<compile_context>
chip_gen: v6e
topology: v6e:2x2x1
jax: 0.10.0
libtpu: 0.0.40
codegen_flags: <defaults>
</compile_context>

<pallas_src>
import functools

import jax
import jax.numpy as jnp
import numpy as np
from jax.experimental import pallas as pl
from jax.experimental.pallas import tpu as pltpu

EPS = 1e-5
LANE = 128
TARGET_TILE_ROWS = 256                 # v6e/v7x MXU-friendly minimum tile height
VMEM_TILE_BUDGET = 24 * 1024 * 1024    # per-call budget used when choosing batch tiles


def _round_up(x, m):
    return (x + m - 1) // m * m


# ------------- fused conv3x3(SAME) + BatchNorm(train stats) + ReLU kernel -------------
def _conv3x3_bn_relu_kernel(x_ref, w_ref, g_ref, beta_ref, o_ref,
                            col_ref, acc_ref, mean_ref, m2_ref,
                            *, nb, h, w, cp, cop, nt):
    """grid = (phase, batch_tile).

    phase 0 : conv -> accumulate batch-norm statistics (Chan parallel combine)
    phase 1 : conv (reused from scratch when nt == 1) -> BN + ReLU -> bf16 store

    x_ref   : (nb, h+2, w+2, cp)  bf16   halo- and lane-padded input tile
    w_ref   : (3, 3*cp, cop)      bf16   taps packed as [kh][kw*cp + c, o]
    g/beta  : (1, cop)            f32
    o_ref   : (nb*h*w, cop)       bf16   lane-dense output tile
    col_ref : (nb, h+2, w, 3*cp)  bf16   kw-shifted im2col slab (scratch)
    acc_ref : (nb*h*w, cop)       f32    conv accumulator (scratch)
    mean/m2 : (1, cop)            f32    running batch stats (persist across grid)
    """
    phase = pl.program_id(0)
    tile = pl.program_id(1)
    mt = nb * h * w
    total = float(nt * mt)

    def _conv_into_acc():
        # im2col: only the 3 kw taps (the sublane-misaligned copies) are materialized;
        # the 3 kh offsets are free row-address offsets consumed by the matmuls below.
        for kw in range(3):
            col_ref[:, :, :, kw * cp:(kw + 1) * cp] = x_ref[:, :, kw:kw + w, :]
        acc_ref[...] = jnp.dot(col_ref[:, 0:h, :, :].reshape(mt, 3 * cp), w_ref[0],
                               preferred_element_type=jnp.float32)
        for kh in (1, 2):
            acc_ref[...] += jnp.dot(col_ref[:, kh:kh + h, :, :].reshape(mt, 3 * cp),
                                    w_ref[kh], preferred_element_type=jnp.float32)

    if nt == 1:
        # Single batch tile: the f32 accumulator persists across the phase axis, so the
        # conv only needs to be computed once (in the stats phase).
        pl.when(phase == 0)(_conv_into_acc)
    else:
        # TODO(synk): for large M, stash the phase-0 conv to HBM (aliased output)
        # instead of recomputing it in the apply phase.
        _conv_into_acc()

    @pl.when(phase == 0)
    def _accumulate_stats():
        conv = acc_ref[...]
        t_mean = jnp.sum(conv, axis=0, keepdims=True) * (1.0 / mt)
        d = conv - t_mean
        t_m2 = jnp.sum(d * d, axis=0, keepdims=True)
        if nt == 1:
            mean_ref[...] = t_mean
            m2_ref[...] = t_m2
        else:
            @pl.when(tile == 0)
            def _():
                mean_ref[...] = t_mean
                m2_ref[...] = t_m2

            @pl.when(tile > 0)
            def _():
                # Chan's parallel mean/M2 combination (robust two-pass-style variance).
                n_a = (tile * mt).astype(jnp.float32)
                n_ab = n_a + mt
                delta = t_mean - mean_ref[...]
                mean_ref[...] = mean_ref[...] + delta * (mt / n_ab)
                m2_ref[...] = m2_ref[...] + t_m2 + delta * delta * (n_a * mt / n_ab)

    @pl.when(phase == 1)
    def _apply_bn_relu():
        var = m2_ref[...] * (1.0 / total)           # biased variance (training-mode BN)
        scale = jax.lax.rsqrt(var + EPS) * g_ref[...]
        shift = beta_ref[...] - mean_ref[...] * scale
        y = acc_ref[...] * scale + shift
        o_ref[...] = jnp.maximum(y, 0.0).astype(o_ref.dtype)


def _vmem_tile_bytes(nb, h, w, cp, cop):
    x_t = nb * (h + 2) * (w + 2) * cp * 2          # bf16 input tile
    col = nb * (h + 2) * w * 3 * cp * 2            # bf16 im2col slab
    acc = nb * h * w * cop * 4                     # f32 conv accumulator
    out = nb * h * w * cop * 2                     # bf16 output tile
    wgt = 3 * 3 * cp * cop * 2
    return 2 * x_t + col + acc + 2 * out + wgt + 4 * cop * 4 + (1 << 14)


def _choose_batch_tile(n, h, w, cp, cop):
    """Largest divisor of n whose tile fits the VMEM budget and stays near TARGET rows."""
    best = None
    for nb in range(1, n + 1):
        if n % nb:
            continue
        if _vmem_tile_bytes(nb, h, w, cp, cop) > VMEM_TILE_BUDGET:
            break
        rows = nb * h * w
        if nb < n and rows % 8:                    # partial-batch blocks must tile (8,128)
            continue
        if best is None or rows <= TARGET_TILE_ROWS:
            best = nb
    # TODO(synk): if a single image exceeds the VMEM budget, add spatial (row) tiling
    # with a 1-row halo; not needed at the shapes exercised here.
    return 1 if best is None else best


def conv3x3_bn_relu(x, cin, w_hwio, gamma, beta):
    """Fused conv3x3(SAME) + BatchNorm2d(train stats) + ReLU.

    x: (n, h, w, cp) bf16, lane-padded NHWC with real channels at [0:cin] and zeros above.
    Returns (out, cout) where out is (n, h, w, cop) bf16 with real channels [0:cout].
    """
    n, h, w, cp = x.shape
    cout = w_hwio.shape[-1]
    cop = _round_up(cout, LANE)
    assert cp % LANE == 0 and cin <= cp

    # Host-side packing (tiny, fuses with the preceding glue op):
    #   * 1-pixel spatial halo of zeros so the kernel needs no border handling,
    #   * weights packed as [kh][kw*cp + c, o] with zero rows for padded input lanes,
    #   * gamma/beta zero-padded so padded output lanes stay exactly zero.
    # The conv bias is intentionally NOT passed: training-mode BN cancels it exactly.
    xp = jnp.pad(x.astype(jnp.bfloat16), ((0, 0), (1, 1), (1, 1), (0, 0)))
    wp = (jnp.zeros((3, 3, cp, cop), jnp.float32)
          .at[:, :, :cin, :cout].set(w_hwio.astype(jnp.float32))
          .reshape(3, 3 * cp, cop).astype(jnp.bfloat16))

    def pad_vec(v):
        return jnp.zeros((1, cop), jnp.float32).at[:, :cout].set(
            v.astype(jnp.float32).reshape(1, cout))

    gp, bp = pad_vec(gamma), pad_vec(beta)

    nb = _choose_batch_tile(n, h, w, cp, cop)
    nt = n // nb
    mt = nb * h * w
    if nt > 1:
        assert mt % 8 == 0

    kernel = functools.partial(_conv3x3_bn_relu_kernel,
                               nb=nb, h=h, w=w, cp=cp, cop=cop, nt=nt)
    vmem_limit = int(min(64 << 20, max(32 << 20, 2 * _vmem_tile_bytes(nb, h, w, cp, cop))))

    out = pl.pallas_call(
        kernel,
        out_shape=jax.ShapeDtypeStruct((n * h * w, cop), jnp.bfloat16),
        grid_spec=pltpu.PrefetchScalarGridSpec(
            num_scalar_prefetch=0,
            grid=(2, nt),                                    # (BN phase, batch tile)
            in_specs=[
                pl.BlockSpec((nb, h + 2, w + 2, cp), lambda p, i: (i, 0, 0, 0)),
                pl.BlockSpec((3, 3 * cp, cop), lambda p, i: (0, 0, 0)),
                pl.BlockSpec((1, cop), lambda p, i: (0, 0)),
                pl.BlockSpec((1, cop), lambda p, i: (0, 0)),
            ],
            # Phase 0 never writes the output; park it on block 0 so no garbage block is
            # flushed and every real block is written back exactly once (in phase 1).
            out_specs=pl.BlockSpec((mt, cop), lambda p, i: (i * p, 0)),
            scratch_shapes=[
                pltpu.VMEM((nb, h + 2, w, 3 * cp), jnp.bfloat16),   # im2col slab
                pltpu.VMEM((mt, cop), jnp.float32),                 # conv accumulator
                pltpu.VMEM((1, cop), jnp.float32),                  # running mean
                pltpu.VMEM((1, cop), jnp.float32),                  # running M2
            ]),
        # Both axes stay "arbitrary": the batch-tile axis is the BN-reduction axis, and
        # the phase axis must run after all stats tiles (see TODO above for a parallel
        # two-kernel split).
        compiler_params=pltpu.CompilerParams(
            dimension_semantics=("arbitrary", "arbitrary"),
            vmem_limit_bytes=vmem_limit),
    )(xp, wp, gp, bp)

    return out.reshape(n, h, w, cop), cout


# ------------------------------ host-side glue (tiny) ------------------------------
def avg_pool2x2(x):
    n, h, w, c = x.shape
    y = x.reshape(n, h // 2, 2, w // 2, 2, c).astype(jnp.float32).mean(axis=(2, 4))
    return y.astype(x.dtype)


def upsample2x_nearest(x):
    return jnp.repeat(jnp.repeat(x, 2, axis=1), 2, axis=2)


def _concat_packed(a, ca, b, cb):
    """Concat the real channels of two lane-padded tensors and re-pad to 128 lanes."""
    c = ca + cb
    cp = _round_up(c, LANE)
    out = jnp.concatenate([a[..., :ca], b[..., :cb]], axis=-1)
    if cp > c:
        out = jnp.pad(out, ((0, 0), (0, 0), (0, 0), (0, cp - c)))
    return out, c


# ------------------------------- Hourglass2D forward -------------------------------
@jax.jit
def hourglass2d_pallas(x_nchw, params):
    x = jnp.transpose(x_nchw, (0, 2, 3, 1))                   # NCHW -> NHWC once
    c = x.shape[-1]
    x = jnp.pad(x, ((0, 0), (0, 0), (0, 0), (0, _round_up(c, LANE) - c)))
    x = x.astype(jnp.bfloat16)                                 # lane-padded bf16 carry

    # Encoder2D: DownBlock2d = conv -> BN -> relu -> avgpool(2)
    skips = [(x, c)]
    for p in params["down"]:
        y, cy = conv3x3_bn_relu(skips[-1][0], skips[-1][1], p["w"], p["g"], p["beta"])
        skips.append((avg_pool2x2(y), cy))

    # Decoder2D: UpBlock2d = upsample(2, nearest) -> conv -> BN -> relu, then concat skip
    out, co = skips.pop()
    for p in params["up"]:
        out = upsample2x_nearest(out)
        out, co = conv3x3_bn_relu(out, co, p["w"], p["g"], p["beta"])
        s, cs = skips.pop()
        out, co = _concat_packed(out, co, s, cs)

    pf = params["final"]
    out, co = conv3x3_bn_relu(out, co, pf["w"], pf["g"], pf["beta"])
    out = out[..., :co].astype(jnp.float32)                    # drop lane padding once
    return jnp.transpose(out, (0, 3, 1, 2))                    # NHWC -> NCHW once


# --------------------------------- pure-JAX reference ---------------------------------
def _conv_bn_relu_ref(x, p):
    o = jax.lax.conv_general_dilated(
        x, p["w"], (1, 1), "SAME",
        dimension_numbers=("NHWC", "HWIO", "NHWC"),
        precision=jax.lax.Precision.HIGHEST) + p["b"]
    mean = o.mean(axis=(0, 1, 2), keepdims=True)
    var = jnp.square(o - mean).mean(axis=(0, 1, 2), keepdims=True)
    o = (o - mean) * jax.lax.rsqrt(var + EPS) * p["g"] + p["beta"]
    return jax.nn.relu(o)


def hourglass2d_ref(x_nchw, params):
    x = jnp.transpose(x_nchw, (0, 2, 3, 1)).astype(jnp.float32)
    skips = [x]
    for p in params["down"]:
        skips.append(avg_pool2x2(_conv_bn_relu_ref(skips[-1], p)))
    out = skips.pop()
    for p in params["up"]:
        out = _conv_bn_relu_ref(upsample2x_nearest(out), p)
        out = jnp.concatenate([out, skips.pop()], axis=-1)
    out = _conv_bn_relu_ref(out, params["final"])
    return jnp.transpose(out, (0, 3, 1, 2))


# ------------------------------------ parameters ------------------------------------
def init_hourglass_params(key, block_expansion, num_blocks, max_features):
    be, mf = block_expansion, max_features
    n_conv_blocks = 2 * num_blocks + 1
    keys = iter(jax.random.split(key, 4 * n_conv_blocks))

    def conv_block(cin, cout):
        kw_, kb, kg, kbeta = next(keys), next(keys), next(keys), next(keys)
        fan_in = float(cin * 9)
        return dict(
            w=jax.random.normal(kw_, (3, 3, cin, cout), jnp.float32) / np.sqrt(fan_in),
            b=0.1 * jax.random.normal(kb, (cout,), jnp.float32),
            g=1.0 + 0.1 * jax.random.normal(kg, (cout,), jnp.float32),
            beta=0.1 * jax.random.normal(kbeta, (cout,), jnp.float32),
        )

    down = []
    for i in range(num_blocks):
        down.append(conv_block(min(mf, be * 2 ** i), min(mf, be * 2 ** (i + 1))))

    up = []
    cout = be
    for i in range(num_blocks):
        cin = (1 if i == 0 else 2) * min(mf, be * 2 ** (num_blocks - i))
        cout = min(mf, be * 2 ** (num_blocks - i - 1))
        up.append(conv_block(cin, cout))

    final = conv_block(cout + be, be)   # in_features = out_features + block_expansion
    return dict(down=down, up=up, final=final)


if __name__ == "__main__":
    key = jax.random.PRNGKey(0)
    kx, kp = jax.random.split(key)

    # Hourglass2D(in_features=4, num_blocks=3, max_features=32) on a (2, 4, 16, 16) input.
    N, C, H, W = 2, 4, 16, 16
    num_blocks, max_features = 3, 32

    x = jax.random.normal(kx, (N, C, H, W), jnp.float32)
    params = init_hourglass_params(kp, C, num_blocks, max_features)

    out = jax.block_until_ready(hourglass2d_pallas(x, params))
    ref = hourglass2d_ref(x, params)

    assert out.shape == (N, C, H, W), out.shape
    np.testing.assert_allclose(np.asarray(out), np.asarray(ref), rtol=5e-2, atol=5e-2)
    print("KERNEL_OK")
</pallas_src>

<mosaic_0001>
module attributes {stable_mosaic.version = 11 : i64} {
  func.func @_conv3x3_bn_relu_kernel(%arg0: i32, %arg1: i32, %arg2: memref<1x18x18x128xbf16, #tpu.memory_space<vmem>>, %arg3: memref<3x384x128xbf16, #tpu.memory_space<vmem>>, %arg4: memref<1x128xf32, #tpu.memory_space<vmem>>, %arg5: memref<1x128xf32, #tpu.memory_space<vmem>>, %arg6: memref<256x128xbf16, #tpu.memory_space<vmem>>, %arg7: memref<1x18x16x384xbf16, #tpu.memory_space<vmem>>, %arg8: memref<256x128xf32, #tpu.memory_space<vmem>>, %arg9: memref<1x128xf32, #tpu.memory_space<vmem>>, %arg10: memref<1x128xf32, #tpu.memory_space<vmem>>) attributes {dimension_semantics = [#tpu.dimension_semantics<arbitrary>, #tpu.dimension_semantics<arbitrary>], iteration_bounds = array<i64: 2, 2>, scalar_prefetch = 0 : i64, scratch_operands = 4 : i64, tpu.core_type = #tpu.core_type<tc>, window_params = [{transform_indices = @transform_0, window_bounds = array<i64: 1, 18, 18, 128>}, {pipeline_mode = #tpu.pipeline_mode<synchronous>, transform_indices = @transform_1, window_bounds = array<i64: 3, 384, 128>}, {pipeline_mode = #tpu.pipeline_mode<synchronous>, transform_indices = @transform_2, window_bounds = array<i64: 1, 128>}, {pipeline_mode = #tpu.pipeline_mode<synchronous>, transform_indices = @transform_3, window_bounds = array<i64: 1, 128>}, {transform_indices = @transform_4, window_bounds = array<i64: 256, 128>}]} {
    %c0 = arith.constant 0 : index
    %c0_0 = arith.constant 0 : index
    %c0_1 = arith.constant 0 : index
    %c0_2 = arith.constant 0 : index
    %0 = vector.load %arg2[%c0, %c0_0, %c0_1, %c0_2] : memref<1x18x18x128xbf16, #tpu.memory_space<vmem>>, vector<1x18x16x128xbf16>
    %c0_3 = arith.constant 0 : index
    %c0_4 = arith.constant 0 : index
    %c0_5 = arith.constant 0 : index
    %c0_6 = arith.constant 0 : index
    %1 = vector.load %arg7[%c0_3, %c0_4, %c0_5, %c0_6] : memref<1x18x16x384xbf16, #tpu.memory_space<vmem>>, vector<1x18x16x128xbf16>
    tpu.vector_store %arg7[%c0_3, %c0_4, %c0_5, %c0_6], %0 {strides = array<i32>} : memref<1x18x16x384xbf16, #tpu.memory_space<vmem>>, vector<1x18x16x128xbf16>,
    %c0_7 = arith.constant 0 : index
    %c0_8 = arith.constant 0 : index
    %c1 = arith.constant 1 : index
    %c0_9 = arith.constant 0 : index
    %2 = vector.load %arg2[%c0_7, %c0_8, %c1, %c0_9] : memref<1x18x18x128xbf16, #tpu.memory_space<vmem>>, vector<1x18x16x128xbf16>
    %c0_10 = arith.constant 0 : index
    %c0_11 = arith.constant 0 : index
    %c0_12 = arith.constant 0 : index
    %c128 = arith.constant 128 : index
    %3 = vector.load %arg7[%c0_10, %c0_11, %c0_12, %c128] : memref<1x18x16x384xbf16, #tpu.memory_space<vmem>>, vector<1x18x16x128xbf16>
    tpu.vector_store %arg7[%c0_10, %c0_11, %c0_12, %c128], %2 {strides = array<i32>} : memref<1x18x16x384xbf16, #tpu.memory_space<vmem>>, vector<1x18x16x128xbf16>,
    %c0_13 = arith.constant 0 : index
    %c0_14 = arith.constant 0 : index
    %c2 = arith.constant 2 : index
    %c0_15 = arith.constant 0 : index
    %4 = vector.load %arg2[%c0_13, %c0_14, %c2, %c0_15] : memref<1x18x18x128xbf16, #tpu.memory_space<vmem>>, vector<1x18x16x128xbf16>
    %c0_16 = arith.constant 0 : index
    %c0_17 = arith.constant 0 : index
    %c0_18 = arith.constant 0 : index
    %c256 = arith.constant 256 : index
    %5 = vector.load %arg7[%c0_16, %c0_17, %c0_18, %c256] : memref<1x18x16x384xbf16, #tpu.memory_space<vmem>>, vector<1x18x16x128xbf16>
    tpu.vector_store %arg7[%c0_16, %c0_17, %c0_18, %c256], %4 {strides = array<i32>} : memref<1x18x16x384xbf16, #tpu.memory_space<vmem>>, vector<1x18x16x128xbf16>,
    %c0_19 = arith.constant 0 : index
    %c0_20 = arith.constant 0 : index
    %c0_21 = arith.constant 0 : index
    %c0_22 = arith.constant 0 : index
    %6 = vector.load %arg7[%c0_19, %c0_20, %c0_21, %c0_22] : memref<1x18x16x384xbf16, #tpu.memory_space<vmem>>, vector<1x16x16x384xbf16>
    %7 = vector.shape_cast %6 : vector<1x16x16x384xbf16> to vector<256x384xbf16>
    %c0_23 = arith.constant 0 : index
    %c0_24 = arith.constant 0 : index
    %c0_25 = arith.constant 0 : index
    %8 = vector.load %arg3[%c0_23, %c0_24, %c0_25] : memref<3x384x128xbf16, #tpu.memory_space<vmem>>, vector<1x384x128xbf16>
    %9 = vector.shape_cast %8 : vector<1x384x128xbf16> to vector<384x128xbf16>
    %cst = arith.constant dense<0.000000e+00> : vector<256x128xf32>
    %10 = tpu.matmul %7, %9, %cst {dimension_numbers = #tpu.dot_dimension_numbers<[1], [0], [0], [1], [0, 0, 1, 1], [], []>} : vector<256x384xbf16>, vector<384x128xbf16>, vector<256x128xf32> -> vector<256x128xf32>
    %c0_26 = arith.constant 0 : index
    %c0_27 = arith.constant 0 : index
    %11 = vector.load %arg8[%c0_26, %c0_27] : memref<256x128xf32, #tpu.memory_space<vmem>>, vector<256x128xf32>
    tpu.vector_store %arg8[%c0_26, %c0_27], %10 {strides = array<i32>} : memref<256x128xf32, #tpu.memory_space<vmem>>, vector<256x128xf32>,
    %c0_28 = arith.constant 0 : index
    %c0_29 = arith.constant 0 : index
    %12 = vector.load %arg8[%c0_28, %c0_29] : memref<256x128xf32, #tpu.memory_space<vmem>>, vector<256x128xf32>
    %c0_30 = arith.constant 0 : index
    %c1_31 = arith.constant 1 : index
    %c0_32 = arith.constant 0 : index
    %c0_33 = arith.constant 0 : index
    %13 = vector.load %arg7[%c0_30, %c1_31, %c0_32, %c0_33] : memref<1x18x16x384xbf16, #tpu.memory_space<vmem>>, vector<1x16x16x384xbf16>
    %14 = vector.shape_cast %13 : vector<1x16x16x384xbf16> to vector<256x384xbf16>
    %c1_34 = arith.constant 1 : index
    %c0_35 = arith.constant 0 : index
    %c0_36 = arith.constant 0 : index
    %15 = vector.load %arg3[%c1_34, %c0_35, %c0_36] : memref<3x384x128xbf16, #tpu.memory_space<vmem>>, vector<1x384x128xbf16>
    %16 = vector.shape_cast %15 : vector<1x384x128xbf16> to vector<384x128xbf16>
    %cst_37 = arith.constant dense<0.000000e+00> : vector<256x128xf32>
    %17 = tpu.matmul %14, %16, %cst_37 {dimension_numbers = #tpu.dot_dimension_numbers<[1], [0], [0], [1], [0, 0, 1, 1], [], []>} : vector<256x384xbf16>, vector<384x128xbf16>, vector<256x128xf32> -> vector<256x128xf32>
    %18 = arith.addf %12, %17 : vector<256x128xf32>
    %c0_38 = arith.constant 0 : index
    %c0_39 = arith.constant 0 : index
    %19 = vector.load %arg8[%c0_38, %c0_39] : memref<256x128xf32, #tpu.memory_space<vmem>>, vector<256x128xf32>
    tpu.vector_store %arg8[%c0_38, %c0_39], %18 {strides = array<i32>} : memref<256x128xf32, #tpu.memory_space<vmem>>, vector<256x128xf32>,
    %c0_40 = arith.constant 0 : index
    %c0_41 = arith.constant 0 : index
    %20 = vector.load %arg8[%c0_40, %c0_41] : memref<256x128xf32, #tpu.memory_space<vmem>>, vector<256x128xf32>
    %c0_42 = arith.constant 0 : index
    %c2_43 = arith.constant 2 : index
    %c0_44 = arith.constant 0 : index
    %c0_45 = arith.constant 0 : index
    %21 = vector.load %arg7[%c0_42, %c2_43, %c0_44, %c0_45] : memref<1x18x16x384xbf16, #tpu.memory_space<vmem>>, vector<1x16x16x384xbf16>
    %22 = vector.shape_cast %21 : vector<1x16x16x384xbf16> to vector<256x384xbf16>
    %c2_46 = arith.constant 2 : index
    %c0_47 = arith.constant 0 : index
    %c0_48 = arith.constant 0 : index
    %23 = vector.load %arg3[%c2_46, %c0_47, %c0_48] : memref<3x384x128xbf16, #tpu.memory_space<vmem>>, vector<1x384x128xbf16>
    %24 = vector.shape_cast %23 : vector<1x384x128xbf16> to vector<384x128xbf16>
    %cst_49 = arith.constant dense<0.000000e+00> : vector<256x128xf32>
    %25 = tpu.matmul %22, %24, %cst_49 {dimension_numbers = #tpu.dot_dimension_numbers<[1], [0], [0], [1], [0, 0, 1, 1], [], []>} : vector<256x384xbf16>, vector<384x128xbf16>, vector<256x128xf32> -> vector<256x128xf32>
    %26 = arith.addf %20, %25 : vector<256x128xf32>
    %c0_50 = arith.constant 0 : index
    %c0_51 = arith.constant 0 : index
    %27 = vector.load %arg8[%c0_50, %c0_51] : memref<256x128xf32, #tpu.memory_space<vmem>>, vector<256x128xf32>
    tpu.vector_store %arg8[%c0_50, %c0_51], %26 {strides = array<i32>} : memref<256x128xf32, #tpu.memory_space<vmem>>, vector<256x128xf32>,
    %c0_i32 = arith.constant 0 : i32
    %28 = arith.cmpi eq, %arg0, %c0_i32 : i32
    %29 = arith.extui %28 : i1 to i32
    %c0_i32_52 = arith.constant 0 : i32
    %30 = arith.cmpi ne, %29, %c0_i32_52 : i32
    scf.if %30 {
      %c0_54 = arith.constant 0 : index
      %c0_55 = arith.constant 0 : index
      %34 = vector.load %arg8[%c0_54, %c0_55] : memref<256x128xf32, #tpu.memory_space<vmem>>, vector<256x128xf32>
      %cst_56 = arith.constant dense<0.000000e+00> : vector<128xf32>
      %35 = vector.multi_reduction <add>, %34, %cst_56 [0] : vector<256x128xf32> to vector<128xf32>
      %36 = vector.shape_cast %35 : vector<128xf32> to vector<1x128xf32>
      %cst_57 = arith.constant 3.906250e-03 : f32
      %37 = vector.broadcast %cst_57 : f32 to vector<1x128xf32>
      %38 = arith.mulf %36, %37 : vector<1x128xf32>
      %39 = vector.broadcast %38 : vector<1x128xf32> to vector<256x128xf32>
      %40 = arith.subf %34, %39 : vector<256x128xf32>
      %41 = arith.mulf %40, %40 : vector<256x128xf32>
      %cst_58 = arith.constant dense<0.000000e+00> : vector<128xf32>
      %42 = vector.multi_reduction <add>, %41, %cst_58 [0] : vector<256x128xf32> to vector<128xf32>
      %43 = vector.shape_cast %42 : vector<128xf32> to vector<1x128xf32>
      %c0_i32_59 = arith.constant 0 : i32
      %44 = arith.cmpi eq, %arg1, %c0_i32_59 : i32
      %45 = arith.extui %44 : i1 to i32
      %c0_i32_60 = arith.constant 0 : i32
      %46 = arith.cmpi ne, %45, %c0_i32_60 : i32
      scf.if %46 {
        %c0_63 = arith.constant 0 : index
        %c0_64 = arith.constant 0 : index
        %50 = vector.load %arg9[%c0_63, %c0_64] : memref<1x128xf32, #tpu.memory_space<vmem>>, vector<1x128xf32>
        tpu.vector_store %arg9[%c0_63, %c0_64], %38 {strides = array<i32>} : memref<1x128xf32, #tpu.memory_space<vmem>>, vector<1x128xf32>,
        %c0_65 = arith.constant 0 : index
        %c0_66 = arith.constant 0 : index
        %51 = vector.load %arg10[%c0_65, %c0_66] : memref<1x128xf32, #tpu.memory_space<vmem>>, vector<1x128xf32>
        tpu.vector_store %arg10[%c0_65, %c0_66], %43 {strides = array<i32>} : memref<1x128xf32, #tpu.memory_space<vmem>>, vector<1x128xf32>,
      } else {
      }
      %c0_i32_61 = arith.constant 0 : i32
      %47 = arith.cmpi sgt, %arg1, %c0_i32_61 : i32
      %48 = arith.extui %47 : i1 to i32
      %c0_i32_62 = arith.constant 0 : i32
      %49 = arith.cmpi ne, %48, %c0_i32_62 : i32
      scf.if %49 {
        %c256_i32 = arith.constant 256 : i32
        %50 = arith.muli %arg1, %c256_i32 : i32
        %51 = arith.sitofp %50 : i32 to f32
        %cst_63 = arith.constant 2.560000e+02 : f32
        %52 = arith.addf %51, %cst_63 : f32
        %c0_64 = arith.constant 0 : index
        %c0_65 = arith.constant 0 : index
        %53 = vector.load %arg9[%c0_64, %c0_65] : memref<1x128xf32, #tpu.memory_space<vmem>>, vector<1x128xf32>
        %54 = arith.subf %38, %53 : vector<1x128xf32>
        %c0_66 = arith.constant 0 : index
        %c0_67 = arith.constant 0 : index
        %55 = vector.load %arg9[%c0_66, %c0_67] : memref<1x128xf32, #tpu.memory_space<vmem>>, vector<1x128xf32>
        %cst_68 = arith.constant 2.560000e+02 : f32
        %56 = arith.divf %cst_68, %52 : f32
        %57 = vector.broadcast %56 : f32 to vector<1x128xf32>
        %58 = arith.mulf %54, %57 : vector<1x128xf32>
        %59 = arith.addf %55, %58 : vector<1x128xf32>
        %c0_69 = arith.constant 0 : index
        %c0_70 = arith.constant 0 : index
        %60 = vector.load %arg9[%c0_69, %c0_70] : memref<1x128xf32, #tpu.memory_space<vmem>>, vector<1x128xf32>
        tpu.vector_store %arg9[%c0_69, %c0_70], %59 {strides = array<i32>} : memref<1x128xf32, #tpu.memory_space<vmem>>, vector<1x128xf32>,
        %c0_71 = arith.constant 0 : index
        %c0_72 = arith.constant 0 : index
        %61 = vector.load %arg10[%c0_71, %c0_72] : memref<1x128xf32, #tpu.memory_space<vmem>>, vector<1x128xf32>
        %62 = arith.addf %61, %43 : vector<1x128xf32>
        %63 = arith.mulf %54, %54 : vector<1x128xf32>
        %cst_73 = arith.constant 2.560000e+02 : f32
        %64 = arith.mulf %51, %cst_73 : f32
        %65 = arith.divf %64, %52 : f32
        %66 = vector.broadcast %65 : f32 to vector<1x128xf32>
        %67 = arith.mulf %63, %66 : vector<1x128xf32>
        %68 = arith.addf %62, %67 : vector<1x128xf32>
        %c0_74 = arith.constant 0 : index
        %c0_75 = arith.constant 0 : index
        %69 = vector.load %arg10[%c0_74, %c0_75] : memref<1x128xf32, #tpu.memory_space<vmem>>, vector<1x128xf32>
        tpu.vector_store %arg10[%c0_74, %c0_75], %68 {strides = array<i32>} : memref<1x128xf32, #tpu.memory_space<vmem>>, vector<1x128xf32>,
      } else {
      }
    } else {
    }
    %c1_i32 = arith.constant 1 : i32
    %31 = arith.cmpi eq, %arg0, %c1_i32 : i32
    %32 = arith.extui %31 : i1 to i32
    %c0_i32_53 = arith.constant 0 : i32
    %33 = arith.cmpi ne, %32, %c0_i32_53 : i32
    scf.if %33 {
      %c0_54 = arith.constant 0 : index
      %c0_55 = arith.constant 0 : index
      %34 = vector.load %arg10[%c0_54, %c0_55] : memref<1x128xf32, #tpu.memory_space<vmem>>, vector<1x128xf32>
      %cst_56 = arith.constant 0.001953125 : f32
      %35 = vector.broadcast %cst_56 : f32 to vector<1x128xf32>
      %36 = arith.mulf %34, %35 : vector<1x128xf32>
      %cst_57 = arith.constant 9.99999974E-6 : f32
      %37 = vector.broadcast %cst_57 : f32 to vector<1x128xf32>
      %38 = arith.addf %36, %37 : vector<1x128xf32>
      %39 = math.rsqrt %38 : vector<1x128xf32>
      %c0_58 = arith.constant 0 : index
      %c0_59 = arith.constant 0 : index
      %40 = vector.load %arg4[%c0_58, %c0_59] : memref<1x128xf32, #tpu.memory_space<vmem>>, vector<1x128xf32>
      %41 = arith.mulf %39, %40 : vector<1x128xf32>
      %c0_60 = arith.constant 0 : index
      %c0_61 = arith.constant 0 : index
      %42 = vector.load %arg5[%c0_60, %c0_61] : memref<1x128xf32, #tpu.memory_space<vmem>>, vector<1x128xf32>
      %c0_62 = arith.constant 0 : index
      %c0_63 = arith.constant 0 : index
      %43 = vector.load %arg9[%c0_62, %c0_63] : memref<1x128xf32, #tpu.memory_space<vmem>>, vector<1x128xf32>
      %44 = arith.mulf %43, %41 : vector<1x128xf32>
      %45 = arith.subf %42, %44 : vector<1x128xf32>
      %c0_64 = arith.constant 0 : index
      %c0_65 = arith.constant 0 : index
      %46 = vector.load %arg8[%c0_64, %c0_65] : memref<256x128xf32, #tpu.memory_space<vmem>>, vector<256x128xf32>
      %47 = vector.broadcast %41 : vector<1x128xf32> to vector<256x128xf32>
      %48 = arith.mulf %46, %47 : vector<256x128xf32>
      %49 = vector.broadcast %45 : vector<1x128xf32> to vector<256x128xf32>
      %50 = arith.addf %48, %49 : vector<256x128xf32>
      %cst_66 = arith.constant 0.000000e+00 : f32
      %51 = vector.broadcast %cst_66 : f32 to vector<256x128xf32>
      %52 = arith.maximumf %50, %51 : vector<256x128xf32>
      %53 = arith.truncf %52 : vector<256x128xf32> to vector<256x128xbf16>
      %c0_67 = arith.constant 0 : index
      %c0_68 = arith.constant 0 : index
      %54 = vector.load %arg6[%c0_67, %c0_68] : memref<256x128xbf16, #tpu.memory_space<vmem>>, vector<256x128xbf16>
      tpu.vector_store %arg6[%c0_67, %c0_68], %53 {strides = array<i32>} : memref<256x128xbf16, #tpu.memory_space<vmem>>, vector<256x128xbf16>,
    } else {
    }
    return
  }
  func.func @transform_0(%arg0: i32, %arg1: i32) -> (i32, i32, i32, i32) {
    %c0_i32 = arith.constant 0 : i32
    %c0_i32_0 = arith.constant 0 : i32
    %c0_i32_1 = arith.constant 0 : i32
    %c0_i32_2 = arith.constant 0 : i32
    return %arg1, %c0_i32, %c0_i32_0, %c0_i32_1 : i32, i32, i32, i32
  }
  func.func @transform_1(%arg0: i32, %arg1: i32) -> (i32, i32, i32) {
    %c0_i32 = arith.constant 0 : i32
    %c0_i32_0 = arith.constant 0 : i32
    %c0_i32_1 = arith.constant 0 : i32
    %c0_i32_2 = arith.constant 0 : i32
    return %c0_i32, %c0_i32_0, %c0_i32_1 : i32, i32, i32
  }
  func.func @transform_2(%arg0: i32, %arg1: i32) -> (i32, i32) {
    %c0_i32 = arith.constant 0 : i32
    %c0_i32_0 = arith.constant 0 : i32
    %c0_i32_1 = arith.constant 0 : i32
    return %c0_i32, %c0_i32_0 : i32, i32
  }
  func.func @transform_3(%arg0: i32, %arg1: i32) -> (i32, i32) {
    %c0_i32 = arith.constant 0 : i32
    %c0_i32_0 = arith.constant 0 : i32
    %c0_i32_1 = arith.constant 0 : i32
    return %c0_i32, %c0_i32_0 : i32, i32
  }
  func.func @transform_4(%arg0: i32, %arg1: i32) -> (i32, i32) {
    %0 = arith.muli %arg1, %arg0 : i32
    %c0_i32 = arith.constant 0 : i32
    %c0_i32_0 = arith.constant 0 : i32
    return %0, %c0_i32 : i32, i32
  }
}

module attributes {stable_mosaic.version = 11 : i64} {
  func.func @_conv3x3_bn_relu_kernel(%arg0: i32, %arg1: i32, %arg2: memref<2x10x10x128xbf16, #tpu.memory_space<vmem>>, %arg3: memref<3x384x128xbf16, #tpu.memory_space<vmem>>, %arg4: memref<1x128xf32, #tpu.memory_space<vmem>>, %arg5: memref<1x128xf32, #tpu.memory_space<vmem>>, %arg6: memref<128x128xbf16, #tpu.memory_space<vmem>>, %arg7: memref<2x10x8x384xbf16, #tpu.memory_space<vmem>>, %arg8: memref<128x128xf32, #tpu.memory_space<vmem>>, %arg9: memref<1x128xf32, #tpu.memory_space<vmem>>, %arg10: memref<1x128xf32, #tpu.memory_space<vmem>>) attributes {dimension_semantics = [#tpu.dimension_semantics<arbitrary>, #tpu.dimension_semantics<arbitrary>], iteration_bounds = array<i64: 2, 1>, scalar_prefetch = 0 : i64, scratch_operands = 4 : i64, tpu.core_type = #tpu.core_type<tc>, window_params = [{transform_indices = @transform_0, window_bounds = array<i64: 2, 10, 10, 128>}, {pipeline_mode = #tpu.pipeline_mode<synchronous>, transform_indices = @transform_1, window_bounds = array<i64: 3, 384, 128>}, {pipeline_mode = #tpu.pipeline_mode<synchronous>, transform_indices = @transform_2, window_bounds = array<i64: 1, 128>}, {pipeline_mode = #tpu.pipeline_mode<synchronous>, transform_indices = @transform_3, window_bounds = array<i64: 1, 128>}, {transform_indices = @transform_4, window_bounds = array<i64: 128, 128>}]} {
    %c0_i32 = arith.constant 0 : i32
    %0 = arith.cmpi eq, %arg0, %c0_i32 : i32
    %1 = arith.extui %0 : i1 to i32
    %c0_i32_0 = arith.constant 0 : i32
    %2 = arith.cmpi ne, %1, %c0_i32_0 : i32
    scf.if %2 {
      %c0 = arith.constant 0 : index
      %c0_4 = arith.constant 0 : index
      %c0_5 = arith.constant 0 : index
      %c0_6 = arith.constant 0 : index
      %9 = vector.load %arg2[%c0, %c0_4, %c0_5, %c0_6] : memref<2x10x10x128xbf16, #tpu.memory_space<vmem>>, vector<2x10x8x128xbf16>
      %c0_7 = arith.constant 0 : index
      %c0_8 = arith.constant 0 : index
      %c0_9 = arith.constant 0 : index
      %c0_10 = arith.constant 0 : index
      %10 = vector.load %arg7[%c0_7, %c0_8, %c0_9, %c0_10] : memref<2x10x8x384xbf16, #tpu.memory_space<vmem>>, vector<2x10x8x128xbf16>
      tpu.vector_store %arg7[%c0_7, %c0_8, %c0_9, %c0_10], %9 {strides = array<i32>} : memref<2x10x8x384xbf16, #tpu.memory_space<vmem>>, vector<2x10x8x128xbf16>,
      %c0_11 = arith.constant 0 : index
      %c0_12 = arith.constant 0 : index
      %c1 = arith.constant 1 : index
      %c0_13 = arith.constant 0 : index
      %11 = vector.load %arg2[%c0_11, %c0_12, %c1, %c0_13] : memref<2x10x10x128xbf16, #tpu.memory_space<vmem>>, vector<2x10x8x128xbf16>
      %c0_14 = arith.constant 0 : index
      %c0_15 = arith.constant 0 : index
      %c0_16 = arith.constant 0 : index
      %c128 = arith.constant 128 : index
      %12 = vector.load %arg7[%c0_14, %c0_15, %c0_16, %c128] : memref<2x10x8x384xbf16, #tpu.memory_space<vmem>>, vector<2x10x8x128xbf16>
      tpu.vector_store %arg7[%c0_14, %c0_15, %c0_16, %c128], %11 {strides = array<i32>} : memref<2x10x8x384xbf16, #tpu.memory_space<vmem>>, vector<2x10x8x128xbf16>,
      %c0_17 = arith.constant 0 : index
      %c0_18 = arith.constant 0 : index
      %c2 = arith.constant 2 : index
      %c0_19 = arith.constant 0 : index
      %13 = vector.load %arg2[%c0_17, %c0_18, %c2, %c0_19] : memref<2x10x10x128xbf16, #tpu.memory_space<vmem>>, vector<2x10x8x128xbf16>
      %c0_20 = arith.constant 0 : index
      %c0_21 = arith.constant 0 : index
      %c0_22 = arith.constant 0 : index
      %c256 = arith.constant 256 : index
      %14 = vector.load %arg7[%c0_20, %c0_21, %c0_22, %c256] : memref<2x10x8x384xbf16, #tpu.memory_space<vmem>>, vector<2x10x8x128xbf16>
      tpu.vector_store %arg7[%c0_20, %c0_21, %c0_22, %c256], %13 {strides = array<i32>} : memref<2x10x8x384xbf16, #tpu.memory_space<vmem>>, vector<2x10x8x128xbf16>,
      %c0_23 = arith.constant 0 : index
      %c0_24 = arith.constant 0 : index
      %c0_25 = arith.constant 0 : index
      %c0_26 = arith.constant 0 : index
      %15 = vector.load %arg7[%c0_23, %c0_24, %c0_25, %c0_26] : memref<2x10x8x384xbf16, #tpu.memory_space<vmem>>, vector<2x8x8x384xbf16>
      %16 = vector.shape_cast %15 : vector<2x8x8x384xbf16> to vector<128x384xbf16>
      %c0_27 = arith.constant 0 : index
      %c0_28 = arith.constant 0 : index
      %c0_29 = arith.constant 0 : index
      %17 = vector.load %arg3[%c0_27, %c0_28, %c0_29] : memref<3x384x128xbf16, #tpu.memory_space<vmem>>, vector<1x384x128xbf16>
      %18 = vector.shape_cast %17 : vector<1x384x128xbf16> to vector<384x128xbf16>
      %cst = arith.constant dense<0.000000e+00> : vector<128x128xf32>
      %19 = tpu.matmul %16, %18, %cst {dimension_numbers = #tpu.dot_dimension_numbers<[1], [0], [0], [1], [0, 0, 1, 1], [], []>} : vector<128x384xbf16>, vector<384x128xbf16>, vector<128x128xf32> -> vector<128x128xf32>
      %c0_30 = arith.constant 0 : index
      %c0_31 = arith.constant 0 : index
      %20 = vector.load %arg8[%c0_30, %c0_31] : memref<128x128xf32, #tpu.memory_space<vmem>>, vector<128x128xf32>
      tpu.vector_store %arg8[%c0_30, %c0_31], %19 {strides = array<i32>} : memref<128x128xf32, #tpu.memory_space<vmem>>, vector<128x128xf32>,
      %c0_32 = arith.constant 0 : index
      %c0_33 = arith.constant 0 : index
      %21 = vector.load %arg8[%c0_32, %c0_33] : memref<128x128xf32, #tpu.memory_space<vmem>>, vector<128x128xf32>
      %c0_34 = arith.constant 0 : index
      %c1_35 = arith.constant 1 : index
      %c0_36 = arith.constant 0 : index
      %c0_37 = arith.constant 0 : index
      %22 = vector.load %arg7[%c0_34, %c1_35, %c0_36, %c0_37] : memref<2x10x8x384xbf16, #tpu.memory_space<vmem>>, vector<2x8x8x384xbf16>
      %23 = vector.shape_cast %22 : vector<2x8x8x384xbf16> to vector<128x384xbf16>
      %c1_38 = arith.constant 1 : index
      %c0_39 = arith.constant 0 : index
      %c0_40 = arith.constant 0 : index
      %24 = vector.load %arg3[%c1_38, %c0_39, %c0_40] : memref<3x384x128xbf16, #tpu.memory_space<vmem>>, vector<1x384x128xbf16>
      %25 = vector.shape_cast %24 : vector<1x384x128xbf16> to vector<384x128xbf16>
      %cst_41 = arith.constant dense<0.000000e+00> : vector<128x128xf32>
      %26 = tpu.matmul %23, %25, %cst_41 {dimension_numbers = #tpu.dot_dimension_numbers<[1], [0], [0], [1], [0, 0, 1, 1], [], []>} : vector<128x384xbf16>, vector<384x128xbf16>, vector<128x128xf32> -> vector<128x128xf32>
      %27 = arith.addf %21, %26 : vector<128x128xf32>
      %c0_42 = arith.constant 0 : index
      %c0_43 = arith.constant 0 : index
      %28 = vector.load %arg8[%c0_42, %c0_43] : memref<128x128xf32, #tpu.memory_space<vmem>>, vector<128x128xf32>
      tpu.vector_store %arg8[%c0_42, %c0_43], %27 {strides = array<i32>} : memref<128x128xf32, #tpu.memory_space<vmem>>, vector<128x128xf32>,
      %c0_44 = arith.constant 0 : index
      %c0_45 = arith.constant 0 : index
      %29 = vector.load %arg8[%c0_44, %c0_45] : memref<128x128xf32, #tpu.memory_space<vmem>>, vector<128x128xf32>
      %c0_46 = arith.constant 0 : index
      %c2_47 = arith.constant 2 : index
      %c0_48 = arith.constant 0 : index
      %c0_49 = arith.constant 0 : index
      %30 = vector.load %arg7[%c0_46, %c2_47, %c0_48, %c0_49] : memref<2x10x8x384xbf16, #tpu.memory_space<vmem>>, vector<2x8x8x384xbf16>
      %31 = vector.shape_cast %30 : vector<2x8x8x384xbf16> to vector<128x384xbf16>
      %c2_50 = arith.constant 2 : index
      %c0_51 = arith.constant 0 : index
      %c0_52 = arith.constant 0 : index
      %32 = vector.load %arg3[%c2_50, %c0_51, %c0_52] : memref<3x384x128xbf16, #tpu.memory_space<vmem>>, vector<1x384x128xbf16>
      %33 = vector.shape_cast %32 : vector<1x384x128xbf16> to vector<384x128xbf16>
      %cst_53 = arith.constant dense<0.000000e+00> : vector<128x128xf32>
      %34 = tpu.matmul %31, %33, %cst_53 {dimension_numbers = #tpu.dot_dimension_numbers<[1], [0], [0], [1], [0, 0, 1, 1], [], []>} : vector<128x384xbf16>, vector<384x128xbf16>, vector<128x128xf32> -> vector<128x128xf32>
      %35 = arith.addf %29, %34 : vector<128x128xf32>
      %c0_54 = arith.constant 0 : index
      %c0_55 = arith.constant 0 : index
      %36 = vector.load %arg8[%c0_54, %c0_55] : memref<128x128xf32, #tpu.memory_space<vmem>>, vector<128x128xf32>
      tpu.vector_store %arg8[%c0_54, %c0_55], %35 {strides = array<i32>} : memref<128x128xf32, #tpu.memory_space<vmem>>, vector<128x128xf32>,
    } else {
    }
    %c0_i32_1 = arith.constant 0 : i32
    %3 = arith.cmpi eq, %arg0, %c0_i32_1 : i32
    %4 = arith.extui %3 : i1 to i32
    %c0_i32_2 = arith.constant 0 : i32
    %5 = arith.cmpi ne, %4, %c0_i32_2 : i32
    scf.if %5 {
      %c0 = arith.constant 0 : index
      %c0_4 = arith.constant 0 : index
      %9 = vector.load %arg8[%c0, %c0_4] : memref<128x128xf32, #tpu.memory_space<vmem>>, vector<128x128xf32>
      %cst = arith.constant dense<0.000000e+00> : vector<128xf32>
      %10 = vector.multi_reduction <add>, %9, %cst [0] : vector<128x128xf32> to vector<128xf32>
      %11 = vector.shape_cast %10 : vector<128xf32> to vector<1x128xf32>
      %cst_5 = arith.constant 7.812500e-03 : f32
      %12 = vector.broadcast %cst_5 : f32 to vector<1x128xf32>
      %13 = arith.mulf %11, %12 : vector<1x128xf32>
      %14 = vector.broadcast %13 : vector<1x128xf32> to vector<128x128xf32>
      %15 = arith.subf %9, %14 : vector<128x128xf32>
      %16 = arith.mulf %15, %15 : vector<128x128xf32>
      %cst_6 = arith.constant dense<0.000000e+00> : vector<128xf32>
      %17 = vector.multi_reduction <add>, %16, %cst_6 [0] : vector<128x128xf32> to vector<128xf32>
      %18 = vector.shape_cast %17 : vector<128xf32> to vector<1x128xf32>
      %c0_7 = arith.constant 0 : index
      %c0_8 = arith.constant 0 : index
      %19 = vector.load %arg9[%c0_7, %c0_8] : memref<1x128xf32, #tpu.memory_space<vmem>>, vector<1x128xf32>
      tpu.vector_store %arg9[%c0_7, %c0_8], %13 {strides = array<i32>} : memref<1x128xf32, #tpu.memory_space<vmem>>, vector<1x128xf32>,
      %c0_9 = arith.constant 0 : index
      %c0_10 = arith.constant 0 : index
      %20 = vector.load %arg10[%c0_9, %c0_10] : memref<1x128xf32, #tpu.memory_space<vmem>>, vector<1x128xf32>
      tpu.vector_store %arg10[%c0_9, %c0_10], %18 {strides = array<i32>} : memref<1x128xf32, #tpu.memory_space<vmem>>, vector<1x128xf32>,
    } else {
    }
    %c1_i32 = arith.constant 1 : i32
    %6 = arith.cmpi eq, %arg0, %c1_i32 : i32
    %7 = arith.extui %6 : i1 to i32
    %c0_i32_3 = arith.constant 0 : i32
    %8 = arith.cmpi ne, %7, %c0_i32_3 : i32
    scf.if %8 {
      %c0 = arith.constant 0 : index
      %c0_4 = arith.constant 0 : index
      %9 = vector.load %arg10[%c0, %c0_4] : memref<1x128xf32, #tpu.memory_space<vmem>>, vector<1x128xf32>
      %cst = arith.constant 7.812500e-03 : f32
      %10 = vector.broadcast %cst : f32 to vector<1x128xf32>
      %11 = arith.mulf %9, %10 : vector<1x128xf32>
      %cst_5 = arith.constant 9.99999974E-6 : f32
      %12 = vector.broadcast %cst_5 : f32 to vector<1x128xf32>
      %13 = arith.addf %11, %12 : vector<1x128xf32>
      %14 = math.rsqrt %13 : vector<1x128xf32>
      %c0_6 = arith.constant 0 : index
      %c0_7 = arith.constant 0 : index
      %15 = vector.load %arg4[%c0_6, %c0_7] : memref<1x128xf32, #tpu.memory_space<vmem>>, vector<1x128xf32>
      %16 = arith.mulf %14, %15 : vector<1x128xf32>
      %c0_8 = arith.constant 0 : index
      %c0_9 = arith.constant 0 : index
      %17 = vector.load %arg5[%c0_8, %c0_9] : memref<1x128xf32, #tpu.memory_space<vmem>>, vector<1x128xf32>
      %c0_10 = arith.constant 0 : index
      %c0_11 = arith.constant 0 : index
      %18 = vector.load %arg9[%c0_10, %c0_11] : memref<1x128xf32, #tpu.memory_space<vmem>>, vector<1x128xf32>
      %19 = arith.mulf %18, %16 : vector<1x128xf32>
      %20 = arith.subf %17, %19 : vector<1x128xf32>
      %c0_12 = arith.constant 0 : index
      %c0_13 = arith.constant 0 : index
      %21 = vector.load %arg8[%c0_12, %c0_13] : memref<128x128xf32, #tpu.memory_space<vmem>>, vector<128x128xf32>
      %22 = vector.broadcast %16 : vector<1x128xf32> to vector<128x128xf32>
      %23 = arith.mulf %21, %22 : vector<128x128xf32>
      %24 = vector.broadcast %20 : vector<1x128xf32> to vector<128x128xf32>
      %25 = arith.addf %23, %24 : vector<128x128xf32>
      %cst_14 = arith.constant 0.000000e+00 : f32
      %26 = vector.broadcast %cst_14 : f32 to vector<128x128xf32>
      %27 = arith.maximumf %25, %26 : vector<128x128xf32>
      %28 = arith.truncf %27 : vector<128x128xf32> to vector<128x128xbf16>
      %c0_15 = arith.constant 0 : index
      %c0_16 = arith.constant 0 : index
      %29 = vector.load %arg6[%c0_15, %c0_16] : memref<128x128xbf16, #tpu.memory_space<vmem>>, vector<128x128xbf16>
      tpu.vector_store %arg6[%c0_15, %c0_16], %28 {strides = array<i32>} : memref<128x128xbf16, #tpu.memory_space<vmem>>, vector<128x128xbf16>,
    } else {
    }
    return
  }
  func.func @transform_0(%arg0: i32, %arg1: i32) -> (i32, i32, i32, i32) {
    %c0_i32 = arith.constant 0 : i32
    %c0_i32_0 = arith.constant 0 : i32
    %c0_i32_1 = arith.constant 0 : i32
    %c0_i32_2 = arith.constant 0 : i32
    return %arg1, %c0_i32, %c0_i32_0, %c0_i32_1 : i32, i32, i32, i32
  }
  func.func @transform_1(%arg0: i32, %arg1: i32) -> (i32, i32, i32) {
    %c0_i32 = arith.constant 0 : i32
    %c0_i32_0 = arith.constant 0 : i32
    %c0_i32_1 = arith.constant 0 : i32
    %c0_i32_2 = arith.constant 0 : i32
    return %c0_i32, %c0_i32_0, %c0_i32_1 : i32, i32, i32
  }
  func.func @transform_2(%arg0: i32, %arg1: i32) -> (i32, i32) {
    %c0_i32 = arith.constant 0 : i32
    %c0_i32_0 = arith.constant 0 : i32
    %c0_i32_1 = arith.constant 0 : i32
    return %c0_i32, %c0_i32_0 : i32, i32
  }
  func.func @transform_3(%arg0: i32, %arg1: i32) -> (i32, i32) {
    %c0_i32 = arith.constant 0 : i32
    %c0_i32_0 = arith.constant 0 : i32
    %c0_i32_1 = arith.constant 0 : i32
    return %c0_i32, %c0_i32_0 : i32, i32
  }
  func.func @transform_4(%arg0: i32, %arg1: i32) -> (i32, i32) {
    %0 = arith.muli %arg1, %arg0 : i32
    %c0_i32 = arith.constant 0 : i32
    %c0_i32_0 = arith.constant 0 : i32
    return %0, %c0_i32 : i32, i32
  }
}

module attributes {stable_mosaic.version = 11 : i64} {
  func.func @_conv3x3_bn_relu_kernel(%arg0: i32, %arg1: i32, %arg2: memref<2x6x6x128xbf16, #tpu.memory_space<vmem>>, %arg3: memref<3x384x128xbf16, #tpu.memory_space<vmem>>, %arg4: memref<1x128xf32, #tpu.memory_space<vmem>>, %arg5: memref<1x128xf32, #tpu.memory_space<vmem>>, %arg6: memref<32x128xbf16, #tpu.memory_space<vmem>>, %arg7: memref<2x6x4x384xbf16, #tpu.memory_space<vmem>>, %arg8: memref<32x128xf32, #tpu.memory_space<vmem>>, %arg9: memref<1x128xf32, #tpu.memory_space<vmem>>, %arg10: memref<1x128xf32, #tpu.memory_space<vmem>>) attributes {dimension_semantics = [#tpu.dimension_semantics<arbitrary>, #tpu.dimension_semantics<arbitrary>], iteration_bounds = array<i64: 2, 1>, scalar_prefetch = 0 : i64, scratch_operands = 4 : i64, tpu.core_type = #tpu.core_type<tc>, window_params = [{transform_indices = @transform_0, window_bounds = array<i64: 2, 6, 6, 128>}, {pipeline_mode = #tpu.pipeline_mode<synchronous>, transform_indices = @transform_1, window_bounds = array<i64: 3, 384, 128>}, {pipeline_mode = #tpu.pipeline_mode<synchronous>, transform_indices = @transform_2, window_bounds = array<i64: 1, 128>}, {pipeline_mode = #tpu.pipeline_mode<synchronous>, transform_indices = @transform_3, window_bounds = array<i64: 1, 128>}, {transform_indices = @transform_4, window_bounds = array<i64: 32, 128>}]} {
    %c0_i32 = arith.constant 0 : i32
    %0 = arith.cmpi eq, %arg0, %c0_i32 : i32
    %1 = arith.extui %0 : i1 to i32
    %c0_i32_0 = arith.constant 0 : i32
    %2 = arith.cmpi ne, %1, %c0_i32_0 : i32
    scf.if %2 {
      %c0 = arith.constant 0 : index
      %c0_4 = arith.constant 0 : index
      %c0_5 = arith.constant 0 : index
      %c0_6 = arith.constant 0 : index
      %9 = vector.load %arg2[%c0, %c0_4, %c0_5, %c0_6] : memref<2x6x6x128xbf16, #tpu.memory_space<vmem>>, vector<2x6x4x128xbf16>
      %c0_7 = arith.constant 0 : index
      %c0_8 = arith.constant 0 : index
      %c0_9 = arith.constant 0 : index
      %c0_10 = arith.constant 0 : index
      %10 = vector.load %arg7[%c0_7, %c0_8, %c0_9, %c0_10] : memref<2x6x4x384xbf16, #tpu.memory_space<vmem>>, vector<2x6x4x128xbf16>
      tpu.vector_store %arg7[%c0_7, %c0_8, %c0_9, %c0_10], %9 {strides = array<i32>} : memref<2x6x4x384xbf16, #tpu.memory_space<vmem>>, vector<2x6x4x128xbf16>,
      %c0_11 = arith.constant 0 : index
      %c0_12 = arith.constant 0 : index
      %c1 = arith.constant 1 : index
      %c0_13 = arith.constant 0 : index
      %11 = vector.load %arg2[%c0_11, %c0_12, %c1, %c0_13] : memref<2x6x6x128xbf16, #tpu.memory_space<vmem>>, vector<2x6x4x128xbf16>
      %c0_14 = arith.constant 0 : index
      %c0_15 = arith.constant 0 : index
      %c0_16 = arith.constant 0 : index
      %c128 = arith.constant 128 : index
      %12 = vector.load %arg7[%c0_14, %c0_15, %c0_16, %c128] : memref<2x6x4x384xbf16, #tpu.memory_space<vmem>>, vector<2x6x4x128xbf16>
      tpu.vector_store %arg7[%c0_14, %c0_15, %c0_16, %c128], %11 {strides = array<i32>} : memref<2x6x4x384xbf16, #tpu.memory_space<vmem>>, vector<2x6x4x128xbf16>,
      %c0_17 = arith.constant 0 : index
      %c0_18 = arith.constant 0 : index
      %c2 = arith.constant 2 : index
      %c0_19 = arith.constant 0 : index
      %13 = vector.load %arg2[%c0_17, %c0_18, %c2, %c0_19] : memref<2x6x6x128xbf16, #tpu.memory_space<vmem>>, vector<2x6x4x128xbf16>
      %c0_20 = arith.constant 0 : index
      %c0_21 = arith.constant 0 : index
      %c0_22 = arith.constant 0 : index
      %c256 = arith.constant 256 : index
      %14 = vector.load %arg7[%c0_20, %c0_21, %c0_22, %c256] : memref<2x6x4x384xbf16, #tpu.memory_space<vmem>>, vector<2x6x4x128xbf16>
      tpu.vector_store %arg7[%c0_20, %c0_21, %c0_22, %c256], %13 {strides = array<i32>} : memref<2x6x4x384xbf16, #tpu.memory_space<vmem>>, vector<2x6x4x128xbf16>,
      %c0_23 = arith.constant 0 : index
      %c0_24 = arith.constant 0 : index
      %c0_25 = arith.constant 0 : index
      %c0_26 = arith.constant 0 : index
      %15 = vector.load %arg7[%c0_23, %c0_24, %c0_25, %c0_26] : memref<2x6x4x384xbf16, #tpu.memory_space<vmem>>, vector<2x4x4x384xbf16>
      %16 = vector.shape_cast %15 : vector<2x4x4x384xbf16> to vector<32x384xbf16>
      %c0_27 = arith.constant 0 : index
      %c0_28 = arith.constant 0 : index
      %c0_29 = arith.constant 0 : index
      %17 = vector.load %arg3[%c0_27, %c0_28, %c0_29] : memref<3x384x128xbf16, #tpu.memory_space<vmem>>, vector<1x384x128xbf16>
      %18 = vector.shape_cast %17 : vector<1x384x128xbf16> to vector<384x128xbf16>
      %cst = arith.constant dense<0.000000e+00> : vector<32x128xf32>
      %19 = tpu.matmul %16, %18, %cst {dimension_numbers = #tpu.dot_dimension_numbers<[1], [0], [0], [1], [0, 0, 1, 1], [], []>} : vector<32x384xbf16>, vector<384x128xbf16>, vector<32x128xf32> -> vector<32x128xf32>
      %c0_30 = arith.constant 0 : index
      %c0_31 = arith.constant 0 : index
      %20 = vector.load %arg8[%c0_30, %c0_31] : memref<32x128xf32, #tpu.memory_space<vmem>>, vector<32x128xf32>
      tpu.vector_store %arg8[%c0_30, %c0_31], %19 {strides = array<i32>} : memref<32x128xf32, #tpu.memory_space<vmem>>, vector<32x128xf32>,
      %c0_32 = arith.constant 0 : index
      %c0_33 = arith.constant 0 : index
      %21 = vector.load %arg8[%c0_32, %c0_33] : memref<32x128xf32, #tpu.memory_space<vmem>>, vector<32x128xf32>
      %c0_34 = arith.constant 0 : index
      %c1_35 = arith.constant 1 : index
      %c0_36 = arith.constant 0 : index
      %c0_37 = arith.constant 0 : index
      %22 = vector.load %arg7[%c0_34, %c1_35, %c0_36, %c0_37] : memref<2x6x4x384xbf16, #tpu.memory_space<vmem>>, vector<2x4x4x384xbf16>
      %23 = vector.shape_cast %22 : vector<2x4x4x384xbf16> to vector<32x384xbf16>
      %c1_38 = arith.constant 1 : index
      %c0_39 = arith.constant 0 : index
      %c0_40 = arith.constant 0 : index
      %24 = vector.load %arg3[%c1_38, %c0_39, %c0_40] : memref<3x384x128xbf16, #tpu.memory_space<vmem>>, vector<1x384x128xbf16>
      %25 = vector.shape_cast %24 : vector<1x384x128xbf16> to vector<384x128xbf16>
      %cst_41 = arith.constant dense<0.000000e+00> : vector<32x128xf32>
      %26 = tpu.matmul %23, %25, %cst_41 {dimension_numbers = #tpu.dot_dimension_numbers<[1], [0], [0], [1], [0, 0, 1, 1], [], []>} : vector<32x384xbf16>, vector<384x128xbf16>, vector<32x128xf32> -> vector<32x128xf32>
      %27 = arith.addf %21, %26 : vector<32x128xf32>
      %c0_42 = arith.constant 0 : index
      %c0_43 = arith.constant 0 : index
      %28 = vector.load %arg8[%c0_42, %c0_43] : memref<32x128xf32, #tpu.memory_space<vmem>>, vector<32x128xf32>
      tpu.vector_store %arg8[%c0_42, %c0_43], %27 {strides = array<i32>} : memref<32x128xf32, #tpu.memory_space<vmem>>, vector<32x128xf32>,
      %c0_44 = arith.constant 0 : index
      %c0_45 = arith.constant 0 : index
      %29 = vector.load %arg8[%c0_44, %c0_45] : memref<32x128xf32, #tpu.memory_space<vmem>>, vector<32x128xf32>
      %c0_46 = arith.constant 0 : index
      %c2_47 = arith.constant 2 : index
      %c0_48 = arith.constant 0 : index
      %c0_49 = arith.constant 0 : index
      %30 = vector.load %arg7[%c0_46, %c2_47, %c0_48, %c0_49] : memref<2x6x4x384xbf16, #tpu.memory_space<vmem>>, vector<2x4x4x384xbf16>
      %31 = vector.shape_cast %30 : vector<2x4x4x384xbf16> to vector<32x384xbf16>
      %c2_50 = arith.constant 2 : index
      %c0_51 = arith.constant 0 : index
      %c0_52 = arith.constant 0 : index
      %32 = vector.load %arg3[%c2_50, %c0_51, %c0_52] : memref<3x384x128xbf16, #tpu.memory_space<vmem>>, vector<1x384x128xbf16>
      %33 = vector.shape_cast %32 : vector<1x384x128xbf16> to vector<384x128xbf16>
      %cst_53 = arith.constant dense<0.000000e+00> : vector<32x128xf32>
      %34 = tpu.matmul %31, %33, %cst_53 {dimension_numbers = #tpu.dot_dimension_numbers<[1], [0], [0], [1], [0, 0, 1, 1], [], []>} : vector<32x384xbf16>, vector<384x128xbf16>, vector<32x128xf32> -> vector<32x128xf32>
      %35 = arith.addf %29, %34 : vector<32x128xf32>
      %c0_54 = arith.constant 0 : index
      %c0_55 = arith.constant 0 : index
      %36 = vector.load %arg8[%c0_54, %c0_55] : memref<32x128xf32, #tpu.memory_space<vmem>>, vector<32x128xf32>
      tpu.vector_store %arg8[%c0_54, %c0_55], %35 {strides = array<i32>} : memref<32x128xf32, #tpu.memory_space<vmem>>, vector<32x128xf32>,
    } else {
    }
    %c0_i32_1 = arith.constant 0 : i32
    %3 = arith.cmpi eq, %arg0, %c0_i32_1 : i32
    %4 = arith.extui %3 : i1 to i32
    %c0_i32_2 = arith.constant 0 : i32
    %5 = arith.cmpi ne, %4, %c0_i32_2 : i32
    scf.if %5 {
      %c0 = arith.constant 0 : index
      %c0_4 = arith.constant 0 : index
      %9 = vector.load %arg8[%c0, %c0_4] : memref<32x128xf32, #tpu.memory_space<vmem>>, vector<32x128xf32>
      %cst = arith.constant dense<0.000000e+00> : vector<128xf32>
      %10 = vector.multi_reduction <add>, %9, %cst [0] : vector<32x128xf32> to vector<128xf32>
      %11 = vector.shape_cast %10 : vector<128xf32> to vector<1x128xf32>
      %cst_5 = arith.constant 3.125000e-02 : f32
      %12 = vector.broadcast %cst_5 : f32 to vector<1x128xf32>
      %13 = arith.mulf %11, %12 : vector<1x128xf32>
      %14 = vector.broadcast %13 : vector<1x128xf32> to vector<32x128xf32>
      %15 = arith.subf %9, %14 : vector<32x128xf32>
      %16 = arith.mulf %15, %15 : vector<32x128xf32>
      %cst_6 = arith.constant dense<0.000000e+00> : vector<128xf32>
      %17 = vector.multi_reduction <add>, %16, %cst_6 [0] : vector<32x128xf32> to vector<128xf32>
      %18 = vector.shape_cast %17 : vector<128xf32> to vector<1x128xf32>
      %c0_7 = arith.constant 0 : index
      %c0_8 = arith.constant 0 : index
      %19 = vector.load %arg9[%c0_7, %c0_8] : memref<1x128xf32, #tpu.memory_space<vmem>>, vector<1x128xf32>
      tpu.vector_store %arg9[%c0_7, %c0_8], %13 {strides = array<i32>} : memref<1x128xf32, #tpu.memory_space<vmem>>, vector<1x128xf32>,
      %c0_9 = arith.constant 0 : index
      %c0_10 = arith.constant 0 : index
      %20 = vector.load %arg10[%c0_9, %c0_10] : memref<1x128xf32, #tpu.memory_space<vmem>>, vector<1x128xf32>
      tpu.vector_store %arg10[%c0_9, %c0_10], %18 {strides = array<i32>} : memref<1x128xf32, #tpu.memory_space<vmem>>, vector<1x128xf32>,
    } else {
    }
    %c1_i32 = arith.constant 1 : i32
    %6 = arith.cmpi eq, %arg0, %c1_i32 : i32
    %7 = arith.extui %6 : i1 to i32
    %c0_i32_3 = arith.constant 0 : i32
    %8 = arith.cmpi ne, %7, %c0_i32_3 : i32
    scf.if %8 {
      %c0 = arith.constant 0 : index
      %c0_4 = arith.constant 0 : index
      %9 = vector.load %arg10[%c0, %c0_4] : memref<1x128xf32, #tpu.memory_space<vmem>>, vector<1x128xf32>
      %cst = arith.constant 3.125000e-02 : f32
      %10 = vector.broadcast %cst : f32 to vector<1x128xf32>
      %11 = arith.mulf %9, %10 : vector<1x128xf32>
      %cst_5 = arith.constant 9.99999974E-6 : f32
      %12 = vector.broadcast %cst_5 : f32 to vector<1x128xf32>
      %13 = arith.addf %11, %12 : vector<1x128xf32>
      %14 = math.rsqrt %13 : vector<1x128xf32>
      %c0_6 = arith.constant 0 : index
      %c0_7 = arith.constant 0 : index
      %15 = vector.load %arg4[%c0_6, %c0_7] : memref<1x128xf32, #tpu.memory_space<vmem>>, vector<1x128xf32>
      %16 = arith.mulf %14, %15 : vector<1x128xf32>
      %c0_8 = arith.constant 0 : index
      %c0_9 = arith.constant 0 : index
      %17 = vector.load %arg5[%c0_8, %c0_9] : memref<1x128xf32, #tpu.memory_space<vmem>>, vector<1x128xf32>
      %c0_10 = arith.constant 0 : index
      %c0_11 = arith.constant 0 : index
      %18 = vector.load %arg9[%c0_10, %c0_11] : memref<1x128xf32, #tpu.memory_space<vmem>>, vector<1x128xf32>
      %19 = arith.mulf %18, %16 : vector<1x128xf32>
      %20 = arith.subf %17, %19 : vector<1x128xf32>
      %c0_12 = arith.constant 0 : index
      %c0_13 = arith.constant 0 : index
      %21 = vector.load %arg8[%c0_12, %c0_13] : memref<32x128xf32, #tpu.memory_space<vmem>>, vector<32x128xf32>
      %22 = vector.broadcast %16 : vector<1x128xf32> to vector<32x128xf32>
      %23 = arith.mulf %21, %22 : vector<32x128xf32>
      %24 = vector.broadcast %20 : vector<1x128xf32> to vector<32x128xf32>
      %25 = arith.addf %23, %24 : vector<32x128xf32>
      %cst_14 = arith.constant 0.000000e+00 : f32
      %26 = vector.broadcast %cst_14 : f32 to vector<32x128xf32>
      %27 = arith.maximumf %25, %26 : vector<32x128xf32>
      %28 = arith.truncf %27 : vector<32x128xf32> to vector<32x128xbf16>
      %c0_15 = arith.constant 0 : index
      %c0_16 = arith.constant 0 : index
      %29 = vector.load %arg6[%c0_15, %c0_16] : memref<32x128xbf16, #tpu.memory_space<vmem>>, vector<32x128xbf16>
      tpu.vector_store %arg6[%c0_15, %c0_16], %28 {strides = array<i32>} : memref<32x128xbf16, #tpu.memory_space<vmem>>, vector<32x128xbf16>,
    } else {
    }
    return
  }
  func.func @transform_0(%arg0: i32, %arg1: i32) -> (i32, i32, i32, i32) {
    %c0_i32 = arith.constant 0 : i32
    %c0_i32_0 = arith.constant 0 : i32
    %c0_i32_1 = arith.constant 0 : i32
    %c0_i32_2 = arith.constant 0 : i32
    return %arg1, %c0_i32, %c0_i32_0, %c0_i32_1 : i32, i32, i32, i32
  }
  func.func @transform_1(%arg0: i32, %arg1: i32) -> (i32, i32, i32) {
    %c0_i32 = arith.constant 0 : i32
    %c0_i32_0 = arith.constant 0 : i32
    %c0_i32_1 = arith.constant 0 : i32
    %c0_i32_2 = arith.constant 0 : i32
    return %c0_i32, %c0_i32_0, %c0_i32_1 : i32, i32, i32
  }
  func.func @transform_2(%arg0: i32, %arg1: i32) -> (i32, i32) {
    %c0_i32 = arith.constant 0 : i32
    %c0_i32_0 = arith.constant 0 : i32
    %c0_i32_1 = arith.constant 0 : i32
    return %c0_i32, %c0_i32_0 : i32, i32
  }
  func.func @transform_3(%arg0: i32, %arg1: i32) -> (i32, i32) {
    %c0_i32 = arith.constant 0 : i32
    %c0_i32_0 = arith.constant 0 : i32
    %c0_i32_1 = arith.constant 0 : i32
    return %c0_i32, %c0_i32_0 : i32, i32
  }
  func.func @transform_4(%arg0: i32, %arg1: i32) -> (i32, i32) {
    %0 = arith.muli %arg1, %arg0 : i32
    %c0_i32 = arith.constant 0 : i32
    %c0_i32_0 = arith.constant 0 : i32
    return %0, %c0_i32 : i32, i32
  }
}

</mosaic_0001>

<llo_original>
// kernel: hourglass2d_pallas.9
$region0: #{hourglass2d_pallas.9}
  #allocation0 [shape = 'u32[]', space=smem, size = 0x4, offset = 0x4, fixed_abs, tag = 'smem constant byte address 0x4 - core index']
  #allocation1 [shape = 'u32[144,128]{1,0:T(1,128)}', space=vmem, size = 0x12000, scoped, tag = 'internal scratch']
  #allocation2 [shape = 'bf16[2,6,4,384]{3,2,1,0:T(4,128)(2,1)}', space=vmem, size = 0x9000, scoped, tag = 'scratch operand']
  #allocation3 [shape = 'f32[32,128]{1,0:T(8,128)}', space=vmem, size = 0x4000, scoped, tag = 'scratch operand']
  #allocation4 [shape = 'f32[1,128]{1,0:T(1,128)}', space=vmem, size = 0x200, scoped, tag = 'scratch operand']
  #allocation5 [shape = 'f32[1,128]{1,0:T(1,128)}', space=vmem, size = 0x200, scoped, tag = 'scratch operand']
  %s0 = inlined_call_operand.vmem [shape: bf16[2,6,6,128], index: 0, kind: input, shape index: {}]
  %s1 = inlined_call_operand.vmem [shape: bf16[3,384,128], index: 1, kind: input, shape index: {}]
  %s2 = inlined_call_operand.vmem [shape: f32[1,128], index: 2, kind: input, shape index: {}]
  %s3 = inlined_call_operand.vmem [shape: f32[1,128], index: 3, kind: input, shape index: {}]
  %s4 = inlined_call_operand.vmem [shape: bf16[32,128], index: 4, kind: output, shape index: {}]
  %s5 = sld [smem:[#allocation0]]
  $region57: #{hourglass2d_pallas.9} parent=0
    _
  %s7 = ssub.s32 1, %s5
  %s8 = scalar_select 0, %s7, %s5
  loop: start=0, step=1, limit=4
  $region2: #{hourglass2d_pallas.9} parent=0 // loop_pre_header
    _
  $region3: #{hourglass2d_pallas.9} parent=0 // loop_header
    %s10 = sphi 0, %s14
    %p11 = scmp.ge.s32.totalorder %s10, 4
    %s17 = sphi 0, %s29
    %s18 = sphi 0, %s25
    %s19 = sphi 0, %s17
    %s20 = sphi 0, %s18
    %s21 = sphi 0, %s19
    %s22 = sphi 0, %s20
    %s32 = sphi 0, %s34
    %s35 = sphi 0, %s32
    %s36 = sphi 0, %s35
    %s52 = sphi 0, %s36
    %s56 = sphi 0, %s56
    %s58 = sphi 0, %s56
    %s59 = sphi 0, %s58
    %s73 = sphi 0, %s59
    %s77 = sphi 0, %s77
    %s79 = sphi 0, %s77
    %s80 = sphi 0, %s79
    %s94 = sphi 0, %s80
    %s98 = sphi 0, %s98
    %s100 = sphi 0, %s98
    %s101 = sphi 0, %s100
    %s115 = sphi 0, %s101
    %s123 = sphi 0, %s125
    %s126 = sphi 0, %s123
    %s127 = sphi 0, %s126
    %s143 = sphi 0, %s127
  $region4: #{hourglass2d_pallas.9} parent=0 // loop_header_branch
    %13 = sbr.rel (%p11) target = $region8
  $region5: #{hourglass2d_pallas.9} parent=0 // loop_body
    %s15 = ssub.s32 %s10, 1
    %s16 = ssub.s32 %s10, 2
    %s23 = sadd.s32 1, %s18
    %p24 = scmp.ge.s32.totalorder %s23, 1
    %s25 = scalar_select %p24, 0, %s23
    %s26 = sadd.s32 1, %s17
    %s27 = scalar_select %p24, %s26, %s17
    %p28 = scmp.ge.s32.totalorder %s27, 2
    %s29 = scalar_select %p28, 0, %s27
    %s30 = ssub.s32 %s18, %s25
    %p31 = scmp.eq.s32.totalorder %s30, 0
    %s33 = sadd.s32 %s32, 1
    %s34 = scalar_select %p31, %s32, %s33
    %p37 = pneg %p31
    %p38 = scmp.eq.s32.totalorder %s10, 1
    %p39 = por %p37, %p38
    %p40 = scmp.ne.s32.totalorder %s32, %s35
    %p41 = scmp.eq.s32.totalorder %s10, 0
    %p42 = por %p40, %p41
    %p43 = scmp.ne.s32.totalorder %s32, %s35
    %p44 = scmp.eq.s32.totalorder %s15, 1
    %p45 = por %p43, %p44
    %p46 = scmp.ne.s32.totalorder %s35, %s36
    %p47 = scmp.eq.s32.totalorder %s15, 0
    %p48 = por %p46, %p47
    %p49 = scmp.ne.s32.totalorder %s35, %s36
    %p50 = scmp.eq.s32.totalorder %s16, 1
    %p51 = por %p49, %p50
    %p53 = scmp.ne.s32.totalorder %s36, %s52
    %p54 = scmp.eq.s32.totalorder %s16, 0
    %p55 = por %p53, %p54
    %s57 = sadd.s32 %s56, 1
    %p60 = scmp.eq.s32.totalorder %s10, 1
    %p61 = scmp.ne.s32.totalorder %s56, %s58
    %p62 = scmp.eq.s32.totalorder %s10, 0
    %p63 = por %p61, %p62
    %p64 = scmp.ne.s32.totalorder %s56, %s58
    %p65 = scmp.eq.s32.totalorder %s15, 1
    %p66 = por %p64, %p65
    %p67 = scmp.ne.s32.totalorder %s58, %s59
    %p68 = scmp.eq.s32.totalorder %s15, 0
    %p69 = por %p67, %p68
    %p70 = scmp.ne.s32.totalorder %s58, %s59
    %p71 = scmp.eq.s32.totalorder %s16, 1
    %p72 = por %p70, %p71
    %p74 = scmp.ne.s32.totalorder %s59, %s73
    %p75 = scmp.eq.s32.totalorder %s16, 0
    %p76 = por %p74, %p75
    %s78 = sadd.s32 %s77, 1
    %p81 = scmp.eq.s32.totalorder %s10, 1
    %p82 = scmp.ne.s32.totalorder %s77, %s79
    %p83 = scmp.eq.s32.totalorder %s10, 0
    %p84 = por %p82, %p83
    %p85 = scmp.ne.s32.totalorder %s77, %s79
    %p86 = scmp.eq.s32.totalorder %s15, 1
    %p87 = por %p85, %p86
    %p88 = scmp.ne.s32.totalorder %s79, %s80
    %p89 = scmp.eq.s32.totalorder %s15, 0
    %p90 = por %p88, %p89
    %p91 = scmp.ne.s32.totalorder %s79, %s80
    %p92 = scmp.eq.s32.totalorder %s16, 1
    %p93 = por %p91, %p92
    %p95 = scmp.ne.s32.totalorder %s80, %s94
    %p96 = scmp.eq.s32.totalorder %s16, 0
    %p97 = por %p95, %p96
    %s99 = sadd.s32 %s98, 1
    %p102 = scmp.eq.s32.totalorder %s10, 1
    %p103 = scmp.ne.s32.totalorder %s98, %s100
    %p104 = scmp.eq.s32.totalorder %s10, 0
    %p105 = por %p103, %p104
    %p106 = scmp.ne.s32.totalorder %s98, %s100
    %p107 = scmp.eq.s32.totalorder %s15, 1
    %p108 = por %p106, %p107
    %p109 = scmp.ne.s32.totalorder %s100, %s101
    %p110 = scmp.eq.s32.totalorder %s15, 0
    %p111 = por %p109, %p110
    %p112 = scmp.ne.s32.totalorder %s100, %s101
    %p113 = scmp.eq.s32.totalorder %s16, 1
    %p114 = por %p112, %p113
    %p116 = scmp.ne.s32.totalorder %s101, %s115
    %p117 = scmp.eq.s32.totalorder %s16, 0
    %p118 = por %p116, %p117
    %s119 = smul.u32 %s18, %s17
    %s120 = smul.u32 %s25, %s29
    %s121 = ssub.s32 %s119, %s120
    %p122 = scmp.eq.s32.totalorder %s121, 0
    %s124 = sadd.s32 %s123, 1
    %s125 = scalar_select %p122, %s123, %s124
    %p128 = pneg %p122
    %p129 = scmp.eq.s32.totalorder %s10, 1
    %p130 = por %p128, %p129
    %p131 = scmp.ne.s32.totalorder %s123, %s126
    %p132 = scmp.eq.s32.totalorder %s10, 0
    %p133 = por %p131, %p132
    %p134 = scmp.ne.s32.totalorder %s123, %s126
    %p135 = scmp.eq.s32.totalorder %s15, 1
    %p136 = por %p134, %p135
    %p137 = scmp.ne.s32.totalorder %s126, %s127
    %p138 = scmp.eq.s32.totalorder %s15, 0
    %p139 = por %p137, %p138
    %p140 = scmp.ne.s32.totalorder %s126, %s127
    %p141 = scmp.eq.s32.totalorder %s16, 1
    %p142 = por %p140, %p141
    %p144 = scmp.ne.s32.totalorder %s127, %s143
    %p145 = scmp.eq.s32.totalorder %s16, 0
    %p146 = por %p144, %p145
    %p147 = scmp.le.s32.totalorder 1, %s10
    %p148 = scmp.lt.s32.totalorder %s10, 3
    %p149 = pnand %p147, %p148
    %p150 = pneg %p149
    // Predicated region
    $region9: #{hourglass2d_pallas.9} parent=5 // pred_check
      _
    $region10: #{hourglass2d_pallas.9} parent=5 // pred_check_branch
      %152 = sbr.rel (%p149) target = $region12
    $region11: #{hourglass2d_pallas.9} parent=5 // pred_region
      %s153 = ssub.s32 %s10, 1
      // Predicated region
      $region13: #{hourglass2d_pallas.9} parent=11 // pred_check
        %p154 = pneg %p48
      $region14: #{hourglass2d_pallas.9} parent=11 // pred_check_branch
        %156 = sbr.rel (%p154) target = $region16
      $region15: #{hourglass2d_pallas.9} parent=11 // pred_region
        %s157 = smul.u32 2, %s20
        %p158 = scmp.lt.s32.totalorder %s157, 1
        %s159 = scalar_select %p158, %s157, 1
        %s160 = smul.addr %s159, 6
        %s161 = smul.addr %s160, 4
        %s162 = scalar_lea.vmem %s0, %s161
        %s163 = smul.u32 2, %s20
      $region16: #{hourglass2d_pallas.9} parent=11 // pred_fallthru
        _
      // Predicated region
      $region17: #{hourglass2d_pallas.9} parent=11 // pred_check
        %p164 = pneg %p69
      $region18: #{hourglass2d_pallas.9} parent=11 // pred_check_branch
        %166 = sbr.rel (%p164) target = $region20
      $region19: #{hourglass2d_pallas.9} parent=11 // pred_region
        _
      $region20: #{hourglass2d_pallas.9} parent=11 // pred_fallthru
        _
      // Predicated region
      $region21: #{hourglass2d_pallas.9} parent=11 // pred_check
        %p167 = pneg %p90
      $region22: #{hourglass2d_pallas.9} parent=11 // pred_check_branch
        %169 = sbr.rel (%p167) target = $region24
      $region23: #{hourglass2d_pallas.9} parent=11 // pred_region
        _
      $region24: #{hourglass2d_pallas.9} parent=11 // pred_fallthru
        _
      // Predicated region
      $region25: #{hourglass2d_pallas.9} parent=11 // pred_check
        %p170 = pneg %p111
      $region26: #{hourglass2d_pallas.9} parent=11 // pred_check_branch
        %172 = sbr.rel (%p170) target = $region28
      $region27: #{hourglass2d_pallas.9} parent=11 // pred_region
        _
      $region28: #{hourglass2d_pallas.9} parent=11 // pred_fallthru
        _
    $region12: #{hourglass2d_pallas.9} parent=5 // pred_fallthru
      _
    %p173 = scmp.lt.s32.totalorder %s10, 2
    // Predicated region
    $region29: #{hourglass2d_pallas.9} parent=5 // pred_check
      %p174 = pneg %p173
    $region30: #{hourglass2d_pallas.9} parent=5 // pred_check_branch
      %176 = sbr.rel (%p174) target = $region32
    $region31: #{hourglass2d_pallas.9} parent=5 // pred_region
      _
    $region32: #{hourglass2d_pallas.9} parent=5 // pred_fallthru
      _
    %p177 = scmp.le.s32.totalorder 1, %s10
    %p178 = scmp.lt.s32.totalorder %s10, 3
    %p179 = pnand %p177, %p178
    %p180 = pneg %p179
    // Predicated region
    $region33: #{hourglass2d_pallas.9} parent=5 // pred_check
      _
    $region34: #{hourglass2d_pallas.9} parent=5 // pred_check_branch
      %182 = sbr.rel (%p179) target = $region36
    $region35: #{hourglass2d_pallas.9} parent=5 // pred_region
      %s183 = ssub.s32 %s10, 1
      %s184 = smul.u32 2, %s20
      %p185 = scmp.lt.s32.totalorder %s184, 1
      %s186 = scalar_select %p185, %s184, 1
      %s187 = smul.addr %s186, 6
      %s188 = smul.addr %s187, 4
      %s189 = scalar_lea.vmem %s0, %s188
      %p190 = pneg %p48
      %p191 = pneg %p45
      %p192 = pneg %p69
      %p193 = pneg %p66
      %p194 = pneg %p90
      %p195 = pneg %p87
      %p196 = pneg %p111
      %p197 = pneg %p108
      %p198 = pneg %p139
      %p199 = pneg %p136
      %s200 = smul.u32 %s20, %s19
      %s201 = smul.u32 4, %s200
      %p202 = scmp.lt.s32.totalorder %s201, 3
      %s203 = scalar_select %p202, %s201, 3
      %s204 = smul.addr %s203, 4
      %s205 = scalar_lea.vmem %s4, %s204
      %s206 = smul.u32 2, %s20
      %p207 = scmp.lt.s32.totalorder %s206, 1
      %s208 = scalar_select %p207, %s206, 1
      %s209 = smul.addr %s208, 6
      %s210 = smul.addr %s209, 4
      %s211 = scalar_lea.vmem %s0, %s210
      %s212 = smul.u32 2, %s20
      %s213 = smul.u32 %s20, %s19
      %s214 = smul.u32 4, %s213
      %p215 = scmp.lt.s32.totalorder %s214, 3
      %s216 = scalar_select %p215, %s214, 3
      %s217 = smul.addr %s216, 4
      %s218 = scalar_lea.vmem %s4, %s217
      %s219 = smul.u32 %s20, %s19
      %s220 = smul.u32 4, %s219
      %p222 = scmp.eq.s32.totalorder %s19, 0
      // Predicated region
      $region37: #{hourglass2d_pallas.9} parent=35 // pred_check
        %p223 = pneg %p222
      $region38: #{hourglass2d_pallas.9} parent=35 // pred_check_branch
        %225 = sbr.rel (%p223) target = $region40
      $region39: #{hourglass2d_pallas.9} parent=35 // pred_region
        %v226 = vld [vmem:[%s211] sm:$0x3]
        %v227 = vld [vmem:[%s211 + $0x4] sm:$0x3]
        %v228 = vld [vmem:[%s211 + $0x8] sm:$0x3]
        %v229 = vld [vmem:[%s211 + $0xc] sm:$0x3]
        %v230 = vld [vmem:[%s211 + $0x10] sm:$0x3]
        %v231 = vld [vmem:[%s211 + $0x14] sm:$0x3]
        %v232 = vld [vmem:[%s211 + $0x18] sm:$0x3]
        %v233 = vld [vmem:[%s211 + $0x1c] sm:$0x3]
        %v234 = vld [vmem:[%s211 + $0x20] sm:$0x3]
        %v235 = vld [vmem:[%s211 + $0x24] sm:$0x3]
        %v236 = vld [vmem:[%s211 + $0x28] sm:$0x3]
        %v237 = vld [vmem:[%s211 + $0x2c] sm:$0x3]
        %238 = vst [vmem:[#allocation2] sm:$0x3] %v226
        %239 = vst [vmem:[#allocation2 + $0x6] sm:$0x3] %v227
        %240 = vst [vmem:[#allocation2 + $0xc] sm:$0x3] %v228
        %241 = vst [vmem:[#allocation2 + $0x12] sm:$0x3] %v229
        %242 = vst [vmem:[#allocation2 + $0x18] sm:$0x3] %v230
        %243 = vst [vmem:[#allocation2 + $0x1e] sm:$0x3] %v231
        %244 = vst [vmem:[#allocation2 + $0x24] sm:$0x3] %v232
        %245 = vst [vmem:[#allocation2 + $0x2a] sm:$0x3] %v233
        %246 = vst [vmem:[#allocation2 + $0x30] sm:$0x3] %v234
        %247 = vst [vmem:[#allocation2 + $0x36] sm:$0x3] %v235
        %248 = vst [vmem:[#allocation2 + $0x3c] sm:$0x3] %v236
        %249 = vst [vmem:[#allocation2 + $0x42] sm:$0x3] %v237
        %v250 = vld [vmem:[%s211] sm:$0x7]
        %v251 = vld [vmem:[%s211 + $0x4] sm:$0x7]
        %v252 = vld [vmem:[%s211 + $0x8] sm:$0x7]
        %v253 = vld [vmem:[%s211 + $0xc] sm:$0x7]
        %v254 = vld [vmem:[%s211 + $0x10] sm:$0x7]
        %v255 = vld [vmem:[%s211 + $0x14] sm:$0x7]
        %v256 = vld [vmem:[%s211 + $0x18] sm:$0x7]
        %v257 = vld [vmem:[%s211 + $0x1c] sm:$0x7]
        %v258 = vld [vmem:[%s211 + $0x20] sm:$0x7]
        %v259 = vld [vmem:[%s211 + $0x24] sm:$0x7]
        %v260 = vld [vmem:[%s211 + $0x28] sm:$0x7]
        %v261 = vld [vmem:[%s211 + $0x2c] sm:$0x7]
        %v275 = vunpack.c.l.s4 1983009808
        %v276 = vunpack.c.0.s8 %v275
        %v277 = vlaneseq
        %v278 = vshrl.u32 %v277, 7
        %v279 = vsub.s32 %v276, %v278
        %v280 = vrot.slane %v250, %v279
        %v281 = vcombine.high %v280, %v280
        %v283 = vunpack.c.l.s4 1983009808
        %v284 = vunpack.c.0.s8 %v283
        %v285 = vlaneseq
        %v286 = vshrl.u32 %v285, 7
        %v287 = vsub.s32 %v284, %v286
        %v288 = vrot.slane %v251, %v287
        %v289 = vcombine.high %v288, %v288
        %v291 = vunpack.c.l.s4 1983009808
        %v292 = vunpack.c.0.s8 %v291
        %v293 = vlaneseq
        %v294 = vshrl.u32 %v293, 7
        %v295 = vsub.s32 %v292, %v294
        %v296 = vrot.slane %v252, %v295
        %v297 = vcombine.high %v296, %v296
        %v299 = vunpack.c.l.s4 1983009808
        %v300 = vunpack.c.0.s8 %v299
        %v301 = vlaneseq
        %v302 = vshrl.u32 %v301, 7
        %v303 = vsub.s32 %v300, %v302
        %v304 = vrot.slane %v253, %v303
        %v305 = vcombine.high %v304, %v304
        %v307 = vunpack.c.l.s4 1983009808
        %v308 = vunpack.c.0.s8 %v307
        %v309 = vlaneseq
        %v310 = vshrl.u32 %v309, 7
        %v311 = vsub.s32 %v308, %v310
        %v312 = vrot.slane %v254, %v311
        %v313 = vcombine.high %v312, %v312
        %v315 = vunpack.c.l.s4 1983009808
        %v316 = vunpack.c.0.s8 %v315
        %v317 = vlaneseq
        %v318 = vshrl.u32 %v317, 7
        %v319 = vsub.s32 %v316, %v318
        %v320 = vrot.slane %v255, %v319
        %v321 = vcombine.high %v320, %v320
        %v323 = vunpack.c.l.s4 1983009808
        %v324 = vunpack.c.0.s8 %v323
        %v325 = vlaneseq
        %v326 = vshrl.u32 %v325, 7
        %v327 = vsub.s32 %v324, %v326
        %v328 = vrot.slane %v256, %v327
        %v329 = vcombine.high %v328, %v328
        %v331 = vunpack.c.l.s4 1983009808
        %v332 = vunpack.c.0.s8 %v331
        %v333 = vlaneseq
        %v334 = vshrl.u32 %v333, 7
        %v335 = vsub.s32 %v332, %v334
        %v336 = vrot.slane %v257, %v335
        %v337 = vcombine.high %v336, %v336
        %v339 = vunpack.c.l.s4 1983009808
        %v340 = vunpack.c.0.s8 %v339
        %v341 = vlaneseq
        %v342 = vshrl.u32 %v341, 7
        %v343 = vsub.s32 %v340, %v342
        %v344 = vrot.slane %v258, %v343
        %v345 = vcombine.high %v344, %v344
        %v347 = vunpack.c.l.s4 1983009808
        %v348 = vunpack.c.0.s8 %v347
        %v349 = vlaneseq
        %v350 = vshrl.u32 %v349, 7
        %v351 = vsub.s32 %v348, %v350
        %v352 = vrot.slane %v259, %v351
        %v353 = vcombine.high %v352, %v352
        %v355 = vunpack.c.l.s4 1983009808
        %v356 = vunpack.c.0.s8 %v355
        %v357 = vlaneseq
        %v358 = vshrl.u32 %v357, 7
        %v359 = vsub.s32 %v356, %v358
        %v360 = vrot.slane %v260, %v359
        %v361 = vcombine.high %v360, %v360
        %v363 = vunpack.c.l.s4 1983009808
        %v364 = vunpack.c.0.s8 %v363
        %v365 = vlaneseq
        %v366 = vshrl.u32 %v365, 7
        %v367 = vsub.s32 %v364, %v366
        %v368 = vrot.slane %v261, %v367
        %v369 = vcombine.high %v368, %v368
        %vm370 = vsmask.f32 1280
        %vm371 = vsmask.f32 3336
        %vm372 = vmor %vm370, %vm371
        %vm373 = vsmask.f32 5392
        %vm374 = vmor %vm372, %vm373
        %vm375 = vsmask.f32 7448
        %vm376 = vmor %vm374, %vm375
        %v378 = vshrl.u32 %v280, 16
        %v380 = vrot.slane %v378, 6
        %v381 = vshll.u32 %v280, 16
        %v383 = vrot.slane %v381, 7
        %v384 = vor.u32 %v380, %v383
        %v385 = vrot.slane %v384, 2
        %v387 = vshll.u32 %v281, 16
        %v389 = vrot.slane %v387, 7
        %v390 = vsel %vm376, %v385, %v389
        %v392 = vshrl.u32 %v288, 16
        %v394 = vrot.slane %v392, 6
        %v395 = vshll.u32 %v288, 16
        %v397 = vrot.slane %v395, 7
        %v398 = vor.u32 %v394, %v397
        %v399 = vrot.slane %v398, 2
        %v401 = vshll.u32 %v289, 16
        %v403 = vrot.slane %v401, 7
        %v404 = vsel %vm376, %v399, %v403
        %v406 = vshrl.u32 %v296, 16
        %v408 = vrot.slane %v406, 6
        %v409 = vshll.u32 %v296, 16
        %v411 = vrot.slane %v409, 7
        %v412 = vor.u32 %v408, %v411
        %v413 = vrot.slane %v412, 2
        %v415 = vshll.u32 %v297, 16
        %v417 = vrot.slane %v415, 7
        %v418 = vsel %vm376, %v413, %v417
        %v420 = vshrl.u32 %v304, 16
        %v422 = vrot.slane %v420, 6
        %v423 = vshll.u32 %v304, 16
        %v425 = vrot.slane %v423, 7
        %v426 = vor.u32 %v422, %v425
        %v427 = vrot.slane %v426, 2
        %v429 = vshll.u32 %v305, 16
        %v431 = vrot.slane %v429, 7
        %v432 = vsel %vm376, %v427, %v431
        %v434 = vshrl.u32 %v312, 16
        %v436 = vrot.slane %v434, 6
        %v437 = vshll.u32 %v312, 16
        %v439 = vrot.slane %v437, 7
        %v440 = vor.u32 %v436, %v439
        %v441 = vrot.slane %v440, 2
        %v443 = vshll.u32 %v313, 16
        %v445 = vrot.slane %v443, 7
        %v446 = vsel %vm376, %v441, %v445
        %v448 = vshrl.u32 %v320, 16
        %v450 = vrot.slane %v448, 6
        %v451 = vshll.u32 %v320, 16
        %v453 = vrot.slane %v451, 7
        %v454 = vor.u32 %v450, %v453
        %v455 = vrot.slane %v454, 2
        %v457 = vshll.u32 %v321, 16
        %v459 = vrot.slane %v457, 7
        %v460 = vsel %vm376, %v455, %v459
        %v462 = vshrl.u32 %v328, 16
        %v464 = vrot.slane %v462, 6
        %v465 = vshll.u32 %v328, 16
        %v467 = vrot.slane %v465, 7
        %v468 = vor.u32 %v464, %v467
        %v469 = vrot.slane %v468, 2
        %v471 = vshll.u32 %v329, 16
        %v473 = vrot.slane %v471, 7
        %v474 = vsel %vm376, %v469, %v473
        %v476 = vshrl.u32 %v336, 16
        %v478 = vrot.slane %v476, 6
        %v479 = vshll.u32 %v336, 16
        %v481 = vrot.slane %v479, 7
        %v482 = vor.u32 %v478, %v481
        %v483 = vrot.slane %v482, 2
        %v485 = vshll.u32 %v337, 16
        %v487 = vrot.slane %v485, 7
        %v488 = vsel %vm376, %v483, %v487
        %v490 = vshrl.u32 %v344, 16
        %v492 = vrot.slane %v490, 6
        %v493 = vshll.u32 %v344, 16
        %v495 = vrot.slane %v493, 7
        %v496 = vor.u32 %v492, %v495
        %v497 = vrot.slane %v496, 2
        %v499 = vshll.u32 %v345, 16
        %v501 = vrot.slane %v499, 7
        %v502 = vsel %vm376, %v497, %v501
        %v504 = vshrl.u32 %v352, 16
        %v506 = vrot.slane %v504, 6
        %v507 = vshll.u32 %v352, 16
        %v509 = vrot.slane %v507, 7
        %v510 = vor.u32 %v506, %v509
        %v511 = vrot.slane %v510, 2
        %v513 = vshll.u32 %v353, 16
        %v515 = vrot.slane %v513, 7
        %v516 = vsel %vm376, %v511, %v515
        %v518 = vshrl.u32 %v360, 16
        %v520 = vrot.slane %v518, 6
        %v521 = vshll.u32 %v360, 16
        %v523 = vrot.slane %v521, 7
        %v524 = vor.u32 %v520, %v523
        %v525 = vrot.slane %v524, 2
        %v527 = vshll.u32 %v361, 16
        %v529 = vrot.slane %v527, 7
        %v530 = vsel %vm376, %v525, %v529
        %v532 = vshrl.u32 %v368, 16
        %v534 = vrot.slane %v532, 6
        %v535 = vshll.u32 %v368, 16
        %v537 = vrot.slane %v535, 7
        %v538 = vor.u32 %v534, %v537
        %v539 = vrot.slane %v538, 2
        %v541 = vshll.u32 %v369, 16
        %v543 = vrot.slane %v541, 7
        %v544 = vsel %vm376, %v539, %v543
        %557 = vst [vmem:[#allocation2 + $0x2] sm:$0x3] %v390
        %558 = vst [vmem:[#allocation2 + $0x8] sm:$0x3] %v404
        %559 = vst [vmem:[#allocation2 + $0xe] sm:$0x3] %v418
        %560 = vst [vmem:[#allocation2 + $0x14] sm:$0x3] %v432
        %561 = vst [vmem:[#allocation2 + $0x1a] sm:$0x3] %v446
        %562 = vst [vmem:[#allocation2 + $0x20] sm:$0x3] %v460
        %563 = vst [vmem:[#allocation2 + $0x26] sm:$0x3] %v474
        %564 = vst [vmem:[#allocation2 + $0x2c] sm:$0x3] %v488
        %565 = vst [vmem:[#allocation2 + $0x32] sm:$0x3] %v502
        %566 = vst [vmem:[#allocation2 + $0x38] sm:$0x3] %v516
        %567 = vst [vmem:[#allocation2 + $0x3e] sm:$0x3] %v530
        %568 = vst [vmem:[#allocation2 + $0x44] sm:$0x3] %v544
        %v569 = vld [vmem:[%s211] sm:$0x6]
        %v570 = vld [vmem:[%s211 + $0x4] sm:$0x6]
        %v571 = vld [vmem:[%s211 + $0x8] sm:$0x6]
        %v572 = vld [vmem:[%s211 + $0xc] sm:$0x6]
        %v573 = vld [vmem:[%s211 + $0x10] sm:$0x6]
        %v574 = vld [vmem:[%s211 + $0x14] sm:$0x6]
        %v575 = vld [vmem:[%s211 + $0x18] sm:$0x6]
        %v576 = vld [vmem:[%s211 + $0x1c] sm:$0x6]
        %v577 = vld [vmem:[%s211 + $0x20] sm:$0x6]
        %v578 = vld [vmem:[%s211 + $0x24] sm:$0x6]
        %v579 = vld [vmem:[%s211 + $0x28] sm:$0x6]
        %v580 = vld [vmem:[%s211 + $0x2c] sm:$0x6]
        %v594 = vunpack.c.l.s4 1983009808
        %v595 = vunpack.c.0.s8 %v594
        %v596 = vlaneseq
        %v597 = vshrl.u32 %v596, 7
        %v598 = vsub.s32 %v595, %v597
        %v599 = vrot.slane %v569, %v598
        %v600 = vcombine.high %v599, %v599
        %v602 = vunpack.c.l.s4 1983009808
        %v603 = vunpack.c.0.s8 %v602
        %v604 = vlaneseq
        %v605 = vshrl.u32 %v604, 7
        %v606 = vsub.s32 %v603, %v605
        %v607 = vrot.slane %v570, %v606
        %v608 = vcombine.high %v607, %v607
        %v610 = vunpack.c.l.s4 1983009808
        %v611 = vunpack.c.0.s8 %v610
        %v612 = vlaneseq
        %v613 = vshrl.u32 %v612, 7
        %v614 = vsub.s32 %v611, %v613
        %v615 = vrot.slane %v571, %v614
        %v616 = vcombine.high %v615, %v615
        %v618 = vunpack.c.l.s4 1983009808
        %v619 = vunpack.c.0.s8 %v618
        %v620 = vlaneseq
        %v621 = vshrl.u32 %v620, 7
        %v622 = vsub.s32 %v619, %v621
        %v623 = vrot.slane %v572, %v622
        %v624 = vcombine.high %v623, %v623
        %v626 = vunpack.c.l.s4 1983009808
        %v627 = vunpack.c.0.s8 %v626
        %v628 = vlaneseq
        %v629 = vshrl.u32 %v628, 7
        %v630 = vsub.s32 %v627, %v629
        %v631 = vrot.slane %v573, %v630
        %v632 = vcombine.high %v631, %v631
        %v634 = vunpack.c.l.s4 1983009808
        %v635 = vunpack.c.0.s8 %v634
        %v636 = vlaneseq
        %v637 = vshrl.u32 %v636, 7
        %v638 = vsub.s32 %v635, %v637
        %v639 = vrot.slane %v574, %v638
        %v640 = vcombine.high %v639, %v639
        %v642 = vunpack.c.l.s4 1983009808
        %v643 = vunpack.c.0.s8 %v642
        %v644 = vlaneseq
        %v645 = vshrl.u32 %v644, 7
        %v646 = vsub.s32 %v643, %v645
        %v647 = vrot.slane %v575, %v646
        %v648 = vcombine.high %v647, %v647
        %v650 = vunpack.c.l.s4 1983009808
        %v651 = vunpack.c.0.s8 %v650
        %v652 = vlaneseq
        %v653 = vshrl.u32 %v652, 7
        %v654 = vsub.s32 %v651, %v653
        %v655 = vrot.slane %v576, %v654
        %v656 = vcombine.high %v655, %v655
        %v658 = vunpack.c.l.s4 1983009808
        %v659 = vunpack.c.0.s8 %v658
        %v660 = vlaneseq
        %v661 = vshrl.u32 %v660, 7
        %v662 = vsub.s32 %v659, %v661
        %v663 = vrot.slane %v577, %v662
        %v664 = vcombine.high %v663, %v663
        %v666 = vunpack.c.l.s4 1983009808
        %v667 = vunpack.c.0.s8 %v666
        %v668 = vlaneseq
        %v669 = vshrl.u32 %v668, 7
        %v670 = vsub.s32 %v667, %v669
        %v671 = vrot.slane %v578, %v670
        %v672 = vcombine.high %v671, %v671
        %v674 = vunpack.c.l.s4 1983009808
        %v675 = vunpack.c.0.s8 %v674
        %v676 = vlaneseq
        %v677 = vshrl.u32 %v676, 7
        %v678 = vsub.s32 %v675, %v677
        %v679 = vrot.slane %v579, %v678
        %v680 = vcombine.high %v679, %v679
        %v682 = vunpack.c.l.s4 1983009808
        %v683 = vunpack.c.0.s8 %v682
        %v684 = vlaneseq
        %v685 = vshrl.u32 %v684, 7
        %v686 = vsub.s32 %v683, %v685
        %v687 = vrot.slane %v580, %v686
        %v688 = vcombine.high %v687, %v687
        %vm689 = vcmask 1040384
        %vm690 = vcmask 1042434
        %vm691 = vmor %vm689, %vm690
        %vm692 = vcmask 1044484
        %vm693 = vmor %vm691, %vm692
        %vm694 = vcmask 1046534
        %vm695 = vmor %vm693, %vm694
        %v696 = vrot.slane %v599, 7
        %v697 = vrot.slane %v696, 2
        %v698 = vrot.slane %v600, 7
        %v699 = vsel %vm695, %v697, %v698
        %v700 = vrot.slane %v607, 7
        %v701 = vrot.slane %v700, 2
        %v702 = vrot.slane %v608, 7
        %v703 = vsel %vm695, %v701, %v702
        %v704 = vrot.slane %v615, 7
        %v705 = vrot.slane %v704, 2
        %v706 = vrot.slane %v616, 7
        %v707 = vsel %vm695, %v705, %v706
        %v708 = vrot.slane %v623, 7
        %v709 = vrot.slane %v708, 2
        %v710 = vrot.slane %v624, 7
        %v711 = vsel %vm695, %v709, %v710
        %v712 = vrot.slane %v631, 7
        %v713 = vrot.slane %v712, 2
        %v714 = vrot.slane %v632, 7
        %v715 = vsel %vm695, %v713, %v714
        %v716 = vrot.slane %v639, 7
        %v717 = vrot.slane %v716, 2
        %v718 = vrot.slane %v640, 7
        %v719 = vsel %vm695, %v717, %v718
        %v720 = vrot.slane %v647, 7
        %v721 = vrot.slane %v720, 2
        %v722 = vrot.slane %v648, 7
        %v723 = vsel %vm695, %v721, %v722
        %v724 = vrot.slane %v655, 7
        %v725 = vrot.slane %v724, 2
        %v726 = vrot.slane %v656, 7
        %v727 = vsel %vm695, %v725, %v726
        %v728 = vrot.slane %v663, 7
        %v729 = vrot.slane %v728, 2
        %v730 = vrot.slane %v664, 7
        %v731 = vsel %vm695, %v729, %v730
        %v732 = vrot.slane %v671, 7
        %v733 = vrot.slane %v732, 2
        %v734 = vrot.slane %v672, 7
        %v735 = vsel %vm695, %v733, %v734
        %v736 = vrot.slane %v679, 7
        %v737 = vrot.slane %v736, 2
        %v738 = vrot.slane %v680, 7
        %v739 = vsel %vm695, %v737, %v738
        %v740 = vrot.slane %v687, 7
        %v741 = vrot.slane %v740, 2
        %v742 = vrot.slane %v688, 7
        %v743 = vsel %vm695, %v741, %v742
        %756 = vst [vmem:[#allocation2 + $0x4] sm:$0x3] %v699
        %757 = vst [vmem:[#allocation2 + $0xa] sm:$0x3] %v703
        %758 = vst [vmem:[#allocation2 + $0x10] sm:$0x3] %v707
        %759 = vst [vmem:[#allocation2 + $0x16] sm:$0x3] %v711
        %760 = vst [vmem:[#allocation2 + $0x1c] sm:$0x3] %v715
        %761 = vst [vmem:[#allocation2 + $0x22] sm:$0x3] %v719
        %762 = vst [vmem:[#allocation2 + $0x28] sm:$0x3] %v723
        %763 = vst [vmem:[#allocation2 + $0x2e] sm:$0x3] %v727
        %764 = vst [vmem:[#allocation2 + $0x34] sm:$0x3] %v731
        %765 = vst [vmem:[#allocation2 + $0x3a] sm:$0x3] %v735
        %766 = vst [vmem:[#allocation2 + $0x40] sm:$0x3] %v739
        %767 = vst [vmem:[#allocation2 + $0x46] sm:$0x3] %v743
        %v768 = vld [vmem:[#allocation2] sm:$0x3f]
        %v769 = vld [vmem:[#allocation2 + $0x6] sm:$0x3f]
        %v770 = vld [vmem:[#allocation2 + $0xc] sm:$0x3f]
        %v771 = vld [vmem:[#allocation2 + $0x12] sm:$0x3f]
        %v772 = vld [vmem:[#allocation2 + $0x24] sm:$0x3f]
        %v773 = vld [vmem:[#allocation2 + $0x2a] sm:$0x3f]
        %v774 = vld [vmem:[#allocation2 + $0x30] sm:$0x3f]
        %v775 = vld [vmem:[#allocation2 + $0x36] sm:$0x3f]
        %v776 = vld [vmem:[%s1] sm:$0xf]
        %v777 = vld [vmem:[%s1 + $0x4] sm:$0xf]
        %v778 = vld [vmem:[%s1 + $0x8] sm:$0xf]
        %v779 = vld [vmem:[%s1 + $0xc] sm:$0xf]
        %v780 = vld [vmem:[%s1 + $0x10] sm:$0xf]
        %v781 = vld [vmem:[%s1 + $0x14] sm:$0xf]
        %v782 = vld [vmem:[%s1 + $0x18] sm:$0xf]
        %v783 = vld [vmem:[%s1 + $0x1c] sm:$0xf]
        %v784 = vld [vmem:[%s1 + $0x20] sm:$0xf]
        %v785 = vld [vmem:[%s1 + $0x24] sm:$0xf]
        %v786 = vld [vmem:[%s1 + $0x28] sm:$0xf]
        %v787 = vld [vmem:[%s1 + $0x2c] sm:$0xf]
        %v788 = vld [vmem:[%s1 + $0x30] sm:$0xf]
        %v789 = vld [vmem:[%s1 + $0x34] sm:$0xf]
        %v790 = vld [vmem:[%s1 + $0x38] sm:$0xf]
        %v791 = vld [vmem:[%s1 + $0x3c] sm:$0xf]
        %v792 = vld [vmem:[%s1 + $0x40] sm:$0xf]
        %v793 = vld [vmem:[%s1 + $0x44] sm:$0xf]
        %v794 = vld [vmem:[%s1 + $0x48] sm:$0xf]
        %v795 = vld [vmem:[%s1 + $0x4c] sm:$0xf]
        %v796 = vld [vmem:[%s1 + $0x50] sm:$0xf]
        %v797 = vld [vmem:[%s1 + $0x54] sm:$0xf]
        %v798 = vld [vmem:[%s1 + $0x58] sm:$0xf]
        %v799 = vld [vmem:[%s1 + $0x5c] sm:$0xf]
        %v800 = vld [vmem:[%s1 + $0x60] sm:$0xf]
        %v801 = vld [vmem:[%s1 + $0x64] sm:$0xf]
        %v802 = vld [vmem:[%s1 + $0x68] sm:$0xf]
        %v803 = vld [vmem:[%s1 + $0x6c] sm:$0xf]
        %v804 = vld [vmem:[%s1 + $0x70] sm:$0xf]
        %v805 = vld [vmem:[%s1 + $0x74] sm:$0xf]
        %v806 = vld [vmem:[%s1 + $0x78] sm:$0xf]
        %v807 = vld [vmem:[%s1 + $0x7c] sm:$0xf]
        %v808 = vld [vmem:[%s1 + $0x80] sm:$0xf]
        %v809 = vld [vmem:[%s1 + $0x84] sm:$0xf]
        %v810 = vld [vmem:[%s1 + $0x88] sm:$0xf]
        %v811 = vld [vmem:[%s1 + $0x8c] sm:$0xf]
        %v812 = vld [vmem:[%s1 + $0x90] sm:$0xf]
        %v813 = vld [vmem:[%s1 + $0x94] sm:$0xf]
        %v814 = vld [vmem:[%s1 + $0x98] sm:$0xf]
        %v815 = vld [vmem:[%s1 + $0x9c] sm:$0xf]
        %v816 = vld [vmem:[%s1 + $0xa0] sm:$0xf]
        %v817 = vld [vmem:[%s1 + $0xa4] sm:$0xf]
        %v818 = vld [vmem:[%s1 + $0xa8] sm:$0xf]
        %v819 = vld [vmem:[%s1 + $0xac] sm:$0xf]
        %v820 = vld [vmem:[%s1 + $0xb0] sm:$0xf]
        %v821 = vld [vmem:[%s1 + $0xb4] sm:$0xf]
        %v822 = vld [vmem:[%s1 + $0xb8] sm:$0xf]
        %v823 = vld [vmem:[%s1 + $0xbc] sm:$0xf]
        %v832 = vcombine.low %v768, %v769
        %v833 = vcombine.high %v768, %v769
        %v834 = vcombine.low %v770, %v771
        %v835 = vcombine.high %v770, %v771
        %v837 = vunpack.c.l.s4 1983009808
        %v838 = vunpack.c.0.s8 %v837
        %v839 = vlaneseq
        %v840 = vshrl.u32 %v839, 7
        %v841 = vsub.s32 %v838, %v840
        %v842 = vrot.slane %v832, %v841
        %v844 = vunpack.c.l.s4 1983009808
        %v845 = vunpack.c.0.s8 %v844
        %v846 = vlaneseq
        %v847 = vshrl.u32 %v846, 7
        %v848 = vsub.s32 %v845, %v847
        %v849 = vrot.slane %v833, %v848
        %v851 = vunpack.c.l.s4 1983009808
        %v852 = vunpack.c.0.s8 %v851
        %v853 = vlaneseq
        %v854 = vshrl.u32 %v853, 7
        %v855 = vsub.s32 %v852, %v854
        %v856 = vrot.slane %v834, %v855
        %v858 = vunpack.c.l.s4 1983009808
        %v859 = vunpack.c.0.s8 %v858
        %v860 = vlaneseq
        %v861 = vshrl.u32 %v860, 7
        %v862 = vsub.s32 %v859, %v861
        %v863 = vrot.slane %v835, %v862
        %v864 = vcombine.low %v842, %v856
        %v865 = vcombine.high %v842, %v856
        %v866 = vcombine.low %v849, %v863
        %v867 = vcombine.low %v772, %v773
        %v868 = vcombine.high %v772, %v773
        %v869 = vcombine.low %v774, %v775
        %v870 = vcombine.high %v774, %v775
        %v872 = vunpack.c.l.s4 1983009808
        %v873 = vunpack.c.0.s8 %v872
        %v874 = vlaneseq
        %v875 = vshrl.u32 %v874, 7
        %v876 = vsub.s32 %v873, %v875
        %v877 = vrot.slane %v867, %v876
        %v879 = vunpack.c.l.s4 1983009808
        %v880 = vunpack.c.0.s8 %v879
        %v881 = vlaneseq
        %v882 = vshrl.u32 %v881, 7
        %v883 = vsub.s32 %v880, %v882
        %v884 = vrot.slane %v868, %v883
        %v886 = vunpack.c.l.s4 1983009808
        %v887 = vunpack.c.0.s8 %v886
        %v888 = vlaneseq
        %v889 = vshrl.u32 %v888, 7
        %v890 = vsub.s32 %v887, %v889
        %v891 = vrot.slane %v869, %v890
        %v893 = vunpack.c.l.s4 1983009808
        %v894 = vunpack.c.0.s8 %v893
        %v895 = vlaneseq
        %v896 = vshrl.u32 %v895, 7
        %v897 = vsub.s32 %v894, %v896
        %v898 = vrot.slane %v870, %v897
        %v899 = vcombine.low %v877, %v891
        %v900 = vcombine.high %v877, %v891
        %v901 = vcombine.low %v884, %v898
        %v956 = vunpack.c.l.b16 %v776
        %v957 = vunpack.c.l.b16 %v777
        %v958 = vunpack.c.l.b16 %v778
        %v959 = vunpack.c.l.b16 %v779
        %v960 = vunpack.c.l.b16 %v780
        %v961 = vunpack.c.l.b16 %v781
        %v962 = vunpack.c.l.b16 %v782
        %v963 = vunpack.c.l.b16 %v783
        %v964 = vunpack.c.l.b16 %v784
        %v965 = vunpack.c.l.b16 %v785
        %v966 = vunpack.c.l.b16 %v786
        %v967 = vunpack.c.l.b16 %v787
        %v968 = vunpack.c.l.b16 %v788
        %v969 = vunpack.c.l.b16 %v789
        %v970 = vunpack.c.l.b16 %v790
        %v971 = vunpack.c.l.b16 %v791
        %v972 = vunpack.c.l.b16 %v792
        %v973 = vunpack.c.l.b16 %v793
        %v974 = vunpack.c.l.b16 %v794
        %v975 = vunpack.c.l.b16 %v795
        %v976 = vunpack.c.l.b16 %v796
        %v977 = vunpack.c.l.b16 %v797
        %v978 = vunpack.c.l.b16 %v798
        %v979 = vunpack.c.l.b16 %v799
        %v980 = vunpack.c.l.b16 %v800
        %v981 = vunpack.c.l.b16 %v801
        %v982 = vunpack.c.l.b16 %v802
        %v983 = vunpack.c.l.b16 %v803
        %v984 = vunpack.c.l.b16 %v804
        %v985 = vunpack.c.l.b16 %v805
        %v986 = vunpack.c.l.b16 %v806
        %v987 = vunpack.c.l.b16 %v807
        %v988 = vunpack.c.l.b16 %v808
        %v989 = vunpack.c.l.b16 %v809
        %v990 = vunpack.c.l.b16 %v810
        %v991 = vunpack.c.l.b16 %v811
        %v992 = vunpack.c.l.b16 %v812
        %v993 = vunpack.c.l.b16 %v813
        %v994 = vunpack.c.l.b16 %v814
        %v995 = vunpack.c.l.b16 %v815
        %v996 = vunpack.c.l.b16 %v816
        %v997 = vunpack.c.l.b16 %v817
        %v998 = vunpack.c.l.b16 %v818
        %v999 = vunpack.c.l.b16 %v819
        %v1000 = vunpack.c.l.b16 %v820
        %v1001 = vunpack.c.l.b16 %v821
        %v1002 = vunpack.c.l.b16 %v822
        %v1003 = vunpack.c.l.b16 %v823
        %v1004 = vpack.c.b16 %v957, %v956
        %v1005 = vpack.c.b16 %v959, %v958
        %v1006 = vpack.c.b16 %v961, %v960
        %v1007 = vpack.c.b16 %v963, %v962
        %v1008 = vpack.c.b16 %v965, %v964
        %v1009 = vpack.c.b16 %v967, %v966
        %v1010 = vpack.c.b16 %v969, %v968
        %v1011 = vpack.c.b16 %v971, %v970
        %v1012 = vpack.c.b16 %v973, %v972
        %v1013 = vpack.c.b16 %v975, %v974
        %v1014 = vpack.c.b16 %v977, %v976
        %v1015 = vpack.c.b16 %v979, %v978
        %v1016 = vpack.c.b16 %v981, %v980
        %v1017 = vpack.c.b16 %v983, %v982
        %v1018 = vpack.c.b16 %v985, %v984
        %v1019 = vpack.c.b16 %v987, %v986
        %v1020 = vpack.c.b16 %v989, %v988
        %v1021 = vpack.c.b16 %v991, %v990
        %v1022 = vpack.c.b16 %v993, %v992
        %v1023 = vpack.c.b16 %v995, %v994
        %v1024 = vpack.c.b16 %v997, %v996
        %v1025 = vpack.c.b16 %v999, %v998
        %v1026 = vpack.c.b16 %v1001, %v1000
        %v1027 = vpack.c.b16 %v1003, %v1002
        %1052 = vmatprep.subr.bf16.mxu0 0
        %1053 = vmatpush1.bf16.msra.mxu0 %v1011
        %1054 = vmatprep.subr.bf16.mxu0 0
        %1055 = vmatpush1.bf16.msra.mxu0 %v1010
        %1056 = vmatprep.subr.bf16.mxu0 0
        %1057 = vmatpush1.bf16.msra.mxu0 %v1009
        %1058 = vmatprep.subr.bf16.mxu0 0
        %1059 = vmatpush1.bf16.msra.mxu0 %v1008
        %1060 = vmatprep.subr.bf16.mxu0 0
        %1061 = vmatpush1.bf16.msra.mxu0 %v1007
        %1062 = vmatprep.subr.bf16.mxu0 0
        %1063 = vmatpush1.bf16.msra.mxu0 %v1006
        %1064 = vmatprep.subr.bf16.mxu0 0
        %1065 = vmatpush1.bf16.msra.mxu0 %v1005
        %1066 = vmatprep.subr.bf16.mxu0 0
        %1067 = vmatpush1.bf16.msra.mxu0 %v1004
        %1068 = vmatprep.subr.bf16.mxu0 0
        %1069 = vmatpush2.bf16.msra.mxu0 %v1019
        %1070 = vmatprep.subr.bf16.mxu0 0
        %1071 = vmatpush2.bf16.msra.mxu0 %v1018
        %1072 = vmatprep.subr.bf16.mxu0 0
        %1073 = vmatpush2.bf16.msra.mxu0 %v1017
        %1074 = vmatprep.subr.bf16.mxu0 0
        %1075 = vmatpush2.bf16.msra.mxu0 %v1016
        %1076 = vmatprep.subr.bf16.mxu0 0
        %1077 = vmatpush2.bf16.msra.mxu0 %v1015
        %1078 = vmatprep.subr.bf16.mxu0 0
        %1079 = vmatpush2.bf16.msra.mxu0 %v1014
        %1080 = vmatprep.subr.bf16.mxu0 0
        %1081 = vmatpush2.bf16.msra.mxu0 %v1013
        %1082 = vmatprep.subr.bf16.mxu0 0
        %1083 = vmatpush2.bf16.msra.mxu0 %v1012
        %1084 = vmatprep.mubr.bf16.mxu0 %v865
        %1085 = vmatmul.mubr.bf16.gmra.mxu0 %v864
        %v1086 = vpop.f32.mrf.mxu0
        %v1087 = vadd.f32 0.0, %v1086
        %v1088 = vpop.f32.mrf.mxu0
        %v1089 = vpop.f32.mrf.mxu0
        %v1090 = vadd.f32 0.0, %v1089
        %v1091 = vpop.f32.mrf.mxu0
        %1092 = vmatprep.mubr.bf16.mxu0 %v900
        %1093 = vmatmul.mubr.bf16.gmra.mxu0 %v899
        %v1094 = vpop.f32.mrf.mxu0
        %v1095 = vadd.f32 0.0, %v1094
        %v1096 = vpop.f32.mrf.mxu0
        %v1097 = vpop.f32.mrf.mxu0
        %v1098 = vadd.f32 0.0, %v1097
        %v1099 = vpop.f32.mrf.mxu0
        %1100 = vdwg.mxu0
        %1101 = vmatprep.subr.bf16.mxu0 0
        %1102 = vmatpush1.bf16.msra.mxu0 %v1027
        %1103 = vmatprep.subr.bf16.mxu0 0
        %1104 = vmatpush1.bf16.msra.mxu0 %v1026
        %1105 = vmatprep.subr.bf16.mxu0 0
        %1106 = vmatpush1.bf16.msra.mxu0 %v1025
        %1107 = vmatprep.subr.bf16.mxu0 0
        %1108 = vmatpush1.bf16.msra.mxu0 %v1024
        %1109 = vmatprep.subr.bf16.mxu0 0
        %1110 = vmatpush1.bf16.msra.mxu0 %v1023
        %1111 = vmatprep.subr.bf16.mxu0 0
        %1112 = vmatpush1.bf16.msra.mxu0 %v1022
        %1113 = vmatprep.subr.bf16.mxu0 0
        %1114 = vmatpush1.bf16.msra.mxu0 %v1021
        %1115 = vmatprep.subr.bf16.mxu0 0
        %1116 = vmatpush1.bf16.msra.mxu0 %v1020
        %1117 = vmatprep.subr.bf16.mxu0 0
        %1118 = vmatpush2.bf16.msra.mxu0 0
        %1119 = vmatprep.subr.bf16.mxu0 0
        %1120 = vmatpush2.bf16.msra.mxu0 0
        %1121 = vmatprep.subr.bf16.mxu0 0
        %1122 = vmatpush2.bf16.msra.mxu0 0
        %1123 = vmatprep.subr.bf16.mxu0 0
        %1124 = vmatpush2.bf16.msra.mxu0 0
        %1125 = vmatprep.subr.bf16.mxu0 0
        %1126 = vmatpush2.bf16.msra.mxu0 0
        %1127 = vmatprep.subr.bf16.mxu0 0
        %1128 = vmatpush2.bf16.msra.mxu0 0
        %1129 = vmatprep.subr.bf16.mxu0 0
        %1130 = vmatpush2.bf16.msra.mxu0 0
        %1131 = vmatprep.subr.bf16.mxu0 0
        %1132 = vmatpush2.bf16.msra.mxu0 0
        %1133 = vmatprep.mubr.bf16.mxu0 0
        %1134 = vmatmul.mubr.bf16.gmra.mxu0 %v866
        %v1135 = vpop.f32.mrf.mxu0
        %v1136 = vadd.f32 %v1087, %v1135
        %v1137 = vpop.f32.mrf.mxu0
        %v1138 = vpop.f32.mrf.mxu0
        %v1139 = vadd.f32 %v1090, %v1138
        %v1140 = vpop.f32.mrf.mxu0
        %1141 = vmatprep.mubr.bf16.mxu0 0
        %1142 = vmatmul.mubr.bf16.gmra.mxu0 %v901
        %v1143 = vpop.f32.mrf.mxu0
        %v1144 = vadd.f32 %v1095, %v1143
        %v1145 = vpop.f32.mrf.mxu0
        %v1146 = vpop.f32.mrf.mxu0
        %v1147 = vadd.f32 %v1098, %v1146
        %v1148 = vpop.f32.mrf.mxu0
        %1149 = vdwg.mxu0
        %1150 = vst [vmem:[#allocation3] sm:$0xff] %v1136
        %1151 = vst [vmem:[#allocation3 + $0x8] sm:$0xff] %v1139
        %1152 = vst [vmem:[#allocation3 + $0x10] sm:$0xff] %v1144
        %1153 = vst [vmem:[#allocation3 + $0x18] sm:$0xff] %v1147
        %v1154 = vld [vmem:[#allocation3] sm:$0xff]
        %v1155 = vld [vmem:[#allocation3 + $0x8] sm:$0xff]
        %v1156 = vld [vmem:[#allocation3 + $0x10] sm:$0xff]
        %v1157 = vld [vmem:[#allocation3 + $0x18] sm:$0xff]
        %s1158 = scalar_lea.vmem [#allocation2], 6
        %v1159 = vld [vmem:[%s1158] sm:$0x3f]
        %v1160 = vld [vmem:[%s1158 + $0x6] sm:$0x3f]
        %v1161 = vld [vmem:[%s1158 + $0xc] sm:$0x3f]
        %v1162 = vld [vmem:[%s1158 + $0x12] sm:$0x3f]
        %v1163 = vld [vmem:[%s1158 + $0x24] sm:$0x3f]
        %v1164 = vld [vmem:[%s1158 + $0x2a] sm:$0x3f]
        %v1165 = vld [vmem:[%s1158 + $0x30] sm:$0x3f]
        %v1166 = vld [vmem:[%s1158 + $0x36] sm:$0x3f]
        %s1167 = scalar_lea.vmem %s1, 192
        %v1168 = vld [vmem:[%s1167] sm:$0xf]
        %v1169 = vld [vmem:[%s1167 + $0x4] sm:$0xf]
        %v1170 = vld [vmem:[%s1167 + $0x8] sm:$0xf]
        %v1171 = vld [vmem:[%s1167 + $0xc] sm:$0xf]
        %v1172 = vld [vmem:[%s1167 + $0x10] sm:$0xf]
        %v1173 = vld [vmem:[%s1167 + $0x14] sm:$0xf]
        %v1174 = vld [vmem:[%s1167 + $0x18] sm:$0xf]
        %v1175 = vld [vmem:[%s1167 + $0x1c] sm:$0xf]
        %v1176 = vld [vmem:[%s1167 + $0x20] sm:$0xf]
        %v1177 = vld [vmem:[%s1167 + $0x24] sm:$0xf]
        %v1178 = vld [vmem:[%s1167 + $0x28] sm:$0xf]
        %v1179 = vld [vmem:[%s1167 + $0x2c] sm:$0xf]
        %v1180 = vld [vmem:[%s1167 + $0x30] sm:$0xf]
        %v1181 = vld [vmem:[%s1167 + $0x34] sm:$0xf]
        %v1182 = vld [vmem:[%s1167 + $0x38] sm:$0xf]
        %v1183 = vld [vmem:[%s1167 + $0x3c] sm:$0xf]
        %v1184 = vld [vmem:[%s1167 + $0x40] sm:$0xf]
        %v1185 = vld [vmem:[%s1167 + $0x44] sm:$0xf]
        %v1186 = vld [vmem:[%s1167 + $0x48] sm:$0xf]
        %v1187 = vld [vmem:[%s1167 + $0x4c] sm:$0xf]
        %v1188 = vld [vmem:[%s1167 + $0x50] sm:$0xf]
        %v1189 = vld [vmem:[%s1167 + $0x54] sm:$0xf]
        %v1190 = vld [vmem:[%s1167 + $0x58] sm:$0xf]
        %v1191 = vld [vmem:[%s1167 + $0x5c] sm:$0xf]
        %v1192 = vld [vmem:[%s1167 + $0x60] sm:$0xf]
        %v1193 = vld [vmem:[%s1167 + $0x64] sm:$0xf]
        %v1194 = vld [vmem:[%s1167 + $0x68] sm:$0xf]
        %v1195 = vld [vmem:[%s1167 + $0x6c] sm:$0xf]
        %v1196 = vld [vmem:[%s1167 + $0x70] sm:$0xf]
        %v1197 = vld [vmem:[%s1167 + $0x74] sm:$0xf]
        %v1198 = vld [vmem:[%s1167 + $0x78] sm:$0xf]
        %v1199 = vld [vmem:[%s1167 + $0x7c] sm:$0xf]
        %v1200 = vld [vmem:[%s1167 + $0x80] sm:$0xf]
        %v1201 = vld [vmem:[%s1167 + $0x84] sm:$0xf]
        %v1202 = vld [vmem:[%s1167 + $0x88] sm:$0xf]
        %v1203 = vld [vmem:[%s1167 + $0x8c] sm:$0xf]
        %v1204 = vld [vmem:[%s1167 + $0x90] sm:$0xf]
        %v1205 = vld [vmem:[%s1167 + $0x94] sm:$0xf]
        %v1206 = vld [vmem:[%s1167 + $0x98] sm:$0xf]
        %v1207 = vld [vmem:[%s1167 + $0x9c] sm:$0xf]
        %v1208 = vld [vmem:[%s1167 + $0xa0] sm:$0xf]
        %v1209 = vld [vmem:[%s1167 + $0xa4] sm:$0xf]
        %v1210 = vld [vmem:[%s1167 + $0xa8] sm:$0xf]
        %v1211 = vld [vmem:[%s1167 + $0xac] sm:$0xf]
        %v1212 = vld [vmem:[%s1167 + $0xb0] sm:$0xf]
        %v1213 = vld [vmem:[%s1167 + $0xb4] sm:$0xf]
        %v1214 = vld [vmem:[%s1167 + $0xb8] sm:$0xf]
        %v1215 = vld [vmem:[%s1167 + $0xbc] sm:$0xf]
        %v1224 = vcombine.low %v1159, %v1160
        %v1225 = vcombine.high %v1159, %v1160
        %v1226 = vcombine.low %v1161, %v1162
        %v1227 = vcombine.high %v1161, %v1162
        %v1229 = vunpack.c.l.s4 1983009808
        %v1230 = vunpack.c.0.s8 %v1229
        %v1231 = vlaneseq
        %v1232 = vshrl.u32 %v1231, 7
        %v1233 = vsub.s32 %v1230, %v1232
        %v1234 = vrot.slane %v1224, %v1233
        %v1236 = vunpack.c.l.s4 1983009808
        %v1237 = vunpack.c.0.s8 %v1236
        %v1238 = vlaneseq
        %v1239 = vshrl.u32 %v1238, 7
        %v1240 = vsub.s32 %v1237, %v1239
        %v1241 = vrot.slane %v1225, %v1240
        %v1243 = vunpack.c.l.s4 1983009808
        %v1244 = vunpack.c.0.s8 %v1243
        %v1245 = vlaneseq
        %v1246 = vshrl.u32 %v1245, 7
        %v1247 = vsub.s32 %v1244, %v1246
        %v1248 = vrot.slane %v1226, %v1247
        %v1250 = vunpack.c.l.s4 1983009808
        %v1251 = vunpack.c.0.s8 %v1250
        %v1252 = vlaneseq
        %v1253 = vshrl.u32 %v1252, 7
        %v1254 = vsub.s32 %v1251, %v1253
        %v1255 = vrot.slane %v1227, %v1254
        %v1256 = vcombine.low %v1234, %v1248
        %v1257 = vcombine.high %v1234, %v1248
        %v1258 = vcombine.low %v1241, %v1255
        %v1259 = vcombine.low %v1163, %v1164
        %v1260 = vcombine.high %v1163, %v1164
        %v1261 = vcombine.low %v1165, %v1166
        %v1262 = vcombine.high %v1165, %v1166
        %v1264 = vunpack.c.l.s4 1983009808
        %v1265 = vunpack.c.0.s8 %v1264
        %v1266 = vlaneseq
        %v1267 = vshrl.u32 %v1266, 7
        %v1268 = vsub.s32 %v1265, %v1267
        %v1269 = vrot.slane %v1259, %v1268
        %v1271 = vunpack.c.l.s4 1983009808
        %v1272 = vunpack.c.0.s8 %v1271
        %v1273 = vlaneseq
        %v1274 = vshrl.u32 %v1273, 7
        %v1275 = vsub.s32 %v1272, %v1274
        %v1276 = vrot.slane %v1260, %v1275
        %v1278 = vunpack.c.l.s4 1983009808
        %v1279 = vunpack.c.0.s8 %v1278
        %v1280 = vlaneseq
        %v1281 = vshrl.u32 %v1280, 7
        %v1282 = vsub.s32 %v1279, %v1281
        %v1283 = vrot.slane %v1261, %v1282
        %v1285 = vunpack.c.l.s4 1983009808
        %v1286 = vunpack.c.0.s8 %v1285
        %v1287 = vlaneseq
        %v1288 = vshrl.u32 %v1287, 7
        %v1289 = vsub.s32 %v1286, %v1288
        %v1290 = vrot.slane %v1262, %v1289
        %v1291 = vcombine.low %v1269, %v1283
        %v1292 = vcombine.high %v1269, %v1283
        %v1293 = vcombine.low %v1276, %v1290
        %v1348 = vunpack.c.l.b16 %v1168
        %v1349 = vunpack.c.l.b16 %v1169
        %v1350 = vunpack.c.l.b16 %v1170
        %v1351 = vunpack.c.l.b16 %v1171
        %v1352 = vunpack.c.l.b16 %v1172
        %v1353 = vunpack.c.l.b16 %v1173
        %v1354 = vunpack.c.l.b16 %v1174
        %v1355 = vunpack.c.l.b16 %v1175
        %v1356 = vunpack.c.l.b16 %v1176
        %v1357 = vunpack.c.l.b16 %v1177
        %v1358 = vunpack.c.l.b16 %v1178
        %v1359 = vunpack.c.l.b16 %v1179
        %v1360 = vunpack.c.l.b16 %v1180
        %v1361 = vunpack.c.l.b16 %v1181
        %v1362 = vunpack.c.l.b16 %v1182
        %v1363 = vunpack.c.l.b16 %v1183
        %v1364 = vunpack.c.l.b16 %v1184
        %v1365 = vunpack.c.l.b16 %v1185
        %v1366 = vunpack.c.l.b16 %v1186
        %v1367 = vunpack.c.l.b16 %v1187
        %v1368 = vunpack.c.l.b16 %v1188
        %v1369 = vunpack.c.l.b16 %v1189
        %v1370 = vunpack.c.l.b16 %v1190
        %v1371 = vunpack.c.l.b16 %v1191
        %v1372 = vunpack.c.l.b16 %v1192
        %v1373 = vunpack.c.l.b16 %v1193
        %v1374 = vunpack.c.l.b16 %v1194
        %v1375 = vunpack.c.l.b16 %v1195
        %v1376 = vunpack.c.l.b16 %v1196
        %v1377 = vunpack.c.l.b16 %v1197
        %v1378 = vunpack.c.l.b16 %v1198
        %v1379 = vunpack.c.l.b16 %v1199
        %v1380 = vunpack.c.l.b16 %v1200
        %v1381 = vunpack.c.l.b16 %v1201
        %v1382 = vunpack.c.l.b16 %v1202
        %v1383 = vunpack.c.l.b16 %v1203
        %v1384 = vunpack.c.l.b16 %v1204
        %v1385 = vunpack.c.l.b16 %v1205
        %v1386 = vunpack.c.l.b16 %v1206
        %v1387 = vunpack.c.l.b16 %v1207
        %v1388 = vunpack.c.l.b16 %v1208
        %v1389 = vunpack.c.l.b16 %v1209
        %v1390 = vunpack.c.l.b16 %v1210
        %v1391 = vunpack.c.l.b16 %v1211
        %v1392 = vunpack.c.l.b16 %v1212
        %v1393 = vunpack.c.l.b16 %v1213
        %v1394 = vunpack.c.l.b16 %v1214
        %v1395 = vunpack.c.l.b16 %v1215
        %v1396 = vpack.c.b16 %v1349, %v1348
        %v1397 = vpack.c.b16 %v1351, %v1350
        %v1398 = vpack.c.b16 %v1353, %v1352
        %v1399 = vpack.c.b16 %v1355, %v1354
        %v1400 = vpack.c.b16 %v1357, %v1356
        %v1401 = vpack.c.b16 %v1359, %v1358
        %v1402 = vpack.c.b16 %v1361, %v1360
        %v1403 = vpack.c.b16 %v1363, %v1362
        %v1404 = vpack.c.b16 %v1365, %v1364
        %v1405 = vpack.c.b16 %v1367, %v1366
        %v1406 = vpack.c.b16 %v1369, %v1368
        %v1407 = vpack.c.b16 %v1371, %v1370
        %v1408 = vpack.c.b16 %v1373, %v1372
        %v1409 = vpack.c.b16 %v1375, %v1374
        %v1410 = vpack.c.b16 %v1377, %v1376
        %v1411 = vpack.c.b16 %v1379, %v1378
        %v1412 = vpack.c.b16 %v1381, %v1380
        %v1413 = vpack.c.b16 %v1383, %v1382
        %v1414 = vpack.c.b16 %v1385, %v1384
        %v1415 = vpack.c.b16 %v1387, %v1386
        %v1416 = vpack.c.b16 %v1389, %v1388
        %v1417 = vpack.c.b16 %v1391, %v1390
        %v1418 = vpack.c.b16 %v1393, %v1392
        %v1419 = vpack.c.b16 %v1395, %v1394
        %1444 = vmatprep.subr.bf16.mxu0 0
        %1445 = vmatpush1.bf16.msra.mxu0 %v1403
        %1446 = vmatprep.subr.bf16.mxu0 0
        %1447 = vmatpush1.bf16.msra.mxu0 %v1402
        %1448 = vmatprep.subr.bf16.mxu0 0
        %1449 = vmatpush1.bf16.msra.mxu0 %v1401
        %1450 = vmatprep.subr.bf16.mxu0 0
        %1451 = vmatpush1.bf16.msra.mxu0 %v1400
        %1452 = vmatprep.subr.bf16.mxu0 0
        %1453 = vmatpush1.bf16.msra.mxu0 %v1399
        %1454 = vmatprep.subr.bf16.mxu0 0
        %1455 = vmatpush1.bf16.msra.mxu0 %v1398
        %1456 = vmatprep.subr.bf16.mxu0 0
        %1457 = vmatpush1.bf16.msra.mxu0 %v1397
        %1458 = vmatprep.subr.bf16.mxu0 0
        %1459 = vmatpush1.bf16.msra.mxu0 %v1396
        %1460 = vmatprep.subr.bf16.mxu0 0
        %1461 = vmatpush2.bf16.msra.mxu0 %v1411
        %1462 = vmatprep.subr.bf16.mxu0 0
        %1463 = vmatpush2.bf16.msra.mxu0 %v1410
        %1464 = vmatprep.subr.bf16.mxu0 0
        %1465 = vmatpush2.bf16.msra.mxu0 %v1409
        %1466 = vmatprep.subr.bf16.mxu0 0
        %1467 = vmatpush2.bf16.msra.mxu0 %v1408
        %1468 = vmatprep.subr.bf16.mxu0 0
        %1469 = vmatpush2.bf16.msra.mxu0 %v1407
        %1470 = vmatprep.subr.bf16.mxu0 0
        %1471 = vmatpush2.bf16.msra.mxu0 %v1406
        %1472 = vmatprep.subr.bf16.mxu0 0
        %1473 = vmatpush2.bf16.msra.mxu0 %v1405
        %1474 = vmatprep.subr.bf16.mxu0 0
        %1475 = vmatpush2.bf16.msra.mxu0 %v1404
        %1476 = vmatprep.mubr.bf16.mxu0 %v1257
        %1477 = vmatmul.mubr.bf16.gmra.mxu0 %v1256
        %v1478 = vpop.f32.mrf.mxu0
        %v1479 = vadd.f32 0.0, %v1478
        %v1480 = vpop.f32.mrf.mxu0
        %v1481 = vpop.f32.mrf.mxu0
        %v1482 = vadd.f32 0.0, %v1481
        %v1483 = vpop.f32.mrf.mxu0
        %1484 = vmatprep.mubr.bf16.mxu0 %v1292
        %1485 = vmatmul.mubr.bf16.gmra.mxu0 %v1291
        %v1486 = vpop.f32.mrf.mxu0
        %v1487 = vadd.f32 0.0, %v1486
        %v1488 = vpop.f32.mrf.mxu0
        %v1489 = vpop.f32.mrf.mxu0
        %v1490 = vadd.f32 0.0, %v1489
        %v1491 = vpop.f32.mrf.mxu0
        %1492 = vdwg.mxu0
        %1493 = vmatprep.subr.bf16.mxu0 0
        %1494 = vmatpush1.bf16.msra.mxu0 %v1419
        %1495 = vmatprep.subr.bf16.mxu0 0
        %1496 = vmatpush1.bf16.msra.mxu0 %v1418
        %1497 = vmatprep.subr.bf16.mxu0 0
        %1498 = vmatpush1.bf16.msra.mxu0 %v1417
        %1499 = vmatprep.subr.bf16.mxu0 0
        %1500 = vmatpush1.bf16.msra.mxu0 %v1416
        %1501 = vmatprep.subr.bf16.mxu0 0
        %1502 = vmatpush1.bf16.msra.mxu0 %v1415
        %1503 = vmatprep.subr.bf16.mxu0 0
        %1504 = vmatpush1.bf16.msra.mxu0 %v1414
        %1505 = vmatprep.subr.bf16.mxu0 0
        %1506 = vmatpush1.bf16.msra.mxu0 %v1413
        %1507 = vmatprep.subr.bf16.mxu0 0
        %1508 = vmatpush1.bf16.msra.mxu0 %v1412
        %1509 = vmatprep.subr.bf16.mxu0 0
        %1510 = vmatpush2.bf16.msra.mxu0 0
        %1511 = vmatprep.subr.bf16.mxu0 0
        %1512 = vmatpush2.bf16.msra.mxu0 0
        %1513 = vmatprep.subr.bf16.mxu0 0
        %1514 = vmatpush2.bf16.msra.mxu0 0
        %1515 = vmatprep.subr.bf16.mxu0 0
        %1516 = vmatpush2.bf16.msra.mxu0 0
        %1517 = vmatprep.subr.bf16.mxu0 0
        %1518 = vmatpush2.bf16.msra.mxu0 0
        %1519 = vmatprep.subr.bf16.mxu0 0
        %1520 = vmatpush2.bf16.msra.mxu0 0
        %1521 = vmatprep.subr.bf16.mxu0 0
        %1522 = vmatpush2.bf16.msra.mxu0 0
        %1523 = vmatprep.subr.bf16.mxu0 0
        %1524 = vmatpush2.bf16.msra.mxu0 0
        %1525 = vmatprep.mubr.bf16.mxu0 0
        %1526 = vmatmul.mubr.bf16.gmra.mxu0 %v1258
        %v1527 = vpop.f32.mrf.mxu0
        %v1528 = vadd.f32 %v1479, %v1527
        %v1529 = vpop.f32.mrf.mxu0
        %v1530 = vpop.f32.mrf.mxu0
        %v1531 = vadd.f32 %v1482, %v1530
        %v1532 = vpop.f32.mrf.mxu0
        %1533 = vmatprep.mubr.bf16.mxu0 0
        %1534 = vmatmul.mubr.bf16.gmra.mxu0 %v1293
        %v1535 = vpop.f32.mrf.mxu0
        %v1536 = vadd.f32 %v1487, %v1535
        %v1537 = vpop.f32.mrf.mxu0
        %v1538 = vpop.f32.mrf.mxu0
        %v1539 = vadd.f32 %v1490, %v1538
        %v1540 = vpop.f32.mrf.mxu0
        %1541 = vdwg.mxu0
        %v1542 = vadd.f32 %v1154, %v1528
        %v1543 = vadd.f32 %v1155, %v1531
        %v1544 = vadd.f32 %v1156, %v1536
        %v1545 = vadd.f32 %v1157, %v1539
        %1546 = vst [vmem:[#allocation3] sm:$0xff] %v1542
        %1547 = vst [vmem:[#allocation3 + $0x8] sm:$0xff] %v1543
        %1548 = vst [vmem:[#allocation3 + $0x10] sm:$0xff] %v1544
        %1549 = vst [vmem:[#allocation3 + $0x18] sm:$0xff] %v1545
        %v1550 = vld [vmem:[#allocation3] sm:$0xff]
        %v1551 = vld [vmem:[#allocation3 + $0x8] sm:$0xff]
        %v1552 = vld [vmem:[#allocation3 + $0x10] sm:$0xff]
        %v1553 = vld [vmem:[#allocation3 + $0x18] sm:$0xff]
        %s1554 = scalar_lea.vmem [#allocation2], 12
        %v1555 = vld [vmem:[%s1554] sm:$0x3f]
        %v1556 = vld [vmem:[%s1554 + $0x6] sm:$0x3f]
        %v1557 = vld [vmem:[%s1554 + $0xc] sm:$0x3f]
        %v1558 = vld [vmem:[%s1554 + $0x12] sm:$0x3f]
        %v1559 = vld [vmem:[%s1554 + $0x24] sm:$0x3f]
        %v1560 = vld [vmem:[%s1554 + $0x2a] sm:$0x3f]
        %v1561 = vld [vmem:[%s1554 + $0x30] sm:$0x3f]
        %v1562 = vld [vmem:[%s1554 + $0x36] sm:$0x3f]
        %s1563 = scalar_lea.vmem %s1, 384
        %v1564 = vld [vmem:[%s1563] sm:$0xf]
        %v1565 = vld [vmem:[%s1563 + $0x4] sm:$0xf]
        %v1566 = vld [vmem:[%s1563 + $0x8] sm:$0xf]
        %v1567 = vld [vmem:[%s1563 + $0xc] sm:$0xf]
        %v1568 = vld [vmem:[%s1563 + $0x10] sm:$0xf]
        %v1569 = vld [vmem:[%s1563 + $0x14] sm:$0xf]
        %v1570 = vld [vmem:[%s1563 + $0x18] sm:$0xf]
        %v1571 = vld [vmem:[%s1563 + $0x1c] sm:$0xf]
        %v1572 = vld [vmem:[%s1563 + $0x20] sm:$0xf]
        %v1573 = vld [vmem:[%s1563 + $0x24] sm:$0xf]
        %v1574 = vld [vmem:[%s1563 + $0x28] sm:$0xf]
        %v1575 = vld [vmem:[%s1563 + $0x2c] sm:$0xf]
        %v1576 = vld [vmem:[%s1563 + $0x30] sm:$0xf]
        %v1577 = vld [vmem:[%s1563 + $0x34] sm:$0xf]
        %v1578 = vld [vmem:[%s1563 + $0x38] sm:$0xf]
        %v1579 = vld [vmem:[%s1563 + $0x3c] sm:$0xf]
        %v1580 = vld [vmem:[%s1563 + $0x40] sm:$0xf]
        %v1581 = vld [vmem:[%s1563 + $0x44] sm:$0xf]
        %v1582 = vld [vmem:[%s1563 + $0x48] sm:$0xf]
        %v1583 = vld [vmem:[%s1563 + $0x4c] sm:$0xf]
        %v1584 = vld [vmem:[%s1563 + $0x50] sm:$0xf]
        %v1585 = vld [vmem:[%s1563 + $0x54] sm:$0xf]
        %v1586 = vld [vmem:[%s1563 + $0x58] sm:$0xf]
        %v1587 = vld [vmem:[%s1563 + $0x5c] sm:$0xf]
        %v1588 = vld [vmem:[%s1563 + $0x60] sm:$0xf]
        %v1589 = vld [vmem:[%s1563 + $0x64] sm:$0xf]
        %v1590 = vld [vmem:[%s1563 + $0x68] sm:$0xf]
        %v1591 = vld [vmem:[%s1563 + $0x6c] sm:$0xf]
        %v1592 = vld [vmem:[%s1563 + $0x70] sm:$0xf]
        %v1593 = vld [vmem:[%s1563 + $0x74] sm:$0xf]
        %v1594 = vld [vmem:[%s1563 + $0x78] sm:$0xf]
        %v1595 = vld [vmem:[%s1563 + $0x7c] sm:$0xf]
        %v1596 = vld [vmem:[%s1563 + $0x80] sm:$0xf]
        %v1597 = vld [vmem:[%s1563 + $0x84] sm:$0xf]
        %v1598 = vld [vmem:[%s1563 + $0x88] sm:$0xf]
        %v1599 = vld [vmem:[%s1563 + $0x8c] sm:$0xf]
        %v1600 = vld [vmem:[%s1563 + $0x90] sm:$0xf]
        %v1601 = vld [vmem:[%s1563 + $0x94] sm:$0xf]
        %v1602 = vld [vmem:[%s1563 + $0x98] sm:$0xf]
        %v1603 = vld [vmem:[%s1563 + $0x9c] sm:$0xf]
        %v1604 = vld [vmem:[%s1563 + $0xa0] sm:$0xf]
        %v1605 = vld [vmem:[%s1563 + $0xa4] sm:$0xf]
        %v1606 = vld [vmem:[%s1563 + $0xa8] sm:$0xf]
        %v1607 = vld [vmem:[%s1563 + $0xac] sm:$0xf]
        %v1608 = vld [vmem:[%s1563 + $0xb0] sm:$0xf]
        %v1609 = vld [vmem:[%s1563 + $0xb4] sm:$0xf]
        %v1610 = vld [vmem:[%s1563 + $0xb8] sm:$0xf]
        %v1611 = vld [vmem:[%s1563 + $0xbc] sm:$0xf]
        %v1620 = vcombine.low %v1555, %v1556
        %v1621 = vcombine.high %v1555, %v1556
        %v1622 = vcombine.low %v1557, %v1558
        %v1623 = vcombine.high %v1557, %v1558
        %v1625 = vunpack.c.l.s4 1983009808
        %v1626 = vunpack.c.0.s8 %v1625
        %v1627 = vlaneseq
        %v1628 = vshrl.u32 %v1627, 7
        %v1629 = vsub.s32 %v1626, %v1628
        %v1630 = vrot.slane %v1620, %v1629
        %v1632 = vunpack.c.l.s4 1983009808
        %v1633 = vunpack.c.0.s8 %v1632
        %v1634 = vlaneseq
        %v1635 = vshrl.u32 %v1634, 7
        %v1636 = vsub.s32 %v1633, %v1635
        %v1637 = vrot.slane %v1621, %v1636
        %v1639 = vunpack.c.l.s4 1983009808
        %v1640 = vunpack.c.0.s8 %v1639
        %v1641 = vlaneseq
        %v1642 = vshrl.u32 %v1641, 7
        %v1643 = vsub.s32 %v1640, %v1642
        %v1644 = vrot.slane %v1622, %v1643
        %v1646 = vunpack.c.l.s4 1983009808
        %v1647 = vunpack.c.0.s8 %v1646
        %v1648 = vlaneseq
        %v1649 = vshrl.u32 %v1648, 7
        %v1650 = vsub.s32 %v1647, %v1649
        %v1651 = vrot.slane %v1623, %v1650
        %v1652 = vcombine.low %v1630, %v1644
        %v1653 = vcombine.high %v1630, %v1644
        %v1654 = vcombine.low %v1637, %v1651
        %v1655 = vcombine.low %v1559, %v1560
        %v1656 = vcombine.high %v1559, %v1560
        %v1657 = vcombine.low %v1561, %v1562
        %v1658 = vcombine.high %v1561, %v1562
        %v1660 = vunpack.c.l.s4 1983009808
        %v1661 = vunpack.c.0.s8 %v1660
        %v1662 = vlaneseq
        %v1663 = vshrl.u32 %v1662, 7
        %v1664 = vsub.s32 %v1661, %v1663
        %v1665 = vrot.slane %v1655, %v1664
        %v1667 = vunpack.c.l.s4 1983009808
        %v1668 = vunpack.c.0.s8 %v1667
        %v1669 = vlaneseq
        %v1670 = vshrl.u32 %v1669, 7
        %v1671 = vsub.s32 %v1668, %v1670
        %v1672 = vrot.slane %v1656, %v1671
        %v1674 = vunpack.c.l.s4 1983009808
        %v1675 = vunpack.c.0.s8 %v1674
        %v1676 = vlaneseq
        %v1677 = vshrl.u32 %v1676, 7
        %v1678 = vsub.s32 %v1675, %v1677
        %v1679 = vrot.slane %v1657, %v1678
        %v1681 = vunpack.c.l.s4 1983009808
        %v1682 = vunpack.c.0.s8 %v1681
        %v1683 = vlaneseq
        %v1684 = vshrl.u32 %v1683, 7
        %v1685 = vsub.s32 %v1682, %v1684
        %v1686 = vrot.slane %v1658, %v1685
        %v1687 = vcombine.low %v1665, %v1679
        %v1688 = vcombine.high %v1665, %v1679
        %v1689 = vcombine.low %v1672, %v1686
        %v1744 = vunpack.c.l.b16 %v1564
        %v1745 = vunpack.c.l.b16 %v1565
        %v1746 = vunpack.c.l.b16 %v1566
        %v1747 = vunpack.c.l.b16 %v1567
        %v1748 = vunpack.c.l.b16 %v1568
        %v1749 = vunpack.c.l.b16 %v1569
        %v1750 = vunpack.c.l.b16 %v1570
        %v1751 = vunpack.c.l.b16 %v1571
        %v1752 = vunpack.c.l.b16 %v1572
        %v1753 = vunpack.c.l.b16 %v1573
        %v1754 = vunpack.c.l.b16 %v1574
        %v1755 = vunpack.c.l.b16 %v1575
        %v1756 = vunpack.c.l.b16 %v1576
        %v1757 = vunpack.c.l.b16 %v1577
        %v1758 = vunpack.c.l.b16 %v1578
        %v1759 = vunpack.c.l.b16 %v1579
        %v1760 = vunpack.c.l.b16 %v1580
        %v1761 = vunpack.c.l.b16 %v1581
        %v1762 = vunpack.c.l.b16 %v1582
        %v1763 = vunpack.c.l.b16 %v1583
        %v1764 = vunpack.c.l.b16 %v1584
        %v1765 = vunpack.c.l.b16 %v1585
        %v1766 = vunpack.c.l.b16 %v1586
        %v1767 = vunpack.c.l.b16 %v1587
        %v1768 = vunpack.c.l.b16 %v1588
        %v1769 = vunpack.c.l.b16 %v1589
        %v1770 = vunpack.c.l.b16 %v1590
        %v1771 = vunpack.c.l.b16 %v1591
        %v1772 = vunpack.c.l.b16 %v1592
        %v1773 = vunpack.c.l.b16 %v1593
        %v1774 = vunpack.c.l.b16 %v1594
        %v1775 = vunpack.c.l.b16 %v1595
        %v1776 = vunpack.c.l.b16 %v1596
        %v1777 = vunpack.c.l.b16 %v1597
        %v1778 = vunpack.c.l.b16 %v1598
        %v1779 = vunpack.c.l.b16 %v1599
        %v1780 = vunpack.c.l.b16 %v1600
        %v1781 = vunpack.c.l.b16 %v1601
        %v1782 = vunpack.c.l.b16 %v1602
        %v1783 = vunpack.c.l.b16 %v1603
        %v1784 = vunpack.c.l.b16 %v1604
        %v1785 = vunpack.c.l.b16 %v1605
        %v1786 = vunpack.c.l.b16 %v1606
        %v1787 = vunpack.c.l.b16 %v1607
        %v1788 = vunpack.c.l.b16 %v1608
        %v1789 = vunpack.c.l.b16 %v1609
        %v1790 = vunpack.c.l.b16 %v1610
        %v1791 = vunpack.c.l.b16 %v1611
        %v1792 = vpack.c.b16 %v1745, %v1744
        %v1793 = vpack.c.b16 %v1747, %v1746
        %v1794 = vpack.c.b16 %v1749, %v1748
        %v1795 = vpack.c.b16 %v1751, %v1750
        %v1796 = vpack.c.b16 %v1753, %v1752
        %v1797 = vpack.c.b16 %v1755, %v1754
        %v1798 = vpack.c.b16 %v1757, %v1756
        %v1799 = vpack.c.b16 %v1759, %v1758
        %v1800 = vpack.c.b16 %v1761, %v1760
        %v1801 = vpack.c.b16 %v1763, %v1762
        %v1802 = vpack.c.b16 %v1765, %v1764
        %v1803 = vpack.c.b16 %v1767, %v1766
        %v1804 = vpack.c.b16 %v1769, %v1768
        %v1805 = vpack.c.b16 %v1771, %v1770
        %v1806 = vpack.c.b16 %v1773, %v1772
        %v1807 = vpack.c.b16 %v1775, %v1774
        %v1808 = vpack.c.b16 %v1777, %v1776
        %v1809 = vpack.c.b16 %v1779, %v1778
        %v1810 = vpack.c.b16 %v1781, %v1780
        %v1811 = vpack.c.b16 %v1783, %v1782
        %v1812 = vpack.c.b16 %v1785, %v1784
        %v1813 = vpack.c.b16 %v1787, %v1786
        %v1814 = vpack.c.b16 %v1789, %v1788
        %v1815 = vpack.c.b16 %v1791, %v1790
        %1840 = vmatprep.subr.bf16.mxu0 0
        %1841 = vmatpush1.bf16.msra.mxu0 %v1799
        %1842 = vmatprep.subr.bf16.mxu0 0
        %1843 = vmatpush1.bf16.msra.mxu0 %v1798
        %1844 = vmatprep.subr.bf16.mxu0 0
        %1845 = vmatpush1.bf16.msra.mxu0 %v1797
        %1846 = vmatprep.subr.bf16.mxu0 0
        %1847 = vmatpush1.bf16.msra.mxu0 %v1796
        %1848 = vmatprep.subr.bf16.mxu0 0
        %1849 = vmatpush1.bf16.msra.mxu0 %v1795
        %1850 = vmatprep.subr.bf16.mxu0 0
        %1851 = vmatpush1.bf16.msra.mxu0 %v1794
        %1852 = vmatprep.subr.bf16.mxu0 0
        %1853 = vmatpush1.bf16.msra.mxu0 %v1793
        %1854 = vmatprep.subr.bf16.mxu0 0
        %1855 = vmatpush1.bf16.msra.mxu0 %v1792
        %1856 = vmatprep.subr.bf16.mxu0 0
        %1857 = vmatpush2.bf16.msra.mxu0 %v1807
        %1858 = vmatprep.subr.bf16.mxu0 0
        %1859 = vmatpush2.bf16.msra.mxu0 %v1806
        %1860 = vmatprep.subr.bf16.mxu0 0
        %1861 = vmatpush2.bf16.msra.mxu0 %v1805
        %1862 = vmatprep.subr.bf16.mxu0 0
        %1863 = vmatpush2.bf16.msra.mxu0 %v1804
        %1864 = vmatprep.subr.bf16.mxu0 0
        %1865 = vmatpush2.bf16.msra.mxu0 %v1803
        %1866 = vmatprep.subr.bf16.mxu0 0
        %1867 = vmatpush2.bf16.msra.mxu0 %v1802
        %1868 = vmatprep.subr.bf16.mxu0 0
        %1869 = vmatpush2.bf16.msra.mxu0 %v1801
        %1870 = vmatprep.subr.bf16.mxu0 0
        %1871 = vmatpush2.bf16.msra.mxu0 %v1800
        %1872 = vmatprep.mubr.bf16.mxu0 %v1653
        %1873 = vmatmul.mubr.bf16.gmra.mxu0 %v1652
        %v1874 = vpop.f32.mrf.mxu0
        %v1875 = vadd.f32 0.0, %v1874
        %v1876 = vpop.f32.mrf.mxu0
        %v1877 = vpop.f32.mrf.mxu0
        %v1878 = vadd.f32 0.0, %v1877
        %v1879 = vpop.f32.mrf.mxu0
        %1880 = vmatprep.mubr.bf16.mxu0 %v1688
        %1881 = vmatmul.mubr.bf16.gmra.mxu0 %v1687
        %v1882 = vpop.f32.mrf.mxu0
        %v1883 = vadd.f32 0.0, %v1882
        %v1884 = vpop.f32.mrf.mxu0
        %v1885 = vpop.f32.mrf.mxu0
        %v1886 = vadd.f32 0.0, %v1885
        %v1887 = vpop.f32.mrf.mxu0
        %1888 = vdwg.mxu0
        %1889 = vmatprep.subr.bf16.mxu0 0
        %1890 = vmatpush1.bf16.msra.mxu0 %v1815
        %1891 = vmatprep.subr.bf16.mxu0 0
        %1892 = vmatpush1.bf16.msra.mxu0 %v1814
        %1893 = vmatprep.subr.bf16.mxu0 0
        %1894 = vmatpush1.bf16.msra.mxu0 %v1813
        %1895 = vmatprep.subr.bf16.mxu0 0
        %1896 = vmatpush1.bf16.msra.mxu0 %v1812
        %1897 = vmatprep.subr.bf16.mxu0 0
        %1898 = vmatpush1.bf16.msra.mxu0 %v1811
        %1899 = vmatprep.subr.bf16.mxu0 0
        %1900 = vmatpush1.bf16.msra.mxu0 %v1810
        %1901 = vmatprep.subr.bf16.mxu0 0
        %1902 = vmatpush1.bf16.msra.mxu0 %v1809
        %1903 = vmatprep.subr.bf16.mxu0 0
        %1904 = vmatpush1.bf16.msra.mxu0 %v1808
        %1905 = vmatprep.subr.bf16.mxu0 0
        %1906 = vmatpush2.bf16.msra.mxu0 0
        %1907 = vmatprep.subr.bf16.mxu0 0
        %1908 = vmatpush2.bf16.msra.mxu0 0
        %1909 = vmatprep.subr.bf16.mxu0 0
        %1910 = vmatpush2.bf16.msra.mxu0 0
        %1911 = vmatprep.subr.bf16.mxu0 0
        %1912 = vmatpush2.bf16.msra.mxu0 0
        %1913 = vmatprep.subr.bf16.mxu0 0
        %1914 = vmatpush2.bf16.msra.mxu0 0
        %1915 = vmatprep.subr.bf16.mxu0 0
        %1916 = vmatpush2.bf16.msra.mxu0 0
        %1917 = vmatprep.subr.bf16.mxu0 0
        %1918 = vmatpush2.bf16.msra.mxu0 0
        %1919 = vmatprep.subr.bf16.mxu0 0
        %1920 = vmatpush2.bf16.msra.mxu0 0
        %1921 = vmatprep.mubr.bf16.mxu0 0
        %1922 = vmatmul.mubr.bf16.gmra.mxu0 %v1654
        %v1923 = vpop.f32.mrf.mxu0
        %v1924 = vadd.f32 %v1875, %v1923
        %v1925 = vpop.f32.mrf.mxu0
        %v1926 = vpop.f32.mrf.mxu0
        %v1927 = vadd.f32 %v1878, %v1926
        %v1928 = vpop.f32.mrf.mxu0
        %1929 = vmatprep.mubr.bf16.mxu0 0
        %1930 = vmatmul.mubr.bf16.gmra.mxu0 %v1689
        %v1931 = vpop.f32.mrf.mxu0
        %v1932 = vadd.f32 %v1883, %v1931
        %v1933 = vpop.f32.mrf.mxu0
        %v1934 = vpop.f32.mrf.mxu0
        %v1935 = vadd.f32 %v1886, %v1934
        %v1936 = vpop.f32.mrf.mxu0
        %1937 = vdwg.mxu0
        %v1938 = vadd.f32 %v1550, %v1924
        %v1939 = vadd.f32 %v1551, %v1927
        %v1940 = vadd.f32 %v1552, %v1932
        %v1941 = vadd.f32 %v1553, %v1935
        %1942 = vst [vmem:[#allocation3] sm:$0xff] %v1938
        %1943 = vst [vmem:[#allocation3 + $0x8] sm:$0xff] %v1939
        %1944 = vst [vmem:[#allocation3 + $0x10] sm:$0xff] %v1940
        %1945 = vst [vmem:[#allocation3 + $0x18] sm:$0xff] %v1941
        %v1946 = vld [vmem:[#allocation3] sm:$0xff]
        %v1947 = vld [vmem:[#allocation3 + $0x8] sm:$0xff]
        %v1948 = vld [vmem:[#allocation3 + $0x10] sm:$0xff]
        %v1949 = vld [vmem:[#allocation3 + $0x18] sm:$0xff]
        %v1950 = vadd.f32 %v1946, %v1947
        %v1951 = vadd.f32 %v1950, %v1948
        %v1952 = vadd.f32 %v1951, %v1949
        %v1953 = vrot.slane %v1952, 4
        %v1954 = vadd.f32 %v1952, %v1953
        %v1955 = vrot.slane %v1954, 2
        %v1956 = vadd.f32 %v1954, %v1955
        %v1957 = vrot.slane %v1956, 1
        %v1958 = vadd.f32 %v1956, %v1957
        %v1959 = vmul.f32 %v1958, 0.03125
        %v1960 = vsub.f32 %v1946, %v1959
        %v1961 = vsub.f32 %v1947, %v1959
        %v1962 = vsub.f32 %v1948, %v1959
        %v1963 = vsub.f32 %v1949, %v1959
        %v1964 = vmul.f32 %v1960, %v1960
        %v1965 = vmul.f32 %v1961, %v1961
        %v1966 = vmul.f32 %v1962, %v1962
        %v1967 = vmul.f32 %v1963, %v1963
        %v1968 = vadd.f32 %v1964, %v1965
        %v1969 = vadd.f32 %v1968, %v1966
        %v1970 = vadd.f32 %v1969, %v1967
        %v1971 = vrot.slane %v1970, 4
        %v1972 = vadd.f32 %v1970, %v1971
        %v1973 = vrot.slane %v1972, 2
        %v1974 = vadd.f32 %v1972, %v1973
        %v1975 = vrot.slane %v1974, 1
        %v1976 = vadd.f32 %v1974, %v1975
        %1977 = vst [vmem:[#allocation4] sm:$0x1] %v1959
        %1978 = vst [vmem:[#allocation5] sm:$0x1] %v1976
      $region40: #{hourglass2d_pallas.9} parent=35 // pred_fallthru
        _
      %p1979 = scmp.eq.s32.totalorder %s19, 1
      // Predicated region
      $region41: #{hourglass2d_pallas.9} parent=35 // pred_check
        %p1980 = pneg %p1979
      $region42: #{hourglass2d_pallas.9} parent=35 // pred_check_branch
        %1982 = sbr.rel (%p1980) target = $region44
      $region43: #{hourglass2d_pallas.9} parent=35 // pred_region
        %v1983 = vld [vmem:[#allocation5] sm:$0x1]
        %v1984 = vmul.f32 %v1983, 0.03125
        %v1985 = vadd.f32 %v1984, 1e-05
        %v1986 = vrsqrt.pop %v1985
        %v1987 = vld [vmem:[%s2] sm:$0x1]
        %v1988 = vmul.f32 %v1986, %v1987
        %v1989 = vld [vmem:[%s3] sm:$0x1]
        %v1990 = vld [vmem:[#allocation4] sm:$0x1]
        %v1991 = vmul.f32 %v1990, %v1988
        %v1992 = vsub.f32 %v1989, %v1991
        %v1993 = vld [vmem:[#allocation3] sm:$0xff]
        %v1994 = vld [vmem:[#allocation3 + $0x8] sm:$0xff]
        %v1995 = vld [vmem:[#allocation3 + $0x10] sm:$0xff]
        %v1996 = vld [vmem:[#allocation3 + $0x18] sm:$0xff]
        %v1998 = vlaneseq
        %v1999 = vshrl.u32 %v1998, 7
        %v2000 = vsub.s32 0, %v1999
        %v2001 = vrot.slane %v1988, %v2000
        %v2003 = vmul.f32 %v1993, %v2001
        %v2004 = vmul.f32 %v1994, %v2001
        %v2005 = vmul.f32 %v1995, %v2001
        %v2006 = vmul.f32 %v1996, %v2001
        %v2008 = vlaneseq
        %v2009 = vshrl.u32 %v2008, 7
        %v2010 = vsub.s32 0, %v2009
        %v2011 = vrot.slane %v1992, %v2010
        %v2013 = vadd.f32 %v2003, %v2011
        %v2014 = vadd.f32 %v2004, %v2011
        %v2015 = vadd.f32 %v2005, %v2011
        %v2016 = vadd.f32 %v2006, %v2011
        %v2017 = vmax.f32 %v2013, 0.0
        %v2018 = vmax.f32 %v2014, 0.0
        %v2019 = vmax.f32 %v2015, 0.0
        %v2020 = vmax.f32 %v2016, 0.0
        %v2021 = vpack.c.bf16 %v2018, %v2017
        %v2022 = vpack.c.bf16 %v2020, %v2019
        %v2025 = vunpack.c.l.b16 %v2021
        %v2026 = vunpack.c.h.b16 %v2021
        %v2027 = vunpack.c.l.b16 %v2022
        %v2028 = vunpack.c.h.b16 %v2022
        %v2029 = vpack.c.b16 %v2025, %v2025
        %v2030 = vpack.c.b16 %v2026, %v2026
        %v2031 = vpack.c.b16 %v2027, %v2027
        %v2032 = vpack.c.b16 %v2028, %v2028
        %2037 = vst [vmem:[%s218] sm:$0xf] %v2029
        %2038 = vst [vmem:[%s218 + $0x4] sm:$0xf] %v2030
        %2039 = vst [vmem:[%s218 + $0x8] sm:$0xf] %v2031
        %2040 = vst [vmem:[%s218 + $0xc] sm:$0xf] %v2032
      $region44: #{hourglass2d_pallas.9} parent=35 // pred_fallthru
        _
      %s2041 = smul.u32 %s20, %s19
      %s2042 = smul.u32 4, %s2041
      %p2043 = scmp.lt.s32.totalorder %s2042, 3
      %s2044 = scalar_select %p2043, %s2042, 3
      %s2045 = smul.addr %s2044, 4
      %s2046 = scalar_lea.vmem %s4, %s2045
      // Predicated region
      $region45: #{hourglass2d_pallas.9} parent=35 // pred_check
        %p2047 = pneg %p136
      $region46: #{hourglass2d_pallas.9} parent=35 // pred_check_branch
        %2049 = sbr.rel (%p2047) target = $region48
      $region47: #{hourglass2d_pallas.9} parent=35 // pred_region
        %s2050 = smul.u32 %s20, %s19
        %s2051 = smul.u32 4, %s2050
      $region48: #{hourglass2d_pallas.9} parent=35 // pred_fallthru
        _
    $region36: #{hourglass2d_pallas.9} parent=5 // pred_fallthru
      _
    %p2052 = scmp.le.s32.totalorder 2, %s10
    // Predicated region
    $region49: #{hourglass2d_pallas.9} parent=5 // pred_check
      %p2053 = pneg %p2052
    $region50: #{hourglass2d_pallas.9} parent=5 // pred_check_branch
      %2055 = sbr.rel (%p2053) target = $region52
    $region51: #{hourglass2d_pallas.9} parent=5 // pred_region
      %s2056 = ssub.s32 %s10, 2
      // Predicated region
      $region53: #{hourglass2d_pallas.9} parent=51 // pred_check
        %p2057 = pneg %p142
      $region54: #{hourglass2d_pallas.9} parent=51 // pred_check_branch
        %2059 = sbr.rel (%p2057) target = $region56
      $region55: #{hourglass2d_pallas.9} parent=51 // pred_region
        %s2060 = smul.u32 %s22, %s21
        %s2061 = smul.u32 4, %s2060
        %p2062 = scmp.lt.s32.totalorder %s2061, 3
        %s2063 = scalar_select %p2062, %s2061, 3
        %s2064 = smul.addr %s2063, 4
        %s2065 = scalar_lea.vmem %s4, %s2064
      $region56: #{hourglass2d_pallas.9} parent=51 // pred_fallthru
        _
    $region52: #{hourglass2d_pallas.9} parent=5 // pred_fallthru
      _
  $region6: #{hourglass2d_pallas.9} parent=0 // loop_footer
    %s14 = sadd.s32 1, %s10
  $region7: #{hourglass2d_pallas.9} parent=0 // loop_footer_branch
    %9 = sbr.rel target = $region3
  $region8: #{hourglass2d_pallas.9} parent=0 // loop_exit
    _

// kernel: hourglass2d_pallas.8
$region0: #{hourglass2d_pallas.8}
  #allocation0 [shape = 'u32[]', space=smem, size = 0x4, offset = 0x4, fixed_abs, tag = 'smem constant byte address 0x4 - core index']
  #allocation1 [shape = 'u32[144,128]{1,0:T(1,128)}', space=vmem, size = 0x12000, scoped, tag = 'internal scratch']
  #allocation2 [shape = 'bf16[2,10,8,384]{3,2,1,0:T(8,128)(2,1)}', space=vmem, size = 0x1e000, scoped, tag = 'scratch operand']
  #allocation3 [shape = 'f32[128,128]{1,0:T(8,128)}', space=vmem, size = 0x10000, scoped, tag = 'scratch operand']
  #allocation4 [shape = 'f32[1,128]{1,0:T(1,128)}', space=vmem, size = 0x200, scoped, tag = 'scratch operand']
  #allocation5 [shape = 'f32[1,128]{1,0:T(1,128)}', space=vmem, size = 0x200, scoped, tag = 'scratch operand']
  %s0 = inlined_call_operand.vmem [shape: bf16[2,10,10,128], index: 0, kind: input, shape index: {}]
  %s1 = inlined_call_operand.vmem [shape: bf16[3,384,128], index: 1, kind: input, shape index: {}]
  %s2 = inlined_call_operand.vmem [shape: f32[1,128], index: 2, kind: input, shape index: {}]
  %s3 = inlined_call_operand.vmem [shape: f32[1,128], index: 3, kind: input, shape index: {}]
  %s4 = inlined_call_operand.vmem [shape: bf16[128,128], index: 4, kind: output, shape index: {}]
  %s5 = sld [smem:[#allocation0]]
  $region57: #{hourglass2d_pallas.8} parent=0
    _
  %s7 = ssub.s32 1, %s5
  %s8 = scalar_select 0, %s7, %s5
  loop: start=0, step=1, limit=4
  $region2: #{hourglass2d_pallas.8} parent=0 // loop_pre_header
    _
  $region3: #{hourglass2d_pallas.8} parent=0 // loop_header
    %s10 = sphi 0, %s14
    %p11 = scmp.ge.s32.totalorder %s10, 4
    %s17 = sphi 0, %s29
    %s18 = sphi 0, %s25
    %s19 = sphi 0, %s17
    %s20 = sphi 0, %s18
    %s21 = sphi 0, %s19
    %s22 = sphi 0, %s20
    %s32 = sphi 0, %s34
    %s35 = sphi 0, %s32
    %s36 = sphi 0, %s35
    %s52 = sphi 0, %s36
    %s56 = sphi 0, %s56
    %s58 = sphi 0, %s56
    %s59 = sphi 0, %s58
    %s73 = sphi 0, %s59
    %s77 = sphi 0, %s77
    %s79 = sphi 0, %s77
    %s80 = sphi 0, %s79
    %s94 = sphi 0, %s80
    %s98 = sphi 0, %s98
    %s100 = sphi 0, %s98
    %s101 = sphi 0, %s100
    %s115 = sphi 0, %s101
    %s123 = sphi 0, %s125
    %s126 = sphi 0, %s123
    %s127 = sphi 0, %s126
    %s143 = sphi 0, %s127
  $region4: #{hourglass2d_pallas.8} parent=0 // loop_header_branch
    %13 = sbr.rel (%p11) target = $region8
  $region5: #{hourglass2d_pallas.8} parent=0 // loop_body
    %s15 = ssub.s32 %s10, 1
    %s16 = ssub.s32 %s10, 2
    %s23 = sadd.s32 1, %s18
    %p24 = scmp.ge.s32.totalorder %s23, 1
    %s25 = scalar_select %p24, 0, %s23
    %s26 = sadd.s32 1, %s17
    %s27 = scalar_select %p24, %s26, %s17
    %p28 = scmp.ge.s32.totalorder %s27, 2
    %s29 = scalar_select %p28, 0, %s27
    %s30 = ssub.s32 %s18, %s25
    %p31 = scmp.eq.s32.totalorder %s30, 0
    %s33 = sadd.s32 %s32, 1
    %s34 = scalar_select %p31, %s32, %s33
    %p37 = pneg %p31
    %p38 = scmp.eq.s32.totalorder %s10, 1
    %p39 = por %p37, %p38
    %p40 = scmp.ne.s32.totalorder %s32, %s35
    %p41 = scmp.eq.s32.totalorder %s10, 0
    %p42 = por %p40, %p41
    %p43 = scmp.ne.s32.totalorder %s32, %s35
    %p44 = scmp.eq.s32.totalorder %s15, 1
    %p45 = por %p43, %p44
    %p46 = scmp.ne.s32.totalorder %s35, %s36
    %p47 = scmp.eq.s32.totalorder %s15, 0
    %p48 = por %p46, %p47
    %p49 = scmp.ne.s32.totalorder %s35, %s36
    %p50 = scmp.eq.s32.totalorder %s16, 1
    %p51 = por %p49, %p50
    %p53 = scmp.ne.s32.totalorder %s36, %s52
    %p54 = scmp.eq.s32.totalorder %s16, 0
    %p55 = por %p53, %p54
    %s57 = sadd.s32 %s56, 1
    %p60 = scmp.eq.s32.totalorder %s10, 1
    %p61 = scmp.ne.s32.totalorder %s56, %s58
    %p62 = scmp.eq.s32.totalorder %s10, 0
    %p63 = por %p61, %p62
    %p64 = scmp.ne.s32.totalorder %s56, %s58
    %p65 = scmp.eq.s32.totalorder %s15, 1
    %p66 = por %p64, %p65
    %p67 = scmp.ne.s32.totalorder %s58, %s59
    %p68 = scmp.eq.s32.totalorder %s15, 0
    %p69 = por %p67, %p68
    %p70 = scmp.ne.s32.totalorder %s58, %s59
    %p71 = scmp.eq.s32.totalorder %s16, 1
    %p72 = por %p70, %p71
    %p74 = scmp.ne.s32.totalorder %s59, %s73
    %p75 = scmp.eq.s32.totalorder %s16, 0
    %p76 = por %p74, %p75
    %s78 = sadd.s32 %s77, 1
    %p81 = scmp.eq.s32.totalorder %s10, 1
    %p82 = scmp.ne.s32.totalorder %s77, %s79
    %p83 = scmp.eq.s32.totalorder %s10, 0
    %p84 = por %p82, %p83
    %p85 = scmp.ne.s32.totalorder %s77, %s79
    %p86 = scmp.eq.s32.totalorder %s15, 1
    %p87 = por %p85, %p86
    %p88 = scmp.ne.s32.totalorder %s79, %s80
    %p89 = scmp.eq.s32.totalorder %s15, 0
    %p90 = por %p88, %p89
    %p91 = scmp.ne.s32.totalorder %s79, %s80
    %p92 = scmp.eq.s32.totalorder %s16, 1
    %p93 = por %p91, %p92
    %p95 = scmp.ne.s32.totalorder %s80, %s94
    %p96 = scmp.eq.s32.totalorder %s16, 0
    %p97 = por %p95, %p96
    %s99 = sadd.s32 %s98, 1
    %p102 = scmp.eq.s32.totalorder %s10, 1
    %p103 = scmp.ne.s32.totalorder %s98, %s100
    %p104 = scmp.eq.s32.totalorder %s10, 0
    %p105 = por %p103, %p104
    %p106 = scmp.ne.s32.totalorder %s98, %s100
    %p107 = scmp.eq.s32.totalorder %s15, 1
    %p108 = por %p106, %p107
    %p109 = scmp.ne.s32.totalorder %s100, %s101
    %p110 = scmp.eq.s32.totalorder %s15, 0
    %p111 = por %p109, %p110
    %p112 = scmp.ne.s32.totalorder %s100, %s101
    %p113 = scmp.eq.s32.totalorder %s16, 1
    %p114 = por %p112, %p113
    %p116 = scmp.ne.s32.totalorder %s101, %s115
    %p117 = scmp.eq.s32.totalorder %s16, 0
    %p118 = por %p116, %p117
    %s119 = smul.u32 %s18, %s17
    %s120 = smul.u32 %s25, %s29
    %s121 = ssub.s32 %s119, %s120
    %p122 = scmp.eq.s32.totalorder %s121, 0
    %s124 = sadd.s32 %s123, 1
    %s125 = scalar_select %p122, %s123, %s124
    %p128 = pneg %p122
    %p129 = scmp.eq.s32.totalorder %s10, 1
    %p130 = por %p128, %p129
    %p131 = scmp.ne.s32.totalorder %s123, %s126
    %p132 = scmp.eq.s32.totalorder %s10, 0
    %p133 = por %p131, %p132
    %p134 = scmp.ne.s32.totalorder %s123, %s126
    %p135 = scmp.eq.s32.totalorder %s15, 1
    %p136 = por %p134, %p135
    %p137 = scmp.ne.s32.totalorder %s126, %s127
    %p138 = scmp.eq.s32.totalorder %s15, 0
    %p139 = por %p137, %p138
    %p140 = scmp.ne.s32.totalorder %s126, %s127
    %p141 = scmp.eq.s32.totalorder %s16, 1
    %p142 = por %p140, %p141
    %p144 = scmp.ne.s32.totalorder %s127, %s143
    %p145 = scmp.eq.s32.totalorder %s16, 0
    %p146 = por %p144, %p145
    %p147 = scmp.le.s32.totalorder 1, %s10
    %p148 = scmp.lt.s32.totalorder %s10, 3
    %p149 = pnand %p147, %p148
    %p150 = pneg %p149
    // Predicated region
    $region9: #{hourglass2d_pallas.8} parent=5 // pred_check
      _
    $region10: #{hourglass2d_pallas.8} parent=5 // pred_check_branch
      %152 = sbr.rel (%p149) target = $region12
    $region11: #{hourglass2d_pallas.8} parent=5 // pred_region
      %s153 = ssub.s32 %s10, 1
      // Predicated region
      $region13: #{hourglass2d_pallas.8} parent=11 // pred_check
        %p154 = pneg %p48
      $region14: #{hourglass2d_pallas.8} parent=11 // pred_check_branch
        %156 = sbr.rel (%p154) target = $region16
      $region15: #{hourglass2d_pallas.8} parent=11 // pred_region
        %s157 = smul.u32 2, %s20
        %p158 = scmp.lt.s32.totalorder %s157, 1
        %s159 = scalar_select %p158, %s157, 1
        %s160 = smul.addr %s159, 20
        %s161 = smul.addr %s160, 4
        %s162 = scalar_lea.vmem %s0, %s161
        %s163 = smul.u32 2, %s20
      $region16: #{hourglass2d_pallas.8} parent=11 // pred_fallthru
        _
      // Predicated region
      $region17: #{hourglass2d_pallas.8} parent=11 // pred_check
        %p164 = pneg %p69
      $region18: #{hourglass2d_pallas.8} parent=11 // pred_check_branch
        %166 = sbr.rel (%p164) target = $region20
      $region19: #{hourglass2d_pallas.8} parent=11 // pred_region
        _
      $region20: #{hourglass2d_pallas.8} parent=11 // pred_fallthru
        _
      // Predicated region
      $region21: #{hourglass2d_pallas.8} parent=11 // pred_check
        %p167 = pneg %p90
      $region22: #{hourglass2d_pallas.8} parent=11 // pred_check_branch
        %169 = sbr.rel (%p167) target = $region24
      $region23: #{hourglass2d_pallas.8} parent=11 // pred_region
        _
      $region24: #{hourglass2d_pallas.8} parent=11 // pred_fallthru
        _
      // Predicated region
      $region25: #{hourglass2d_pallas.8} parent=11 // pred_check
        %p170 = pneg %p111
      $region26: #{hourglass2d_pallas.8} parent=11 // pred_check_branch
        %172 = sbr.rel (%p170) target = $region28
      $region27: #{hourglass2d_pallas.8} parent=11 // pred_region
        _
      $region28: #{hourglass2d_pallas.8} parent=11 // pred_fallthru
        _
    $region12: #{hourglass2d_pallas.8} parent=5 // pred_fallthru
      _
    %p173 = scmp.lt.s32.totalorder %s10, 2
    // Predicated region
    $region29: #{hourglass2d_pallas.8} parent=5 // pred_check
      %p174 = pneg %p173
    $region30: #{hourglass2d_pallas.8} parent=5 // pred_check_branch
      %176 = sbr.rel (%p174) target = $region32
    $region31: #{hourglass2d_pallas.8} parent=5 // pred_region
      _
    $region32: #{hourglass2d_pallas.8} parent=5 // pred_fallthru
      _
    %p177 = scmp.le.s32.totalorder 1, %s10
    %p178 = scmp.lt.s32.totalorder %s10, 3
    %p179 = pnand %p177, %p178
    %p180 = pneg %p179
    // Predicated region
    $region33: #{hourglass2d_pallas.8} parent=5 // pred_check
      _
    $region34: #{hourglass2d_pallas.8} parent=5 // pred_check_branch
      %182 = sbr.rel (%p179) target = $region36
    $region35: #{hourglass2d_pallas.8} parent=5 // pred_region
      %s183 = ssub.s32 %s10, 1
      %s184 = smul.u32 2, %s20
      %p185 = scmp.lt.s32.totalorder %s184, 1
      %s186 = scalar_select %p185, %s184, 1
      %s187 = smul.addr %s186, 20
      %s188 = smul.addr %s187, 4
      %s189 = scalar_lea.vmem %s0, %s188
      %p190 = pneg %p48
      %p191 = pneg %p45
      %p192 = pneg %p69
      %p193 = pneg %p66
      %p194 = pneg %p90
      %p195 = pneg %p87
      %p196 = pneg %p111
      %p197 = pneg %p108
      %p198 = pneg %p139
      %p199 = pneg %p136
      %s200 = smul.u32 %s20, %s19
      %s201 = smul.u32 16, %s200
      %p202 = scmp.lt.s32.totalorder %s201, 15
      %s203 = scalar_select %p202, %s201, 15
      %s204 = smul.addr %s203, 4
      %s205 = scalar_lea.vmem %s4, %s204
      %s206 = smul.u32 2, %s20
      %p207 = scmp.lt.s32.totalorder %s206, 1
      %s208 = scalar_select %p207, %s206, 1
      %s209 = smul.addr %s208, 20
      %s210 = smul.addr %s209, 4
      %s211 = scalar_lea.vmem %s0, %s210
      %s212 = smul.u32 2, %s20
      %s213 = smul.u32 %s20, %s19
      %s214 = smul.u32 16, %s213
      %p215 = scmp.lt.s32.totalorder %s214, 15
      %s216 = scalar_select %p215, %s214, 15
      %s217 = smul.addr %s216, 4
      %s218 = scalar_lea.vmem %s4, %s217
      %s219 = smul.u32 %s20, %s19
      %s220 = smul.u32 16, %s219
      %p222 = scmp.eq.s32.totalorder %s19, 0
      // Predicated region
      $region37: #{hourglass2d_pallas.8} parent=35 // pred_check
        %p223 = pneg %p222
      $region38: #{hourglass2d_pallas.8} parent=35 // pred_check_branch
        %225 = sbr.rel (%p223) target = $region40
      $region39: #{hourglass2d_pallas.8} parent=35 // pred_region
        %v226 = vld [vmem:[%s211] sm:$0xf]
        %v227 = vld [vmem:[%s211 + $0x8] sm:$0xf]
        %v228 = vld [vmem:[%s211 + $0x10] sm:$0xf]
        %v229 = vld [vmem:[%s211 + $0x18] sm:$0xf]
        %v230 = vld [vmem:[%s211 + $0x20] sm:$0xf]
        %v231 = vld [vmem:[%s211 + $0x28] sm:$0xf]
        %v232 = vld [vmem:[%s211 + $0x30] sm:$0xf]
        %v233 = vld [vmem:[%s211 + $0x38] sm:$0xf]
        %v234 = vld [vmem:[%s211 + $0x40] sm:$0xf]
        %v235 = vld [vmem:[%s211 + $0x48] sm:$0xf]
        %v236 = vld [vmem:[%s211 + $0x50] sm:$0xf]
        %v237 = vld [vmem:[%s211 + $0x58] sm:$0xf]
        %v238 = vld [vmem:[%s211 + $0x60] sm:$0xf]
        %v239 = vld [vmem:[%s211 + $0x68] sm:$0xf]
        %v240 = vld [vmem:[%s211 + $0x70] sm:$0xf]
        %v241 = vld [vmem:[%s211 + $0x78] sm:$0xf]
        %v242 = vld [vmem:[%s211 + $0x80] sm:$0xf]
        %v243 = vld [vmem:[%s211 + $0x88] sm:$0xf]
        %v244 = vld [vmem:[%s211 + $0x90] sm:$0xf]
        %v245 = vld [vmem:[%s211 + $0x98] sm:$0xf]
        %246 = vst [vmem:[#allocation2] sm:$0xf] %v226
        %247 = vst [vmem:[#allocation2 + $0xc] sm:$0xf] %v227
        %248 = vst [vmem:[#allocation2 + $0x18] sm:$0xf] %v228
        %249 = vst [vmem:[#allocation2 + $0x24] sm:$0xf] %v229
        %250 = vst [vmem:[#allocation2 + $0x30] sm:$0xf] %v230
        %251 = vst [vmem:[#allocation2 + $0x3c] sm:$0xf] %v231
        %252 = vst [vmem:[#allocation2 + $0x48] sm:$0xf] %v232
        %253 = vst [vmem:[#allocation2 + $0x54] sm:$0xf] %v233
        %254 = vst [vmem:[#allocation2 + $0x60] sm:$0xf] %v234
        %255 = vst [vmem:[#allocation2 + $0x6c] sm:$0xf] %v235
        %256 = vst [vmem:[#allocation2 + $0x78] sm:$0xf] %v236
        %257 = vst [vmem:[#allocation2 + $0x84] sm:$0xf] %v237
        %258 = vst [vmem:[#allocation2 + $0x90] sm:$0xf] %v238
        %259 = vst [vmem:[#allocation2 + $0x9c] sm:$0xf] %v239
        %260 = vst [vmem:[#allocation2 + $0xa8] sm:$0xf] %v240
        %261 = vst [vmem:[#allocation2 + $0xb4] sm:$0xf] %v241
        %262 = vst [vmem:[#allocation2 + $0xc0] sm:$0xf] %v242
        %263 = vst [vmem:[#allocation2 + $0xcc] sm:$0xf] %v243
        %264 = vst [vmem:[#allocation2 + $0xd8] sm:$0xf] %v244
        %265 = vst [vmem:[#allocation2 + $0xe4] sm:$0xf] %v245
        %v266 = vld [vmem:[%s211] sm:$0xf]
        %v267 = vld [vmem:[%s211 + $0x4] sm:$0x1]
        %v268 = vld [vmem:[%s211 + $0x8] sm:$0xf]
        %v269 = vld [vmem:[%s211 + $0xc] sm:$0x1]
        %v270 = vld [vmem:[%s211 + $0x10] sm:$0xf]
        %v271 = vld [vmem:[%s211 + $0x14] sm:$0x1]
        %v272 = vld [vmem:[%s211 + $0x18] sm:$0xf]
        %v273 = vld [vmem:[%s211 + $0x1c] sm:$0x1]
        %v274 = vld [vmem:[%s211 + $0x20] sm:$0xf]
        %v275 = vld [vmem:[%s211 + $0x24] sm:$0x1]
        %v276 = vld [vmem:[%s211 + $0x28] sm:$0xf]
        %v277 = vld [vmem:[%s211 + $0x2c] sm:$0x1]
        %v278 = vld [vmem:[%s211 + $0x30] sm:$0xf]
        %v279 = vld [vmem:[%s211 + $0x34] sm:$0x1]
        %v280 = vld [vmem:[%s211 + $0x38] sm:$0xf]
        %v281 = vld [vmem:[%s211 + $0x3c] sm:$0x1]
        %v282 = vld [vmem:[%s211 + $0x40] sm:$0xf]
        %v283 = vld [vmem:[%s211 + $0x44] sm:$0x1]
        %v284 = vld [vmem:[%s211 + $0x48] sm:$0xf]
        %v285 = vld [vmem:[%s211 + $0x4c] sm:$0x1]
        %v286 = vld [vmem:[%s211 + $0x50] sm:$0xf]
        %v287 = vld [vmem:[%s211 + $0x54] sm:$0x1]
        %v288 = vld [vmem:[%s211 + $0x58] sm:$0xf]
        %v289 = vld [vmem:[%s211 + $0x5c] sm:$0x1]
        %v290 = vld [vmem:[%s211 + $0x60] sm:$0xf]
        %v291 = vld [vmem:[%s211 + $0x64] sm:$0x1]
        %v292 = vld [vmem:[%s211 + $0x68] sm:$0xf]
        %v293 = vld [vmem:[%s211 + $0x6c] sm:$0x1]
        %v294 = vld [vmem:[%s211 + $0x70] sm:$0xf]
        %v295 = vld [vmem:[%s211 + $0x74] sm:$0x1]
        %v296 = vld [vmem:[%s211 + $0x78] sm:$0xf]
        %v297 = vld [vmem:[%s211 + $0x7c] sm:$0x1]
        %v298 = vld [vmem:[%s211 + $0x80] sm:$0xf]
        %v299 = vld [vmem:[%s211 + $0x84] sm:$0x1]
        %v300 = vld [vmem:[%s211 + $0x88] sm:$0xf]
        %v301 = vld [vmem:[%s211 + $0x8c] sm:$0x1]
        %v302 = vld [vmem:[%s211 + $0x90] sm:$0xf]
        %v303 = vld [vmem:[%s211 + $0x94] sm:$0x1]
        %v304 = vld [vmem:[%s211 + $0x98] sm:$0xf]
        %v305 = vld [vmem:[%s211 + $0x9c] sm:$0x1]
        %vm306 = vsmask.f32 3328
        %vm307 = vsmask.f32 7440
        %vm308 = vmor %vm306, %vm307
        %v310 = vshrl.u32 %v266, 16
        %v312 = vrot.slane %v310, 4
        %v313 = vshll.u32 %v266, 16
        %v315 = vrot.slane %v313, 5
        %v316 = vor.u32 %v312, %v315
        %v317 = vrot.slane %v316, 4
        %v319 = vshll.u32 %v267, 16
        %v321 = vrot.slane %v319, 5
        %v322 = vsel %vm308, %v317, %v321
        %v324 = vshrl.u32 %v268, 16
        %v326 = vrot.slane %v324, 4
        %v327 = vshll.u32 %v268, 16
        %v329 = vrot.slane %v327, 5
        %v330 = vor.u32 %v326, %v329
        %v331 = vrot.slane %v330, 4
        %v333 = vshll.u32 %v269, 16
        %v335 = vrot.slane %v333, 5
        %v336 = vsel %vm308, %v331, %v335
        %v338 = vshrl.u32 %v270, 16
        %v340 = vrot.slane %v338, 4
        %v341 = vshll.u32 %v270, 16
        %v343 = vrot.slane %v341, 5
        %v344 = vor.u32 %v340, %v343
        %v345 = vrot.slane %v344, 4
        %v347 = vshll.u32 %v271, 16
        %v349 = vrot.slane %v347, 5
        %v350 = vsel %vm308, %v345, %v349
        %v352 = vshrl.u32 %v272, 16
        %v354 = vrot.slane %v352, 4
        %v355 = vshll.u32 %v272, 16
        %v357 = vrot.slane %v355, 5
        %v358 = vor.u32 %v354, %v357
        %v359 = vrot.slane %v358, 4
        %v361 = vshll.u32 %v273, 16
        %v363 = vrot.slane %v361, 5
        %v364 = vsel %vm308, %v359, %v363
        %v366 = vshrl.u32 %v274, 16
        %v368 = vrot.slane %v366, 4
        %v369 = vshll.u32 %v274, 16
        %v371 = vrot.slane %v369, 5
        %v372 = vor.u32 %v368, %v371
        %v373 = vrot.slane %v372, 4
        %v375 = vshll.u32 %v275, 16
        %v377 = vrot.slane %v375, 5
        %v378 = vsel %vm308, %v373, %v377
        %v380 = vshrl.u32 %v276, 16
        %v382 = vrot.slane %v380, 4
        %v383 = vshll.u32 %v276, 16
        %v385 = vrot.slane %v383, 5
        %v386 = vor.u32 %v382, %v385
        %v387 = vrot.slane %v386, 4
        %v389 = vshll.u32 %v277, 16
        %v391 = vrot.slane %v389, 5
        %v392 = vsel %vm308, %v387, %v391
        %v394 = vshrl.u32 %v278, 16
        %v396 = vrot.slane %v394, 4
        %v397 = vshll.u32 %v278, 16
        %v399 = vrot.slane %v397, 5
        %v400 = vor.u32 %v396, %v399
        %v401 = vrot.slane %v400, 4
        %v403 = vshll.u32 %v279, 16
        %v405 = vrot.slane %v403, 5
        %v406 = vsel %vm308, %v401, %v405
        %v408 = vshrl.u32 %v280, 16
        %v410 = vrot.slane %v408, 4
        %v411 = vshll.u32 %v280, 16
        %v413 = vrot.slane %v411, 5
        %v414 = vor.u32 %v410, %v413
        %v415 = vrot.slane %v414, 4
        %v417 = vshll.u32 %v281, 16
        %v419 = vrot.slane %v417, 5
        %v420 = vsel %vm308, %v415, %v419
        %v422 = vshrl.u32 %v282, 16
        %v424 = vrot.slane %v422, 4
        %v425 = vshll.u32 %v282, 16
        %v427 = vrot.slane %v425, 5
        %v428 = vor.u32 %v424, %v427
        %v429 = vrot.slane %v428, 4
        %v431 = vshll.u32 %v283, 16
        %v433 = vrot.slane %v431, 5
        %v434 = vsel %vm308, %v429, %v433
        %v436 = vshrl.u32 %v284, 16
        %v438 = vrot.slane %v436, 4
        %v439 = vshll.u32 %v284, 16
        %v441 = vrot.slane %v439, 5
        %v442 = vor.u32 %v438, %v441
        %v443 = vrot.slane %v442, 4
        %v445 = vshll.u32 %v285, 16
        %v447 = vrot.slane %v445, 5
        %v448 = vsel %vm308, %v443, %v447
        %v450 = vshrl.u32 %v286, 16
        %v452 = vrot.slane %v450, 4
        %v453 = vshll.u32 %v286, 16
        %v455 = vrot.slane %v453, 5
        %v456 = vor.u32 %v452, %v455
        %v457 = vrot.slane %v456, 4
        %v459 = vshll.u32 %v287, 16
        %v461 = vrot.slane %v459, 5
        %v462 = vsel %vm308, %v457, %v461
        %v464 = vshrl.u32 %v288, 16
        %v466 = vrot.slane %v464, 4
        %v467 = vshll.u32 %v288, 16
        %v469 = vrot.slane %v467, 5
        %v470 = vor.u32 %v466, %v469
        %v471 = vrot.slane %v470, 4
        %v473 = vshll.u32 %v289, 16
        %v475 = vrot.slane %v473, 5
        %v476 = vsel %vm308, %v471, %v475
        %v478 = vshrl.u32 %v290, 16
        %v480 = vrot.slane %v478, 4
        %v481 = vshll.u32 %v290, 16
        %v483 = vrot.slane %v481, 5
        %v484 = vor.u32 %v480, %v483
        %v485 = vrot.slane %v484, 4
        %v487 = vshll.u32 %v291, 16
        %v489 = vrot.slane %v487, 5
        %v490 = vsel %vm308, %v485, %v489
        %v492 = vshrl.u32 %v292, 16
        %v494 = vrot.slane %v492, 4
        %v495 = vshll.u32 %v292, 16
        %v497 = vrot.slane %v495, 5
        %v498 = vor.u32 %v494, %v497
        %v499 = vrot.slane %v498, 4
        %v501 = vshll.u32 %v293, 16
        %v503 = vrot.slane %v501, 5
        %v504 = vsel %vm308, %v499, %v503
        %v506 = vshrl.u32 %v294, 16
        %v508 = vrot.slane %v506, 4
        %v509 = vshll.u32 %v294, 16
        %v511 = vrot.slane %v509, 5
        %v512 = vor.u32 %v508, %v511
        %v513 = vrot.slane %v512, 4
        %v515 = vshll.u32 %v295, 16
        %v517 = vrot.slane %v515, 5
        %v518 = vsel %vm308, %v513, %v517
        %v520 = vshrl.u32 %v296, 16
        %v522 = vrot.slane %v520, 4
        %v523 = vshll.u32 %v296, 16
        %v525 = vrot.slane %v523, 5
        %v526 = vor.u32 %v522, %v525
        %v527 = vrot.slane %v526, 4
        %v529 = vshll.u32 %v297, 16
        %v531 = vrot.slane %v529, 5
        %v532 = vsel %vm308, %v527, %v531
        %v534 = vshrl.u32 %v298, 16
        %v536 = vrot.slane %v534, 4
        %v537 = vshll.u32 %v298, 16
        %v539 = vrot.slane %v537, 5
        %v540 = vor.u32 %v536, %v539
        %v541 = vrot.slane %v540, 4
        %v543 = vshll.u32 %v299, 16
        %v545 = vrot.slane %v543, 5
        %v546 = vsel %vm308, %v541, %v545
        %v548 = vshrl.u32 %v300, 16
        %v550 = vrot.slane %v548, 4
        %v551 = vshll.u32 %v300, 16
        %v553 = vrot.slane %v551, 5
        %v554 = vor.u32 %v550, %v553
        %v555 = vrot.slane %v554, 4
        %v557 = vshll.u32 %v301, 16
        %v559 = vrot.slane %v557, 5
        %v560 = vsel %vm308, %v555, %v559
        %v562 = vshrl.u32 %v302, 16
        %v564 = vrot.slane %v562, 4
        %v565 = vshll.u32 %v302, 16
        %v567 = vrot.slane %v565, 5
        %v568 = vor.u32 %v564, %v567
        %v569 = vrot.slane %v568, 4
        %v571 = vshll.u32 %v303, 16
        %v573 = vrot.slane %v571, 5
        %v574 = vsel %vm308, %v569, %v573
        %v576 = vshrl.u32 %v304, 16
        %v578 = vrot.slane %v576, 4
        %v579 = vshll.u32 %v304, 16
        %v581 = vrot.slane %v579, 5
        %v582 = vor.u32 %v578, %v581
        %v583 = vrot.slane %v582, 4
        %v585 = vshll.u32 %v305, 16
        %v587 = vrot.slane %v585, 5
        %v588 = vsel %vm308, %v583, %v587
        %609 = vst [vmem:[#allocation2 + $0x4] sm:$0xf] %v322
        %610 = vst [vmem:[#allocation2 + $0x10] sm:$0xf] %v336
        %611 = vst [vmem:[#allocation2 + $0x1c] sm:$0xf] %v350
        %612 = vst [vmem:[#allocation2 + $0x28] sm:$0xf] %v364
        %613 = vst [vmem:[#allocation2 + $0x34] sm:$0xf] %v378
        %614 = vst [vmem:[#allocation2 + $0x40] sm:$0xf] %v392
        %615 = vst [vmem:[#allocation2 + $0x4c] sm:$0xf] %v406
        %616 = vst [vmem:[#allocation2 + $0x58] sm:$0xf] %v420
        %617 = vst [vmem:[#allocation2 + $0x64] sm:$0xf] %v434
        %618 = vst [vmem:[#allocation2 + $0x70] sm:$0xf] %v448
        %619 = vst [vmem:[#allocation2 + $0x7c] sm:$0xf] %v462
        %620 = vst [vmem:[#allocation2 + $0x88] sm:$0xf] %v476
        %621 = vst [vmem:[#allocation2 + $0x94] sm:$0xf] %v490
        %622 = vst [vmem:[#allocation2 + $0xa0] sm:$0xf] %v504
        %623 = vst [vmem:[#allocation2 + $0xac] sm:$0xf] %v518
        %624 = vst [vmem:[#allocation2 + $0xb8] sm:$0xf] %v532
        %625 = vst [vmem:[#allocation2 + $0xc4] sm:$0xf] %v546
        %626 = vst [vmem:[#allocation2 + $0xd0] sm:$0xf] %v560
        %627 = vst [vmem:[#allocation2 + $0xdc] sm:$0xf] %v574
        %628 = vst [vmem:[#allocation2 + $0xe8] sm:$0xf] %v588
        %v629 = vld [vmem:[%s211] sm:$0xe]
        %v630 = vld [vmem:[%s211 + $0x4] sm:$0x1]
        %v631 = vld [vmem:[%s211 + $0x8] sm:$0xe]
        %v632 = vld [vmem:[%s211 + $0xc] sm:$0x1]
        %v633 = vld [vmem:[%s211 + $0x10] sm:$0xe]
        %v634 = vld [vmem:[%s211 + $0x14] sm:$0x1]
        %v635 = vld [vmem:[%s211 + $0x18] sm:$0xe]
        %v636 = vld [vmem:[%s211 + $0x1c] sm:$0x1]
        %v637 = vld [vmem:[%s211 + $0x20] sm:$0xe]
        %v638 = vld [vmem:[%s211 + $0x24] sm:$0x1]
        %v639 = vld [vmem:[%s211 + $0x28] sm:$0xe]
        %v640 = vld [vmem:[%s211 + $0x2c] sm:$0x1]
        %v641 = vld [vmem:[%s211 + $0x30] sm:$0xe]
        %v642 = vld [vmem:[%s211 + $0x34] sm:$0x1]
        %v643 = vld [vmem:[%s211 + $0x38] sm:$0xe]
        %v644 = vld [vmem:[%s211 + $0x3c] sm:$0x1]
        %v645 = vld [vmem:[%s211 + $0x40] sm:$0xe]
        %v646 = vld [vmem:[%s211 + $0x44] sm:$0x1]
        %v647 = vld [vmem:[%s211 + $0x48] sm:$0xe]
        %v648 = vld [vmem:[%s211 + $0x4c] sm:$0x1]
        %v649 = vld [vmem:[%s211 + $0x50] sm:$0xe]
        %v650 = vld [vmem:[%s211 + $0x54] sm:$0x1]
        %v651 = vld [vmem:[%s211 + $0x58] sm:$0xe]
        %v652 = vld [vmem:[%s211 + $0x5c] sm:$0x1]
        %v653 = vld [vmem:[%s211 + $0x60] sm:$0xe]
        %v654 = vld [vmem:[%s211 + $0x64] sm:$0x1]
        %v655 = vld [vmem:[%s211 + $0x68] sm:$0xe]
        %v656 = vld [vmem:[%s211 + $0x6c] sm:$0x1]
        %v657 = vld [vmem:[%s211 + $0x70] sm:$0xe]
        %v658 = vld [vmem:[%s211 + $0x74] sm:$0x1]
        %v659 = vld [vmem:[%s211 + $0x78] sm:$0xe]
        %v660 = vld [vmem:[%s211 + $0x7c] sm:$0x1]
        %v661 = vld [vmem:[%s211 + $0x80] sm:$0xe]
        %v662 = vld [vmem:[%s211 + $0x84] sm:$0x1]
        %v663 = vld [vmem:[%s211 + $0x88] sm:$0xe]
        %v664 = vld [vmem:[%s211 + $0x8c] sm:$0x1]
        %v665 = vld [vmem:[%s211 + $0x90] sm:$0xe]
        %v666 = vld [vmem:[%s211 + $0x94] sm:$0x1]
        %v667 = vld [vmem:[%s211 + $0x98] sm:$0xe]
        %v668 = vld [vmem:[%s211 + $0x9c] sm:$0x1]
        %vm709 = vcmask 1042432
        %vm710 = vcmask 1046532
        %vm711 = vmor %vm709, %vm710
        %v712 = vrot.slane %v629, 5
        %v713 = vrot.slane %v712, 4
        %v714 = vrot.slane %v630, 5
        %v715 = vsel %vm711, %v713, %v714
        %v716 = vrot.slane %v631, 5
        %v717 = vrot.slane %v716, 4
        %v718 = vrot.slane %v632, 5
        %v719 = vsel %vm711, %v717, %v718
        %v720 = vrot.slane %v633, 5
        %v721 = vrot.slane %v720, 4
        %v722 = vrot.slane %v634, 5
        %v723 = vsel %vm711, %v721, %v722
        %v724 = vrot.slane %v635, 5
        %v725 = vrot.slane %v724, 4
        %v726 = vrot.slane %v636, 5
        %v727 = vsel %vm711, %v725, %v726
        %v728 = vrot.slane %v637, 5
        %v729 = vrot.slane %v728, 4
        %v730 = vrot.slane %v638, 5
        %v731 = vsel %vm711, %v729, %v730
        %v732 = vrot.slane %v639, 5
        %v733 = vrot.slane %v732, 4
        %v734 = vrot.slane %v640, 5
        %v735 = vsel %vm711, %v733, %v734
        %v736 = vrot.slane %v641, 5
        %v737 = vrot.slane %v736, 4
        %v738 = vrot.slane %v642, 5
        %v739 = vsel %vm711, %v737, %v738
        %v740 = vrot.slane %v643, 5
        %v741 = vrot.slane %v740, 4
        %v742 = vrot.slane %v644, 5
        %v743 = vsel %vm711, %v741, %v742
        %v744 = vrot.slane %v645, 5
        %v745 = vrot.slane %v744, 4
        %v746 = vrot.slane %v646, 5
        %v747 = vsel %vm711, %v745, %v746
        %v748 = vrot.slane %v647, 5
        %v749 = vrot.slane %v748, 4
        %v750 = vrot.slane %v648, 5
        %v751 = vsel %vm711, %v749, %v750
        %v752 = vrot.slane %v649, 5
        %v753 = vrot.slane %v752, 4
        %v754 = vrot.slane %v650, 5
        %v755 = vsel %vm711, %v753, %v754
        %v756 = vrot.slane %v651, 5
        %v757 = vrot.slane %v756, 4
        %v758 = vrot.slane %v652, 5
        %v759 = vsel %vm711, %v757, %v758
        %v760 = vrot.slane %v653, 5
        %v761 = vrot.slane %v760, 4
        %v762 = vrot.slane %v654, 5
        %v763 = vsel %vm711, %v761, %v762
        %v764 = vrot.slane %v655, 5
        %v765 = vrot.slane %v764, 4
        %v766 = vrot.slane %v656, 5
        %v767 = vsel %vm711, %v765, %v766
        %v768 = vrot.slane %v657, 5
        %v769 = vrot.slane %v768, 4
        %v770 = vrot.slane %v658, 5
        %v771 = vsel %vm711, %v769, %v770
        %v772 = vrot.slane %v659, 5
        %v773 = vrot.slane %v772, 4
        %v774 = vrot.slane %v660, 5
        %v775 = vsel %vm711, %v773, %v774
        %v776 = vrot.slane %v661, 5
        %v777 = vrot.slane %v776, 4
        %v778 = vrot.slane %v662, 5
        %v779 = vsel %vm711, %v777, %v778
        %v780 = vrot.slane %v663, 5
        %v781 = vrot.slane %v780, 4
        %v782 = vrot.slane %v664, 5
        %v783 = vsel %vm711, %v781, %v782
        %v784 = vrot.slane %v665, 5
        %v785 = vrot.slane %v784, 4
        %v786 = vrot.slane %v666, 5
        %v787 = vsel %vm711, %v785, %v786
        %v788 = vrot.slane %v667, 5
        %v789 = vrot.slane %v788, 4
        %v790 = vrot.slane %v668, 5
        %v791 = vsel %vm711, %v789, %v790
        %812 = vst [vmem:[#allocation2 + $0x8] sm:$0xf] %v715
        %813 = vst [vmem:[#allocation2 + $0x14] sm:$0xf] %v719
        %814 = vst [vmem:[#allocation2 + $0x20] sm:$0xf] %v723
        %815 = vst [vmem:[#allocation2 + $0x2c] sm:$0xf] %v727
        %816 = vst [vmem:[#allocation2 + $0x38] sm:$0xf] %v731
        %817 = vst [vmem:[#allocation2 + $0x44] sm:$0xf] %v735
        %818 = vst [vmem:[#allocation2 + $0x50] sm:$0xf] %v739
        %819 = vst [vmem:[#allocation2 + $0x5c] sm:$0xf] %v743
        %820 = vst [vmem:[#allocation2 + $0x68] sm:$0xf] %v747
        %821 = vst [vmem:[#allocation2 + $0x74] sm:$0xf] %v751
        %822 = vst [vmem:[#allocation2 + $0x80] sm:$0xf] %v755
        %823 = vst [vmem:[#allocation2 + $0x8c] sm:$0xf] %v759
        %824 = vst [vmem:[#allocation2 + $0x98] sm:$0xf] %v763
        %825 = vst [vmem:[#allocation2 + $0xa4] sm:$0xf] %v767
        %826 = vst [vmem:[#allocation2 + $0xb0] sm:$0xf] %v771
        %827 = vst [vmem:[#allocation2 + $0xbc] sm:$0xf] %v775
        %828 = vst [vmem:[#allocation2 + $0xc8] sm:$0xf] %v779
        %829 = vst [vmem:[#allocation2 + $0xd4] sm:$0xf] %v783
        %830 = vst [vmem:[#allocation2 + $0xe0] sm:$0xf] %v787
        %831 = vst [vmem:[#allocation2 + $0xec] sm:$0xf] %v791
        %v832 = vld [vmem:[#allocation2] sm:$0xff]
        %v833 = vld [vmem:[#allocation2 + $0x8] sm:$0xf]
        %v834 = vld [vmem:[#allocation2 + $0xc] sm:$0xff]
        %v835 = vld [vmem:[#allocation2 + $0x14] sm:$0xf]
        %v836 = vld [vmem:[#allocation2 + $0x18] sm:$0xff]
        %v837 = vld [vmem:[#allocation2 + $0x20] sm:$0xf]
        %v838 = vld [vmem:[#allocation2 + $0x24] sm:$0xff]
        %v839 = vld [vmem:[#allocation2 + $0x2c] sm:$0xf]
        %v840 = vld [vmem:[#allocation2 + $0x30] sm:$0xff]
        %v841 = vld [vmem:[#allocation2 + $0x38] sm:$0xf]
        %v842 = vld [vmem:[#allocation2 + $0x3c] sm:$0xff]
        %v843 = vld [vmem:[#allocation2 + $0x44] sm:$0xf]
        %v844 = vld [vmem:[#allocation2 + $0x48] sm:$0xff]
        %v845 = vld [vmem:[#allocation2 + $0x50] sm:$0xf]
        %v846 = vld [vmem:[#allocation2 + $0x54] sm:$0xff]
        %v847 = vld [vmem:[#allocation2 + $0x5c] sm:$0xf]
        %v848 = vld [vmem:[#allocation2 + $0x78] sm:$0xff]
        %v849 = vld [vmem:[#allocation2 + $0x80] sm:$0xf]
        %v850 = vld [vmem:[#allocation2 + $0x84] sm:$0xff]
        %v851 = vld [vmem:[#allocation2 + $0x8c] sm:$0xf]
        %v852 = vld [vmem:[#allocation2 + $0x90] sm:$0xff]
        %v853 = vld [vmem:[#allocation2 + $0x98] sm:$0xf]
        %v854 = vld [vmem:[#allocation2 + $0x9c] sm:$0xff]
        %v855 = vld [vmem:[#allocation2 + $0xa4] sm:$0xf]
        %v856 = vld [vmem:[#allocation2 + $0xa8] sm:$0xff]
        %v857 = vld [vmem:[#allocation2 + $0xb0] sm:$0xf]
        %v858 = vld [vmem:[#allocation2 + $0xb4] sm:$0xff]
        %v859 = vld [vmem:[#allocation2 + $0xbc] sm:$0xf]
        %v860 = vld [vmem:[#allocation2 + $0xc0] sm:$0xff]
        %v861 = vld [vmem:[#allocation2 + $0xc8] sm:$0xf]
        %v862 = vld [vmem:[#allocation2 + $0xcc] sm:$0xff]
        %v863 = vld [vmem:[#allocation2 + $0xd4] sm:$0xf]
        %v864 = vld [vmem:[%s1] sm:$0xf]
        %v865 = vld [vmem:[%s1 + $0x4] sm:$0xf]
        %v866 = vld [vmem:[%s1 + $0x8] sm:$0xf]
        %v867 = vld [vmem:[%s1 + $0xc] sm:$0xf]
        %v868 = vld [vmem:[%s1 + $0x10] sm:$0xf]
        %v869 = vld [vmem:[%s1 + $0x14] sm:$0xf]
        %v870 = vld [vmem:[%s1 + $0x18] sm:$0xf]
        %v871 = vld [vmem:[%s1 + $0x1c] sm:$0xf]
        %v872 = vld [vmem:[%s1 + $0x20] sm:$0xf]
        %v873 = vld [vmem:[%s1 + $0x24] sm:$0xf]
        %v874 = vld [vmem:[%s1 + $0x28] sm:$0xf]
        %v875 = vld [vmem:[%s1 + $0x2c] sm:$0xf]
        %v876 = vld [vmem:[%s1 + $0x30] sm:$0xf]
        %v877 = vld [vmem:[%s1 + $0x34] sm:$0xf]
        %v878 = vld [vmem:[%s1 + $0x38] sm:$0xf]
        %v879 = vld [vmem:[%s1 + $0x3c] sm:$0xf]
        %v880 = vld [vmem:[%s1 + $0x40] sm:$0xf]
        %v881 = vld [vmem:[%s1 + $0x44] sm:$0xf]
        %v882 = vld [vmem:[%s1 + $0x48] sm:$0xf]
        %v883 = vld [vmem:[%s1 + $0x4c] sm:$0xf]
        %v884 = vld [vmem:[%s1 + $0x50] sm:$0xf]
        %v885 = vld [vmem:[%s1 + $0x54] sm:$0xf]
        %v886 = vld [vmem:[%s1 + $0x58] sm:$0xf]
        %v887 = vld [vmem:[%s1 + $0x5c] sm:$0xf]
        %v888 = vld [vmem:[%s1 + $0x60] sm:$0xf]
        %v889 = vld [vmem:[%s1 + $0x64] sm:$0xf]
        %v890 = vld [vmem:[%s1 + $0x68] sm:$0xf]
        %v891 = vld [vmem:[%s1 + $0x6c] sm:$0xf]
        %v892 = vld [vmem:[%s1 + $0x70] sm:$0xf]
        %v893 = vld [vmem:[%s1 + $0x74] sm:$0xf]
        %v894 = vld [vmem:[%s1 + $0x78] sm:$0xf]
        %v895 = vld [vmem:[%s1 + $0x7c] sm:$0xf]
        %v896 = vld [vmem:[%s1 + $0x80] sm:$0xf]
        %v897 = vld [vmem:[%s1 + $0x84] sm:$0xf]
        %v898 = vld [vmem:[%s1 + $0x88] sm:$0xf]
        %v899 = vld [vmem:[%s1 + $0x8c] sm:$0xf]
        %v900 = vld [vmem:[%s1 + $0x90] sm:$0xf]
        %v901 = vld [vmem:[%s1 + $0x94] sm:$0xf]
        %v902 = vld [vmem:[%s1 + $0x98] sm:$0xf]
        %v903 = vld [vmem:[%s1 + $0x9c] sm:$0xf]
        %v904 = vld [vmem:[%s1 + $0xa0] sm:$0xf]
        %v905 = vld [vmem:[%s1 + $0xa4] sm:$0xf]
        %v906 = vld [vmem:[%s1 + $0xa8] sm:$0xf]
        %v907 = vld [vmem:[%s1 + $0xac] sm:$0xf]
        %v908 = vld [vmem:[%s1 + $0xb0] sm:$0xf]
        %v909 = vld [vmem:[%s1 + $0xb4] sm:$0xf]
        %v910 = vld [vmem:[%s1 + $0xb8] sm:$0xf]
        %v911 = vld [vmem:[%s1 + $0xbc] sm:$0xf]
        %v944 = vunpack.c.l.b16 %v832
        %v945 = vunpack.c.h.b16 %v832
        %v946 = vunpack.c.l.b16 %v833
        %v947 = vunpack.c.l.b16 %v834
        %v948 = vunpack.c.h.b16 %v834
        %v949 = vunpack.c.l.b16 %v835
        %v950 = vunpack.c.l.b16 %v836
        %v951 = vunpack.c.h.b16 %v836
        %v952 = vunpack.c.l.b16 %v837
        %v953 = vunpack.c.l.b16 %v838
        %v954 = vunpack.c.h.b16 %v838
        %v955 = vunpack.c.l.b16 %v839
        %v956 = vunpack.c.l.b16 %v840
        %v957 = vunpack.c.h.b16 %v840
        %v958 = vunpack.c.l.b16 %v841
        %v959 = vunpack.c.l.b16 %v842
        %v960 = vunpack.c.h.b16 %v842
        %v961 = vunpack.c.l.b16 %v843
        %v962 = vunpack.c.l.b16 %v844
        %v963 = vunpack.c.h.b16 %v844
        %v964 = vunpack.c.l.b16 %v845
        %v965 = vunpack.c.l.b16 %v846
        %v966 = vunpack.c.h.b16 %v846
        %v967 = vunpack.c.l.b16 %v847
        %v968 = vunpack.c.l.b16 %v848
        %v969 = vunpack.c.h.b16 %v848
        %v970 = vunpack.c.l.b16 %v849
        %v971 = vunpack.c.l.b16 %v850
        %v972 = vunpack.c.h.b16 %v850
        %v973 = vunpack.c.l.b16 %v851
        %v974 = vunpack.c.l.b16 %v852
        %v975 = vunpack.c.h.b16 %v852
        %v976 = vunpack.c.l.b16 %v853
        %v977 = vunpack.c.l.b16 %v854
        %v978 = vunpack.c.h.b16 %v854
        %v979 = vunpack.c.l.b16 %v855
        %v980 = vunpack.c.l.b16 %v856
        %v981 = vunpack.c.h.b16 %v856
        %v982 = vunpack.c.l.b16 %v857
        %v983 = vunpack.c.l.b16 %v858
        %v984 = vunpack.c.h.b16 %v858
        %v985 = vunpack.c.l.b16 %v859
        %v986 = vunpack.c.l.b16 %v860
        %v987 = vunpack.c.h.b16 %v860
        %v988 = vunpack.c.l.b16 %v861
        %v989 = vunpack.c.l.b16 %v862
        %v990 = vunpack.c.h.b16 %v862
        %v991 = vunpack.c.l.b16 %v863
        %v992 = vpack.c.b16 %v947, %v944
        %v993 = vpack.c.b16 %v948, %v945
        %v994 = vpack.c.b16 %v949, %v946
        %v995 = vpack.c.b16 %v953, %v950
        %v996 = vpack.c.b16 %v954, %v951
        %v997 = vpack.c.b16 %v955, %v952
        %v998 = vpack.c.b16 %v959, %v956
        %v999 = vpack.c.b16 %v960, %v957
        %v1000 = vpack.c.b16 %v961, %v958
        %v1001 = vpack.c.b16 %v965, %v962
        %v1002 = vpack.c.b16 %v966, %v963
        %v1003 = vpack.c.b16 %v967, %v964
        %v1004 = vpack.c.b16 %v971, %v968
        %v1005 = vpack.c.b16 %v972, %v969
        %v1006 = vpack.c.b16 %v973, %v970
        %v1007 = vpack.c.b16 %v977, %v974
        %v1008 = vpack.c.b16 %v978, %v975
        %v1009 = vpack.c.b16 %v979, %v976
        %v1010 = vpack.c.b16 %v983, %v980
        %v1011 = vpack.c.b16 %v984, %v981
        %v1012 = vpack.c.b16 %v985, %v982
        %v1013 = vpack.c.b16 %v989, %v986
        %v1014 = vpack.c.b16 %v990, %v987
        %v1015 = vpack.c.b16 %v991, %v988
        %v1088 = vunpack.c.l.b16 %v864
        %v1089 = vunpack.c.l.b16 %v865
        %v1090 = vunpack.c.l.b16 %v866
        %v1091 = vunpack.c.l.b16 %v867
        %v1092 = vunpack.c.l.b16 %v868
        %v1093 = vunpack.c.l.b16 %v869
        %v1094 = vunpack.c.l.b16 %v870
        %v1095 = vunpack.c.l.b16 %v871
        %v1096 = vunpack.c.l.b16 %v872
        %v1097 = vunpack.c.l.b16 %v873
        %v1098 = vunpack.c.l.b16 %v874
        %v1099 = vunpack.c.l.b16 %v875
        %v1100 = vunpack.c.l.b16 %v876
        %v1101 = vunpack.c.l.b16 %v877
        %v1102 = vunpack.c.l.b16 %v878
        %v1103 = vunpack.c.l.b16 %v879
        %v1104 = vunpack.c.l.b16 %v880
        %v1105 = vunpack.c.l.b16 %v881
        %v1106 = vunpack.c.l.b16 %v882
        %v1107 = vunpack.c.l.b16 %v883
        %v1108 = vunpack.c.l.b16 %v884
        %v1109 = vunpack.c.l.b16 %v885
        %v1110 = vunpack.c.l.b16 %v886
        %v1111 = vunpack.c.l.b16 %v887
        %v1112 = vunpack.c.l.b16 %v888
        %v1113 = vunpack.c.l.b16 %v889
        %v1114 = vunpack.c.l.b16 %v890
        %v1115 = vunpack.c.l.b16 %v891
        %v1116 = vunpack.c.l.b16 %v892
        %v1117 = vunpack.c.l.b16 %v893
        %v1118 = vunpack.c.l.b16 %v894
        %v1119 = vunpack.c.l.b16 %v895
        %v1120 = vunpack.c.l.b16 %v896
        %v1121 = vunpack.c.l.b16 %v897
        %v1122 = vunpack.c.l.b16 %v898
        %v1123 = vunpack.c.l.b16 %v899
        %v1124 = vunpack.c.l.b16 %v900
        %v1125 = vunpack.c.l.b16 %v901
        %v1126 = vunpack.c.l.b16 %v902
        %v1127 = vunpack.c.l.b16 %v903
        %v1128 = vunpack.c.l.b16 %v904
        %v1129 = vunpack.c.l.b16 %v905
        %v1130 = vunpack.c.l.b16 %v906
        %v1131 = vunpack.c.l.b16 %v907
        %v1132 = vunpack.c.l.b16 %v908
        %v1133 = vunpack.c.l.b16 %v909
        %v1134 = vunpack.c.l.b16 %v910
        %v1135 = vunpack.c.l.b16 %v911
        %v1136 = vpack.c.b16 %v1089, %v1088
        %v1137 = vpack.c.b16 %v1091, %v1090
        %v1138 = vpack.c.b16 %v1093, %v1092
        %v1139 = vpack.c.b16 %v1095, %v1094
        %v1140 = vpack.c.b16 %v1097, %v1096
        %v1141 = vpack.c.b16 %v1099, %v1098
        %v1142 = vpack.c.b16 %v1101, %v1100
        %v1143 = vpack.c.b16 %v1103, %v1102
        %v1144 = vpack.c.b16 %v1105, %v1104
        %v1145 = vpack.c.b16 %v1107, %v1106
        %v1146 = vpack.c.b16 %v1109, %v1108
        %v1147 = vpack.c.b16 %v1111, %v1110
        %v1148 = vpack.c.b16 %v1113, %v1112
        %v1149 = vpack.c.b16 %v1115, %v1114
        %v1150 = vpack.c.b16 %v1117, %v1116
        %v1151 = vpack.c.b16 %v1119, %v1118
        %v1152 = vpack.c.b16 %v1121, %v1120
        %v1153 = vpack.c.b16 %v1123, %v1122
        %v1154 = vpack.c.b16 %v1125, %v1124
        %v1155 = vpack.c.b16 %v1127, %v1126
        %v1156 = vpack.c.b16 %v1129, %v1128
        %v1157 = vpack.c.b16 %v1131, %v1130
        %v1158 = vpack.c.b16 %v1133, %v1132
        %v1159 = vpack.c.b16 %v1135, %v1134
        %1184 = vmatprep.subr.bf16.mxu0 0
        %1185 = vmatpush1.bf16.msra.mxu0 %v1143
        %1186 = vmatprep.subr.bf16.mxu0 0
        %1187 = vmatpush1.bf16.msra.mxu0 %v1142
        %1188 = vmatprep.subr.bf16.mxu0 0
        %1189 = vmatpush1.bf16.msra.mxu0 %v1141
        %1190 = vmatprep.subr.bf16.mxu0 0
        %1191 = vmatpush1.bf16.msra.mxu0 %v1140
        %1192 = vmatprep.subr.bf16.mxu0 0
        %1193 = vmatpush1.bf16.msra.mxu0 %v1139
        %1194 = vmatprep.subr.bf16.mxu0 0
        %1195 = vmatpush1.bf16.msra.mxu0 %v1138
        %1196 = vmatprep.subr.bf16.mxu0 0
        %1197 = vmatpush1.bf16.msra.mxu0 %v1137
        %1198 = vmatprep.subr.bf16.mxu0 0
        %1199 = vmatpush1.bf16.msra.mxu0 %v1136
        %1200 = vmatprep.subr.bf16.mxu0 0
        %1201 = vmatpush2.bf16.msra.mxu0 %v1151
        %1202 = vmatprep.subr.bf16.mxu0 0
        %1203 = vmatpush2.bf16.msra.mxu0 %v1150
        %1204 = vmatprep.subr.bf16.mxu0 0
        %1205 = vmatpush2.bf16.msra.mxu0 %v1149
        %1206 = vmatprep.subr.bf16.mxu0 0
        %1207 = vmatpush2.bf16.msra.mxu0 %v1148
        %1208 = vmatprep.subr.bf16.mxu0 0
        %1209 = vmatpush2.bf16.msra.mxu0 %v1147
        %1210 = vmatprep.subr.bf16.mxu0 0
        %1211 = vmatpush2.bf16.msra.mxu0 %v1146
        %1212 = vmatprep.subr.bf16.mxu0 0
        %1213 = vmatpush2.bf16.msra.mxu0 %v1145
        %1214 = vmatprep.subr.bf16.mxu0 0
        %1215 = vmatpush2.bf16.msra.mxu0 %v1144
        %1216 = vmatprep.mubr.bf16.mxu0 %v993
        %1217 = vmatmul.mubr.bf16.gmra.mxu0 %v992
        %v1218 = vpop.f32.mrf.mxu0
        %v1219 = vadd.f32 0.0, %v1218
        %v1220 = vpop.f32.mrf.mxu0
        %v1221 = vpop.f32.mrf.mxu0
        %v1222 = vadd.f32 0.0, %v1221
        %v1223 = vpop.f32.mrf.mxu0
        %1224 = vmatprep.mubr.bf16.mxu0 %v996
        %1225 = vmatmul.mubr.bf16.gmra.mxu0 %v995
        %v1226 = vpop.f32.mrf.mxu0
        %v1227 = vadd.f32 0.0, %v1226
        %v1228 = vpop.f32.mrf.mxu0
        %v1229 = vpop.f32.mrf.mxu0
        %v1230 = vadd.f32 0.0, %v1229
        %v1231 = vpop.f32.mrf.mxu0
        %1232 = vmatprep.mubr.bf16.mxu0 %v999
        %1233 = vmatmul.mubr.bf16.gmra.mxu0 %v998
        %v1234 = vpop.f32.mrf.mxu0
        %v1235 = vadd.f32 0.0, %v1234
        %v1236 = vpop.f32.mrf.mxu0
        %v1237 = vpop.f32.mrf.mxu0
        %v1238 = vadd.f32 0.0, %v1237
        %v1239 = vpop.f32.mrf.mxu0
        %1240 = vmatprep.mubr.bf16.mxu0 %v1002
        %1241 = vmatmul.mubr.bf16.gmra.mxu0 %v1001
        %v1242 = vpop.f32.mrf.mxu0
        %v1243 = vadd.f32 0.0, %v1242
        %v1244 = vpop.f32.mrf.mxu0
        %v1245 = vpop.f32.mrf.mxu0
        %v1246 = vadd.f32 0.0, %v1245
        %v1247 = vpop.f32.mrf.mxu0
        %1248 = vmatprep.mubr.bf16.mxu0 %v1005
        %1249 = vmatmul.mubr.bf16.gmra.mxu0 %v1004
        %v1250 = vpop.f32.mrf.mxu0
        %v1251 = vadd.f32 0.0, %v1250
        %v1252 = vpop.f32.mrf.mxu0
        %v1253 = vpop.f32.mrf.mxu0
        %v1254 = vadd.f32 0.0, %v1253
        %v1255 = vpop.f32.mrf.mxu0
        %1256 = vmatprep.mubr.bf16.mxu0 %v1008
        %1257 = vmatmul.mubr.bf16.gmra.mxu0 %v1007
        %v1258 = vpop.f32.mrf.mxu0
        %v1259 = vadd.f32 0.0, %v1258
        %v1260 = vpop.f32.mrf.mxu0
        %v1261 = vpop.f32.mrf.mxu0
        %v1262 = vadd.f32 0.0, %v1261
        %v1263 = vpop.f32.mrf.mxu0
        %1264 = vmatprep.mubr.bf16.mxu0 %v1011
        %1265 = vmatmul.mubr.bf16.gmra.mxu0 %v1010
        %v1266 = vpop.f32.mrf.mxu0
        %v1267 = vadd.f32 0.0, %v1266
        %v1268 = vpop.f32.mrf.mxu0
        %v1269 = vpop.f32.mrf.mxu0
        %v1270 = vadd.f32 0.0, %v1269
        %v1271 = vpop.f32.mrf.mxu0
        %1272 = vmatprep.mubr.bf16.mxu0 %v1014
        %1273 = vmatmul.mubr.bf16.gmra.mxu0 %v1013
        %v1274 = vpop.f32.mrf.mxu0
        %v1275 = vadd.f32 0.0, %v1274
        %v1276 = vpop.f32.mrf.mxu0
        %v1277 = vpop.f32.mrf.mxu0
        %v1278 = vadd.f32 0.0, %v1277
        %v1279 = vpop.f32.mrf.mxu0
        %1280 = vdwg.mxu0
        %1281 = vmatprep.subr.bf16.mxu0 0
        %1282 = vmatpush1.bf16.msra.mxu0 %v1159
        %1283 = vmatprep.subr.bf16.mxu0 0
        %1284 = vmatpush1.bf16.msra.mxu0 %v1158
        %1285 = vmatprep.subr.bf16.mxu0 0
        %1286 = vmatpush1.bf16.msra.mxu0 %v1157
        %1287 = vmatprep.subr.bf16.mxu0 0
        %1288 = vmatpush1.bf16.msra.mxu0 %v1156
        %1289 = vmatprep.subr.bf16.mxu0 0
        %1290 = vmatpush1.bf16.msra.mxu0 %v1155
        %1291 = vmatprep.subr.bf16.mxu0 0
        %1292 = vmatpush1.bf16.msra.mxu0 %v1154
        %1293 = vmatprep.subr.bf16.mxu0 0
        %1294 = vmatpush1.bf16.msra.mxu0 %v1153
        %1295 = vmatprep.subr.bf16.mxu0 0
        %1296 = vmatpush1.bf16.msra.mxu0 %v1152
        %1297 = vmatprep.subr.bf16.mxu0 0
        %1298 = vmatpush2.bf16.msra.mxu0 0
        %1299 = vmatprep.subr.bf16.mxu0 0
        %1300 = vmatpush2.bf16.msra.mxu0 0
        %1301 = vmatprep.subr.bf16.mxu0 0
        %1302 = vmatpush2.bf16.msra.mxu0 0
        %1303 = vmatprep.subr.bf16.mxu0 0
        %1304 = vmatpush2.bf16.msra.mxu0 0
        %1305 = vmatprep.subr.bf16.mxu0 0
        %1306 = vmatpush2.bf16.msra.mxu0 0
        %1307 = vmatprep.subr.bf16.mxu0 0
        %1308 = vmatpush2.bf16.msra.mxu0 0
        %1309 = vmatprep.subr.bf16.mxu0 0
        %1310 = vmatpush2.bf16.msra.mxu0 0
        %1311 = vmatprep.subr.bf16.mxu0 0
        %1312 = vmatpush2.bf16.msra.mxu0 0
        %1313 = vmatprep.mubr.bf16.mxu0 0
        %1314 = vmatmul.mubr.bf16.gmra.mxu0 %v994
        %v1315 = vpop.f32.mrf.mxu0
        %v1316 = vadd.f32 %v1219, %v1315
        %v1317 = vpop.f32.mrf.mxu0
        %v1318 = vpop.f32.mrf.mxu0
        %v1319 = vadd.f32 %v1222, %v1318
        %v1320 = vpop.f32.mrf.mxu0
        %1321 = vmatprep.mubr.bf16.mxu0 0
        %1322 = vmatmul.mubr.bf16.gmra.mxu0 %v997
        %v1323 = vpop.f32.mrf.mxu0
        %v1324 = vadd.f32 %v1227, %v1323
        %v1325 = vpop.f32.mrf.mxu0
        %v1326 = vpop.f32.mrf.mxu0
        %v1327 = vadd.f32 %v1230, %v1326
        %v1328 = vpop.f32.mrf.mxu0
        %1329 = vmatprep.mubr.bf16.mxu0 0
        %1330 = vmatmul.mubr.bf16.gmra.mxu0 %v1000
        %v1331 = vpop.f32.mrf.mxu0
        %v1332 = vadd.f32 %v1235, %v1331
        %v1333 = vpop.f32.mrf.mxu0
        %v1334 = vpop.f32.mrf.mxu0
        %v1335 = vadd.f32 %v1238, %v1334
        %v1336 = vpop.f32.mrf.mxu0
        %1337 = vmatprep.mubr.bf16.mxu0 0
        %1338 = vmatmul.mubr.bf16.gmra.mxu0 %v1003
        %v1339 = vpop.f32.mrf.mxu0
        %v1340 = vadd.f32 %v1243, %v1339
        %v1341 = vpop.f32.mrf.mxu0
        %v1342 = vpop.f32.mrf.mxu0
        %v1343 = vadd.f32 %v1246, %v1342
        %v1344 = vpop.f32.mrf.mxu0
        %1345 = vmatprep.mubr.bf16.mxu0 0
        %1346 = vmatmul.mubr.bf16.gmra.mxu0 %v1006
        %v1347 = vpop.f32.mrf.mxu0
        %v1348 = vadd.f32 %v1251, %v1347
        %v1349 = vpop.f32.mrf.mxu0
        %v1350 = vpop.f32.mrf.mxu0
        %v1351 = vadd.f32 %v1254, %v1350
        %v1352 = vpop.f32.mrf.mxu0
        %1353 = vmatprep.mubr.bf16.mxu0 0
        %1354 = vmatmul.mubr.bf16.gmra.mxu0 %v1009
        %v1355 = vpop.f32.mrf.mxu0
        %v1356 = vadd.f32 %v1259, %v1355
        %v1357 = vpop.f32.mrf.mxu0
        %v1358 = vpop.f32.mrf.mxu0
        %v1359 = vadd.f32 %v1262, %v1358
        %v1360 = vpop.f32.mrf.mxu0
        %1361 = vmatprep.mubr.bf16.mxu0 0
        %1362 = vmatmul.mubr.bf16.gmra.mxu0 %v1012
        %v1363 = vpop.f32.mrf.mxu0
        %v1364 = vadd.f32 %v1267, %v1363
        %v1365 = vpop.f32.mrf.mxu0
        %v1366 = vpop.f32.mrf.mxu0
        %v1367 = vadd.f32 %v1270, %v1366
        %v1368 = vpop.f32.mrf.mxu0
        %1369 = vmatprep.mubr.bf16.mxu0 0
        %1370 = vmatmul.mubr.bf16.gmra.mxu0 %v1015
        %v1371 = vpop.f32.mrf.mxu0
        %v1372 = vadd.f32 %v1275, %v1371
        %v1373 = vpop.f32.mrf.mxu0
        %v1374 = vpop.f32.mrf.mxu0
        %v1375 = vadd.f32 %v1278, %v1374
        %v1376 = vpop.f32.mrf.mxu0
        %1377 = vdwg.mxu0
        %1378 = vst [vmem:[#allocation3] sm:$0xff] %v1316
        %1379 = vst [vmem:[#allocation3 + $0x8] sm:$0xff] %v1319
        %1380 = vst [vmem:[#allocation3 + $0x10] sm:$0xff] %v1324
        %1381 = vst [vmem:[#allocation3 + $0x18] sm:$0xff] %v1327
        %1382 = vst [vmem:[#allocation3 + $0x20] sm:$0xff] %v1332
        %1383 = vst [vmem:[#allocation3 + $0x28] sm:$0xff] %v1335
        %1384 = vst [vmem:[#allocation3 + $0x30] sm:$0xff] %v1340
        %1385 = vst [vmem:[#allocation3 + $0x38] sm:$0xff] %v1343
        %1386 = vst [vmem:[#allocation3 + $0x40] sm:$0xff] %v1348
        %1387 = vst [vmem:[#allocation3 + $0x48] sm:$0xff] %v1351
        %1388 = vst [vmem:[#allocation3 + $0x50] sm:$0xff] %v1356
        %1389 = vst [vmem:[#allocation3 + $0x58] sm:$0xff] %v1359
        %1390 = vst [vmem:[#allocation3 + $0x60] sm:$0xff] %v1364
        %1391 = vst [vmem:[#allocation3 + $0x68] sm:$0xff] %v1367
        %1392 = vst [vmem:[#allocation3 + $0x70] sm:$0xff] %v1372
        %1393 = vst [vmem:[#allocation3 + $0x78] sm:$0xff] %v1375
        %v1394 = vld [vmem:[#allocation3] sm:$0xff]
        %v1395 = vld [vmem:[#allocation3 + $0x8] sm:$0xff]
        %v1396 = vld [vmem:[#allocation3 + $0x10] sm:$0xff]
        %v1397 = vld [vmem:[#allocation3 + $0x18] sm:$0xff]
        %v1398 = vld [vmem:[#allocation3 + $0x20] sm:$0xff]
        %v1399 = vld [vmem:[#allocation3 + $0x28] sm:$0xff]
        %v1400 = vld [vmem:[#allocation3 + $0x30] sm:$0xff]
        %v1401 = vld [vmem:[#allocation3 + $0x38] sm:$0xff]
        %v1402 = vld [vmem:[#allocation3 + $0x40] sm:$0xff]
        %v1403 = vld [vmem:[#allocation3 + $0x48] sm:$0xff]
        %v1404 = vld [vmem:[#allocation3 + $0x50] sm:$0xff]
        %v1405 = vld [vmem:[#allocation3 + $0x58] sm:$0xff]
        %v1406 = vld [vmem:[#allocation3 + $0x60] sm:$0xff]
        %v1407 = vld [vmem:[#allocation3 + $0x68] sm:$0xff]
        %v1408 = vld [vmem:[#allocation3 + $0x70] sm:$0xff]
        %v1409 = vld [vmem:[#allocation3 + $0x78] sm:$0xff]
        %s1410 = scalar_lea.vmem [#allocation2], 12
        %v1411 = vld [vmem:[%s1410] sm:$0xff]
        %v1412 = vld [vmem:[%s1410 + $0x8] sm:$0xf]
        %v1413 = vld [vmem:[%s1410 + $0xc] sm:$0xff]
        %v1414 = vld [vmem:[%s1410 + $0x14] sm:$0xf]
        %v1415 = vld [vmem:[%s1410 + $0x18] sm:$0xff]
        %v1416 = vld [vmem:[%s1410 + $0x20] sm:$0xf]
        %v1417 = vld [vmem:[%s1410 + $0x24] sm:$0xff]
        %v1418 = vld [vmem:[%s1410 + $0x2c] sm:$0xf]
        %v1419 = vld [vmem:[%s1410 + $0x30] sm:$0xff]
        %v1420 = vld [vmem:[%s1410 + $0x38] sm:$0xf]
        %v1421 = vld [vmem:[%s1410 + $0x3c] sm:$0xff]
        %v1422 = vld [vmem:[%s1410 + $0x44] sm:$0xf]
        %v1423 = vld [vmem:[%s1410 + $0x48] sm:$0xff]
        %v1424 = vld [vmem:[%s1410 + $0x50] sm:$0xf]
        %v1425 = vld [vmem:[%s1410 + $0x54] sm:$0xff]
        %v1426 = vld [vmem:[%s1410 + $0x5c] sm:$0xf]
        %v1427 = vld [vmem:[%s1410 + $0x78] sm:$0xff]
        %v1428 = vld [vmem:[%s1410 + $0x80] sm:$0xf]
        %v1429 = vld [vmem:[%s1410 + $0x84] sm:$0xff]
        %v1430 = vld [vmem:[%s1410 + $0x8c] sm:$0xf]
        %v1431 = vld [vmem:[%s1410 + $0x90] sm:$0xff]
        %v1432 = vld [vmem:[%s1410 + $0x98] sm:$0xf]
        %v1433 = vld [vmem:[%s1410 + $0x9c] sm:$0xff]
        %v1434 = vld [vmem:[%s1410 + $0xa4] sm:$0xf]
        %v1435 = vld [vmem:[%s1410 + $0xa8] sm:$0xff]
        %v1436 = vld [vmem:[%s1410 + $0xb0] sm:$0xf]
        %v1437 = vld [vmem:[%s1410 + $0xb4] sm:$0xff]
        %v1438 = vld [vmem:[%s1410 + $0xbc] sm:$0xf]
        %v1439 = vld [vmem:[%s1410 + $0xc0] sm:$0xff]
        %v1440 = vld [vmem:[%s1410 + $0xc8] sm:$0xf]
        %v1441 = vld [vmem:[%s1410 + $0xcc] sm:$0xff]
        %v1442 = vld [vmem:[%s1410 + $0xd4] sm:$0xf]
        %s1443 = scalar_lea.vmem %s1, 192
        %v1444 = vld [vmem:[%s1443] sm:$0xf]
        %v1445 = vld [vmem:[%s1443 + $0x4] sm:$0xf]
        %v1446 = vld [vmem:[%s1443 + $0x8] sm:$0xf]
        %v1447 = vld [vmem:[%s1443 + $0xc] sm:$0xf]
        %v1448 = vld [vmem:[%s1443 + $0x10] sm:$0xf]
        %v1449 = vld [vmem:[%s1443 + $0x14] sm:$0xf]
        %v1450 = vld [vmem:[%s1443 + $0x18] sm:$0xf]
        %v1451 = vld [vmem:[%s1443 + $0x1c] sm:$0xf]
        %v1452 = vld [vmem:[%s1443 + $0x20] sm:$0xf]
        %v1453 = vld [vmem:[%s1443 + $0x24] sm:$0xf]
        %v1454 = vld [vmem:[%s1443 + $0x28] sm:$0xf]
        %v1455 = vld [vmem:[%s1443 + $0x2c] sm:$0xf]
        %v1456 = vld [vmem:[%s1443 + $0x30] sm:$0xf]
        %v1457 = vld [vmem:[%s1443 + $0x34] sm:$0xf]
        %v1458 = vld [vmem:[%s1443 + $0x38] sm:$0xf]
        %v1459 = vld [vmem:[%s1443 + $0x3c] sm:$0xf]
        %v1460 = vld [vmem:[%s1443 + $0x40] sm:$0xf]
        %v1461 = vld [vmem:[%s1443 + $0x44] sm:$0xf]
        %v1462 = vld [vmem:[%s1443 + $0x48] sm:$0xf]
        %v1463 = vld [vmem:[%s1443 + $0x4c] sm:$0xf]
        %v1464 = vld [vmem:[%s1443 + $0x50] sm:$0xf]
        %v1465 = vld [vmem:[%s1443 + $0x54] sm:$0xf]
        %v1466 = vld [vmem:[%s1443 + $0x58] sm:$0xf]
        %v1467 = vld [vmem:[%s1443 + $0x5c] sm:$0xf]
        %v1468 = vld [vmem:[%s1443 + $0x60] sm:$0xf]
        %v1469 = vld [vmem:[%s1443 + $0x64] sm:$0xf]
        %v1470 = vld [vmem:[%s1443 + $0x68] sm:$0xf]
        %v1471 = vld [vmem:[%s1443 + $0x6c] sm:$0xf]
        %v1472 = vld [vmem:[%s1443 + $0x70] sm:$0xf]
        %v1473 = vld [vmem:[%s1443 + $0x74] sm:$0xf]
        %v1474 = vld [vmem:[%s1443 + $0x78] sm:$0xf]
        %v1475 = vld [vmem:[%s1443 + $0x7c] sm:$0xf]
        %v1476 = vld [vmem:[%s1443 + $0x80] sm:$0xf]
        %v1477 = vld [vmem:[%s1443 + $0x84] sm:$0xf]
        %v1478 = vld [vmem:[%s1443 + $0x88] sm:$0xf]
        %v1479 = vld [vmem:[%s1443 + $0x8c] sm:$0xf]
        %v1480 = vld [vmem:[%s1443 + $0x90] sm:$0xf]
        %v1481 = vld [vmem:[%s1443 + $0x94] sm:$0xf]
        %v1482 = vld [vmem:[%s1443 + $0x98] sm:$0xf]
        %v1483 = vld [vmem:[%s1443 + $0x9c] sm:$0xf]
        %v1484 = vld [vmem:[%s1443 + $0xa0] sm:$0xf]
        %v1485 = vld [vmem:[%s1443 + $0xa4] sm:$0xf]
        %v1486 = vld [vmem:[%s1443 + $0xa8] sm:$0xf]
        %v1487 = vld [vmem:[%s1443 + $0xac] sm:$0xf]
        %v1488 = vld [vmem:[%s1443 + $0xb0] sm:$0xf]
        %v1489 = vld [vmem:[%s1443 + $0xb4] sm:$0xf]
        %v1490 = vld [vmem:[%s1443 + $0xb8] sm:$0xf]
        %v1491 = vld [vmem:[%s1443 + $0xbc] sm:$0xf]
        %v1524 = vunpack.c.l.b16 %v1411
        %v1525 = vunpack.c.h.b16 %v1411
        %v1526 = vunpack.c.l.b16 %v1412
        %v1527 = vunpack.c.l.b16 %v1413
        %v1528 = vunpack.c.h.b16 %v1413
        %v1529 = vunpack.c.l.b16 %v1414
        %v1530 = vunpack.c.l.b16 %v1415
        %v1531 = vunpack.c.h.b16 %v1415
        %v1532 = vunpack.c.l.b16 %v1416
        %v1533 = vunpack.c.l.b16 %v1417
        %v1534 = vunpack.c.h.b16 %v1417
        %v1535 = vunpack.c.l.b16 %v1418
        %v1536 = vunpack.c.l.b16 %v1419
        %v1537 = vunpack.c.h.b16 %v1419
        %v1538 = vunpack.c.l.b16 %v1420
        %v1539 = vunpack.c.l.b16 %v1421
        %v1540 = vunpack.c.h.b16 %v1421
        %v1541 = vunpack.c.l.b16 %v1422
        %v1542 = vunpack.c.l.b16 %v1423
        %v1543 = vunpack.c.h.b16 %v1423
        %v1544 = vunpack.c.l.b16 %v1424
        %v1545 = vunpack.c.l.b16 %v1425
        %v1546 = vunpack.c.h.b16 %v1425
        %v1547 = vunpack.c.l.b16 %v1426
        %v1548 = vunpack.c.l.b16 %v1427
        %v1549 = vunpack.c.h.b16 %v1427
        %v1550 = vunpack.c.l.b16 %v1428
        %v1551 = vunpack.c.l.b16 %v1429
        %v1552 = vunpack.c.h.b16 %v1429
        %v1553 = vunpack.c.l.b16 %v1430
        %v1554 = vunpack.c.l.b16 %v1431
        %v1555 = vunpack.c.h.b16 %v1431
        %v1556 = vunpack.c.l.b16 %v1432
        %v1557 = vunpack.c.l.b16 %v1433
        %v1558 = vunpack.c.h.b16 %v1433
        %v1559 = vunpack.c.l.b16 %v1434
        %v1560 = vunpack.c.l.b16 %v1435
        %v1561 = vunpack.c.h.b16 %v1435
        %v1562 = vunpack.c.l.b16 %v1436
        %v1563 = vunpack.c.l.b16 %v1437
        %v1564 = vunpack.c.h.b16 %v1437
        %v1565 = vunpack.c.l.b16 %v1438
        %v1566 = vunpack.c.l.b16 %v1439
        %v1567 = vunpack.c.h.b16 %v1439
        %v1568 = vunpack.c.l.b16 %v1440
        %v1569 = vunpack.c.l.b16 %v1441
        %v1570 = vunpack.c.h.b16 %v1441
        %v1571 = vunpack.c.l.b16 %v1442
        %v1572 = vpack.c.b16 %v1527, %v1524
        %v1573 = vpack.c.b16 %v1528, %v1525
        %v1574 = vpack.c.b16 %v1529, %v1526
        %v1575 = vpack.c.b16 %v1533, %v1530
        %v1576 = vpack.c.b16 %v1534, %v1531
        %v1577 = vpack.c.b16 %v1535, %v1532
        %v1578 = vpack.c.b16 %v1539, %v1536
        %v1579 = vpack.c.b16 %v1540, %v1537
        %v1580 = vpack.c.b16 %v1541, %v1538
        %v1581 = vpack.c.b16 %v1545, %v1542
        %v1582 = vpack.c.b16 %v1546, %v1543
        %v1583 = vpack.c.b16 %v1547, %v1544
        %v1584 = vpack.c.b16 %v1551, %v1548
        %v1585 = vpack.c.b16 %v1552, %v1549
        %v1586 = vpack.c.b16 %v1553, %v1550
        %v1587 = vpack.c.b16 %v1557, %v1554
        %v1588 = vpack.c.b16 %v1558, %v1555
        %v1589 = vpack.c.b16 %v1559, %v1556
        %v1590 = vpack.c.b16 %v1563, %v1560
        %v1591 = vpack.c.b16 %v1564, %v1561
        %v1592 = vpack.c.b16 %v1565, %v1562
        %v1593 = vpack.c.b16 %v1569, %v1566
        %v1594 = vpack.c.b16 %v1570, %v1567
        %v1595 = vpack.c.b16 %v1571, %v1568
        %v1668 = vunpack.c.l.b16 %v1444
        %v1669 = vunpack.c.l.b16 %v1445
        %v1670 = vunpack.c.l.b16 %v1446
        %v1671 = vunpack.c.l.b16 %v1447
        %v1672 = vunpack.c.l.b16 %v1448
        %v1673 = vunpack.c.l.b16 %v1449
        %v1674 = vunpack.c.l.b16 %v1450
        %v1675 = vunpack.c.l.b16 %v1451
        %v1676 = vunpack.c.l.b16 %v1452
        %v1677 = vunpack.c.l.b16 %v1453
        %v1678 = vunpack.c.l.b16 %v1454
        %v1679 = vunpack.c.l.b16 %v1455
        %v1680 = vunpack.c.l.b16 %v1456
        %v1681 = vunpack.c.l.b16 %v1457
        %v1682 = vunpack.c.l.b16 %v1458
        %v1683 = vunpack.c.l.b16 %v1459
        %v1684 = vunpack.c.l.b16 %v1460
        %v1685 = vunpack.c.l.b16 %v1461
        %v1686 = vunpack.c.l.b16 %v1462
        %v1687 = vunpack.c.l.b16 %v1463
        %v1688 = vunpack.c.l.b16 %v1464
        %v1689 = vunpack.c.l.b16 %v1465
        %v1690 = vunpack.c.l.b16 %v1466
        %v1691 = vunpack.c.l.b16 %v1467
        %v1692 = vunpack.c.l.b16 %v1468
        %v1693 = vunpack.c.l.b16 %v1469
        %v1694 = vunpack.c.l.b16 %v1470
        %v1695 = vunpack.c.l.b16 %v1471
        %v1696 = vunpack.c.l.b16 %v1472
        %v1697 = vunpack.c.l.b16 %v1473
        %v1698 = vunpack.c.l.b16 %v1474
        %v1699 = vunpack.c.l.b16 %v1475
        %v1700 = vunpack.c.l.b16 %v1476
        %v1701 = vunpack.c.l.b16 %v1477
        %v1702 = vunpack.c.l.b16 %v1478
        %v1703 = vunpack.c.l.b16 %v1479
        %v1704 = vunpack.c.l.b16 %v1480
        %v1705 = vunpack.c.l.b16 %v1481
        %v1706 = vunpack.c.l.b16 %v1482
        %v1707 = vunpack.c.l.b16 %v1483
        %v1708 = vunpack.c.l.b16 %v1484
        %v1709 = vunpack.c.l.b16 %v1485
        %v1710 = vunpack.c.l.b16 %v1486
        %v1711 = vunpack.c.l.b16 %v1487
        %v1712 = vunpack.c.l.b16 %v1488
        %v1713 = vunpack.c.l.b16 %v1489
        %v1714 = vunpack.c.l.b16 %v1490
        %v1715 = vunpack.c.l.b16 %v1491
        %v1716 = vpack.c.b16 %v1669, %v1668
        %v1717 = vpack.c.b16 %v1671, %v1670
        %v1718 = vpack.c.b16 %v1673, %v1672
        %v1719 = vpack.c.b16 %v1675, %v1674
        %v1720 = vpack.c.b16 %v1677, %v1676
        %v1721 = vpack.c.b16 %v1679, %v1678
        %v1722 = vpack.c.b16 %v1681, %v1680
        %v1723 = vpack.c.b16 %v1683, %v1682
        %v1724 = vpack.c.b16 %v1685, %v1684
        %v1725 = vpack.c.b16 %v1687, %v1686
        %v1726 = vpack.c.b16 %v1689, %v1688
        %v1727 = vpack.c.b16 %v1691, %v1690
        %v1728 = vpack.c.b16 %v1693, %v1692
        %v1729 = vpack.c.b16 %v1695, %v1694
        %v1730 = vpack.c.b16 %v1697, %v1696
        %v1731 = vpack.c.b16 %v1699, %v1698
        %v1732 = vpack.c.b16 %v1701, %v1700
        %v1733 = vpack.c.b16 %v1703, %v1702
        %v1734 = vpack.c.b16 %v1705, %v1704
        %v1735 = vpack.c.b16 %v1707, %v1706
        %v1736 = vpack.c.b16 %v1709, %v1708
        %v1737 = vpack.c.b16 %v1711, %v1710
        %v1738 = vpack.c.b16 %v1713, %v1712
        %v1739 = vpack.c.b16 %v1715, %v1714
        %1764 = vmatprep.subr.bf16.mxu0 0
        %1765 = vmatpush1.bf16.msra.mxu0 %v1723
        %1766 = vmatprep.subr.bf16.mxu0 0
        %1767 = vmatpush1.bf16.msra.mxu0 %v1722
        %1768 = vmatprep.subr.bf16.mxu0 0
        %1769 = vmatpush1.bf16.msra.mxu0 %v1721
        %1770 = vmatprep.subr.bf16.mxu0 0
        %1771 = vmatpush1.bf16.msra.mxu0 %v1720
        %1772 = vmatprep.subr.bf16.mxu0 0
        %1773 = vmatpush1.bf16.msra.mxu0 %v1719
        %1774 = vmatprep.subr.bf16.mxu0 0
        %1775 = vmatpush1.bf16.msra.mxu0 %v1718
        %1776 = vmatprep.subr.bf16.mxu0 0
        %1777 = vmatpush1.bf16.msra.mxu0 %v1717
        %1778 = vmatprep.subr.bf16.mxu0 0
        %1779 = vmatpush1.bf16.msra.mxu0 %v1716
        %1780 = vmatprep.subr.bf16.mxu0 0
        %1781 = vmatpush2.bf16.msra.mxu0 %v1731
        %1782 = vmatprep.subr.bf16.mxu0 0
        %1783 = vmatpush2.bf16.msra.mxu0 %v1730
        %1784 = vmatprep.subr.bf16.mxu0 0
        %1785 = vmatpush2.bf16.msra.mxu0 %v1729
        %1786 = vmatprep.subr.bf16.mxu0 0
        %1787 = vmatpush2.bf16.msra.mxu0 %v1728
        %1788 = vmatprep.subr.bf16.mxu0 0
        %1789 = vmatpush2.bf16.msra.mxu0 %v1727
        %1790 = vmatprep.subr.bf16.mxu0 0
        %1791 = vmatpush2.bf16.msra.mxu0 %v1726
        %1792 = vmatprep.subr.bf16.mxu0 0
        %1793 = vmatpush2.bf16.msra.mxu0 %v1725
        %1794 = vmatprep.subr.bf16.mxu0 0
        %1795 = vmatpush2.bf16.msra.mxu0 %v1724
        %1796 = vmatprep.mubr.bf16.mxu0 %v1573
        %1797 = vmatmul.mubr.bf16.gmra.mxu0 %v1572
        %v1798 = vpop.f32.mrf.mxu0
        %v1799 = vadd.f32 0.0, %v1798
        %v1800 = vpop.f32.mrf.mxu0
        %v1801 = vpop.f32.mrf.mxu0
        %v1802 = vadd.f32 0.0, %v1801
        %v1803 = vpop.f32.mrf.mxu0
        %1804 = vmatprep.mubr.bf16.mxu0 %v1576
        %1805 = vmatmul.mubr.bf16.gmra.mxu0 %v1575
        %v1806 = vpop.f32.mrf.mxu0
        %v1807 = vadd.f32 0.0, %v1806
        %v1808 = vpop.f32.mrf.mxu0
        %v1809 = vpop.f32.mrf.mxu0
        %v1810 = vadd.f32 0.0, %v1809
        %v1811 = vpop.f32.mrf.mxu0
        %1812 = vmatprep.mubr.bf16.mxu0 %v1579
        %1813 = vmatmul.mubr.bf16.gmra.mxu0 %v1578
        %v1814 = vpop.f32.mrf.mxu0
        %v1815 = vadd.f32 0.0, %v1814
        %v1816 = vpop.f32.mrf.mxu0
        %v1817 = vpop.f32.mrf.mxu0
        %v1818 = vadd.f32 0.0, %v1817
        %v1819 = vpop.f32.mrf.mxu0
        %1820 = vmatprep.mubr.bf16.mxu0 %v1582
        %1821 = vmatmul.mubr.bf16.gmra.mxu0 %v1581
        %v1822 = vpop.f32.mrf.mxu0
        %v1823 = vadd.f32 0.0, %v1822
        %v1824 = vpop.f32.mrf.mxu0
        %v1825 = vpop.f32.mrf.mxu0
        %v1826 = vadd.f32 0.0, %v1825
        %v1827 = vpop.f32.mrf.mxu0
        %1828 = vmatprep.mubr.bf16.mxu0 %v1585
        %1829 = vmatmul.mubr.bf16.gmra.mxu0 %v1584
        %v1830 = vpop.f32.mrf.mxu0
        %v1831 = vadd.f32 0.0, %v1830
        %v1832 = vpop.f32.mrf.mxu0
        %v1833 = vpop.f32.mrf.mxu0
        %v1834 = vadd.f32 0.0, %v1833
        %v1835 = vpop.f32.mrf.mxu0
        %1836 = vmatprep.mubr.bf16.mxu0 %v1588
        %1837 = vmatmul.mubr.bf16.gmra.mxu0 %v1587
        %v1838 = vpop.f32.mrf.mxu0
        %v1839 = vadd.f32 0.0, %v1838
        %v1840 = vpop.f32.mrf.mxu0
        %v1841 = vpop.f32.mrf.mxu0
        %v1842 = vadd.f32 0.0, %v1841
        %v1843 = vpop.f32.mrf.mxu0
        %1844 = vmatprep.mubr.bf16.mxu0 %v1591
        %1845 = vmatmul.mubr.bf16.gmra.mxu0 %v1590
        %v1846 = vpop.f32.mrf.mxu0
        %v1847 = vadd.f32 0.0, %v1846
        %v1848 = vpop.f32.mrf.mxu0
        %v1849 = vpop.f32.mrf.mxu0
        %v1850 = vadd.f32 0.0, %v1849
        %v1851 = vpop.f32.mrf.mxu0
        %1852 = vmatprep.mubr.bf16.mxu0 %v1594
        %1853 = vmatmul.mubr.bf16.gmra.mxu0 %v1593
        %v1854 = vpop.f32.mrf.mxu0
        %v1855 = vadd.f32 0.0, %v1854
        %v1856 = vpop.f32.mrf.mxu0
        %v1857 = vpop.f32.mrf.mxu0
        %v1858 = vadd.f32 0.0, %v1857
        %v1859 = vpop.f32.mrf.mxu0
        %1860 = vdwg.mxu0
        %1861 = vmatprep.subr.bf16.mxu0 0
        %1862 = vmatpush1.bf16.msra.mxu0 %v1739
        %1863 = vmatprep.subr.bf16.mxu0 0
        %1864 = vmatpush1.bf16.msra.mxu0 %v1738
        %1865 = vmatprep.subr.bf16.mxu0 0
        %1866 = vmatpush1.bf16.msra.mxu0 %v1737
        %1867 = vmatprep.subr.bf16.mxu0 0
        %1868 = vmatpush1.bf16.msra.mxu0 %v1736
        %1869 = vmatprep.subr.bf16.mxu0 0
        %1870 = vmatpush1.bf16.msra.mxu0 %v1735
        %1871 = vmatprep.subr.bf16.mxu0 0
        %1872 = vmatpush1.bf16.msra.mxu0 %v1734
        %1873 = vmatprep.subr.bf16.mxu0 0
        %1874 = vmatpush1.bf16.msra.mxu0 %v1733
        %1875 = vmatprep.subr.bf16.mxu0 0
        %1876 = vmatpush1.bf16.msra.mxu0 %v1732
        %1877 = vmatprep.subr.bf16.mxu0 0
        %1878 = vmatpush2.bf16.msra.mxu0 0
        %1879 = vmatprep.subr.bf16.mxu0 0
        %1880 = vmatpush2.bf16.msra.mxu0 0
        %1881 = vmatprep.subr.bf16.mxu0 0
        %1882 = vmatpush2.bf16.msra.mxu0 0
        %1883 = vmatprep.subr.bf16.mxu0 0
        %1884 = vmatpush2.bf16.msra.mxu0 0
        %1885 = vmatprep.subr.bf16.mxu0 0
        %1886 = vmatpush2.bf16.msra.mxu0 0
        %1887 = vmatprep.subr.bf16.mxu0 0
        %1888 = vmatpush2.bf16.msra.mxu0 0
        %1889 = vmatprep.subr.bf16.mxu0 0
        %1890 = vmatpush2.bf16.msra.mxu0 0
        %1891 = vmatprep.subr.bf16.mxu0 0
        %1892 = vmatpush2.bf16.msra.mxu0 0
        %1893 = vmatprep.mubr.bf16.mxu0 0
        %1894 = vmatmul.mubr.bf16.gmra.mxu0 %v1574
        %v1895 = vpop.f32.mrf.mxu0
        %v1896 = vadd.f32 %v1799, %v1895
        %v1897 = vpop.f32.mrf.mxu0
        %v1898 = vpop.f32.mrf.mxu0
        %v1899 = vadd.f32 %v1802, %v1898
        %v1900 = vpop.f32.mrf.mxu0
        %1901 = vmatprep.mubr.bf16.mxu0 0
        %1902 = vmatmul.mubr.bf16.gmra.mxu0 %v1577
        %v1903 = vpop.f32.mrf.mxu0
        %v1904 = vadd.f32 %v1807, %v1903
        %v1905 = vpop.f32.mrf.mxu0
        %v1906 = vpop.f32.mrf.mxu0
        %v1907 = vadd.f32 %v1810, %v1906
        %v1908 = vpop.f32.mrf.mxu0
        %1909 = vmatprep.mubr.bf16.mxu0 0
        %1910 = vmatmul.mubr.bf16.gmra.mxu0 %v1580
        %v1911 = vpop.f32.mrf.mxu0
        %v1912 = vadd.f32 %v1815, %v1911
        %v1913 = vpop.f32.mrf.mxu0
        %v1914 = vpop.f32.mrf.mxu0
        %v1915 = vadd.f32 %v1818, %v1914
        %v1916 = vpop.f32.mrf.mxu0
        %1917 = vmatprep.mubr.bf16.mxu0 0
        %1918 = vmatmul.mubr.bf16.gmra.mxu0 %v1583
        %v1919 = vpop.f32.mrf.mxu0
        %v1920 = vadd.f32 %v1823, %v1919
        %v1921 = vpop.f32.mrf.mxu0
        %v1922 = vpop.f32.mrf.mxu0
        %v1923 = vadd.f32 %v1826, %v1922
        %v1924 = vpop.f32.mrf.mxu0
        %1925 = vmatprep.mubr.bf16.mxu0 0
        %1926 = vmatmul.mubr.bf16.gmra.mxu0 %v1586
        %v1927 = vpop.f32.mrf.mxu0
        %v1928 = vadd.f32 %v1831, %v1927
        %v1929 = vpop.f32.mrf.mxu0
        %v1930 = vpop.f32.mrf.mxu0
        %v1931 = vadd.f32 %v1834, %v1930
        %v1932 = vpop.f32.mrf.mxu0
        %1933 = vmatprep.mubr.bf16.mxu0 0
        %1934 = vmatmul.mubr.bf16.gmra.mxu0 %v1589
        %v1935 = vpop.f32.mrf.mxu0
        %v1936 = vadd.f32 %v1839, %v1935
        %v1937 = vpop.f32.mrf.mxu0
        %v1938 = vpop.f32.mrf.mxu0
        %v1939 = vadd.f32 %v1842, %v1938
        %v1940 = vpop.f32.mrf.mxu0
        %1941 = vmatprep.mubr.bf16.mxu0 0
        %1942 = vmatmul.mubr.bf16.gmra.mxu0 %v1592
        %v1943 = vpop.f32.mrf.mxu0
        %v1944 = vadd.f32 %v1847, %v1943
        %v1945 = vpop.f32.mrf.mxu0
        %v1946 = vpop.f32.mrf.mxu0
        %v1947 = vadd.f32 %v1850, %v1946
        %v1948 = vpop.f32.mrf.mxu0
        %1949 = vmatprep.mubr.bf16.mxu0 0
        %1950 = vmatmul.mubr.bf16.gmra.mxu0 %v1595
        %v1951 = vpop.f32.mrf.mxu0
        %v1952 = vadd.f32 %v1855, %v1951
        %v1953 = vpop.f32.mrf.mxu0
        %v1954 = vpop.f32.mrf.mxu0
        %v1955 = vadd.f32 %v1858, %v1954
        %v1956 = vpop.f32.mrf.mxu0
        %1957 = vdwg.mxu0
        %v1958 = vadd.f32 %v1394, %v1896
        %v1959 = vadd.f32 %v1395, %v1899
        %v1960 = vadd.f32 %v1396, %v1904
        %v1961 = vadd.f32 %v1397, %v1907
        %v1962 = vadd.f32 %v1398, %v1912
        %v1963 = vadd.f32 %v1399, %v1915
        %v1964 = vadd.f32 %v1400, %v1920
        %v1965 = vadd.f32 %v1401, %v1923
        %v1966 = vadd.f32 %v1402, %v1928
        %v1967 = vadd.f32 %v1403, %v1931
        %v1968 = vadd.f32 %v1404, %v1936
        %v1969 = vadd.f32 %v1405, %v1939
        %v1970 = vadd.f32 %v1406, %v1944
        %v1971 = vadd.f32 %v1407, %v1947
        %v1972 = vadd.f32 %v1408, %v1952
        %v1973 = vadd.f32 %v1409, %v1955
        %1974 = vst [vmem:[#allocation3] sm:$0xff] %v1958
        %1975 = vst [vmem:[#allocation3 + $0x8] sm:$0xff] %v1959
        %1976 = vst [vmem:[#allocation3 + $0x10] sm:$0xff] %v1960
        %1977 = vst [vmem:[#allocation3 + $0x18] sm:$0xff] %v1961
        %1978 = vst [vmem:[#allocation3 + $0x20] sm:$0xff] %v1962
        %1979 = vst [vmem:[#allocation3 + $0x28] sm:$0xff] %v1963
        %1980 = vst [vmem:[#allocation3 + $0x30] sm:$0xff] %v1964
        %1981 = vst [vmem:[#allocation3 + $0x38] sm:$0xff] %v1965
        %1982 = vst [vmem:[#allocation3 + $0x40] sm:$0xff] %v1966
        %1983 = vst [vmem:[#allocation3 + $0x48] sm:$0xff] %v1967
        %1984 = vst [vmem:[#allocation3 + $0x50] sm:$0xff] %v1968
        %1985 = vst [vmem:[#allocation3 + $0x58] sm:$0xff] %v1969
        %1986 = vst [vmem:[#allocation3 + $0x60] sm:$0xff] %v1970
        %1987 = vst [vmem:[#allocation3 + $0x68] sm:$0xff] %v1971
        %1988 = vst [vmem:[#allocation3 + $0x70] sm:$0xff] %v1972
        %1989 = vst [vmem:[#allocation3 + $0x78] sm:$0xff] %v1973
        %v1990 = vld [vmem:[#allocation3] sm:$0xff]
        %v1991 = vld [vmem:[#allocation3 + $0x8] sm:$0xff]
        %v1992 = vld [vmem:[#allocation3 + $0x10] sm:$0xff]
        %v1993 = vld [vmem:[#allocation3 + $0x18] sm:$0xff]
        %v1994 = vld [vmem:[#allocation3 + $0x20] sm:$0xff]
        %v1995 = vld [vmem:[#allocation3 + $0x28] sm:$0xff]
        %v1996 = vld [vmem:[#allocation3 + $0x30] sm:$0xff]
        %v1997 = vld [vmem:[#allocation3 + $0x38] sm:$0xff]
        %v1998 = vld [vmem:[#allocation3 + $0x40] sm:$0xff]
        %v1999 = vld [vmem:[#allocation3 + $0x48] sm:$0xff]
        %v2000 = vld [vmem:[#allocation3 + $0x50] sm:$0xff]
        %v2001 = vld [vmem:[#allocation3 + $0x58] sm:$0xff]
        %v2002 = vld [vmem:[#allocation3 + $0x60] sm:$0xff]
        %v2003 = vld [vmem:[#allocation3 + $0x68] sm:$0xff]
        %v2004 = vld [vmem:[#allocation3 + $0x70] sm:$0xff]
        %v2005 = vld [vmem:[#allocation3 + $0x78] sm:$0xff]
        %s2006 = scalar_lea.vmem [#allocation2], 24
        %v2007 = vld [vmem:[%s2006] sm:$0xff]
        %v2008 = vld [vmem:[%s2006 + $0x8] sm:$0xf]
        %v2009 = vld [vmem:[%s2006 + $0xc] sm:$0xff]
        %v2010 = vld [vmem:[%s2006 + $0x14] sm:$0xf]
        %v2011 = vld [vmem:[%s2006 + $0x18] sm:$0xff]
        %v2012 = vld [vmem:[%s2006 + $0x20] sm:$0xf]
        %v2013 = vld [vmem:[%s2006 + $0x24] sm:$0xff]
        %v2014 = vld [vmem:[%s2006 + $0x2c] sm:$0xf]
        %v2015 = vld [vmem:[%s2006 + $0x30] sm:$0xff]
        %v2016 = vld [vmem:[%s2006 + $0x38] sm:$0xf]
        %v2017 = vld [vmem:[%s2006 + $0x3c] sm:$0xff]
        %v2018 = vld [vmem:[%s2006 + $0x44] sm:$0xf]
        %v2019 = vld [vmem:[%s2006 + $0x48] sm:$0xff]
        %v2020 = vld [vmem:[%s2006 + $0x50] sm:$0xf]
        %v2021 = vld [vmem:[%s2006 + $0x54] sm:$0xff]
        %v2022 = vld [vmem:[%s2006 + $0x5c] sm:$0xf]
        %v2023 = vld [vmem:[%s2006 + $0x78] sm:$0xff]
        %v2024 = vld [vmem:[%s2006 + $0x80] sm:$0xf]
        %v2025 = vld [vmem:[%s2006 + $0x84] sm:$0xff]
        %v2026 = vld [vmem:[%s2006 + $0x8c] sm:$0xf]
        %v2027 = vld [vmem:[%s2006 + $0x90] sm:$0xff]
        %v2028 = vld [vmem:[%s2006 + $0x98] sm:$0xf]
        %v2029 = vld [vmem:[%s2006 + $0x9c] sm:$0xff]
        %v2030 = vld [vmem:[%s2006 + $0xa4] sm:$0xf]
        %v2031 = vld [vmem:[%s2006 + $0xa8] sm:$0xff]
        %v2032 = vld [vmem:[%s2006 + $0xb0] sm:$0xf]
        %v2033 = vld [vmem:[%s2006 + $0xb4] sm:$0xff]
        %v2034 = vld [vmem:[%s2006 + $0xbc] sm:$0xf]
        %v2035 = vld [vmem:[%s2006 + $0xc0] sm:$0xff]
        %v2036 = vld [vmem:[%s2006 + $0xc8] sm:$0xf]
        %v2037 = vld [vmem:[%s2006 + $0xcc] sm:$0xff]
        %v2038 = vld [vmem:[%s2006 + $0xd4] sm:$0xf]
        %s2039 = scalar_lea.vmem %s1, 384
        %v2040 = vld [vmem:[%s2039] sm:$0xf]
        %v2041 = vld [vmem:[%s2039 + $0x4] sm:$0xf]
        %v2042 = vld [vmem:[%s2039 + $0x8] sm:$0xf]
        %v2043 = vld [vmem:[%s2039 + $0xc] sm:$0xf]
        %v2044 = vld [vmem:[%s2039 + $0x10] sm:$0xf]
        %v2045 = vld [vmem:[%s2039 + $0x14] sm:$0xf]
        %v2046 = vld [vmem:[%s2039 + $0x18] sm:$0xf]
        %v2047 = vld [vmem:[%s2039 + $0x1c] sm:$0xf]
        %v2048 = vld [vmem:[%s2039 + $0x20] sm:$0xf]
        %v2049 = vld [vmem:[%s2039 + $0x24] sm:$0xf]
        %v2050 = vld [vmem:[%s2039 + $0x28] sm:$0xf]
        %v2051 = vld [vmem:[%s2039 + $0x2c] sm:$0xf]
        %v2052 = vld [vmem:[%s2039 + $0x30] sm:$0xf]
        %v2053 = vld [vmem:[%s2039 + $0x34] sm:$0xf]
        %v2054 = vld [vmem:[%s2039 + $0x38] sm:$0xf]
        %v2055 = vld [vmem:[%s2039 + $0x3c] sm:$0xf]
        %v2056 = vld [vmem:[%s2039 + $0x40] sm:$0xf]
        %v2057 = vld [vmem:[%s2039 + $0x44] sm:$0xf]
        %v2058 = vld [vmem:[%s2039 + $0x48] sm:$0xf]
        %v2059 = vld [vmem:[%s2039 + $0x4c] sm:$0xf]
        %v2060 = vld [vmem:[%s2039 + $0x50] sm:$0xf]
        %v2061 = vld [vmem:[%s2039 + $0x54] sm:$0xf]
        %v2062 = vld [vmem:[%s2039 + $0x58] sm:$0xf]
        %v2063 = vld [vmem:[%s2039 + $0x5c] sm:$0xf]
        %v2064 = vld [vmem:[%s2039 + $0x60] sm:$0xf]
        %v2065 = vld [vmem:[%s2039 + $0x64] sm:$0xf]
        %v2066 = vld [vmem:[%s2039 + $0x68] sm:$0xf]
        %v2067 = vld [vmem:[%s2039 + $0x6c] sm:$0xf]
        %v2068 = vld [vmem:[%s2039 + $0x70] sm:$0xf]
        %v2069 = vld [vmem:[%s2039 + $0x74] sm:$0xf]
        %v2070 = vld [vmem:[%s2039 + $0x78] sm:$0xf]
        %v2071 = vld [vmem:[%s2039 + $0x7c] sm:$0xf]
        %v2072 = vld [vmem:[%s2039 + $0x80] sm:$0xf]
        %v2073 = vld [vmem:[%s2039 + $0x84] sm:$0xf]
        %v2074 = vld [vmem:[%s2039 + $0x88] sm:$0xf]
        %v2075 = vld [vmem:[%s2039 + $0x8c] sm:$0xf]
        %v2076 = vld [vmem:[%s2039 + $0x90] sm:$0xf]
        %v2077 = vld [vmem:[%s2039 + $0x94] sm:$0xf]
        %v2078 = vld [vmem:[%s2039 + $0x98] sm:$0xf]
        %v2079 = vld [vmem:[%s2039 + $0x9c] sm:$0xf]
        %v2080 = vld [vmem:[%s2039 + $0xa0] sm:$0xf]
        %v2081 = vld [vmem:[%s2039 + $0xa4] sm:$0xf]
        %v2082 = vld [vmem:[%s2039 + $0xa8] sm:$0xf]
        %v2083 = vld [vmem:[%s2039 + $0xac] sm:$0xf]
        %v2084 = vld [vmem:[%s2039 + $0xb0] sm:$0xf]
        %v2085 = vld [vmem:[%s2039 + $0xb4] sm:$0xf]
        %v2086 = vld [vmem:[%s2039 + $0xb8] sm:$0xf]
        %v2087 = vld [vmem:[%s2039 + $0xbc] sm:$0xf]
        %v2120 = vunpack.c.l.b16 %v2007
        %v2121 = vunpack.c.h.b16 %v2007
        %v2122 = vunpack.c.l.b16 %v2008
        %v2123 = vunpack.c.l.b16 %v2009
        %v2124 = vunpack.c.h.b16 %v2009
        %v2125 = vunpack.c.l.b16 %v2010
        %v2126 = vunpack.c.l.b16 %v2011
        %v2127 = vunpack.c.h.b16 %v2011
        %v2128 = vunpack.c.l.b16 %v2012
        %v2129 = vunpack.c.l.b16 %v2013
        %v2130 = vunpack.c.h.b16 %v2013
        %v2131 = vunpack.c.l.b16 %v2014
        %v2132 = vunpack.c.l.b16 %v2015
        %v2133 = vunpack.c.h.b16 %v2015
        %v2134 = vunpack.c.l.b16 %v2016
        %v2135 = vunpack.c.l.b16 %v2017
        %v2136 = vunpack.c.h.b16 %v2017
        %v2137 = vunpack.c.l.b16 %v2018
        %v2138 = vunpack.c.l.b16 %v2019
        %v2139 = vunpack.c.h.b16 %v2019
        %v2140 = vunpack.c.l.b16 %v2020
        %v2141 = vunpack.c.l.b16 %v2021
        %v2142 = vunpack.c.h.b16 %v2021
        %v2143 = vunpack.c.l.b16 %v2022
        %v2144 = vunpack.c.l.b16 %v2023
        %v2145 = vunpack.c.h.b16 %v2023
        %v2146 = vunpack.c.l.b16 %v2024
        %v2147 = vunpack.c.l.b16 %v2025
        %v2148 = vunpack.c.h.b16 %v2025
        %v2149 = vunpack.c.l.b16 %v2026
        %v2150 = vunpack.c.l.b16 %v2027
        %v2151 = vunpack.c.h.b16 %v2027
        %v2152 = vunpack.c.l.b16 %v2028
        %v2153 = vunpack.c.l.b16 %v2029
        %v2154 = vunpack.c.h.b16 %v2029
        %v2155 = vunpack.c.l.b16 %v2030
        %v2156 = vunpack.c.l.b16 %v2031
        %v2157 = vunpack.c.h.b16 %v2031
        %v2158 = vunpack.c.l.b16 %v2032
        %v2159 = vunpack.c.l.b16 %v2033
        %v2160 = vunpack.c.h.b16 %v2033
        %v2161 = vunpack.c.l.b16 %v2034
        %v2162 = vunpack.c.l.b16 %v2035
        %v2163 = vunpack.c.h.b16 %v2035
        %v2164 = vunpack.c.l.b16 %v2036
        %v2165 = vunpack.c.l.b16 %v2037
        %v2166 = vunpack.c.h.b16 %v2037
        %v2167 = vunpack.c.l.b16 %v2038
        %v2168 = vpack.c.b16 %v2123, %v2120
        %v2169 = vpack.c.b16 %v2124, %v2121
        %v2170 = vpack.c.b16 %v2125, %v2122
        %v2171 = vpack.c.b16 %v2129, %v2126
        %v2172 = vpack.c.b16 %v2130, %v2127
        %v2173 = vpack.c.b16 %v2131, %v2128
        %v2174 = vpack.c.b16 %v2135, %v2132
        %v2175 = vpack.c.b16 %v2136, %v2133
        %v2176 = vpack.c.b16 %v2137, %v2134
        %v2177 = vpack.c.b16 %v2141, %v2138
        %v2178 = vpack.c.b16 %v2142, %v2139
        %v2179 = vpack.c.b16 %v2143, %v2140
        %v2180 = vpack.c.b16 %v2147, %v2144
        %v2181 = vpack.c.b16 %v2148, %v2145
        %v2182 = vpack.c.b16 %v2149, %v2146
        %v2183 = vpack.c.b16 %v2153, %v2150
        %v2184 = vpack.c.b16 %v2154, %v2151
        %v2185 = vpack.c.b16 %v2155, %v2152
        %v2186 = vpack.c.b16 %v2159, %v2156
        %v2187 = vpack.c.b16 %v2160, %v2157
        %v2188 = vpack.c.b16 %v2161, %v2158
        %v2189 = vpack.c.b16 %v2165, %v2162
        %v2190 = vpack.c.b16 %v2166, %v2163
        %v2191 = vpack.c.b16 %v2167, %v2164
        %v2264 = vunpack.c.l.b16 %v2040
        %v2265 = vunpack.c.l.b16 %v2041
        %v2266 = vunpack.c.l.b16 %v2042
        %v2267 = vunpack.c.l.b16 %v2043
        %v2268 = vunpack.c.l.b16 %v2044
        %v2269 = vunpack.c.l.b16 %v2045
        %v2270 = vunpack.c.l.b16 %v2046
        %v2271 = vunpack.c.l.b16 %v2047
        %v2272 = vunpack.c.l.b16 %v2048
        %v2273 = vunpack.c.l.b16 %v2049
        %v2274 = vunpack.c.l.b16 %v2050
        %v2275 = vunpack.c.l.b16 %v2051
        %v2276 = vunpack.c.l.b16 %v2052
        %v2277 = vunpack.c.l.b16 %v2053
        %v2278 = vunpack.c.l.b16 %v2054
        %v2279 = vunpack.c.l.b16 %v2055
        %v2280 = vunpack.c.l.b16 %v2056
        %v2281 = vunpack.c.l.b16 %v2057
        %v2282 = vunpack.c.l.b16 %v2058
        %v2283 = vunpack.c.l.b16 %v2059
        %v2284 = vunpack.c.l.b16 %v2060
        %v2285 = vunpack.c.l.b16 %v2061
        %v2286 = vunpack.c.l.b16 %v2062
        %v2287 = vunpack.c.l.b16 %v2063
        %v2288 = vunpack.c.l.b16 %v2064
        %v2289 = vunpack.c.l.b16 %v2065
        %v2290 = vunpack.c.l.b16 %v2066
        %v2291 = vunpack.c.l.b16 %v2067
        %v2292 = vunpack.c.l.b16 %v2068
        %v2293 = vunpack.c.l.b16 %v2069
        %v2294 = vunpack.c.l.b16 %v2070
        %v2295 = vunpack.c.l.b16 %v2071
        %v2296 = vunpack.c.l.b16 %v2072
        %v2297 = vunpack.c.l.b16 %v2073
        %v2298 = vunpack.c.l.b16 %v2074
        %v2299 = vunpack.c.l.b16 %v2075
        %v2300 = vunpack.c.l.b16 %v2076
        %v2301 = vunpack.c.l.b16 %v2077
        %v2302 = vunpack.c.l.b16 %v2078
        %v2303 = vunpack.c.l.b16 %v2079
        %v2304 = vunpack.c.l.b16 %v2080
        %v2305 = vunpack.c.l.b16 %v2081
        %v2306 = vunpack.c.l.b16 %v2082
        %v2307 = vunpack.c.l.b16 %v2083
        %v2308 = vunpack.c.l.b16 %v2084
        %v2309 = vunpack.c.l.b16 %v2085
        %v2310 = vunpack.c.l.b16 %v2086
        %v2311 = vunpack.c.l.b16 %v2087
        %v2312 = vpack.c.b16 %v2265, %v2264
        %v2313 = vpack.c.b16 %v2267, %v2266
        %v2314 = vpack.c.b16 %v2269, %v2268
        %v2315 = vpack.c.b16 %v2271, %v2270
        %v2316 = vpack.c.b16 %v2273, %v2272
        %v2317 = vpack.c.b16 %v2275, %v2274
        %v2318 = vpack.c.b16 %v2277, %v2276
        %v2319 = vpack.c.b16 %v2279, %v2278
        %v2320 = vpack.c.b16 %v2281, %v2280
        %v2321 = vpack.c.b16 %v2283, %v2282
        %v2322 = vpack.c.b16 %v2285, %v2284
        %v2323 = vpack.c.b16 %v2287, %v2286
        %v2324 = vpack.c.b16 %v2289, %v2288
        %v2325 = vpack.c.b16 %v2291, %v2290
        %v2326 = vpack.c.b16 %v2293, %v2292
        %v2327 = vpack.c.b16 %v2295, %v2294
        %v2328 = vpack.c.b16 %v2297, %v2296
        %v2329 = vpack.c.b16 %v2299, %v2298
        %v2330 = vpack.c.b16 %v2301, %v2300
        %v2331 = vpack.c.b16 %v2303, %v2302
        %v2332 = vpack.c.b16 %v2305, %v2304
        %v2333 = vpack.c.b16 %v2307, %v2306
        %v2334 = vpack.c.b16 %v2309, %v2308
        %v2335 = vpack.c.b16 %v2311, %v2310
        %2360 = vmatprep.subr.bf16.mxu0 0
        %2361 = vmatpush1.bf16.msra.mxu0 %v2319
        %2362 = vmatprep.subr.bf16.mxu0 0
        %2363 = vmatpush1.bf16.msra.mxu0 %v2318
        %2364 = vmatprep.subr.bf16.mxu0 0
        %2365 = vmatpush1.bf16.msra.mxu0 %v2317
        %2366 = vmatprep.subr.bf16.mxu0 0
        %2367 = vmatpush1.bf16.msra.mxu0 %v2316
        %2368 = vmatprep.subr.bf16.mxu0 0
        %2369 = vmatpush1.bf16.msra.mxu0 %v2315
        %2370 = vmatprep.subr.bf16.mxu0 0
        %2371 = vmatpush1.bf16.msra.mxu0 %v2314
        %2372 = vmatprep.subr.bf16.mxu0 0
        %2373 = vmatpush1.bf16.msra.mxu0 %v2313
        %2374 = vmatprep.subr.bf16.mxu0 0
        %2375 = vmatpush1.bf16.msra.mxu0 %v2312
        %2376 = vmatprep.subr.bf16.mxu0 0
        %2377 = vmatpush2.bf16.msra.mxu0 %v2327
        %2378 = vmatprep.subr.bf16.mxu0 0
        %2379 = vmatpush2.bf16.msra.mxu0 %v2326
        %2380 = vmatprep.subr.bf16.mxu0 0
        %2381 = vmatpush2.bf16.msra.mxu0 %v2325
        %2382 = vmatprep.subr.bf16.mxu0 0
        %2383 = vmatpush2.bf16.msra.mxu0 %v2324
        %2384 = vmatprep.subr.bf16.mxu0 0
        %2385 = vmatpush2.bf16.msra.mxu0 %v2323
        %2386 = vmatprep.subr.bf16.mxu0 0
        %2387 = vmatpush2.bf16.msra.mxu0 %v2322
        %2388 = vmatprep.subr.bf16.mxu0 0
        %2389 = vmatpush2.bf16.msra.mxu0 %v2321
        %2390 = vmatprep.subr.bf16.mxu0 0
        %2391 = vmatpush2.bf16.msra.mxu0 %v2320
        %2392 = vmatprep.mubr.bf16.mxu0 %v2169
        %2393 = vmatmul.mubr.bf16.gmra.mxu0 %v2168
        %v2394 = vpop.f32.mrf.mxu0
        %v2395 = vadd.f32 0.0, %v2394
        %v2396 = vpop.f32.mrf.mxu0
        %v2397 = vpop.f32.mrf.mxu0
        %v2398 = vadd.f32 0.0, %v2397
        %v2399 = vpop.f32.mrf.mxu0
        %2400 = vmatprep.mubr.bf16.mxu0 %v2172
        %2401 = vmatmul.mubr.bf16.gmra.mxu0 %v2171
        %v2402 = vpop.f32.mrf.mxu0
        %v2403 = vadd.f32 0.0, %v2402
        %v2404 = vpop.f32.mrf.mxu0
        %v2405 = vpop.f32.mrf.mxu0
        %v2406 = vadd.f32 0.0, %v2405
        %v2407 = vpop.f32.mrf.mxu0
        %2408 = vmatprep.mubr.bf16.mxu0 %v2175
        %2409 = vmatmul.mubr.bf16.gmra.mxu0 %v2174
        %v2410 = vpop.f32.mrf.mxu0
        %v2411 = vadd.f32 0.0, %v2410
        %v2412 = vpop.f32.mrf.mxu0
        %v2413 = vpop.f32.mrf.mxu0
        %v2414 = vadd.f32 0.0, %v2413
        %v2415 = vpop.f32.mrf.mxu0
        %2416 = vmatprep.mubr.bf16.mxu0 %v2178
        %2417 = vmatmul.mubr.bf16.gmra.mxu0 %v2177
        %v2418 = vpop.f32.mrf.mxu0
        %v2419 = vadd.f32 0.0, %v2418
        %v2420 = vpop.f32.mrf.mxu0
        %v2421 = vpop.f32.mrf.mxu0
        %v2422 = vadd.f32 0.0, %v2421
        %v2423 = vpop.f32.mrf.mxu0
        %2424 = vmatprep.mubr.bf16.mxu0 %v2181
        %2425 = vmatmul.mubr.bf16.gmra.mxu0 %v2180
        %v2426 = vpop.f32.mrf.mxu0
        %v2427 = vadd.f32 0.0, %v2426
        %v2428 = vpop.f32.mrf.mxu0
        %v2429 = vpop.f32.mrf.mxu0
        %v2430 = vadd.f32 0.0, %v2429
        %v2431 = vpop.f32.mrf.mxu0
        %2432 = vmatprep.mubr.bf16.mxu0 %v2184
        %2433 = vmatmul.mubr.bf16.gmra.mxu0 %v2183
        %v2434 = vpop.f32.mrf.mxu0
        %v2435 = vadd.f32 0.0, %v2434
        %v2436 = vpop.f32.mrf.mxu0
        %v2437 = vpop.f32.mrf.mxu0
        %v2438 = vadd.f32 0.0, %v2437
        %v2439 = vpop.f32.mrf.mxu0
        %2440 = vmatprep.mubr.bf16.mxu0 %v2187
        %2441 = vmatmul.mubr.bf16.gmra.mxu0 %v2186
        %v2442 = vpop.f32.mrf.mxu0
        %v2443 = vadd.f32 0.0, %v2442
        %v2444 = vpop.f32.mrf.mxu0
        %v2445 = vpop.f32.mrf.mxu0
        %v2446 = vadd.f32 0.0, %v2445
        %v2447 = vpop.f32.mrf.mxu0
        %2448 = vmatprep.mubr.bf16.mxu0 %v2190
        %2449 = vmatmul.mubr.bf16.gmra.mxu0 %v2189
        %v2450 = vpop.f32.mrf.mxu0
        %v2451 = vadd.f32 0.0, %v2450
        %v2452 = vpop.f32.mrf.mxu0
        %v2453 = vpop.f32.mrf.mxu0
        %v2454 = vadd.f32 0.0, %v2453
        %v2455 = vpop.f32.mrf.mxu0
        %2456 = vdwg.mxu0
        %2457 = vmatprep.subr.bf16.mxu0 0
        %2458 = vmatpush1.bf16.msra.mxu0 %v2335
        %2459 = vmatprep.subr.bf16.mxu0 0
        %2460 = vmatpush1.bf16.msra.mxu0 %v2334
        %2461 = vmatprep.subr.bf16.mxu0 0
        %2462 = vmatpush1.bf16.msra.mxu0 %v2333
        %2463 = vmatprep.subr.bf16.mxu0 0
        %2464 = vmatpush1.bf16.msra.mxu0 %v2332
        %2465 = vmatprep.subr.bf16.mxu0 0
        %2466 = vmatpush1.bf16.msra.mxu0 %v2331
        %2467 = vmatprep.subr.bf16.mxu0 0
        %2468 = vmatpush1.bf16.msra.mxu0 %v2330
        %2469 = vmatprep.subr.bf16.mxu0 0
        %2470 = vmatpush1.bf16.msra.mxu0 %v2329
        %2471 = vmatprep.subr.bf16.mxu0 0
        %2472 = vmatpush1.bf16.msra.mxu0 %v2328
        %2473 = vmatprep.subr.bf16.mxu0 0
        %2474 = vmatpush2.bf16.msra.mxu0 0
        %2475 = vmatprep.subr.bf16.mxu0 0
        %2476 = vmatpush2.bf16.msra.mxu0 0
        %2477 = vmatprep.subr.bf16.mxu0 0
        %2478 = vmatpush2.bf16.msra.mxu0 0
        %2479 = vmatprep.subr.bf16.mxu0 0
        %2480 = vmatpush2.bf16.msra.mxu0 0
        %2481 = vmatprep.subr.bf16.mxu0 0
        %2482 = vmatpush2.bf16.msra.mxu0 0
        %2483 = vmatprep.subr.bf16.mxu0 0
        %2484 = vmatpush2.bf16.msra.mxu0 0
        %2485 = vmatprep.subr.bf16.mxu0 0
        %2486 = vmatpush2.bf16.msra.mxu0 0
        %2487 = vmatprep.subr.bf16.mxu0 0
        %2488 = vmatpush2.bf16.msra.mxu0 0
        %2489 = vmatprep.mubr.bf16.mxu0 0
        %2490 = vmatmul.mubr.bf16.gmra.mxu0 %v2170
        %v2491 = vpop.f32.mrf.mxu0
        %v2492 = vadd.f32 %v2395, %v2491
        %v2493 = vpop.f32.mrf.mxu0
        %v2494 = vpop.f32.mrf.mxu0
        %v2495 = vadd.f32 %v2398, %v2494
        %v2496 = vpop.f32.mrf.mxu0
        %2497 = vmatprep.mubr.bf16.mxu0 0
        %2498 = vmatmul.mubr.bf16.gmra.mxu0 %v2173
        %v2499 = vpop.f32.mrf.mxu0
        %v2500 = vadd.f32 %v2403, %v2499
        %v2501 = vpop.f32.mrf.mxu0
        %v2502 = vpop.f32.mrf.mxu0
        %v2503 = vadd.f32 %v2406, %v2502
        %v2504 = vpop.f32.mrf.mxu0
        %2505 = vmatprep.mubr.bf16.mxu0 0
        %2506 = vmatmul.mubr.bf16.gmra.mxu0 %v2176
        %v2507 = vpop.f32.mrf.mxu0
        %v2508 = vadd.f32 %v2411, %v2507
        %v2509 = vpop.f32.mrf.mxu0
        %v2510 = vpop.f32.mrf.mxu0
        %v2511 = vadd.f32 %v2414, %v2510
        %v2512 = vpop.f32.mrf.mxu0
        %2513 = vmatprep.mubr.bf16.mxu0 0
        %2514 = vmatmul.mubr.bf16.gmra.mxu0 %v2179
        %v2515 = vpop.f32.mrf.mxu0
        %v2516 = vadd.f32 %v2419, %v2515
        %v2517 = vpop.f32.mrf.mxu0
        %v2518 = vpop.f32.mrf.mxu0
        %v2519 = vadd.f32 %v2422, %v2518
        %v2520 = vpop.f32.mrf.mxu0
        %2521 = vmatprep.mubr.bf16.mxu0 0
        %2522 = vmatmul.mubr.bf16.gmra.mxu0 %v2182
        %v2523 = vpop.f32.mrf.mxu0
        %v2524 = vadd.f32 %v2427, %v2523
        %v2525 = vpop.f32.mrf.mxu0
        %v2526 = vpop.f32.mrf.mxu0
        %v2527 = vadd.f32 %v2430, %v2526
        %v2528 = vpop.f32.mrf.mxu0
        %2529 = vmatprep.mubr.bf16.mxu0 0
        %2530 = vmatmul.mubr.bf16.gmra.mxu0 %v2185
        %v2531 = vpop.f32.mrf.mxu0
        %v2532 = vadd.f32 %v2435, %v2531
        %v2533 = vpop.f32.mrf.mxu0
        %v2534 = vpop.f32.mrf.mxu0
        %v2535 = vadd.f32 %v2438, %v2534
        %v2536 = vpop.f32.mrf.mxu0
        %2537 = vmatprep.mubr.bf16.mxu0 0
        %2538 = vmatmul.mubr.bf16.gmra.mxu0 %v2188
        %v2539 = vpop.f32.mrf.mxu0
        %v2540 = vadd.f32 %v2443, %v2539
        %v2541 = vpop.f32.mrf.mxu0
        %v2542 = vpop.f32.mrf.mxu0
        %v2543 = vadd.f32 %v2446, %v2542
        %v2544 = vpop.f32.mrf.mxu0
        %2545 = vmatprep.mubr.bf16.mxu0 0
        %2546 = vmatmul.mubr.bf16.gmra.mxu0 %v2191
        %v2547 = vpop.f32.mrf.mxu0
        %v2548 = vadd.f32 %v2451, %v2547
        %v2549 = vpop.f32.mrf.mxu0
        %v2550 = vpop.f32.mrf.mxu0
        %v2551 = vadd.f32 %v2454, %v2550
        %v2552 = vpop.f32.mrf.mxu0
        %2553 = vdwg.mxu0
        %v2554 = vadd.f32 %v1990, %v2492
        %v2555 = vadd.f32 %v1991, %v2495
        %v2556 = vadd.f32 %v1992, %v2500
        %v2557 = vadd.f32 %v1993, %v2503
        %v2558 = vadd.f32 %v1994, %v2508
        %v2559 = vadd.f32 %v1995, %v2511
        %v2560 = vadd.f32 %v1996, %v2516
        %v2561 = vadd.f32 %v1997, %v2519
        %v2562 = vadd.f32 %v1998, %v2524
        %v2563 = vadd.f32 %v1999, %v2527
        %v2564 = vadd.f32 %v2000, %v2532
        %v2565 = vadd.f32 %v2001, %v2535
        %v2566 = vadd.f32 %v2002, %v2540
        %v2567 = vadd.f32 %v2003, %v2543
        %v2568 = vadd.f32 %v2004, %v2548
        %v2569 = vadd.f32 %v2005, %v2551
        %2570 = vst [vmem:[#allocation3] sm:$0xff] %v2554
        %2571 = vst [vmem:[#allocation3 + $0x8] sm:$0xff] %v2555
        %2572 = vst [vmem:[#allocation3 + $0x10] sm:$0xff] %v2556
        %2573 = vst [vmem:[#allocation3 + $0x18] sm:$0xff] %v2557
        %2574 = vst [vmem:[#allocation3 + $0x20] sm:$0xff] %v2558
        %2575 = vst [vmem:[#allocation3 + $0x28] sm:$0xff] %v2559
        %2576 = vst [vmem:[#allocation3 + $0x30] sm:$0xff] %v2560
        %2577 = vst [vmem:[#allocation3 + $0x38] sm:$0xff] %v2561
        %2578 = vst [vmem:[#allocation3 + $0x40] sm:$0xff] %v2562
        %2579 = vst [vmem:[#allocation3 + $0x48] sm:$0xff] %v2563
        %2580 = vst [vmem:[#allocation3 + $0x50] sm:$0xff] %v2564
        %2581 = vst [vmem:[#allocation3 + $0x58] sm:$0xff] %v2565
        %2582 = vst [vmem:[#allocation3 + $0x60] sm:$0xff] %v2566
        %2583 = vst [vmem:[#allocation3 + $0x68] sm:$0xff] %v2567
        %2584 = vst [vmem:[#allocation3 + $0x70] sm:$0xff] %v2568
        %2585 = vst [vmem:[#allocation3 + $0x78] sm:$0xff] %v2569
        %v2586 = vld [vmem:[#allocation3] sm:$0xff]
        %v2587 = vld [vmem:[#allocation3 + $0x8] sm:$0xff]
        %v2588 = vld [vmem:[#allocation3 + $0x10] sm:$0xff]
        %v2589 = vld [vmem:[#allocation3 + $0x18] sm:$0xff]
        %v2590 = vld [vmem:[#allocation3 + $0x20] sm:$0xff]
        %v2591 = vld [vmem:[#allocation3 + $0x28] sm:$0xff]
        %v2592 = vld [vmem:[#allocation3 + $0x30] sm:$0xff]
        %v2593 = vld [vmem:[#allocation3 + $0x38] sm:$0xff]
        %v2594 = vld [vmem:[#allocation3 + $0x40] sm:$0xff]
        %v2595 = vld [vmem:[#allocation3 + $0x48] sm:$0xff]
        %v2596 = vld [vmem:[#allocation3 + $0x50] sm:$0xff]
        %v2597 = vld [vmem:[#allocation3 + $0x58] sm:$0xff]
        %v2598 = vld [vmem:[#allocation3 + $0x60] sm:$0xff]
        %v2599 = vld [vmem:[#allocation3 + $0x68] sm:$0xff]
        %v2600 = vld [vmem:[#allocation3 + $0x70] sm:$0xff]
        %v2601 = vld [vmem:[#allocation3 + $0x78] sm:$0xff]
        %v2602 = vadd.f32 %v2586, %v2587
        %v2603 = vadd.f32 %v2602, %v2588
        %v2604 = vadd.f32 %v2603, %v2589
        %v2605 = vadd.f32 %v2604, %v2590
        %v2606 = vadd.f32 %v2605, %v2591
        %v2607 = vadd.f32 %v2606, %v2592
        %v2608 = vadd.f32 %v2607, %v2593
        %v2609 = vadd.f32 %v2608, %v2594
        %v2610 = vadd.f32 %v2609, %v2595
        %v2611 = vadd.f32 %v2610, %v2596
        %v2612 = vadd.f32 %v2611, %v2597
        %v2613 = vadd.f32 %v2612, %v2598
        %v2614 = vadd.f32 %v2613, %v2599
        %v2615 = vadd.f32 %v2614, %v2600
        %v2616 = vadd.f32 %v2615, %v2601
        %v2617 = vrot.slane %v2616, 4
        %v2618 = vadd.f32 %v2616, %v2617
        %v2619 = vrot.slane %v2618, 2
        %v2620 = vadd.f32 %v2618, %v2619
        %v2621 = vrot.slane %v2620, 1
        %v2622 = vadd.f32 %v2620, %v2621
        %v2623 = vmul.f32 %v2622, 0.0078125
        %v2624 = vsub.f32 %v2586, %v2623
        %v2625 = vsub.f32 %v2587, %v2623
        %v2626 = vsub.f32 %v2588, %v2623
        %v2627 = vsub.f32 %v2589, %v2623
        %v2628 = vsub.f32 %v2590, %v2623
        %v2629 = vsub.f32 %v2591, %v2623
        %v2630 = vsub.f32 %v2592, %v2623
        %v2631 = vsub.f32 %v2593, %v2623
        %v2632 = vsub.f32 %v2594, %v2623
        %v2633 = vsub.f32 %v2595, %v2623
        %v2634 = vsub.f32 %v2596, %v2623
        %v2635 = vsub.f32 %v2597, %v2623
        %v2636 = vsub.f32 %v2598, %v2623
        %v2637 = vsub.f32 %v2599, %v2623
        %v2638 = vsub.f32 %v2600, %v2623
        %v2639 = vsub.f32 %v2601, %v2623
        %v2640 = vmul.f32 %v2624, %v2624
        %v2641 = vmul.f32 %v2625, %v2625
        %v2642 = vmul.f32 %v2626, %v2626
        %v2643 = vmul.f32 %v2627, %v2627
        %v2644 = vmul.f32 %v2628, %v2628
        %v2645 = vmul.f32 %v2629, %v2629
        %v2646 = vmul.f32 %v2630, %v2630
        %v2647 = vmul.f32 %v2631, %v2631
        %v2648 = vmul.f32 %v2632, %v2632
        %v2649 = vmul.f32 %v2633, %v2633
        %v2650 = vmul.f32 %v2634, %v2634
        %v2651 = vmul.f32 %v2635, %v2635
        %v2652 = vmul.f32 %v2636, %v2636
        %v2653 = vmul.f32 %v2637, %v2637
        %v2654 = vmul.f32 %v2638, %v2638
        %v2655 = vmul.f32 %v2639, %v2639
        %v2656 = vadd.f32 %v2640, %v2641
        %v2657 = vadd.f32 %v2656, %v2642
        %v2658 = vadd.f32 %v2657, %v2643
        %v2659 = vadd.f32 %v2658, %v2644
        %v2660 = vadd.f32 %v2659, %v2645
        %v2661 = vadd.f32 %v2660, %v2646
        %v2662 = vadd.f32 %v2661, %v2647
        %v2663 = vadd.f32 %v2662, %v2648
        %v2664 = vadd.f32 %v2663, %v2649
        %v2665 = vadd.f32 %v2664, %v2650
        %v2666 = vadd.f32 %v2665, %v2651
        %v2667 = vadd.f32 %v2666, %v2652
        %v2668 = vadd.f32 %v2667, %v2653
        %v2669 = vadd.f32 %v2668, %v2654
        %v2670 = vadd.f32 %v2669, %v2655
        %v2671 = vrot.slane %v2670, 4
        %v2672 = vadd.f32 %v2670, %v2671
        %v2673 = vrot.slane %v2672, 2
        %v2674 = vadd.f32 %v2672, %v2673
        %v2675 = vrot.slane %v2674, 1
        %v2676 = vadd.f32 %v2674, %v2675
        %2677 = vst [vmem:[#allocation4] sm:$0x1] %v2623
        %2678 = vst [vmem:[#allocation5] sm:$0x1] %v2676
      $region40: #{hourglass2d_pallas.8} parent=35 // pred_fallthru
        _
      %p2679 = scmp.eq.s32.totalorder %s19, 1
      // Predicated region
      $region41: #{hourglass2d_pallas.8} parent=35 // pred_check
        %p2680 = pneg %p2679
      $region42: #{hourglass2d_pallas.8} parent=35 // pred_check_branch
        %2682 = sbr.rel (%p2680) target = $region44
      $region43: #{hourglass2d_pallas.8} parent=35 // pred_region
        %v2683 = vld [vmem:[#allocation5] sm:$0x1]
        %v2684 = vmul.f32 %v2683, 0.0078125
        %v2685 = vadd.f32 %v2684, 1e-05
        %v2686 = vrsqrt.pop %v2685
        %v2687 = vld [vmem:[%s2] sm:$0x1]
        %v2688 = vmul.f32 %v2686, %v2687
        %v2689 = vld [vmem:[%s3] sm:$0x1]
        %v2690 = vld [vmem:[#allocation4] sm:$0x1]
        %v2691 = vmul.f32 %v2690, %v2688
        %v2692 = vsub.f32 %v2689, %v2691
        %v2693 = vld [vmem:[#allocation3] sm:$0xff]
        %v2694 = vld [vmem:[#allocation3 + $0x8] sm:$0xff]
        %v2695 = vld [vmem:[#allocation3 + $0x10] sm:$0xff]
        %v2696 = vld [vmem:[#allocation3 + $0x18] sm:$0xff]
        %v2697 = vld [vmem:[#allocation3 + $0x20] sm:$0xff]
        %v2698 = vld [vmem:[#allocation3 + $0x28] sm:$0xff]
        %v2699 = vld [vmem:[#allocation3 + $0x30] sm:$0xff]
        %v2700 = vld [vmem:[#allocation3 + $0x38] sm:$0xff]
        %v2701 = vld [vmem:[#allocation3 + $0x40] sm:$0xff]
        %v2702 = vld [vmem:[#allocation3 + $0x48] sm:$0xff]
        %v2703 = vld [vmem:[#allocation3 + $0x50] sm:$0xff]
        %v2704 = vld [vmem:[#allocation3 + $0x58] sm:$0xff]
        %v2705 = vld [vmem:[#allocation3 + $0x60] sm:$0xff]
        %v2706 = vld [vmem:[#allocation3 + $0x68] sm:$0xff]
        %v2707 = vld [vmem:[#allocation3 + $0x70] sm:$0xff]
        %v2708 = vld [vmem:[#allocation3 + $0x78] sm:$0xff]
        %v2710 = vlaneseq
        %v2711 = vshrl.u32 %v2710, 7
        %v2712 = vsub.s32 0, %v2711
        %v2713 = vrot.slane %v2688, %v2712
        %v2715 = vmul.f32 %v2693, %v2713
        %v2716 = vmul.f32 %v2694, %v2713
        %v2717 = vmul.f32 %v2695, %v2713
        %v2718 = vmul.f32 %v2696, %v2713
        %v2719 = vmul.f32 %v2697, %v2713
        %v2720 = vmul.f32 %v2698, %v2713
        %v2721 = vmul.f32 %v2699, %v2713
        %v2722 = vmul.f32 %v2700, %v2713
        %v2723 = vmul.f32 %v2701, %v2713
        %v2724 = vmul.f32 %v2702, %v2713
        %v2725 = vmul.f32 %v2703, %v2713
        %v2726 = vmul.f32 %v2704, %v2713
        %v2727 = vmul.f32 %v2705, %v2713
        %v2728 = vmul.f32 %v2706, %v2713
        %v2729 = vmul.f32 %v2707, %v2713
        %v2730 = vmul.f32 %v2708, %v2713
        %v2732 = vlaneseq
        %v2733 = vshrl.u32 %v2732, 7
        %v2734 = vsub.s32 0, %v2733
        %v2735 = vrot.slane %v2692, %v2734
        %v2737 = vadd.f32 %v2715, %v2735
        %v2738 = vadd.f32 %v2716, %v2735
        %v2739 = vadd.f32 %v2717, %v2735
        %v2740 = vadd.f32 %v2718, %v2735
        %v2741 = vadd.f32 %v2719, %v2735
        %v2742 = vadd.f32 %v2720, %v2735
        %v2743 = vadd.f32 %v2721, %v2735
        %v2744 = vadd.f32 %v2722, %v2735
        %v2745 = vadd.f32 %v2723, %v2735
        %v2746 = vadd.f32 %v2724, %v2735
        %v2747 = vadd.f32 %v2725, %v2735
        %v2748 = vadd.f32 %v2726, %v2735
        %v2749 = vadd.f32 %v2727, %v2735
        %v2750 = vadd.f32 %v2728, %v2735
        %v2751 = vadd.f32 %v2729, %v2735
        %v2752 = vadd.f32 %v2730, %v2735
        %v2753 = vmax.f32 %v2737, 0.0
        %v2754 = vmax.f32 %v2738, 0.0
        %v2755 = vmax.f32 %v2739, 0.0
        %v2756 = vmax.f32 %v2740, 0.0
        %v2757 = vmax.f32 %v2741, 0.0
        %v2758 = vmax.f32 %v2742, 0.0
        %v2759 = vmax.f32 %v2743, 0.0
        %v2760 = vmax.f32 %v2744, 0.0
        %v2761 = vmax.f32 %v2745, 0.0
        %v2762 = vmax.f32 %v2746, 0.0
        %v2763 = vmax.f32 %v2747, 0.0
        %v2764 = vmax.f32 %v2748, 0.0
        %v2765 = vmax.f32 %v2749, 0.0
        %v2766 = vmax.f32 %v2750, 0.0
        %v2767 = vmax.f32 %v2751, 0.0
        %v2768 = vmax.f32 %v2752, 0.0
        %v2769 = vpack.c.bf16 %v2754, %v2753
        %v2770 = vpack.c.bf16 %v2756, %v2755
        %v2771 = vpack.c.bf16 %v2758, %v2757
        %v2772 = vpack.c.bf16 %v2760, %v2759
        %v2773 = vpack.c.bf16 %v2762, %v2761
        %v2774 = vpack.c.bf16 %v2764, %v2763
        %v2775 = vpack.c.bf16 %v2766, %v2765
        %v2776 = vpack.c.bf16 %v2768, %v2767
        %v2785 = vunpack.c.l.b16 %v2769
        %v2786 = vunpack.c.h.b16 %v2769
        %v2787 = vunpack.c.l.b16 %v2770
        %v2788 = vunpack.c.h.b16 %v2770
        %v2789 = vunpack.c.l.b16 %v2771
        %v2790 = vunpack.c.h.b16 %v2771
        %v2791 = vunpack.c.l.b16 %v2772
        %v2792 = vunpack.c.h.b16 %v2772
        %v2793 = vunpack.c.l.b16 %v2773
        %v2794 = vunpack.c.h.b16 %v2773
        %v2795 = vunpack.c.l.b16 %v2774
        %v2796 = vunpack.c.h.b16 %v2774
        %v2797 = vunpack.c.l.b16 %v2775
        %v2798 = vunpack.c.h.b16 %v2775
        %v2799 = vunpack.c.l.b16 %v2776
        %v2800 = vunpack.c.h.b16 %v2776
        %v2801 = vpack.c.b16 %v2785, %v2785
        %v2802 = vpack.c.b16 %v2786, %v2786
        %v2803 = vpack.c.b16 %v2787, %v2787
        %v2804 = vpack.c.b16 %v2788, %v2788
        %v2805 = vpack.c.b16 %v2789, %v2789
        %v2806 = vpack.c.b16 %v2790, %v2790
        %v2807 = vpack.c.b16 %v2791, %v2791
        %v2808 = vpack.c.b16 %v2792, %v2792
        %v2809 = vpack.c.b16 %v2793, %v2793
        %v2810 = vpack.c.b16 %v2794, %v2794
        %v2811 = vpack.c.b16 %v2795, %v2795
        %v2812 = vpack.c.b16 %v2796, %v2796
        %v2813 = vpack.c.b16 %v2797, %v2797
        %v2814 = vpack.c.b16 %v2798, %v2798
        %v2815 = vpack.c.b16 %v2799, %v2799
        %v2816 = vpack.c.b16 %v2800, %v2800
        %2833 = vst [vmem:[%s218] sm:$0xf] %v2801
        %2834 = vst [vmem:[%s218 + $0x4] sm:$0xf] %v2802
        %2835 = vst [vmem:[%s218 + $0x8] sm:$0xf] %v2803
        %2836 = vst [vmem:[%s218 + $0xc] sm:$0xf] %v2804
        %2837 = vst [vmem:[%s218 + $0x10] sm:$0xf] %v2805
        %2838 = vst [vmem:[%s218 + $0x14] sm:$0xf] %v2806
        %2839 = vst [vmem:[%s218 + $0x18] sm:$0xf] %v2807
        %2840 = vst [vmem:[%s218 + $0x1c] sm:$0xf] %v2808
        %2841 = vst [vmem:[%s218 + $0x20] sm:$0xf] %v2809
        %2842 = vst [vmem:[%s218 + $0x24] sm:$0xf] %v2810
        %2843 = vst [vmem:[%s218 + $0x28] sm:$0xf] %v2811
        %2844 = vst [vmem:[%s218 + $0x2c] sm:$0xf] %v2812
        %2845 = vst [vmem:[%s218 + $0x30] sm:$0xf] %v2813
        %2846 = vst [vmem:[%s218 + $0x34] sm:$0xf] %v2814
        %2847 = vst [vmem:[%s218 + $0x38] sm:$0xf] %v2815
        %2848 = vst [vmem:[%s218 + $0x3c] sm:$0xf] %v2816
      $region44: #{hourglass2d_pallas.8} parent=35 // pred_fallthru
        _
      %s2849 = smul.u32 %s20, %s19
      %s2850 = smul.u32 16, %s2849
      %p2851 = scmp.lt.s32.totalorder %s2850, 15
      %s2852 = scalar_select %p2851, %s2850, 15
      %s2853 = smul.addr %s2852, 4
      %s2854 = scalar_lea.vmem %s4, %s2853
      // Predicated region
      $region45: #{hourglass2d_pallas.8} parent=35 // pred_check
        %p2855 = pneg %p136
      $region46: #{hourglass2d_pallas.8} parent=35 // pred_check_branch
        %2857 = sbr.rel (%p2855) target = $region48
      $region47: #{hourglass2d_pallas.8} parent=35 // pred_region
        %s2858 = smul.u32 %s20, %s19
        %s2859 = smul.u32 16, %s2858
      $region48: #{hourglass2d_pallas.8} parent=35 // pred_fallthru
        _
    $region36: #{hourglass2d_pallas.8} parent=5 // pred_fallthru
      _
    %p2860 = scmp.le.s32.totalorder 2, %s10
    // Predicated region
    $region49: #{hourglass2d_pallas.8} parent=5 // pred_check
      %p2861 = pneg %p2860
    $region50: #{hourglass2d_pallas.8} parent=5 // pred_check_branch
      %2863 = sbr.rel (%p2861) target = $region52
    $region51: #{hourglass2d_pallas.8} parent=5 // pred_region
      %s2864 = ssub.s32 %s10, 2
      // Predicated region
      $region53: #{hourglass2d_pallas.8} parent=51 // pred_check
        %p2865 = pneg %p142
      $region54: #{hourglass2d_pallas.8} parent=51 // pred_check_branch
        %2867 = sbr.rel (%p2865) target = $region56
      $region55: #{hourglass2d_pallas.8} parent=51 // pred_region
        %s2868 = smul.u32 %s22, %s21
        %s2869 = smul.u32 16, %s2868
        %p2870 = scmp.lt.s32.totalorder %s2869, 15
        %s2871 = scalar_select %p2870, %s2869, 15
        %s2872 = smul.addr %s2871, 4
        %s2873 = scalar_lea.vmem %s4, %s2872
      $region56: #{hourglass2d_pallas.8} parent=51 // pred_fallthru
        _
    $region52: #{hourglass2d_pallas.8} parent=5 // pred_fallthru
      _
  $region6: #{hourglass2d_pallas.8} parent=0 // loop_footer
    %s14 = sadd.s32 1, %s10
  $region7: #{hourglass2d_pallas.8} parent=0 // loop_footer_branch
    %9 = sbr.rel target = $region3
  $region8: #{hourglass2d_pallas.8} parent=0 // loop_exit
    _

// kernel: hourglass2d_pallas.7
$region0: #{hourglass2d_pallas.7}
  #allocation0 [shape = 'u32[]', space=smem, size = 0x4, offset = 0x4, fixed_abs, tag = 'smem constant byte address 0x4 - core index']
  #allocation1 [shape = 'u32[144,128]{1,0:T(1,128)}', space=vmem, size = 0x12000, scoped, tag = 'internal scratch']
  #allocation2 [shape = 'bf16[1,18,16,384]{3,2,1,0:T(8,128)(2,1)}', space=vmem, size = 0x36000, scoped, tag = 'scratch operand']
  #allocation3 [shape = 'f32[256,128]{1,0:T(8,128)}', space=vmem, size = 0x20000, scoped, tag = 'scratch operand']
  #allocation4 [shape = 'f32[1,128]{1,0:T(1,128)}', space=vmem, size = 0x200, scoped, tag = 'scratch operand']
  #allocation5 [shape = 'f32[1,128]{1,0:T(1,128)}', space=vmem, size = 0x200, scoped, tag = 'scratch operand']
  %s0 = inlined_call_operand.vmem [shape: bf16[2,18,18,128], index: 0, kind: input, shape index: {}]
  %s1 = inlined_call_operand.vmem [shape: bf16[3,384,128], index: 1, kind: input, shape index: {}]
  %s2 = inlined_call_operand.vmem [shape: f32[1,128], index: 2, kind: input, shape index: {}]
  %s3 = inlined_call_operand.vmem [shape: f32[1,128], index: 3, kind: input, shape index: {}]
  %s4 = inlined_call_operand.vmem [shape: bf16[512,128], index: 4, kind: output, shape index: {}]
  %s5 = sld [smem:[#allocation0]]
  $region65: #{hourglass2d_pallas.7} parent=0
    _
  %s7 = ssub.s32 1, %s5
  %s8 = scalar_select 0, %s7, %s5
  loop: start=0, step=1, limit=6
  $region2: #{hourglass2d_pallas.7} parent=0 // loop_pre_header
    _
  $region3: #{hourglass2d_pallas.7} parent=0 // loop_header
    %s10 = sphi 0, %s14
    %p11 = scmp.ge.s32.totalorder %s10, 6
    %s17 = sphi 0, %s29
    %s18 = sphi 0, %s25
    %s19 = sphi 0, %s17
    %s20 = sphi 0, %s18
    %s21 = sphi 0, %s19
    %s22 = sphi 0, %s20
    %s32 = sphi 0, %s34
    %s35 = sphi 0, %s32
    %s36 = sphi 0, %s35
    %s52 = sphi 0, %s36
    %s56 = sphi 0, %s56
    %s58 = sphi 0, %s56
    %s59 = sphi 0, %s58
    %s73 = sphi 0, %s59
    %s77 = sphi 0, %s77
    %s79 = sphi 0, %s77
    %s80 = sphi 0, %s79
    %s94 = sphi 0, %s80
    %s98 = sphi 0, %s98
    %s100 = sphi 0, %s98
    %s101 = sphi 0, %s100
    %s115 = sphi 0, %s101
    %s123 = sphi 0, %s125
    %s126 = sphi 0, %s123
    %s127 = sphi 0, %s126
    %s143 = sphi 0, %s127
  $region4: #{hourglass2d_pallas.7} parent=0 // loop_header_branch
    %13 = sbr.rel (%p11) target = $region8
  $region5: #{hourglass2d_pallas.7} parent=0 // loop_body
    %s15 = ssub.s32 %s10, 1
    %s16 = ssub.s32 %s10, 2
    %s23 = sadd.s32 1, %s18
    %p24 = scmp.ge.s32.totalorder %s23, 2
    %s25 = scalar_select %p24, 0, %s23
    %s26 = sadd.s32 1, %s17
    %s27 = scalar_select %p24, %s26, %s17
    %p28 = scmp.ge.s32.totalorder %s27, 2
    %s29 = scalar_select %p28, 0, %s27
    %s30 = ssub.s32 %s18, %s25
    %p31 = scmp.eq.s32.totalorder %s30, 0
    %s33 = sadd.s32 %s32, 1
    %s34 = scalar_select %p31, %s32, %s33
    %p37 = pneg %p31
    %p38 = scmp.eq.s32.totalorder %s10, 3
    %p39 = por %p37, %p38
    %p40 = scmp.ne.s32.totalorder %s32, %s35
    %p41 = scmp.eq.s32.totalorder %s10, 0
    %p42 = por %p40, %p41
    %p43 = scmp.ne.s32.totalorder %s32, %s35
    %p44 = scmp.eq.s32.totalorder %s15, 3
    %p45 = por %p43, %p44
    %p46 = scmp.ne.s32.totalorder %s35, %s36
    %p47 = scmp.eq.s32.totalorder %s15, 0
    %p48 = por %p46, %p47
    %p49 = scmp.ne.s32.totalorder %s35, %s36
    %p50 = scmp.eq.s32.totalorder %s16, 3
    %p51 = por %p49, %p50
    %p53 = scmp.ne.s32.totalorder %s36, %s52
    %p54 = scmp.eq.s32.totalorder %s16, 0
    %p55 = por %p53, %p54
    %s57 = sadd.s32 %s56, 1
    %p60 = scmp.eq.s32.totalorder %s10, 3
    %p61 = scmp.ne.s32.totalorder %s56, %s58
    %p62 = scmp.eq.s32.totalorder %s10, 0
    %p63 = por %p61, %p62
    %p64 = scmp.ne.s32.totalorder %s56, %s58
    %p65 = scmp.eq.s32.totalorder %s15, 3
    %p66 = por %p64, %p65
    %p67 = scmp.ne.s32.totalorder %s58, %s59
    %p68 = scmp.eq.s32.totalorder %s15, 0
    %p69 = por %p67, %p68
    %p70 = scmp.ne.s32.totalorder %s58, %s59
    %p71 = scmp.eq.s32.totalorder %s16, 3
    %p72 = por %p70, %p71
    %p74 = scmp.ne.s32.totalorder %s59, %s73
    %p75 = scmp.eq.s32.totalorder %s16, 0
    %p76 = por %p74, %p75
    %s78 = sadd.s32 %s77, 1
    %p81 = scmp.eq.s32.totalorder %s10, 3
    %p82 = scmp.ne.s32.totalorder %s77, %s79
    %p83 = scmp.eq.s32.totalorder %s10, 0
    %p84 = por %p82, %p83
    %p85 = scmp.ne.s32.totalorder %s77, %s79
    %p86 = scmp.eq.s32.totalorder %s15, 3
    %p87 = por %p85, %p86
    %p88 = scmp.ne.s32.totalorder %s79, %s80
    %p89 = scmp.eq.s32.totalorder %s15, 0
    %p90 = por %p88, %p89
    %p91 = scmp.ne.s32.totalorder %s79, %s80
    %p92 = scmp.eq.s32.totalorder %s16, 3
    %p93 = por %p91, %p92
    %p95 = scmp.ne.s32.totalorder %s80, %s94
    %p96 = scmp.eq.s32.totalorder %s16, 0
    %p97 = por %p95, %p96
    %s99 = sadd.s32 %s98, 1
    %p102 = scmp.eq.s32.totalorder %s10, 3
    %p103 = scmp.ne.s32.totalorder %s98, %s100
    %p104 = scmp.eq.s32.totalorder %s10, 0
    %p105 = por %p103, %p104
    %p106 = scmp.ne.s32.totalorder %s98, %s100
    %p107 = scmp.eq.s32.totalorder %s15, 3
    %p108 = por %p106, %p107
    %p109 = scmp.ne.s32.totalorder %s100, %s101
    %p110 = scmp.eq.s32.totalorder %s15, 0
    %p111 = por %p109, %p110
    %p112 = scmp.ne.s32.totalorder %s100, %s101
    %p113 = scmp.eq.s32.totalorder %s16, 3
    %p114 = por %p112, %p113
    %p116 = scmp.ne.s32.totalorder %s101, %s115
    %p117 = scmp.eq.s32.totalorder %s16, 0
    %p118 = por %p116, %p117
    %s119 = smul.u32 %s18, %s17
    %s120 = smul.u32 %s25, %s29
    %s121 = ssub.s32 %s119, %s120
    %p122 = scmp.eq.s32.totalorder %s121, 0
    %s124 = sadd.s32 %s123, 1
    %s125 = scalar_select %p122, %s123, %s124
    %p128 = pneg %p122
    %p129 = scmp.eq.s32.totalorder %s10, 3
    %p130 = por %p128, %p129
    %p131 = scmp.ne.s32.totalorder %s123, %s126
    %p132 = scmp.eq.s32.totalorder %s10, 0
    %p133 = por %p131, %p132
    %p134 = scmp.ne.s32.totalorder %s123, %s126
    %p135 = scmp.eq.s32.totalorder %s15, 3
    %p136 = por %p134, %p135
    %p137 = scmp.ne.s32.totalorder %s126, %s127
    %p138 = scmp.eq.s32.totalorder %s15, 0
    %p139 = por %p137, %p138
    %p140 = scmp.ne.s32.totalorder %s126, %s127
    %p141 = scmp.eq.s32.totalorder %s16, 3
    %p142 = por %p140, %p141
    %p144 = scmp.ne.s32.totalorder %s127, %s143
    %p145 = scmp.eq.s32.totalorder %s16, 0
    %p146 = por %p144, %p145
    %p147 = scmp.le.s32.totalorder 1, %s10
    %p148 = scmp.lt.s32.totalorder %s10, 5
    %p149 = pnand %p147, %p148
    %p150 = pneg %p149
    // Predicated region
    $region9: #{hourglass2d_pallas.7} parent=5 // pred_check
      _
    $region10: #{hourglass2d_pallas.7} parent=5 // pred_check_branch
      %152 = sbr.rel (%p149) target = $region12
    $region11: #{hourglass2d_pallas.7} parent=5 // pred_region
      %s153 = ssub.s32 %s10, 1
      // Predicated region
      $region13: #{hourglass2d_pallas.7} parent=11 // pred_check
        %p154 = pneg %p69
      $region14: #{hourglass2d_pallas.7} parent=11 // pred_check_branch
        %156 = sbr.rel (%p154) target = $region16
      $region15: #{hourglass2d_pallas.7} parent=11 // pred_region
        _
      $region16: #{hourglass2d_pallas.7} parent=11 // pred_fallthru
        _
      // Predicated region
      $region17: #{hourglass2d_pallas.7} parent=11 // pred_check
        %p157 = pneg %p90
      $region18: #{hourglass2d_pallas.7} parent=11 // pred_check_branch
        %159 = sbr.rel (%p157) target = $region20
      $region19: #{hourglass2d_pallas.7} parent=11 // pred_region
        _
      $region20: #{hourglass2d_pallas.7} parent=11 // pred_fallthru
        _
      // Predicated region
      $region21: #{hourglass2d_pallas.7} parent=11 // pred_check
        %p160 = pneg %p111
      $region22: #{hourglass2d_pallas.7} parent=11 // pred_check_branch
        %162 = sbr.rel (%p160) target = $region24
      $region23: #{hourglass2d_pallas.7} parent=11 // pred_region
        _
      $region24: #{hourglass2d_pallas.7} parent=11 // pred_fallthru
        _
    $region12: #{hourglass2d_pallas.7} parent=5 // pred_fallthru
      _
    %p163 = scmp.lt.s32.totalorder %s10, 4
    // Predicated region
    $region25: #{hourglass2d_pallas.7} parent=5 // pred_check
      %p164 = pneg %p163
    $region26: #{hourglass2d_pallas.7} parent=5 // pred_check_branch
      %166 = sbr.rel (%p164) target = $region28
    $region27: #{hourglass2d_pallas.7} parent=5 // pred_region
      // Predicated region
      $region29: #{hourglass2d_pallas.7} parent=27 // pred_check
        %p167 = pneg %p42
      $region30: #{hourglass2d_pallas.7} parent=27 // pred_check_branch
        %169 = sbr.rel (%p167) target = $region32
      $region31: #{hourglass2d_pallas.7} parent=27 // pred_region
        %p170 = scmp.lt.s32.totalorder %s18, 1
        %s171 = scalar_select %p170, %s18, 1
        %s172 = smul.addr %s171, 54
        %s173 = smul.addr %s172, 4
        %s174 = scalar_lea.vmem %s0, %s173
      $region32: #{hourglass2d_pallas.7} parent=27 // pred_fallthru
        _
    $region28: #{hourglass2d_pallas.7} parent=5 // pred_fallthru
      _
    %p175 = scmp.le.s32.totalorder 1, %s10
    %p176 = scmp.lt.s32.totalorder %s10, 5
    %p177 = pnand %p175, %p176
    %p178 = pneg %p177
    // Predicated region
    $region33: #{hourglass2d_pallas.7} parent=5 // pred_check
      _
    $region34: #{hourglass2d_pallas.7} parent=5 // pred_check_branch
      %180 = sbr.rel (%p177) target = $region36
    $region35: #{hourglass2d_pallas.7} parent=5 // pred_region
      %s181 = ssub.s32 %s10, 1
      %p182 = scmp.lt.s32.totalorder %s20, 1
      %s183 = scalar_select %p182, %s20, 1
      %s184 = smul.addr %s183, 54
      %s185 = smul.addr %s184, 4
      %s186 = scalar_lea.vmem %s0, %s185
      %p187 = pneg %p48
      %p188 = pneg %p45
      %p189 = pneg %p69
      %p190 = pneg %p66
      %p191 = pneg %p90
      %p192 = pneg %p87
      %p193 = pneg %p111
      %p194 = pneg %p108
      %p195 = pneg %p139
      %p196 = pneg %p136
      %s197 = smul.u32 %s20, %s19
      %s198 = smul.u32 32, %s197
      %p199 = scmp.lt.s32.totalorder %s198, 63
      %s200 = scalar_select %p199, %s198, 63
      %s201 = smul.addr %s200, 4
      %s202 = scalar_lea.vmem %s4, %s201
      %p203 = scmp.lt.s32.totalorder %s20, 1
      %s204 = scalar_select %p203, %s20, 1
      %s205 = smul.addr %s204, 54
      %s206 = smul.addr %s205, 4
      %s207 = scalar_lea.vmem %s0, %s206
      %s208 = smul.u32 %s20, %s19
      %s209 = smul.u32 32, %s208
      %p210 = scmp.lt.s32.totalorder %s209, 63
      %s211 = scalar_select %p210, %s209, 63
      %s212 = smul.addr %s211, 4
      %s213 = scalar_lea.vmem %s4, %s212
      %s214 = smul.u32 %s20, %s19
      %s215 = smul.u32 32, %s214
      %v217 = vld [vmem:[%s207] sm:$0xf]
      %v218 = vld [vmem:[%s207 + $0x4] sm:$0xf]
      %v219 = vld [vmem:[%s207 + $0xc] sm:$0xf]
      %v220 = vld [vmem:[%s207 + $0x10] sm:$0xf]
      %v221 = vld [vmem:[%s207 + $0x18] sm:$0xf]
      %v222 = vld [vmem:[%s207 + $0x1c] sm:$0xf]
      %v223 = vld [vmem:[%s207 + $0x24] sm:$0xf]
      %v224 = vld [vmem:[%s207 + $0x28] sm:$0xf]
      %v225 = vld [vmem:[%s207 + $0x30] sm:$0xf]
      %v226 = vld [vmem:[%s207 + $0x34] sm:$0xf]
      %v227 = vld [vmem:[%s207 + $0x3c] sm:$0xf]
      %v228 = vld [vmem:[%s207 + $0x40] sm:$0xf]
      %v229 = vld [vmem:[%s207 + $0x48] sm:$0xf]
      %v230 = vld [vmem:[%s207 + $0x4c] sm:$0xf]
      %v231 = vld [vmem:[%s207 + $0x54] sm:$0xf]
      %v232 = vld [vmem:[%s207 + $0x58] sm:$0xf]
      %v233 = vld [vmem:[%s207 + $0x60] sm:$0xf]
      %v234 = vld [vmem:[%s207 + $0x64] sm:$0xf]
      %v235 = vld [vmem:[%s207 + $0x6c] sm:$0xf]
      %v236 = vld [vmem:[%s207 + $0x70] sm:$0xf]
      %v237 = vld [vmem:[%s207 + $0x78] sm:$0xf]
      %v238 = vld [vmem:[%s207 + $0x7c] sm:$0xf]
      %v239 = vld [vmem:[%s207 + $0x84] sm:$0xf]
      %v240 = vld [vmem:[%s207 + $0x88] sm:$0xf]
      %v241 = vld [vmem:[%s207 + $0x90] sm:$0xf]
      %v242 = vld [vmem:[%s207 + $0x94] sm:$0xf]
      %v243 = vld [vmem:[%s207 + $0x9c] sm:$0xf]
      %v244 = vld [vmem:[%s207 + $0xa0] sm:$0xf]
      %v245 = vld [vmem:[%s207 + $0xa8] sm:$0xf]
      %v246 = vld [vmem:[%s207 + $0xac] sm:$0xf]
      %v247 = vld [vmem:[%s207 + $0xb4] sm:$0xf]
      %v248 = vld [vmem:[%s207 + $0xb8] sm:$0xf]
      %v249 = vld [vmem:[%s207 + $0xc0] sm:$0xf]
      %v250 = vld [vmem:[%s207 + $0xc4] sm:$0xf]
      %v251 = vld [vmem:[%s207 + $0xcc] sm:$0xf]
      %v252 = vld [vmem:[%s207 + $0xd0] sm:$0xf]
      %253 = vst [vmem:[#allocation2] sm:$0xf] %v217
      %254 = vst [vmem:[#allocation2 + $0xc] sm:$0xf] %v218
      %255 = vst [vmem:[#allocation2 + $0x18] sm:$0xf] %v219
      %256 = vst [vmem:[#allocation2 + $0x24] sm:$0xf] %v220
      %257 = vst [vmem:[#allocation2 + $0x30] sm:$0xf] %v221
      %258 = vst [vmem:[#allocation2 + $0x3c] sm:$0xf] %v222
      %259 = vst [vmem:[#allocation2 + $0x48] sm:$0xf] %v223
      %260 = vst [vmem:[#allocation2 + $0x54] sm:$0xf] %v224
      %261 = vst [vmem:[#allocation2 + $0x60] sm:$0xf] %v225
      %262 = vst [vmem:[#allocation2 + $0x6c] sm:$0xf] %v226
      %263 = vst [vmem:[#allocation2 + $0x78] sm:$0xf] %v227
      %264 = vst [vmem:[#allocation2 + $0x84] sm:$0xf] %v228
      %265 = vst [vmem:[#allocation2 + $0x90] sm:$0xf] %v229
      %266 = vst [vmem:[#allocation2 + $0x9c] sm:$0xf] %v230
      %267 = vst [vmem:[#allocation2 + $0xa8] sm:$0xf] %v231
      %268 = vst [vmem:[#allocation2 + $0xb4] sm:$0xf] %v232
      %269 = vst [vmem:[#allocation2 + $0xc0] sm:$0xf] %v233
      %270 = vst [vmem:[#allocation2 + $0xcc] sm:$0xf] %v234
      %271 = vst [vmem:[#allocation2 + $0xd8] sm:$0xf] %v235
      %272 = vst [vmem:[#allocation2 + $0xe4] sm:$0xf] %v236
      %273 = vst [vmem:[#allocation2 + $0xf0] sm:$0xf] %v237
      %274 = vst [vmem:[#allocation2 + $0xfc] sm:$0xf] %v238
      %275 = vst [vmem:[#allocation2 + $0x108] sm:$0xf] %v239
      %276 = vst [vmem:[#allocation2 + $0x114] sm:$0xf] %v240
      %277 = vst [vmem:[#allocation2 + $0x120] sm:$0xf] %v241
      %278 = vst [vmem:[#allocation2 + $0x12c] sm:$0xf] %v242
      %279 = vst [vmem:[#allocation2 + $0x138] sm:$0xf] %v243
      %280 = vst [vmem:[#allocation2 + $0x144] sm:$0xf] %v244
      %281 = vst [vmem:[#allocation2 + $0x150] sm:$0xf] %v245
      %282 = vst [vmem:[#allocation2 + $0x15c] sm:$0xf] %v246
      %283 = vst [vmem:[#allocation2 + $0x168] sm:$0xf] %v247
      %284 = vst [vmem:[#allocation2 + $0x174] sm:$0xf] %v248
      %285 = vst [vmem:[#allocation2 + $0x180] sm:$0xf] %v249
      %286 = vst [vmem:[#allocation2 + $0x18c] sm:$0xf] %v250
      %287 = vst [vmem:[#allocation2 + $0x198] sm:$0xf] %v251
      %288 = vst [vmem:[#allocation2 + $0x1a4] sm:$0xf] %v252
      %v289 = vld [vmem:[%s207] sm:$0xf]
      %v290 = vld [vmem:[%s207 + $0x4] sm:$0xf]
      %v291 = vld [vmem:[%s207 + $0x8] sm:$0x1]
      %v292 = vld [vmem:[%s207 + $0xc] sm:$0xf]
      %v293 = vld [vmem:[%s207 + $0x10] sm:$0xf]
      %v294 = vld [vmem:[%s207 + $0x14] sm:$0x1]
      %v295 = vld [vmem:[%s207 + $0x18] sm:$0xf]
      %v296 = vld [vmem:[%s207 + $0x1c] sm:$0xf]
      %v297 = vld [vmem:[%s207 + $0x20] sm:$0x1]
      %v298 = vld [vmem:[%s207 + $0x24] sm:$0xf]
      %v299 = vld [vmem:[%s207 + $0x28] sm:$0xf]
      %v300 = vld [vmem:[%s207 + $0x2c] sm:$0x1]
      %v301 = vld [vmem:[%s207 + $0x30] sm:$0xf]
      %v302 = vld [vmem:[%s207 + $0x34] sm:$0xf]
      %v303 = vld [vmem:[%s207 + $0x38] sm:$0x1]
      %v304 = vld [vmem:[%s207 + $0x3c] sm:$0xf]
      %v305 = vld [vmem:[%s207 + $0x40] sm:$0xf]
      %v306 = vld [vmem:[%s207 + $0x44] sm:$0x1]
      %v307 = vld [vmem:[%s207 + $0x48] sm:$0xf]
      %v308 = vld [vmem:[%s207 + $0x4c] sm:$0xf]
      %v309 = vld [vmem:[%s207 + $0x50] sm:$0x1]
      %v310 = vld [vmem:[%s207 + $0x54] sm:$0xf]
      %v311 = vld [vmem:[%s207 + $0x58] sm:$0xf]
      %v312 = vld [vmem:[%s207 + $0x5c] sm:$0x1]
      %v313 = vld [vmem:[%s207 + $0x60] sm:$0xf]
      %v314 = vld [vmem:[%s207 + $0x64] sm:$0xf]
      %v315 = vld [vmem:[%s207 + $0x68] sm:$0x1]
      %v316 = vld [vmem:[%s207 + $0x6c] sm:$0xf]
      %v317 = vld [vmem:[%s207 + $0x70] sm:$0xf]
      %v318 = vld [vmem:[%s207 + $0x74] sm:$0x1]
      %v319 = vld [vmem:[%s207 + $0x78] sm:$0xf]
      %v320 = vld [vmem:[%s207 + $0x7c] sm:$0xf]
      %v321 = vld [vmem:[%s207 + $0x80] sm:$0x1]
      %v322 = vld [vmem:[%s207 + $0x84] sm:$0xf]
      %v323 = vld [vmem:[%s207 + $0x88] sm:$0xf]
      %v324 = vld [vmem:[%s207 + $0x8c] sm:$0x1]
      %v325 = vld [vmem:[%s207 + $0x90] sm:$0xf]
      %v326 = vld [vmem:[%s207 + $0x94] sm:$0xf]
      %v327 = vld [vmem:[%s207 + $0x98] sm:$0x1]
      %v328 = vld [vmem:[%s207 + $0x9c] sm:$0xf]
      %v329 = vld [vmem:[%s207 + $0xa0] sm:$0xf]
      %v330 = vld [vmem:[%s207 + $0xa4] sm:$0x1]
      %v331 = vld [vmem:[%s207 + $0xa8] sm:$0xf]
      %v332 = vld [vmem:[%s207 + $0xac] sm:$0xf]
      %v333 = vld [vmem:[%s207 + $0xb0] sm:$0x1]
      %v334 = vld [vmem:[%s207 + $0xb4] sm:$0xf]
      %v335 = vld [vmem:[%s207 + $0xb8] sm:$0xf]
      %v336 = vld [vmem:[%s207 + $0xbc] sm:$0x1]
      %v337 = vld [vmem:[%s207 + $0xc0] sm:$0xf]
      %v338 = vld [vmem:[%s207 + $0xc4] sm:$0xf]
      %v339 = vld [vmem:[%s207 + $0xc8] sm:$0x1]
      %v340 = vld [vmem:[%s207 + $0xcc] sm:$0xf]
      %v341 = vld [vmem:[%s207 + $0xd0] sm:$0xf]
      %v342 = vld [vmem:[%s207 + $0xd4] sm:$0x1]
      %vm343 = vsmask.f32 3328
      %vm344 = vsmask.f32 7440
      %vm345 = vmor %vm343, %vm344
      %v347 = vshrl.u32 %v289, 16
      %v349 = vrot.slane %v347, 4
      %v350 = vshll.u32 %v289, 16
      %v352 = vrot.slane %v350, 5
      %v353 = vor.u32 %v349, %v352
      %v354 = vrot.slane %v353, 4
      %v356 = vshll.u32 %v290, 16
      %v358 = vrot.slane %v356, 5
      %v359 = vsel %vm345, %v354, %v358
      %v360 = vshrl.u32 %v290, 16
      %v362 = vrot.slane %v360, 4
      %v363 = vor.u32 %v362, %v358
      %v364 = vrot.slane %v363, 4
      %v366 = vshll.u32 %v291, 16
      %v368 = vrot.slane %v366, 5
      %v369 = vsel %vm345, %v364, %v368
      %v371 = vshrl.u32 %v292, 16
      %v373 = vrot.slane %v371, 4
      %v374 = vshll.u32 %v292, 16
      %v376 = vrot.slane %v374, 5
      %v377 = vor.u32 %v373, %v376
      %v378 = vrot.slane %v377, 4
      %v380 = vshll.u32 %v293, 16
      %v382 = vrot.slane %v380, 5
      %v383 = vsel %vm345, %v378, %v382
      %v384 = vshrl.u32 %v293, 16
      %v386 = vrot.slane %v384, 4
      %v387 = vor.u32 %v386, %v382
      %v388 = vrot.slane %v387, 4
      %v390 = vshll.u32 %v294, 16
      %v392 = vrot.slane %v390, 5
      %v393 = vsel %vm345, %v388, %v392
      %v395 = vshrl.u32 %v295, 16
      %v397 = vrot.slane %v395, 4
      %v398 = vshll.u32 %v295, 16
      %v400 = vrot.slane %v398, 5
      %v401 = vor.u32 %v397, %v400
      %v402 = vrot.slane %v401, 4
      %v404 = vshll.u32 %v296, 16
      %v406 = vrot.slane %v404, 5
      %v407 = vsel %vm345, %v402, %v406
      %v408 = vshrl.u32 %v296, 16
      %v410 = vrot.slane %v408, 4
      %v411 = vor.u32 %v410, %v406
      %v412 = vrot.slane %v411, 4
      %v414 = vshll.u32 %v297, 16
      %v416 = vrot.slane %v414, 5
      %v417 = vsel %vm345, %v412, %v416
      %v419 = vshrl.u32 %v298, 16
      %v421 = vrot.slane %v419, 4
      %v422 = vshll.u32 %v298, 16
      %v424 = vrot.slane %v422, 5
      %v425 = vor.u32 %v421, %v424
      %v426 = vrot.slane %v425, 4
      %v428 = vshll.u32 %v299, 16
      %v430 = vrot.slane %v428, 5
      %v431 = vsel %vm345, %v426, %v430
      %v432 = vshrl.u32 %v299, 16
      %v434 = vrot.slane %v432, 4
      %v435 = vor.u32 %v434, %v430
      %v436 = vrot.slane %v435, 4
      %v438 = vshll.u32 %v300, 16
      %v440 = vrot.slane %v438, 5
      %v441 = vsel %vm345, %v436, %v440
      %v443 = vshrl.u32 %v301, 16
      %v445 = vrot.slane %v443, 4
      %v446 = vshll.u32 %v301, 16
      %v448 = vrot.slane %v446, 5
      %v449 = vor.u32 %v445, %v448
      %v450 = vrot.slane %v449, 4
      %v452 = vshll.u32 %v302, 16
      %v454 = vrot.slane %v452, 5
      %v455 = vsel %vm345, %v450, %v454
      %v456 = vshrl.u32 %v302, 16
      %v458 = vrot.slane %v456, 4
      %v459 = vor.u32 %v458, %v454
      %v460 = vrot.slane %v459, 4
      %v462 = vshll.u32 %v303, 16
      %v464 = vrot.slane %v462, 5
      %v465 = vsel %vm345, %v460, %v464
      %v467 = vshrl.u32 %v304, 16
      %v469 = vrot.slane %v467, 4
      %v470 = vshll.u32 %v304, 16
      %v472 = vrot.slane %v470, 5
      %v473 = vor.u32 %v469, %v472
      %v474 = vrot.slane %v473, 4
      %v476 = vshll.u32 %v305, 16
      %v478 = vrot.slane %v476, 5
      %v479 = vsel %vm345, %v474, %v478
      %v480 = vshrl.u32 %v305, 16
      %v482 = vrot.slane %v480, 4
      %v483 = vor.u32 %v482, %v478
      %v484 = vrot.slane %v483, 4
      %v486 = vshll.u32 %v306, 16
      %v488 = vrot.slane %v486, 5
      %v489 = vsel %vm345, %v484, %v488
      %v491 = vshrl.u32 %v307, 16
      %v493 = vrot.slane %v491, 4
      %v494 = vshll.u32 %v307, 16
      %v496 = vrot.slane %v494, 5
      %v497 = vor.u32 %v493, %v496
      %v498 = vrot.slane %v497, 4
      %v500 = vshll.u32 %v308, 16
      %v502 = vrot.slane %v500, 5
      %v503 = vsel %vm345, %v498, %v502
      %v504 = vshrl.u32 %v308, 16
      %v506 = vrot.slane %v504, 4
      %v507 = vor.u32 %v506, %v502
      %v508 = vrot.slane %v507, 4
      %v510 = vshll.u32 %v309, 16
      %v512 = vrot.slane %v510, 5
      %v513 = vsel %vm345, %v508, %v512
      %v515 = vshrl.u32 %v310, 16
      %v517 = vrot.slane %v515, 4
      %v518 = vshll.u32 %v310, 16
      %v520 = vrot.slane %v518, 5
      %v521 = vor.u32 %v517, %v520
      %v522 = vrot.slane %v521, 4
      %v524 = vshll.u32 %v311, 16
      %v526 = vrot.slane %v524, 5
      %v527 = vsel %vm345, %v522, %v526
      %v528 = vshrl.u32 %v311, 16
      %v530 = vrot.slane %v528, 4
      %v531 = vor.u32 %v530, %v526
      %v532 = vrot.slane %v531, 4
      %v534 = vshll.u32 %v312, 16
      %v536 = vrot.slane %v534, 5
      %v537 = vsel %vm345, %v532, %v536
      %v539 = vshrl.u32 %v313, 16
      %v541 = vrot.slane %v539, 4
      %v542 = vshll.u32 %v313, 16
      %v544 = vrot.slane %v542, 5
      %v545 = vor.u32 %v541, %v544
      %v546 = vrot.slane %v545, 4
      %v548 = vshll.u32 %v314, 16
      %v550 = vrot.slane %v548, 5
      %v551 = vsel %vm345, %v546, %v550
      %v552 = vshrl.u32 %v314, 16
      %v554 = vrot.slane %v552, 4
      %v555 = vor.u32 %v554, %v550
      %v556 = vrot.slane %v555, 4
      %v558 = vshll.u32 %v315, 16
      %v560 = vrot.slane %v558, 5
      %v561 = vsel %vm345, %v556, %v560
      %v563 = vshrl.u32 %v316, 16
      %v565 = vrot.slane %v563, 4
      %v566 = vshll.u32 %v316, 16
      %v568 = vrot.slane %v566, 5
      %v569 = vor.u32 %v565, %v568
      %v570 = vrot.slane %v569, 4
      %v572 = vshll.u32 %v317, 16
      %v574 = vrot.slane %v572, 5
      %v575 = vsel %vm345, %v570, %v574
      %v576 = vshrl.u32 %v317, 16
      %v578 = vrot.slane %v576, 4
      %v579 = vor.u32 %v578, %v574
      %v580 = vrot.slane %v579, 4
      %v582 = vshll.u32 %v318, 16
      %v584 = vrot.slane %v582, 5
      %v585 = vsel %vm345, %v580, %v584
      %v587 = vshrl.u32 %v319, 16
      %v589 = vrot.slane %v587, 4
      %v590 = vshll.u32 %v319, 16
      %v592 = vrot.slane %v590, 5
      %v593 = vor.u32 %v589, %v592
      %v594 = vrot.slane %v593, 4
      %v596 = vshll.u32 %v320, 16
      %v598 = vrot.slane %v596, 5
      %v599 = vsel %vm345, %v594, %v598
      %v600 = vshrl.u32 %v320, 16
      %v602 = vrot.slane %v600, 4
      %v603 = vor.u32 %v602, %v598
      %v604 = vrot.slane %v603, 4
      %v606 = vshll.u32 %v321, 16
      %v608 = vrot.slane %v606, 5
      %v609 = vsel %vm345, %v604, %v608
      %v611 = vshrl.u32 %v322, 16
      %v613 = vrot.slane %v611, 4
      %v614 = vshll.u32 %v322, 16
      %v616 = vrot.slane %v614, 5
      %v617 = vor.u32 %v613, %v616
      %v618 = vrot.slane %v617, 4
      %v620 = vshll.u32 %v323, 16
      %v622 = vrot.slane %v620, 5
      %v623 = vsel %vm345, %v618, %v622
      %v624 = vshrl.u32 %v323, 16
      %v626 = vrot.slane %v624, 4
      %v627 = vor.u32 %v626, %v622
      %v628 = vrot.slane %v627, 4
      %v630 = vshll.u32 %v324, 16
      %v632 = vrot.slane %v630, 5
      %v633 = vsel %vm345, %v628, %v632
      %v635 = vshrl.u32 %v325, 16
      %v637 = vrot.slane %v635, 4
      %v638 = vshll.u32 %v325, 16
      %v640 = vrot.slane %v638, 5
      %v641 = vor.u32 %v637, %v640
      %v642 = vrot.slane %v641, 4
      %v644 = vshll.u32 %v326, 16
      %v646 = vrot.slane %v644, 5
      %v647 = vsel %vm345, %v642, %v646
      %v648 = vshrl.u32 %v326, 16
      %v650 = vrot.slane %v648, 4
      %v651 = vor.u32 %v650, %v646
      %v652 = vrot.slane %v651, 4
      %v654 = vshll.u32 %v327, 16
      %v656 = vrot.slane %v654, 5
      %v657 = vsel %vm345, %v652, %v656
      %v659 = vshrl.u32 %v328, 16
      %v661 = vrot.slane %v659, 4
      %v662 = vshll.u32 %v328, 16
      %v664 = vrot.slane %v662, 5
      %v665 = vor.u32 %v661, %v664
      %v666 = vrot.slane %v665, 4
      %v668 = vshll.u32 %v329, 16
      %v670 = vrot.slane %v668, 5
      %v671 = vsel %vm345, %v666, %v670
      %v672 = vshrl.u32 %v329, 16
      %v674 = vrot.slane %v672, 4
      %v675 = vor.u32 %v674, %v670
      %v676 = vrot.slane %v675, 4
      %v678 = vshll.u32 %v330, 16
      %v680 = vrot.slane %v678, 5
      %v681 = vsel %vm345, %v676, %v680
      %v683 = vshrl.u32 %v331, 16
      %v685 = vrot.slane %v683, 4
      %v686 = vshll.u32 %v331, 16
      %v688 = vrot.slane %v686, 5
      %v689 = vor.u32 %v685, %v688
      %v690 = vrot.slane %v689, 4
      %v692 = vshll.u32 %v332, 16
      %v694 = vrot.slane %v692, 5
      %v695 = vsel %vm345, %v690, %v694
      %v696 = vshrl.u32 %v332, 16
      %v698 = vrot.slane %v696, 4
      %v699 = vor.u32 %v698, %v694
      %v700 = vrot.slane %v699, 4
      %v702 = vshll.u32 %v333, 16
      %v704 = vrot.slane %v702, 5
      %v705 = vsel %vm345, %v700, %v704
      %v707 = vshrl.u32 %v334, 16
      %v709 = vrot.slane %v707, 4
      %v710 = vshll.u32 %v334, 16
      %v712 = vrot.slane %v710, 5
      %v713 = vor.u32 %v709, %v712
      %v714 = vrot.slane %v713, 4
      %v716 = vshll.u32 %v335, 16
      %v718 = vrot.slane %v716, 5
      %v719 = vsel %vm345, %v714, %v718
      %v720 = vshrl.u32 %v335, 16
      %v722 = vrot.slane %v720, 4
      %v723 = vor.u32 %v722, %v718
      %v724 = vrot.slane %v723, 4
      %v726 = vshll.u32 %v336, 16
      %v728 = vrot.slane %v726, 5
      %v729 = vsel %vm345, %v724, %v728
      %v731 = vshrl.u32 %v337, 16
      %v733 = vrot.slane %v731, 4
      %v734 = vshll.u32 %v337, 16
      %v736 = vrot.slane %v734, 5
      %v737 = vor.u32 %v733, %v736
      %v738 = vrot.slane %v737, 4
      %v740 = vshll.u32 %v338, 16
      %v742 = vrot.slane %v740, 5
      %v743 = vsel %vm345, %v738, %v742
      %v744 = vshrl.u32 %v338, 16
      %v746 = vrot.slane %v744, 4
      %v747 = vor.u32 %v746, %v742
      %v748 = vrot.slane %v747, 4
      %v750 = vshll.u32 %v339, 16
      %v752 = vrot.slane %v750, 5
      %v753 = vsel %vm345, %v748, %v752
      %v755 = vshrl.u32 %v340, 16
      %v757 = vrot.slane %v755, 4
      %v758 = vshll.u32 %v340, 16
      %v760 = vrot.slane %v758, 5
      %v761 = vor.u32 %v757, %v760
      %v762 = vrot.slane %v761, 4
      %v764 = vshll.u32 %v341, 16
      %v766 = vrot.slane %v764, 5
      %v767 = vsel %vm345, %v762, %v766
      %v768 = vshrl.u32 %v341, 16
      %v770 = vrot.slane %v768, 4
      %v771 = vor.u32 %v770, %v766
      %v772 = vrot.slane %v771, 4
      %v774 = vshll.u32 %v342, 16
      %v776 = vrot.slane %v774, 5
      %v777 = vsel %vm345, %v772, %v776
      %814 = vst [vmem:[#allocation2 + $0x4] sm:$0xf] %v359
      %815 = vst [vmem:[#allocation2 + $0x10] sm:$0xf] %v369
      %816 = vst [vmem:[#allocation2 + $0x1c] sm:$0xf] %v383
      %817 = vst [vmem:[#allocation2 + $0x28] sm:$0xf] %v393
      %818 = vst [vmem:[#allocation2 + $0x34] sm:$0xf] %v407
      %819 = vst [vmem:[#allocation2 + $0x40] sm:$0xf] %v417
      %820 = vst [vmem:[#allocation2 + $0x4c] sm:$0xf] %v431
      %821 = vst [vmem:[#allocation2 + $0x58] sm:$0xf] %v441
      %822 = vst [vmem:[#allocation2 + $0x64] sm:$0xf] %v455
      %823 = vst [vmem:[#allocation2 + $0x70] sm:$0xf] %v465
      %824 = vst [vmem:[#allocation2 + $0x7c] sm:$0xf] %v479
      %825 = vst [vmem:[#allocation2 + $0x88] sm:$0xf] %v489
      %826 = vst [vmem:[#allocation2 + $0x94] sm:$0xf] %v503
      %827 = vst [vmem:[#allocation2 + $0xa0] sm:$0xf] %v513
      %828 = vst [vmem:[#allocation2 + $0xac] sm:$0xf] %v527
      %829 = vst [vmem:[#allocation2 + $0xb8] sm:$0xf] %v537
      %830 = vst [vmem:[#allocation2 + $0xc4] sm:$0xf] %v551
      %831 = vst [vmem:[#allocation2 + $0xd0] sm:$0xf] %v561
      %832 = vst [vmem:[#allocation2 + $0xdc] sm:$0xf] %v575
      %833 = vst [vmem:[#allocation2 + $0xe8] sm:$0xf] %v585
      %834 = vst [vmem:[#allocation2 + $0xf4] sm:$0xf] %v599
      %835 = vst [vmem:[#allocation2 + $0x100] sm:$0xf] %v609
      %836 = vst [vmem:[#allocation2 + $0x10c] sm:$0xf] %v623
      %837 = vst [vmem:[#allocation2 + $0x118] sm:$0xf] %v633
      %838 = vst [vmem:[#allocation2 + $0x124] sm:$0xf] %v647
      %839 = vst [vmem:[#allocation2 + $0x130] sm:$0xf] %v657
      %840 = vst [vmem:[#allocation2 + $0x13c] sm:$0xf] %v671
      %841 = vst [vmem:[#allocation2 + $0x148] sm:$0xf] %v681
      %842 = vst [vmem:[#allocation2 + $0x154] sm:$0xf] %v695
      %843 = vst [vmem:[#allocation2 + $0x160] sm:$0xf] %v705
      %844 = vst [vmem:[#allocation2 + $0x16c] sm:$0xf] %v719
      %845 = vst [vmem:[#allocation2 + $0x178] sm:$0xf] %v729
      %846 = vst [vmem:[#allocation2 + $0x184] sm:$0xf] %v743
      %847 = vst [vmem:[#allocation2 + $0x190] sm:$0xf] %v753
      %848 = vst [vmem:[#allocation2 + $0x19c] sm:$0xf] %v767
      %849 = vst [vmem:[#allocation2 + $0x1a8] sm:$0xf] %v777
      %v850 = vld [vmem:[%s207] sm:$0xe]
      %v851 = vld [vmem:[%s207 + $0x4] sm:$0xf]
      %v852 = vld [vmem:[%s207 + $0x8] sm:$0x1]
      %v853 = vld [vmem:[%s207 + $0xc] sm:$0xe]
      %v854 = vld [vmem:[%s207 + $0x10] sm:$0xf]
      %v855 = vld [vmem:[%s207 + $0x14] sm:$0x1]
      %v856 = vld [vmem:[%s207 + $0x18] sm:$0xe]
      %v857 = vld [vmem:[%s207 + $0x1c] sm:$0xf]
      %v858 = vld [vmem:[%s207 + $0x20] sm:$0x1]
      %v859 = vld [vmem:[%s207 + $0x24] sm:$0xe]
      %v860 = vld [vmem:[%s207 + $0x28] sm:$0xf]
      %v861 = vld [vmem:[%s207 + $0x2c] sm:$0x1]
      %v862 = vld [vmem:[%s207 + $0x30] sm:$0xe]
      %v863 = vld [vmem:[%s207 + $0x34] sm:$0xf]
      %v864 = vld [vmem:[%s207 + $0x38] sm:$0x1]
      %v865 = vld [vmem:[%s207 + $0x3c] sm:$0xe]
      %v866 = vld [vmem:[%s207 + $0x40] sm:$0xf]
      %v867 = vld [vmem:[%s207 + $0x44] sm:$0x1]
      %v868 = vld [vmem:[%s207 + $0x48] sm:$0xe]
      %v869 = vld [vmem:[%s207 + $0x4c] sm:$0xf]
      %v870 = vld [vmem:[%s207 + $0x50] sm:$0x1]
      %v871 = vld [vmem:[%s207 + $0x54] sm:$0xe]
      %v872 = vld [vmem:[%s207 + $0x58] sm:$0xf]
      %v873 = vld [vmem:[%s207 + $0x5c] sm:$0x1]
      %v874 = vld [vmem:[%s207 + $0x60] sm:$0xe]
      %v875 = vld [vmem:[%s207 + $0x64] sm:$0xf]
      %v876 = vld [vmem:[%s207 + $0x68] sm:$0x1]
      %v877 = vld [vmem:[%s207 + $0x6c] sm:$0xe]
      %v878 = vld [vmem:[%s207 + $0x70] sm:$0xf]
      %v879 = vld [vmem:[%s207 + $0x74] sm:$0x1]
      %v880 = vld [vmem:[%s207 + $0x78] sm:$0xe]
      %v881 = vld [vmem:[%s207 + $0x7c] sm:$0xf]
      %v882 = vld [vmem:[%s207 + $0x80] sm:$0x1]
      %v883 = vld [vmem:[%s207 + $0x84] sm:$0xe]
      %v884 = vld [vmem:[%s207 + $0x88] sm:$0xf]
      %v885 = vld [vmem:[%s207 + $0x8c] sm:$0x1]
      %v886 = vld [vmem:[%s207 + $0x90] sm:$0xe]
      %v887 = vld [vmem:[%s207 + $0x94] sm:$0xf]
      %v888 = vld [vmem:[%s207 + $0x98] sm:$0x1]
      %v889 = vld [vmem:[%s207 + $0x9c] sm:$0xe]
      %v890 = vld [vmem:[%s207 + $0xa0] sm:$0xf]
      %v891 = vld [vmem:[%s207 + $0xa4] sm:$0x1]
      %v892 = vld [vmem:[%s207 + $0xa8] sm:$0xe]
      %v893 = vld [vmem:[%s207 + $0xac] sm:$0xf]
      %v894 = vld [vmem:[%s207 + $0xb0] sm:$0x1]
      %v895 = vld [vmem:[%s207 + $0xb4] sm:$0xe]
      %v896 = vld [vmem:[%s207 + $0xb8] sm:$0xf]
      %v897 = vld [vmem:[%s207 + $0xbc] sm:$0x1]
      %v898 = vld [vmem:[%s207 + $0xc0] sm:$0xe]
      %v899 = vld [vmem:[%s207 + $0xc4] sm:$0xf]
      %v900 = vld [vmem:[%s207 + $0xc8] sm:$0x1]
      %v901 = vld [vmem:[%s207 + $0xcc] sm:$0xe]
      %v902 = vld [vmem:[%s207 + $0xd0] sm:$0xf]
      %v903 = vld [vmem:[%s207 + $0xd4] sm:$0x1]
      %vm958 = vcmask 1042432
      %vm959 = vcmask 1046532
      %vm960 = vmor %vm958, %vm959
      %v961 = vrot.slane %v850, 5
      %v962 = vrot.slane %v961, 4
      %v963 = vrot.slane %v851, 5
      %v964 = vsel %vm960, %v962, %v963
      %v965 = vrot.slane %v963, 4
      %v966 = vrot.slane %v852, 5
      %v967 = vsel %vm960, %v965, %v966
      %v968 = vrot.slane %v853, 5
      %v969 = vrot.slane %v968, 4
      %v970 = vrot.slane %v854, 5
      %v971 = vsel %vm960, %v969, %v970
      %v972 = vrot.slane %v970, 4
      %v973 = vrot.slane %v855, 5
      %v974 = vsel %vm960, %v972, %v973
      %v975 = vrot.slane %v856, 5
      %v976 = vrot.slane %v975, 4
      %v977 = vrot.slane %v857, 5
      %v978 = vsel %vm960, %v976, %v977
      %v979 = vrot.slane %v977, 4
      %v980 = vrot.slane %v858, 5
      %v981 = vsel %vm960, %v979, %v980
      %v982 = vrot.slane %v859, 5
      %v983 = vrot.slane %v982, 4
      %v984 = vrot.slane %v860, 5
      %v985 = vsel %vm960, %v983, %v984
      %v986 = vrot.slane %v984, 4
      %v987 = vrot.slane %v861, 5
      %v988 = vsel %vm960, %v986, %v987
      %v989 = vrot.slane %v862, 5
      %v990 = vrot.slane %v989, 4
      %v991 = vrot.slane %v863, 5
      %v992 = vsel %vm960, %v990, %v991
      %v993 = vrot.slane %v991, 4
      %v994 = vrot.slane %v864, 5
      %v995 = vsel %vm960, %v993, %v994
      %v996 = vrot.slane %v865, 5
      %v997 = vrot.slane %v996, 4
      %v998 = vrot.slane %v866, 5
      %v999 = vsel %vm960, %v997, %v998
      %v1000 = vrot.slane %v998, 4
      %v1001 = vrot.slane %v867, 5
      %v1002 = vsel %vm960, %v1000, %v1001
      %v1003 = vrot.slane %v868, 5
      %v1004 = vrot.slane %v1003, 4
      %v1005 = vrot.slane %v869, 5
      %v1006 = vsel %vm960, %v1004, %v1005
      %v1007 = vrot.slane %v1005, 4
      %v1008 = vrot.slane %v870, 5
      %v1009 = vsel %vm960, %v1007, %v1008
      %v1010 = vrot.slane %v871, 5
      %v1011 = vrot.slane %v1010, 4
      %v1012 = vrot.slane %v872, 5
      %v1013 = vsel %vm960, %v1011, %v1012
      %v1014 = vrot.slane %v1012, 4
      %v1015 = vrot.slane %v873, 5
      %v1016 = vsel %vm960, %v1014, %v1015
      %v1017 = vrot.slane %v874, 5
      %v1018 = vrot.slane %v1017, 4
      %v1019 = vrot.slane %v875, 5
      %v1020 = vsel %vm960, %v1018, %v1019
      %v1021 = vrot.slane %v1019, 4
      %v1022 = vrot.slane %v876, 5
      %v1023 = vsel %vm960, %v1021, %v1022
      %v1024 = vrot.slane %v877, 5
      %v1025 = vrot.slane %v1024, 4
      %v1026 = vrot.slane %v878, 5
      %v1027 = vsel %vm960, %v1025, %v1026
      %v1028 = vrot.slane %v1026, 4
      %v1029 = vrot.slane %v879, 5
      %v1030 = vsel %vm960, %v1028, %v1029
      %v1031 = vrot.slane %v880, 5
      %v1032 = vrot.slane %v1031, 4
      %v1033 = vrot.slane %v881, 5
      %v1034 = vsel %vm960, %v1032, %v1033
      %v1035 = vrot.slane %v1033, 4
      %v1036 = vrot.slane %v882, 5
      %v1037 = vsel %vm960, %v1035, %v1036
      %v1038 = vrot.slane %v883, 5
      %v1039 = vrot.slane %v1038, 4
      %v1040 = vrot.slane %v884, 5
      %v1041 = vsel %vm960, %v1039, %v1040
      %v1042 = vrot.slane %v1040, 4
      %v1043 = vrot.slane %v885, 5
      %v1044 = vsel %vm960, %v1042, %v1043
      %v1045 = vrot.slane %v886, 5
      %v1046 = vrot.slane %v1045, 4
      %v1047 = vrot.slane %v887, 5
      %v1048 = vsel %vm960, %v1046, %v1047
      %v1049 = vrot.slane %v1047, 4
      %v1050 = vrot.slane %v888, 5
      %v1051 = vsel %vm960, %v1049, %v1050
      %v1052 = vrot.slane %v889, 5
      %v1053 = vrot.slane %v1052, 4
      %v1054 = vrot.slane %v890, 5
      %v1055 = vsel %vm960, %v1053, %v1054
      %v1056 = vrot.slane %v1054, 4
      %v1057 = vrot.slane %v891, 5
      %v1058 = vsel %vm960, %v1056, %v1057
      %v1059 = vrot.slane %v892, 5
      %v1060 = vrot.slane %v1059, 4
      %v1061 = vrot.slane %v893, 5
      %v1062 = vsel %vm960, %v1060, %v1061
      %v1063 = vrot.slane %v1061, 4
      %v1064 = vrot.slane %v894, 5
      %v1065 = vsel %vm960, %v1063, %v1064
      %v1066 = vrot.slane %v895, 5
      %v1067 = vrot.slane %v1066, 4
      %v1068 = vrot.slane %v896, 5
      %v1069 = vsel %vm960, %v1067, %v1068
      %v1070 = vrot.slane %v1068, 4
      %v1071 = vrot.slane %v897, 5
      %v1072 = vsel %vm960, %v1070, %v1071
      %v1073 = vrot.slane %v898, 5
      %v1074 = vrot.slane %v1073, 4
      %v1075 = vrot.slane %v899, 5
      %v1076 = vsel %vm960, %v1074, %v1075
      %v1077 = vrot.slane %v1075, 4
      %v1078 = vrot.slane %v900, 5
      %v1079 = vsel %vm960, %v1077, %v1078
      %v1080 = vrot.slane %v901, 5
      %v1081 = vrot.slane %v1080, 4
      %v1082 = vrot.slane %v902, 5
      %v1083 = vsel %vm960, %v1081, %v1082
      %v1084 = vrot.slane %v1082, 4
      %v1085 = vrot.slane %v903, 5
      %v1086 = vsel %vm960, %v1084, %v1085
      %1123 = vst [vmem:[#allocation2 + $0x8] sm:$0xf] %v964
      %1124 = vst [vmem:[#allocation2 + $0x14] sm:$0xf] %v967
      %1125 = vst [vmem:[#allocation2 + $0x20] sm:$0xf] %v971
      %1126 = vst [vmem:[#allocation2 + $0x2c] sm:$0xf] %v974
      %1127 = vst [vmem:[#allocation2 + $0x38] sm:$0xf] %v978
      %1128 = vst [vmem:[#allocation2 + $0x44] sm:$0xf] %v981
      %1129 = vst [vmem:[#allocation2 + $0x50] sm:$0xf] %v985
      %1130 = vst [vmem:[#allocation2 + $0x5c] sm:$0xf] %v988
      %1131 = vst [vmem:[#allocation2 + $0x68] sm:$0xf] %v992
      %1132 = vst [vmem:[#allocation2 + $0x74] sm:$0xf] %v995
      %1133 = vst [vmem:[#allocation2 + $0x80] sm:$0xf] %v999
      %1134 = vst [vmem:[#allocation2 + $0x8c] sm:$0xf] %v1002
      %1135 = vst [vmem:[#allocation2 + $0x98] sm:$0xf] %v1006
      %1136 = vst [vmem:[#allocation2 + $0xa4] sm:$0xf] %v1009
      %1137 = vst [vmem:[#allocation2 + $0xb0] sm:$0xf] %v1013
      %1138 = vst [vmem:[#allocation2 + $0xbc] sm:$0xf] %v1016
      %1139 = vst [vmem:[#allocation2 + $0xc8] sm:$0xf] %v1020
      %1140 = vst [vmem:[#allocation2 + $0xd4] sm:$0xf] %v1023
      %1141 = vst [vmem:[#allocation2 + $0xe0] sm:$0xf] %v1027
      %1142 = vst [vmem:[#allocation2 + $0xec] sm:$0xf] %v1030
      %1143 = vst [vmem:[#allocation2 + $0xf8] sm:$0xf] %v1034
      %1144 = vst [vmem:[#allocation2 + $0x104] sm:$0xf] %v1037
      %1145 = vst [vmem:[#allocation2 + $0x110] sm:$0xf] %v1041
      %1146 = vst [vmem:[#allocation2 + $0x11c] sm:$0xf] %v1044
      %1147 = vst [vmem:[#allocation2 + $0x128] sm:$0xf] %v1048
      %1148 = vst [vmem:[#allocation2 + $0x134] sm:$0xf] %v1051
      %1149 = vst [vmem:[#allocation2 + $0x140] sm:$0xf] %v1055
      %1150 = vst [vmem:[#allocation2 + $0x14c] sm:$0xf] %v1058
      %1151 = vst [vmem:[#allocation2 + $0x158] sm:$0xf] %v1062
      %1152 = vst [vmem:[#allocation2 + $0x164] sm:$0xf] %v1065
      %1153 = vst [vmem:[#allocation2 + $0x170] sm:$0xf] %v1069
      %1154 = vst [vmem:[#allocation2 + $0x17c] sm:$0xf] %v1072
      %1155 = vst [vmem:[#allocation2 + $0x188] sm:$0xf] %v1076
      %1156 = vst [vmem:[#allocation2 + $0x194] sm:$0xf] %v1079
      %1157 = vst [vmem:[#allocation2 + $0x1a0] sm:$0xf] %v1083
      %1158 = vst [vmem:[#allocation2 + $0x1ac] sm:$0xf] %v1086
      %v1159 = vld [vmem:[#allocation2] sm:$0xff]
      %v1160 = vld [vmem:[#allocation2 + $0x8] sm:$0xf]
      %v1161 = vld [vmem:[#allocation2 + $0xc] sm:$0xff]
      %v1162 = vld [vmem:[#allocation2 + $0x14] sm:$0xf]
      %v1163 = vld [vmem:[#allocation2 + $0x18] sm:$0xff]
      %v1164 = vld [vmem:[#allocation2 + $0x20] sm:$0xf]
      %v1165 = vld [vmem:[#allocation2 + $0x24] sm:$0xff]
      %v1166 = vld [vmem:[#allocation2 + $0x2c] sm:$0xf]
      %v1167 = vld [vmem:[#allocation2 + $0x30] sm:$0xff]
      %v1168 = vld [vmem:[#allocation2 + $0x38] sm:$0xf]
      %v1169 = vld [vmem:[#allocation2 + $0x3c] sm:$0xff]
      %v1170 = vld [vmem:[#allocation2 + $0x44] sm:$0xf]
      %v1171 = vld [vmem:[#allocation2 + $0x48] sm:$0xff]
      %v1172 = vld [vmem:[#allocation2 + $0x50] sm:$0xf]
      %v1173 = vld [vmem:[#allocation2 + $0x54] sm:$0xff]
      %v1174 = vld [vmem:[#allocation2 + $0x5c] sm:$0xf]
      %v1175 = vld [vmem:[#allocation2 + $0x60] sm:$0xff]
      %v1176 = vld [vmem:[#allocation2 + $0x68] sm:$0xf]
      %v1177 = vld [vmem:[#allocation2 + $0x6c] sm:$0xff]
      %v1178 = vld [vmem:[#allocation2 + $0x74] sm:$0xf]
      %v1179 = vld [vmem:[#allocation2 + $0x78] sm:$0xff]
      %v1180 = vld [vmem:[#allocation2 + $0x80] sm:$0xf]
      %v1181 = vld [vmem:[#allocation2 + $0x84] sm:$0xff]
      %v1182 = vld [vmem:[#allocation2 + $0x8c] sm:$0xf]
      %v1183 = vld [vmem:[#allocation2 + $0x90] sm:$0xff]
      %v1184 = vld [vmem:[#allocation2 + $0x98] sm:$0xf]
      %v1185 = vld [vmem:[#allocation2 + $0x9c] sm:$0xff]
      %v1186 = vld [vmem:[#allocation2 + $0xa4] sm:$0xf]
      %v1187 = vld [vmem:[#allocation2 + $0xa8] sm:$0xff]
      %v1188 = vld [vmem:[#allocation2 + $0xb0] sm:$0xf]
      %v1189 = vld [vmem:[#allocation2 + $0xb4] sm:$0xff]
      %v1190 = vld [vmem:[#allocation2 + $0xbc] sm:$0xf]
      %v1191 = vld [vmem:[#allocation2 + $0xc0] sm:$0xff]
      %v1192 = vld [vmem:[#allocation2 + $0xc8] sm:$0xf]
      %v1193 = vld [vmem:[#allocation2 + $0xcc] sm:$0xff]
      %v1194 = vld [vmem:[#allocation2 + $0xd4] sm:$0xf]
      %v1195 = vld [vmem:[#allocation2 + $0xd8] sm:$0xff]
      %v1196 = vld [vmem:[#allocation2 + $0xe0] sm:$0xf]
      %v1197 = vld [vmem:[#allocation2 + $0xe4] sm:$0xff]
      %v1198 = vld [vmem:[#allocation2 + $0xec] sm:$0xf]
      %v1199 = vld [vmem:[#allocation2 + $0xf0] sm:$0xff]
      %v1200 = vld [vmem:[#allocation2 + $0xf8] sm:$0xf]
      %v1201 = vld [vmem:[#allocation2 + $0xfc] sm:$0xff]
      %v1202 = vld [vmem:[#allocation2 + $0x104] sm:$0xf]
      %v1203 = vld [vmem:[#allocation2 + $0x108] sm:$0xff]
      %v1204 = vld [vmem:[#allocation2 + $0x110] sm:$0xf]
      %v1205 = vld [vmem:[#allocation2 + $0x114] sm:$0xff]
      %v1206 = vld [vmem:[#allocation2 + $0x11c] sm:$0xf]
      %v1207 = vld [vmem:[#allocation2 + $0x120] sm:$0xff]
      %v1208 = vld [vmem:[#allocation2 + $0x128] sm:$0xf]
      %v1209 = vld [vmem:[#allocation2 + $0x12c] sm:$0xff]
      %v1210 = vld [vmem:[#allocation2 + $0x134] sm:$0xf]
      %v1211 = vld [vmem:[#allocation2 + $0x138] sm:$0xff]
      %v1212 = vld [vmem:[#allocation2 + $0x140] sm:$0xf]
      %v1213 = vld [vmem:[#allocation2 + $0x144] sm:$0xff]
      %v1214 = vld [vmem:[#allocation2 + $0x14c] sm:$0xf]
      %v1215 = vld [vmem:[#allocation2 + $0x150] sm:$0xff]
      %v1216 = vld [vmem:[#allocation2 + $0x158] sm:$0xf]
      %v1217 = vld [vmem:[#allocation2 + $0x15c] sm:$0xff]
      %v1218 = vld [vmem:[#allocation2 + $0x164] sm:$0xf]
      %v1219 = vld [vmem:[#allocation2 + $0x168] sm:$0xff]
      %v1220 = vld [vmem:[#allocation2 + $0x170] sm:$0xf]
      %v1221 = vld [vmem:[#allocation2 + $0x174] sm:$0xff]
      %v1222 = vld [vmem:[#allocation2 + $0x17c] sm:$0xf]
      %v1223 = vld [vmem:[%s1] sm:$0xf]
      %v1224 = vld [vmem:[%s1 + $0x4] sm:$0xf]
      %v1225 = vld [vmem:[%s1 + $0x8] sm:$0xf]
      %v1226 = vld [vmem:[%s1 + $0xc] sm:$0xf]
      %v1227 = vld [vmem:[%s1 + $0x10] sm:$0xf]
      %v1228 = vld [vmem:[%s1 + $0x14] sm:$0xf]
      %v1229 = vld [vmem:[%s1 + $0x18] sm:$0xf]
      %v1230 = vld [vmem:[%s1 + $0x1c] sm:$0xf]
      %v1231 = vld [vmem:[%s1 + $0x20] sm:$0xf]
      %v1232 = vld [vmem:[%s1 + $0x24] sm:$0xf]
      %v1233 = vld [vmem:[%s1 + $0x28] sm:$0xf]
      %v1234 = vld [vmem:[%s1 + $0x2c] sm:$0xf]
      %v1235 = vld [vmem:[%s1 + $0x30] sm:$0xf]
      %v1236 = vld [vmem:[%s1 + $0x34] sm:$0xf]
      %v1237 = vld [vmem:[%s1 + $0x38] sm:$0xf]
      %v1238 = vld [vmem:[%s1 + $0x3c] sm:$0xf]
      %v1239 = vld [vmem:[%s1 + $0x40] sm:$0xf]
      %v1240 = vld [vmem:[%s1 + $0x44] sm:$0xf]
      %v1241 = vld [vmem:[%s1 + $0x48] sm:$0xf]
      %v1242 = vld [vmem:[%s1 + $0x4c] sm:$0xf]
      %v1243 = vld [vmem:[%s1 + $0x50] sm:$0xf]
      %v1244 = vld [vmem:[%s1 + $0x54] sm:$0xf]
      %v1245 = vld [vmem:[%s1 + $0x58] sm:$0xf]
      %v1246 = vld [vmem:[%s1 + $0x5c] sm:$0xf]
      %v1247 = vld [vmem:[%s1 + $0x60] sm:$0xf]
      %v1248 = vld [vmem:[%s1 + $0x64] sm:$0xf]
      %v1249 = vld [vmem:[%s1 + $0x68] sm:$0xf]
      %v1250 = vld [vmem:[%s1 + $0x6c] sm:$0xf]
      %v1251 = vld [vmem:[%s1 + $0x70] sm:$0xf]
      %v1252 = vld [vmem:[%s1 + $0x74] sm:$0xf]
      %v1253 = vld [vmem:[%s1 + $0x78] sm:$0xf]
      %v1254 = vld [vmem:[%s1 + $0x7c] sm:$0xf]
      %v1255 = vld [vmem:[%s1 + $0x80] sm:$0xf]
      %v1256 = vld [vmem:[%s1 + $0x84] sm:$0xf]
      %v1257 = vld [vmem:[%s1 + $0x88] sm:$0xf]
      %v1258 = vld [vmem:[%s1 + $0x8c] sm:$0xf]
      %v1259 = vld [vmem:[%s1 + $0x90] sm:$0xf]
      %v1260 = vld [vmem:[%s1 + $0x94] sm:$0xf]
      %v1261 = vld [vmem:[%s1 + $0x98] sm:$0xf]
      %v1262 = vld [vmem:[%s1 + $0x9c] sm:$0xf]
      %v1263 = vld [vmem:[%s1 + $0xa0] sm:$0xf]
      %v1264 = vld [vmem:[%s1 + $0xa4] sm:$0xf]
      %v1265 = vld [vmem:[%s1 + $0xa8] sm:$0xf]
      %v1266 = vld [vmem:[%s1 + $0xac] sm:$0xf]
      %v1267 = vld [vmem:[%s1 + $0xb0] sm:$0xf]
      %v1268 = vld [vmem:[%s1 + $0xb4] sm:$0xf]
      %v1269 = vld [vmem:[%s1 + $0xb8] sm:$0xf]
      %v1270 = vld [vmem:[%s1 + $0xbc] sm:$0xf]
      %v1335 = vunpack.c.l.b16 %v1159
      %v1336 = vunpack.c.h.b16 %v1159
      %v1337 = vunpack.c.l.b16 %v1160
      %v1338 = vunpack.c.l.b16 %v1161
      %v1339 = vunpack.c.h.b16 %v1161
      %v1340 = vunpack.c.l.b16 %v1162
      %v1341 = vunpack.c.l.b16 %v1163
      %v1342 = vunpack.c.h.b16 %v1163
      %v1343 = vunpack.c.l.b16 %v1164
      %v1344 = vunpack.c.l.b16 %v1165
      %v1345 = vunpack.c.h.b16 %v1165
      %v1346 = vunpack.c.l.b16 %v1166
      %v1347 = vunpack.c.l.b16 %v1167
      %v1348 = vunpack.c.h.b16 %v1167
      %v1349 = vunpack.c.l.b16 %v1168
      %v1350 = vunpack.c.l.b16 %v1169
      %v1351 = vunpack.c.h.b16 %v1169
      %v1352 = vunpack.c.l.b16 %v1170
      %v1353 = vunpack.c.l.b16 %v1171
      %v1354 = vunpack.c.h.b16 %v1171
      %v1355 = vunpack.c.l.b16 %v1172
      %v1356 = vunpack.c.l.b16 %v1173
      %v1357 = vunpack.c.h.b16 %v1173
      %v1358 = vunpack.c.l.b16 %v1174
      %v1359 = vunpack.c.l.b16 %v1175
      %v1360 = vunpack.c.h.b16 %v1175
      %v1361 = vunpack.c.l.b16 %v1176
      %v1362 = vunpack.c.l.b16 %v1177
      %v1363 = vunpack.c.h.b16 %v1177
      %v1364 = vunpack.c.l.b16 %v1178
      %v1365 = vunpack.c.l.b16 %v1179
      %v1366 = vunpack.c.h.b16 %v1179
      %v1367 = vunpack.c.l.b16 %v1180
      %v1368 = vunpack.c.l.b16 %v1181
      %v1369 = vunpack.c.h.b16 %v1181
      %v1370 = vunpack.c.l.b16 %v1182
      %v1371 = vunpack.c.l.b16 %v1183
      %v1372 = vunpack.c.h.b16 %v1183
      %v1373 = vunpack.c.l.b16 %v1184
      %v1374 = vunpack.c.l.b16 %v1185
      %v1375 = vunpack.c.h.b16 %v1185
      %v1376 = vunpack.c.l.b16 %v1186
      %v1377 = vunpack.c.l.b16 %v1187
      %v1378 = vunpack.c.h.b16 %v1187
      %v1379 = vunpack.c.l.b16 %v1188
      %v1380 = vunpack.c.l.b16 %v1189
      %v1381 = vunpack.c.h.b16 %v1189
      %v1382 = vunpack.c.l.b16 %v1190
      %v1383 = vunpack.c.l.b16 %v1191
      %v1384 = vunpack.c.h.b16 %v1191
      %v1385 = vunpack.c.l.b16 %v1192
      %v1386 = vunpack.c.l.b16 %v1193
      %v1387 = vunpack.c.h.b16 %v1193
      %v1388 = vunpack.c.l.b16 %v1194
      %v1389 = vunpack.c.l.b16 %v1195
      %v1390 = vunpack.c.h.b16 %v1195
      %v1391 = vunpack.c.l.b16 %v1196
      %v1392 = vunpack.c.l.b16 %v1197
      %v1393 = vunpack.c.h.b16 %v1197
      %v1394 = vunpack.c.l.b16 %v1198
      %v1395 = vunpack.c.l.b16 %v1199
      %v1396 = vunpack.c.h.b16 %v1199
      %v1397 = vunpack.c.l.b16 %v1200
      %v1398 = vunpack.c.l.b16 %v1201
      %v1399 = vunpack.c.h.b16 %v1201
      %v1400 = vunpack.c.l.b16 %v1202
      %v1401 = vunpack.c.l.b16 %v1203
      %v1402 = vunpack.c.h.b16 %v1203
      %v1403 = vunpack.c.l.b16 %v1204
      %v1404 = vunpack.c.l.b16 %v1205
      %v1405 = vunpack.c.h.b16 %v1205
      %v1406 = vunpack.c.l.b16 %v1206
      %v1407 = vunpack.c.l.b16 %v1207
      %v1408 = vunpack.c.h.b16 %v1207
      %v1409 = vunpack.c.l.b16 %v1208
      %v1410 = vunpack.c.l.b16 %v1209
      %v1411 = vunpack.c.h.b16 %v1209
      %v1412 = vunpack.c.l.b16 %v1210
      %v1413 = vunpack.c.l.b16 %v1211
      %v1414 = vunpack.c.h.b16 %v1211
      %v1415 = vunpack.c.l.b16 %v1212
      %v1416 = vunpack.c.l.b16 %v1213
      %v1417 = vunpack.c.h.b16 %v1213
      %v1418 = vunpack.c.l.b16 %v1214
      %v1419 = vunpack.c.l.b16 %v1215
      %v1420 = vunpack.c.h.b16 %v1215
      %v1421 = vunpack.c.l.b16 %v1216
      %v1422 = vunpack.c.l.b16 %v1217
      %v1423 = vunpack.c.h.b16 %v1217
      %v1424 = vunpack.c.l.b16 %v1218
      %v1425 = vunpack.c.l.b16 %v1219
      %v1426 = vunpack.c.h.b16 %v1219
      %v1427 = vunpack.c.l.b16 %v1220
      %v1428 = vunpack.c.l.b16 %v1221
      %v1429 = vunpack.c.h.b16 %v1221
      %v1430 = vunpack.c.l.b16 %v1222
      %v1431 = vpack.c.b16 %v1338, %v1335
      %v1432 = vpack.c.b16 %v1339, %v1336
      %v1433 = vpack.c.b16 %v1340, %v1337
      %v1434 = vpack.c.b16 %v1344, %v1341
      %v1435 = vpack.c.b16 %v1345, %v1342
      %v1436 = vpack.c.b16 %v1346, %v1343
      %v1437 = vpack.c.b16 %v1350, %v1347
      %v1438 = vpack.c.b16 %v1351, %v1348
      %v1439 = vpack.c.b16 %v1352, %v1349
      %v1440 = vpack.c.b16 %v1356, %v1353
      %v1441 = vpack.c.b16 %v1357, %v1354
      %v1442 = vpack.c.b16 %v1358, %v1355
      %v1443 = vpack.c.b16 %v1362, %v1359
      %v1444 = vpack.c.b16 %v1363, %v1360
      %v1445 = vpack.c.b16 %v1364, %v1361
      %v1446 = vpack.c.b16 %v1368, %v1365
      %v1447 = vpack.c.b16 %v1369, %v1366
      %v1448 = vpack.c.b16 %v1370, %v1367
      %v1449 = vpack.c.b16 %v1374, %v1371
      %v1450 = vpack.c.b16 %v1375, %v1372
      %v1451 = vpack.c.b16 %v1376, %v1373
      %v1452 = vpack.c.b16 %v1380, %v1377
      %v1453 = vpack.c.b16 %v1381, %v1378
      %v1454 = vpack.c.b16 %v1382, %v1379
      %v1455 = vpack.c.b16 %v1386, %v1383
      %v1456 = vpack.c.b16 %v1387, %v1384
      %v1457 = vpack.c.b16 %v1388, %v1385
      %v1458 = vpack.c.b16 %v1392, %v1389
      %v1459 = vpack.c.b16 %v1393, %v1390
      %v1460 = vpack.c.b16 %v1394, %v1391
      %v1461 = vpack.c.b16 %v1398, %v1395
      %v1462 = vpack.c.b16 %v1399, %v1396
      %v1463 = vpack.c.b16 %v1400, %v1397
      %v1464 = vpack.c.b16 %v1404, %v1401
      %v1465 = vpack.c.b16 %v1405, %v1402
      %v1466 = vpack.c.b16 %v1406, %v1403
      %v1467 = vpack.c.b16 %v1410, %v1407
      %v1468 = vpack.c.b16 %v1411, %v1408
      %v1469 = vpack.c.b16 %v1412, %v1409
      %v1470 = vpack.c.b16 %v1416, %v1413
      %v1471 = vpack.c.b16 %v1417, %v1414
      %v1472 = vpack.c.b16 %v1418, %v1415
      %v1473 = vpack.c.b16 %v1422, %v1419
      %v1474 = vpack.c.b16 %v1423, %v1420
      %v1475 = vpack.c.b16 %v1424, %v1421
      %v1476 = vpack.c.b16 %v1428, %v1425
      %v1477 = vpack.c.b16 %v1429, %v1426
      %v1478 = vpack.c.b16 %v1430, %v1427
      %v1575 = vunpack.c.l.b16 %v1223
      %v1576 = vunpack.c.l.b16 %v1224
      %v1577 = vunpack.c.l.b16 %v1225
      %v1578 = vunpack.c.l.b16 %v1226
      %v1579 = vunpack.c.l.b16 %v1227
      %v1580 = vunpack.c.l.b16 %v1228
      %v1581 = vunpack.c.l.b16 %v1229
      %v1582 = vunpack.c.l.b16 %v1230
      %v1583 = vunpack.c.l.b16 %v1231
      %v1584 = vunpack.c.l.b16 %v1232
      %v1585 = vunpack.c.l.b16 %v1233
      %v1586 = vunpack.c.l.b16 %v1234
      %v1587 = vunpack.c.l.b16 %v1235
      %v1588 = vunpack.c.l.b16 %v1236
      %v1589 = vunpack.c.l.b16 %v1237
      %v1590 = vunpack.c.l.b16 %v1238
      %v1591 = vunpack.c.l.b16 %v1239
      %v1592 = vunpack.c.l.b16 %v1240
      %v1593 = vunpack.c.l.b16 %v1241
      %v1594 = vunpack.c.l.b16 %v1242
      %v1595 = vunpack.c.l.b16 %v1243
      %v1596 = vunpack.c.l.b16 %v1244
      %v1597 = vunpack.c.l.b16 %v1245
      %v1598 = vunpack.c.l.b16 %v1246
      %v1599 = vunpack.c.l.b16 %v1247
      %v1600 = vunpack.c.l.b16 %v1248
      %v1601 = vunpack.c.l.b16 %v1249
      %v1602 = vunpack.c.l.b16 %v1250
      %v1603 = vunpack.c.l.b16 %v1251
      %v1604 = vunpack.c.l.b16 %v1252
      %v1605 = vunpack.c.l.b16 %v1253
      %v1606 = vunpack.c.l.b16 %v1254
      %v1607 = vunpack.c.l.b16 %v1255
      %v1608 = vunpack.c.l.b16 %v1256
      %v1609 = vunpack.c.l.b16 %v1257
      %v1610 = vunpack.c.l.b16 %v1258
      %v1611 = vunpack.c.l.b16 %v1259
      %v1612 = vunpack.c.l.b16 %v1260
      %v1613 = vunpack.c.l.b16 %v1261
      %v1614 = vunpack.c.l.b16 %v1262
      %v1615 = vunpack.c.l.b16 %v1263
      %v1616 = vunpack.c.l.b16 %v1264
      %v1617 = vunpack.c.l.b16 %v1265
      %v1618 = vunpack.c.l.b16 %v1266
      %v1619 = vunpack.c.l.b16 %v1267
      %v1620 = vunpack.c.l.b16 %v1268
      %v1621 = vunpack.c.l.b16 %v1269
      %v1622 = vunpack.c.l.b16 %v1270
      %v1623 = vpack.c.b16 %v1576, %v1575
      %v1624 = vpack.c.b16 %v1578, %v1577
      %v1625 = vpack.c.b16 %v1580, %v1579
      %v1626 = vpack.c.b16 %v1582, %v1581
      %v1627 = vpack.c.b16 %v1584, %v1583
      %v1628 = vpack.c.b16 %v1586, %v1585
      %v1629 = vpack.c.b16 %v1588, %v1587
      %v1630 = vpack.c.b16 %v1590, %v1589
      %v1631 = vpack.c.b16 %v1592, %v1591
      %v1632 = vpack.c.b16 %v1594, %v1593
      %v1633 = vpack.c.b16 %v1596, %v1595
      %v1634 = vpack.c.b16 %v1598, %v1597
      %v1635 = vpack.c.b16 %v1600, %v1599
      %v1636 = vpack.c.b16 %v1602, %v1601
      %v1637 = vpack.c.b16 %v1604, %v1603
      %v1638 = vpack.c.b16 %v1606, %v1605
      %v1639 = vpack.c.b16 %v1608, %v1607
      %v1640 = vpack.c.b16 %v1610, %v1609
      %v1641 = vpack.c.b16 %v1612, %v1611
      %v1642 = vpack.c.b16 %v1614, %v1613
      %v1643 = vpack.c.b16 %v1616, %v1615
      %v1644 = vpack.c.b16 %v1618, %v1617
      %v1645 = vpack.c.b16 %v1620, %v1619
      %v1646 = vpack.c.b16 %v1622, %v1621
      %1671 = vmatprep.subr.bf16.mxu0 0
      %1672 = vmatpush1.bf16.msra.mxu0 %v1630
      %1673 = vmatprep.subr.bf16.mxu0 0
      %1674 = vmatpush1.bf16.msra.mxu0 %v1629
      %1675 = vmatprep.subr.bf16.mxu0 0
      %1676 = vmatpush1.bf16.msra.mxu0 %v1628
      %1677 = vmatprep.subr.bf16.mxu0 0
      %1678 = vmatpush1.bf16.msra.mxu0 %v1627
      %1679 = vmatprep.subr.bf16.mxu0 0
      %1680 = vmatpush1.bf16.msra.mxu0 %v1626
      %1681 = vmatprep.subr.bf16.mxu0 0
      %1682 = vmatpush1.bf16.msra.mxu0 %v1625
      %1683 = vmatprep.subr.bf16.mxu0 0
      %1684 = vmatpush1.bf16.msra.mxu0 %v1624
      %1685 = vmatprep.subr.bf16.mxu0 0
      %1686 = vmatpush1.bf16.msra.mxu0 %v1623
      %1687 = vmatprep.subr.bf16.mxu0 0
      %1688 = vmatpush2.bf16.msra.mxu0 %v1638
      %1689 = vmatprep.subr.bf16.mxu0 0
      %1690 = vmatpush2.bf16.msra.mxu0 %v1637
      %1691 = vmatprep.subr.bf16.mxu0 0
      %1692 = vmatpush2.bf16.msra.mxu0 %v1636
      %1693 = vmatprep.subr.bf16.mxu0 0
      %1694 = vmatpush2.bf16.msra.mxu0 %v1635
      %1695 = vmatprep.subr.bf16.mxu0 0
      %1696 = vmatpush2.bf16.msra.mxu0 %v1634
      %1697 = vmatprep.subr.bf16.mxu0 0
      %1698 = vmatpush2.bf16.msra.mxu0 %v1633
      %1699 = vmatprep.subr.bf16.mxu0 0
      %1700 = vmatpush2.bf16.msra.mxu0 %v1632
      %1701 = vmatprep.subr.bf16.mxu0 0
      %1702 = vmatpush2.bf16.msra.mxu0 %v1631
      %1703 = vmatprep.mubr.bf16.mxu0 %v1432
      %1704 = vmatmul.mubr.bf16.gmra.mxu0 %v1431
      %v1705 = vpop.f32.mrf.mxu0
      %v1706 = vadd.f32 0.0, %v1705
      %v1707 = vpop.f32.mrf.mxu0
      %v1708 = vpop.f32.mrf.mxu0
      %v1709 = vadd.f32 0.0, %v1708
      %v1710 = vpop.f32.mrf.mxu0
      %1711 = vmatprep.mubr.bf16.mxu0 %v1435
      %1712 = vmatmul.mubr.bf16.gmra.mxu0 %v1434
      %v1713 = vpop.f32.mrf.mxu0
      %v1714 = vadd.f32 0.0, %v1713
      %v1715 = vpop.f32.mrf.mxu0
      %v1716 = vpop.f32.mrf.mxu0
      %v1717 = vadd.f32 0.0, %v1716
      %v1718 = vpop.f32.mrf.mxu0
      %1719 = vmatprep.mubr.bf16.mxu0 %v1438
      %1720 = vmatmul.mubr.bf16.gmra.mxu0 %v1437
      %v1721 = vpop.f32.mrf.mxu0
      %v1722 = vadd.f32 0.0, %v1721
      %v1723 = vpop.f32.mrf.mxu0
      %v1724 = vpop.f32.mrf.mxu0
      %v1725 = vadd.f32 0.0, %v1724
      %v1726 = vpop.f32.mrf.mxu0
      %1727 = vmatprep.mubr.bf16.mxu0 %v1441
      %1728 = vmatmul.mubr.bf16.gmra.mxu0 %v1440
      %v1729 = vpop.f32.mrf.mxu0
      %v1730 = vadd.f32 0.0, %v1729
      %v1731 = vpop.f32.mrf.mxu0
      %v1732 = vpop.f32.mrf.mxu0
      %v1733 = vadd.f32 0.0, %v1732
      %v1734 = vpop.f32.mrf.mxu0
      %1735 = vmatprep.mubr.bf16.mxu0 %v1444
      %1736 = vmatmul.mubr.bf16.gmra.mxu0 %v1443
      %v1737 = vpop.f32.mrf.mxu0
      %v1738 = vadd.f32 0.0, %v1737
      %v1739 = vpop.f32.mrf.mxu0
      %v1740 = vpop.f32.mrf.mxu0
      %v1741 = vadd.f32 0.0, %v1740
      %v1742 = vpop.f32.mrf.mxu0
      %1743 = vmatprep.mubr.bf16.mxu0 %v1447
      %1744 = vmatmul.mubr.bf16.gmra.mxu0 %v1446
      %v1745 = vpop.f32.mrf.mxu0
      %v1746 = vadd.f32 0.0, %v1745
      %v1747 = vpop.f32.mrf.mxu0
      %v1748 = vpop.f32.mrf.mxu0
      %v1749 = vadd.f32 0.0, %v1748
      %v1750 = vpop.f32.mrf.mxu0
      %1751 = vmatprep.mubr.bf16.mxu0 %v1450
      %1752 = vmatmul.mubr.bf16.gmra.mxu0 %v1449
      %v1753 = vpop.f32.mrf.mxu0
      %v1754 = vadd.f32 0.0, %v1753
      %v1755 = vpop.f32.mrf.mxu0
      %v1756 = vpop.f32.mrf.mxu0
      %v1757 = vadd.f32 0.0, %v1756
      %v1758 = vpop.f32.mrf.mxu0
      %1759 = vmatprep.mubr.bf16.mxu0 %v1453
      %1760 = vmatmul.mubr.bf16.gmra.mxu0 %v1452
      %v1761 = vpop.f32.mrf.mxu0
      %v1762 = vadd.f32 0.0, %v1761
      %v1763 = vpop.f32.mrf.mxu0
      %v1764 = vpop.f32.mrf.mxu0
      %v1765 = vadd.f32 0.0, %v1764
      %v1766 = vpop.f32.mrf.mxu0
      %1767 = vmatprep.mubr.bf16.mxu0 %v1456
      %1768 = vmatmul.mubr.bf16.gmra.mxu0 %v1455
      %v1769 = vpop.f32.mrf.mxu0
      %v1770 = vadd.f32 0.0, %v1769
      %v1771 = vpop.f32.mrf.mxu0
      %v1772 = vpop.f32.mrf.mxu0
      %v1773 = vadd.f32 0.0, %v1772
      %v1774 = vpop.f32.mrf.mxu0
      %1775 = vmatprep.mubr.bf16.mxu0 %v1459
      %1776 = vmatmul.mubr.bf16.gmra.mxu0 %v1458
      %v1777 = vpop.f32.mrf.mxu0
      %v1778 = vadd.f32 0.0, %v1777
      %v1779 = vpop.f32.mrf.mxu0
      %v1780 = vpop.f32.mrf.mxu0
      %v1781 = vadd.f32 0.0, %v1780
      %v1782 = vpop.f32.mrf.mxu0
      %1783 = vmatprep.mubr.bf16.mxu0 %v1462
      %1784 = vmatmul.mubr.bf16.gmra.mxu0 %v1461
      %v1785 = vpop.f32.mrf.mxu0
      %v1786 = vadd.f32 0.0, %v1785
      %v1787 = vpop.f32.mrf.mxu0
      %v1788 = vpop.f32.mrf.mxu0
      %v1789 = vadd.f32 0.0, %v1788
      %v1790 = vpop.f32.mrf.mxu0
      %1791 = vmatprep.mubr.bf16.mxu0 %v1465
      %1792 = vmatmul.mubr.bf16.gmra.mxu0 %v1464
      %v1793 = vpop.f32.mrf.mxu0
      %v1794 = vadd.f32 0.0, %v1793
      %v1795 = vpop.f32.mrf.mxu0
      %v1796 = vpop.f32.mrf.mxu0
      %v1797 = vadd.f32 0.0, %v1796
      %v1798 = vpop.f32.mrf.mxu0
      %1799 = vmatprep.mubr.bf16.mxu0 %v1468
      %1800 = vmatmul.mubr.bf16.gmra.mxu0 %v1467
      %v1801 = vpop.f32.mrf.mxu0
      %v1802 = vadd.f32 0.0, %v1801
      %v1803 = vpop.f32.mrf.mxu0
      %v1804 = vpop.f32.mrf.mxu0
      %v1805 = vadd.f32 0.0, %v1804
      %v1806 = vpop.f32.mrf.mxu0
      %1807 = vmatprep.mubr.bf16.mxu0 %v1471
      %1808 = vmatmul.mubr.bf16.gmra.mxu0 %v1470
      %v1809 = vpop.f32.mrf.mxu0
      %v1810 = vadd.f32 0.0, %v1809
      %v1811 = vpop.f32.mrf.mxu0
      %v1812 = vpop.f32.mrf.mxu0
      %v1813 = vadd.f32 0.0, %v1812
      %v1814 = vpop.f32.mrf.mxu0
      %1815 = vmatprep.mubr.bf16.mxu0 %v1474
      %1816 = vmatmul.mubr.bf16.gmra.mxu0 %v1473
      %v1817 = vpop.f32.mrf.mxu0
      %v1818 = vadd.f32 0.0, %v1817
      %v1819 = vpop.f32.mrf.mxu0
      %v1820 = vpop.f32.mrf.mxu0
      %v1821 = vadd.f32 0.0, %v1820
      %v1822 = vpop.f32.mrf.mxu0
      %1823 = vmatprep.mubr.bf16.mxu0 %v1477
      %1824 = vmatmul.mubr.bf16.gmra.mxu0 %v1476
      %v1825 = vpop.f32.mrf.mxu0
      %v1826 = vadd.f32 0.0, %v1825
      %v1827 = vpop.f32.mrf.mxu0
      %v1828 = vpop.f32.mrf.mxu0
      %v1829 = vadd.f32 0.0, %v1828
      %v1830 = vpop.f32.mrf.mxu0
      %1831 = vdwg.mxu0
      %1832 = vmatprep.subr.bf16.mxu0 0
      %1833 = vmatpush1.bf16.msra.mxu0 %v1646
      %1834 = vmatprep.subr.bf16.mxu0 0
      %1835 = vmatpush1.bf16.msra.mxu0 %v1645
      %1836 = vmatprep.subr.bf16.mxu0 0
      %1837 = vmatpush1.bf16.msra.mxu0 %v1644
      %1838 = vmatprep.subr.bf16.mxu0 0
      %1839 = vmatpush1.bf16.msra.mxu0 %v1643
      %1840 = vmatprep.subr.bf16.mxu0 0
      %1841 = vmatpush1.bf16.msra.mxu0 %v1642
      %1842 = vmatprep.subr.bf16.mxu0 0
      %1843 = vmatpush1.bf16.msra.mxu0 %v1641
      %1844 = vmatprep.subr.bf16.mxu0 0
      %1845 = vmatpush1.bf16.msra.mxu0 %v1640
      %1846 = vmatprep.subr.bf16.mxu0 0
      %1847 = vmatpush1.bf16.msra.mxu0 %v1639
      %1848 = vmatprep.subr.bf16.mxu0 0
      %1849 = vmatpush2.bf16.msra.mxu0 0
      %1850 = vmatprep.subr.bf16.mxu0 0
      %1851 = vmatpush2.bf16.msra.mxu0 0
      %1852 = vmatprep.subr.bf16.mxu0 0
      %1853 = vmatpush2.bf16.msra.mxu0 0
      %1854 = vmatprep.subr.bf16.mxu0 0
      %1855 = vmatpush2.bf16.msra.mxu0 0
      %1856 = vmatprep.subr.bf16.mxu0 0
      %1857 = vmatpush2.bf16.msra.mxu0 0
      %1858 = vmatprep.subr.bf16.mxu0 0
      %1859 = vmatpush2.bf16.msra.mxu0 0
      %1860 = vmatprep.subr.bf16.mxu0 0
      %1861 = vmatpush2.bf16.msra.mxu0 0
      %1862 = vmatprep.subr.bf16.mxu0 0
      %1863 = vmatpush2.bf16.msra.mxu0 0
      %1864 = vmatprep.mubr.bf16.mxu0 0
      %1865 = vmatmul.mubr.bf16.gmra.mxu0 %v1433
      %v1866 = vpop.f32.mrf.mxu0
      %v1867 = vadd.f32 %v1706, %v1866
      %v1868 = vpop.f32.mrf.mxu0
      %v1869 = vpop.f32.mrf.mxu0
      %v1870 = vadd.f32 %v1709, %v1869
      %v1871 = vpop.f32.mrf.mxu0
      %1872 = vmatprep.mubr.bf16.mxu0 0
      %1873 = vmatmul.mubr.bf16.gmra.mxu0 %v1436
      %v1874 = vpop.f32.mrf.mxu0
      %v1875 = vadd.f32 %v1714, %v1874
      %v1876 = vpop.f32.mrf.mxu0
      %v1877 = vpop.f32.mrf.mxu0
      %v1878 = vadd.f32 %v1717, %v1877
      %v1879 = vpop.f32.mrf.mxu0
      %1880 = vmatprep.mubr.bf16.mxu0 0
      %1881 = vmatmul.mubr.bf16.gmra.mxu0 %v1439
      %v1882 = vpop.f32.mrf.mxu0
      %v1883 = vadd.f32 %v1722, %v1882
      %v1884 = vpop.f32.mrf.mxu0
      %v1885 = vpop.f32.mrf.mxu0
      %v1886 = vadd.f32 %v1725, %v1885
      %v1887 = vpop.f32.mrf.mxu0
      %1888 = vmatprep.mubr.bf16.mxu0 0
      %1889 = vmatmul.mubr.bf16.gmra.mxu0 %v1442
      %v1890 = vpop.f32.mrf.mxu0
      %v1891 = vadd.f32 %v1730, %v1890
      %v1892 = vpop.f32.mrf.mxu0
      %v1893 = vpop.f32.mrf.mxu0
      %v1894 = vadd.f32 %v1733, %v1893
      %v1895 = vpop.f32.mrf.mxu0
      %1896 = vmatprep.mubr.bf16.mxu0 0
      %1897 = vmatmul.mubr.bf16.gmra.mxu0 %v1445
      %v1898 = vpop.f32.mrf.mxu0
      %v1899 = vadd.f32 %v1738, %v1898
      %v1900 = vpop.f32.mrf.mxu0
      %v1901 = vpop.f32.mrf.mxu0
      %v1902 = vadd.f32 %v1741, %v1901
      %v1903 = vpop.f32.mrf.mxu0
      %1904 = vmatprep.mubr.bf16.mxu0 0
      %1905 = vmatmul.mubr.bf16.gmra.mxu0 %v1448
      %v1906 = vpop.f32.mrf.mxu0
      %v1907 = vadd.f32 %v1746, %v1906
      %v1908 = vpop.f32.mrf.mxu0
      %v1909 = vpop.f32.mrf.mxu0
      %v1910 = vadd.f32 %v1749, %v1909
      %v1911 = vpop.f32.mrf.mxu0
      %1912 = vmatprep.mubr.bf16.mxu0 0
      %1913 = vmatmul.mubr.bf16.gmra.mxu0 %v1451
      %v1914 = vpop.f32.mrf.mxu0
      %v1915 = vadd.f32 %v1754, %v1914
      %v1916 = vpop.f32.mrf.mxu0
      %v1917 = vpop.f32.mrf.mxu0
      %v1918 = vadd.f32 %v1757, %v1917
      %v1919 = vpop.f32.mrf.mxu0
      %1920 = vmatprep.mubr.bf16.mxu0 0
      %1921 = vmatmul.mubr.bf16.gmra.mxu0 %v1454
      %v1922 = vpop.f32.mrf.mxu0
      %v1923 = vadd.f32 %v1762, %v1922
      %v1924 = vpop.f32.mrf.mxu0
      %v1925 = vpop.f32.mrf.mxu0
      %v1926 = vadd.f32 %v1765, %v1925
      %v1927 = vpop.f32.mrf.mxu0
      %1928 = vmatprep.mubr.bf16.mxu0 0
      %1929 = vmatmul.mubr.bf16.gmra.mxu0 %v1457
      %v1930 = vpop.f32.mrf.mxu0
      %v1931 = vadd.f32 %v1770, %v1930
      %v1932 = vpop.f32.mrf.mxu0
      %v1933 = vpop.f32.mrf.mxu0
      %v1934 = vadd.f32 %v1773, %v1933
      %v1935 = vpop.f32.mrf.mxu0
      %1936 = vmatprep.mubr.bf16.mxu0 0
      %1937 = vmatmul.mubr.bf16.gmra.mxu0 %v1460
      %v1938 = vpop.f32.mrf.mxu0
      %v1939 = vadd.f32 %v1778, %v1938
      %v1940 = vpop.f32.mrf.mxu0
      %v1941 = vpop.f32.mrf.mxu0
      %v1942 = vadd.f32 %v1781, %v1941
      %v1943 = vpop.f32.mrf.mxu0
      %1944 = vmatprep.mubr.bf16.mxu0 0
      %1945 = vmatmul.mubr.bf16.gmra.mxu0 %v1463
      %v1946 = vpop.f32.mrf.mxu0
      %v1947 = vadd.f32 %v1786, %v1946
      %v1948 = vpop.f32.mrf.mxu0
      %v1949 = vpop.f32.mrf.mxu0
      %v1950 = vadd.f32 %v1789, %v1949
      %v1951 = vpop.f32.mrf.mxu0
      %1952 = vmatprep.mubr.bf16.mxu0 0
      %1953 = vmatmul.mubr.bf16.gmra.mxu0 %v1466
      %v1954 = vpop.f32.mrf.mxu0
      %v1955 = vadd.f32 %v1794, %v1954
      %v1956 = vpop.f32.mrf.mxu0
      %v1957 = vpop.f32.mrf.mxu0
      %v1958 = vadd.f32 %v1797, %v1957
      %v1959 = vpop.f32.mrf.mxu0
      %1960 = vmatprep.mubr.bf16.mxu0 0
      %1961 = vmatmul.mubr.bf16.gmra.mxu0 %v1469
      %v1962 = vpop.f32.mrf.mxu0
      %v1963 = vadd.f32 %v1802, %v1962
      %v1964 = vpop.f32.mrf.mxu0
      %v1965 = vpop.f32.mrf.mxu0
      %v1966 = vadd.f32 %v1805, %v1965
      %v1967 = vpop.f32.mrf.mxu0
      %1968 = vmatprep.mubr.bf16.mxu0 0
      %1969 = vmatmul.mubr.bf16.gmra.mxu0 %v1472
      %v1970 = vpop.f32.mrf.mxu0
      %v1971 = vadd.f32 %v1810, %v1970
      %v1972 = vpop.f32.mrf.mxu0
      %v1973 = vpop.f32.mrf.mxu0
      %v1974 = vadd.f32 %v1813, %v1973
      %v1975 = vpop.f32.mrf.mxu0
      %1976 = vmatprep.mubr.bf16.mxu0 0
      %1977 = vmatmul.mubr.bf16.gmra.mxu0 %v1475
      %v1978 = vpop.f32.mrf.mxu0
      %v1979 = vadd.f32 %v1818, %v1978
      %v1980 = vpop.f32.mrf.mxu0
      %v1981 = vpop.f32.mrf.mxu0
      %v1982 = vadd.f32 %v1821, %v1981
      %v1983 = vpop.f32.mrf.mxu0
      %1984 = vmatprep.mubr.bf16.mxu0 0
      %1985 = vmatmul.mubr.bf16.gmra.mxu0 %v1478
      %v1986 = vpop.f32.mrf.mxu0
      %v1987 = vadd.f32 %v1826, %v1986
      %v1988 = vpop.f32.mrf.mxu0
      %v1989 = vpop.f32.mrf.mxu0
      %v1990 = vadd.f32 %v1829, %v1989
      %v1991 = vpop.f32.mrf.mxu0
      %1992 = vdwg.mxu0
      %1993 = vst [vmem:[#allocation3] sm:$0xff] %v1867
      %1994 = vst [vmem:[#allocation3 + $0x8] sm:$0xff] %v1870
      %1995 = vst [vmem:[#allocation3 + $0x10] sm:$0xff] %v1875
      %1996 = vst [vmem:[#allocation3 + $0x18] sm:$0xff] %v1878
      %1997 = vst [vmem:[#allocation3 + $0x20] sm:$0xff] %v1883
      %1998 = vst [vmem:[#allocation3 + $0x28] sm:$0xff] %v1886
      %1999 = vst [vmem:[#allocation3 + $0x30] sm:$0xff] %v1891
      %2000 = vst [vmem:[#allocation3 + $0x38] sm:$0xff] %v1894
      %2001 = vst [vmem:[#allocation3 + $0x40] sm:$0xff] %v1899
      %2002 = vst [vmem:[#allocation3 + $0x48] sm:$0xff] %v1902
      %2003 = vst [vmem:[#allocation3 + $0x50] sm:$0xff] %v1907
      %2004 = vst [vmem:[#allocation3 + $0x58] sm:$0xff] %v1910
      %2005 = vst [vmem:[#allocation3 + $0x60] sm:$0xff] %v1915
      %2006 = vst [vmem:[#allocation3 + $0x68] sm:$0xff] %v1918
      %2007 = vst [vmem:[#allocation3 + $0x70] sm:$0xff] %v1923
      %2008 = vst [vmem:[#allocation3 + $0x78] sm:$0xff] %v1926
      %2009 = vst [vmem:[#allocation3 + $0x80] sm:$0xff] %v1931
      %2010 = vst [vmem:[#allocation3 + $0x88] sm:$0xff] %v1934
      %2011 = vst [vmem:[#allocation3 + $0x90] sm:$0xff] %v1939
      %2012 = vst [vmem:[#allocation3 + $0x98] sm:$0xff] %v1942
      %2013 = vst [vmem:[#allocation3 + $0xa0] sm:$0xff] %v1947
      %2014 = vst [vmem:[#allocation3 + $0xa8] sm:$0xff] %v1950
      %2015 = vst [vmem:[#allocation3 + $0xb0] sm:$0xff] %v1955
      %2016 = vst [vmem:[#allocation3 + $0xb8] sm:$0xff] %v1958
      %2017 = vst [vmem:[#allocation3 + $0xc0] sm:$0xff] %v1963
      %2018 = vst [vmem:[#allocation3 + $0xc8] sm:$0xff] %v1966
      %2019 = vst [vmem:[#allocation3 + $0xd0] sm:$0xff] %v1971
      %2020 = vst [vmem:[#allocation3 + $0xd8] sm:$0xff] %v1974
      %2021 = vst [vmem:[#allocation3 + $0xe0] sm:$0xff] %v1979
      %2022 = vst [vmem:[#allocation3 + $0xe8] sm:$0xff] %v1982
      %2023 = vst [vmem:[#allocation3 + $0xf0] sm:$0xff] %v1987
      %2024 = vst [vmem:[#allocation3 + $0xf8] sm:$0xff] %v1990
      %v2025 = vld [vmem:[#allocation3] sm:$0xff]
      %v2026 = vld [vmem:[#allocation3 + $0x8] sm:$0xff]
      %v2027 = vld [vmem:[#allocation3 + $0x10] sm:$0xff]
      %v2028 = vld [vmem:[#allocation3 + $0x18] sm:$0xff]
      %v2029 = vld [vmem:[#allocation3 + $0x20] sm:$0xff]
      %v2030 = vld [vmem:[#allocation3 + $0x28] sm:$0xff]
      %v2031 = vld [vmem:[#allocation3 + $0x30] sm:$0xff]
      %v2032 = vld [vmem:[#allocation3 + $0x38] sm:$0xff]
      %v2033 = vld [vmem:[#allocation3 + $0x40] sm:$0xff]
      %v2034 = vld [vmem:[#allocation3 + $0x48] sm:$0xff]
      %v2035 = vld [vmem:[#allocation3 + $0x50] sm:$0xff]
      %v2036 = vld [vmem:[#allocation3 + $0x58] sm:$0xff]
      %v2037 = vld [vmem:[#allocation3 + $0x60] sm:$0xff]
      %v2038 = vld [vmem:[#allocation3 + $0x68] sm:$0xff]
      %v2039 = vld [vmem:[#allocation3 + $0x70] sm:$0xff]
      %v2040 = vld [vmem:[#allocation3 + $0x78] sm:$0xff]
      %v2041 = vld [vmem:[#allocation3 + $0x80] sm:$0xff]
      %v2042 = vld [vmem:[#allocation3 + $0x88] sm:$0xff]
      %v2043 = vld [vmem:[#allocation3 + $0x90] sm:$0xff]
      %v2044 = vld [vmem:[#allocation3 + $0x98] sm:$0xff]
      %v2045 = vld [vmem:[#allocation3 + $0xa0] sm:$0xff]
      %v2046 = vld [vmem:[#allocation3 + $0xa8] sm:$0xff]
      %v2047 = vld [vmem:[#allocation3 + $0xb0] sm:$0xff]
      %v2048 = vld [vmem:[#allocation3 + $0xb8] sm:$0xff]
      %v2049 = vld [vmem:[#allocation3 + $0xc0] sm:$0xff]
      %v2050 = vld [vmem:[#allocation3 + $0xc8] sm:$0xff]
      %v2051 = vld [vmem:[#allocation3 + $0xd0] sm:$0xff]
      %v2052 = vld [vmem:[#allocation3 + $0xd8] sm:$0xff]
      %v2053 = vld [vmem:[#allocation3 + $0xe0] sm:$0xff]
      %v2054 = vld [vmem:[#allocation3 + $0xe8] sm:$0xff]
      %v2055 = vld [vmem:[#allocation3 + $0xf0] sm:$0xff]
      %v2056 = vld [vmem:[#allocation3 + $0xf8] sm:$0xff]
      %s2057 = scalar_lea.vmem [#allocation2], 24
      %v2058 = vld [vmem:[%s2057] sm:$0xff]
      %v2059 = vld [vmem:[%s2057 + $0x8] sm:$0xf]
      %v2060 = vld [vmem:[%s2057 + $0xc] sm:$0xff]
      %v2061 = vld [vmem:[%s2057 + $0x14] sm:$0xf]
      %v2062 = vld [vmem:[%s2057 + $0x18] sm:$0xff]
      %v2063 = vld [vmem:[%s2057 + $0x20] sm:$0xf]
      %v2064 = vld [vmem:[%s2057 + $0x24] sm:$0xff]
      %v2065 = vld [vmem:[%s2057 + $0x2c] sm:$0xf]
      %v2066 = vld [vmem:[%s2057 + $0x30] sm:$0xff]
      %v2067 = vld [vmem:[%s2057 + $0x38] sm:$0xf]
      %v2068 = vld [vmem:[%s2057 + $0x3c] sm:$0xff]
      %v2069 = vld [vmem:[%s2057 + $0x44] sm:$0xf]
      %v2070 = vld [vmem:[%s2057 + $0x48] sm:$0xff]
      %v2071 = vld [vmem:[%s2057 + $0x50] sm:$0xf]
      %v2072 = vld [vmem:[%s2057 + $0x54] sm:$0xff]
      %v2073 = vld [vmem:[%s2057 + $0x5c] sm:$0xf]
      %v2074 = vld [vmem:[%s2057 + $0x60] sm:$0xff]
      %v2075 = vld [vmem:[%s2057 + $0x68] sm:$0xf]
      %v2076 = vld [vmem:[%s2057 + $0x6c] sm:$0xff]
      %v2077 = vld [vmem:[%s2057 + $0x74] sm:$0xf]
      %v2078 = vld [vmem:[%s2057 + $0x78] sm:$0xff]
      %v2079 = vld [vmem:[%s2057 + $0x80] sm:$0xf]
      %v2080 = vld [vmem:[%s2057 + $0x84] sm:$0xff]
      %v2081 = vld [vmem:[%s2057 + $0x8c] sm:$0xf]
      %v2082 = vld [vmem:[%s2057 + $0x90] sm:$0xff]
      %v2083 = vld [vmem:[%s2057 + $0x98] sm:$0xf]
      %v2084 = vld [vmem:[%s2057 + $0x9c] sm:$0xff]
      %v2085 = vld [vmem:[%s2057 + $0xa4] sm:$0xf]
      %v2086 = vld [vmem:[%s2057 + $0xa8] sm:$0xff]
      %v2087 = vld [vmem:[%s2057 + $0xb0] sm:$0xf]
      %v2088 = vld [vmem:[%s2057 + $0xb4] sm:$0xff]
      %v2089 = vld [vmem:[%s2057 + $0xbc] sm:$0xf]
      %v2090 = vld [vmem:[%s2057 + $0xc0] sm:$0xff]
      %v2091 = vld [vmem:[%s2057 + $0xc8] sm:$0xf]
      %v2092 = vld [vmem:[%s2057 + $0xcc] sm:$0xff]
      %v2093 = vld [vmem:[%s2057 + $0xd4] sm:$0xf]
      %v2094 = vld [vmem:[%s2057 + $0xd8] sm:$0xff]
      %v2095 = vld [vmem:[%s2057 + $0xe0] sm:$0xf]
      %v2096 = vld [vmem:[%s2057 + $0xe4] sm:$0xff]
      %v2097 = vld [vmem:[%s2057 + $0xec] sm:$0xf]
      %v2098 = vld [vmem:[%s2057 + $0xf0] sm:$0xff]
      %v2099 = vld [vmem:[%s2057 + $0xf8] sm:$0xf]
      %v2100 = vld [vmem:[%s2057 + $0xfc] sm:$0xff]
      %v2101 = vld [vmem:[%s2057 + $0x104] sm:$0xf]
      %v2102 = vld [vmem:[%s2057 + $0x108] sm:$0xff]
      %v2103 = vld [vmem:[%s2057 + $0x110] sm:$0xf]
      %v2104 = vld [vmem:[%s2057 + $0x114] sm:$0xff]
      %v2105 = vld [vmem:[%s2057 + $0x11c] sm:$0xf]
      %v2106 = vld [vmem:[%s2057 + $0x120] sm:$0xff]
      %v2107 = vld [vmem:[%s2057 + $0x128] sm:$0xf]
      %v2108 = vld [vmem:[%s2057 + $0x12c] sm:$0xff]
      %v2109 = vld [vmem:[%s2057 + $0x134] sm:$0xf]
      %v2110 = vld [vmem:[%s2057 + $0x138] sm:$0xff]
      %v2111 = vld [vmem:[%s2057 + $0x140] sm:$0xf]
      %v2112 = vld [vmem:[%s2057 + $0x144] sm:$0xff]
      %v2113 = vld [vmem:[%s2057 + $0x14c] sm:$0xf]
      %v2114 = vld [vmem:[%s2057 + $0x150] sm:$0xff]
      %v2115 = vld [vmem:[%s2057 + $0x158] sm:$0xf]
      %v2116 = vld [vmem:[%s2057 + $0x15c] sm:$0xff]
      %v2117 = vld [vmem:[%s2057 + $0x164] sm:$0xf]
      %v2118 = vld [vmem:[%s2057 + $0x168] sm:$0xff]
      %v2119 = vld [vmem:[%s2057 + $0x170] sm:$0xf]
      %v2120 = vld [vmem:[%s2057 + $0x174] sm:$0xff]
      %v2121 = vld [vmem:[%s2057 + $0x17c] sm:$0xf]
      %s2122 = scalar_lea.vmem %s1, 192
      %v2123 = vld [vmem:[%s2122] sm:$0xf]
      %v2124 = vld [vmem:[%s2122 + $0x4] sm:$0xf]
      %v2125 = vld [vmem:[%s2122 + $0x8] sm:$0xf]
      %v2126 = vld [vmem:[%s2122 + $0xc] sm:$0xf]
      %v2127 = vld [vmem:[%s2122 + $0x10] sm:$0xf]
      %v2128 = vld [vmem:[%s2122 + $0x14] sm:$0xf]
      %v2129 = vld [vmem:[%s2122 + $0x18] sm:$0xf]
      %v2130 = vld [vmem:[%s2122 + $0x1c] sm:$0xf]
      %v2131 = vld [vmem:[%s2122 + $0x20] sm:$0xf]
      %v2132 = vld [vmem:[%s2122 + $0x24] sm:$0xf]
      %v2133 = vld [vmem:[%s2122 + $0x28] sm:$0xf]
      %v2134 = vld [vmem:[%s2122 + $0x2c] sm:$0xf]
      %v2135 = vld [vmem:[%s2122 + $0x30] sm:$0xf]
      %v2136 = vld [vmem:[%s2122 + $0x34] sm:$0xf]
      %v2137 = vld [vmem:[%s2122 + $0x38] sm:$0xf]
      %v2138 = vld [vmem:[%s2122 + $0x3c] sm:$0xf]
      %v2139 = vld [vmem:[%s2122 + $0x40] sm:$0xf]
      %v2140 = vld [vmem:[%s2122 + $0x44] sm:$0xf]
      %v2141 = vld [vmem:[%s2122 + $0x48] sm:$0xf]
      %v2142 = vld [vmem:[%s2122 + $0x4c] sm:$0xf]
      %v2143 = vld [vmem:[%s2122 + $0x50] sm:$0xf]
      %v2144 = vld [vmem:[%s2122 + $0x54] sm:$0xf]
      %v2145 = vld [vmem:[%s2122 + $0x58] sm:$0xf]
      %v2146 = vld [vmem:[%s2122 + $0x5c] sm:$0xf]
      %v2147 = vld [vmem:[%s2122 + $0x60] sm:$0xf]
      %v2148 = vld [vmem:[%s2122 + $0x64] sm:$0xf]
      %v2149 = vld [vmem:[%s2122 + $0x68] sm:$0xf]
      %v2150 = vld [vmem:[%s2122 + $0x6c] sm:$0xf]
      %v2151 = vld [vmem:[%s2122 + $0x70] sm:$0xf]
      %v2152 = vld [vmem:[%s2122 + $0x74] sm:$0xf]
      %v2153 = vld [vmem:[%s2122 + $0x78] sm:$0xf]
      %v2154 = vld [vmem:[%s2122 + $0x7c] sm:$0xf]
      %v2155 = vld [vmem:[%s2122 + $0x80] sm:$0xf]
      %v2156 = vld [vmem:[%s2122 + $0x84] sm:$0xf]
      %v2157 = vld [vmem:[%s2122 + $0x88] sm:$0xf]
      %v2158 = vld [vmem:[%s2122 + $0x8c] sm:$0xf]
      %v2159 = vld [vmem:[%s2122 + $0x90] sm:$0xf]
      %v2160 = vld [vmem:[%s2122 + $0x94] sm:$0xf]
      %v2161 = vld [vmem:[%s2122 + $0x98] sm:$0xf]
      %v2162 = vld [vmem:[%s2122 + $0x9c] sm:$0xf]
      %v2163 = vld [vmem:[%s2122 + $0xa0] sm:$0xf]
      %v2164 = vld [vmem:[%s2122 + $0xa4] sm:$0xf]
      %v2165 = vld [vmem:[%s2122 + $0xa8] sm:$0xf]
      %v2166 = vld [vmem:[%s2122 + $0xac] sm:$0xf]
      %v2167 = vld [vmem:[%s2122 + $0xb0] sm:$0xf]
      %v2168 = vld [vmem:[%s2122 + $0xb4] sm:$0xf]
      %v2169 = vld [vmem:[%s2122 + $0xb8] sm:$0xf]
      %v2170 = vld [vmem:[%s2122 + $0xbc] sm:$0xf]
      %v2235 = vunpack.c.l.b16 %v2058
      %v2236 = vunpack.c.h.b16 %v2058
      %v2237 = vunpack.c.l.b16 %v2059
      %v2238 = vunpack.c.l.b16 %v2060
      %v2239 = vunpack.c.h.b16 %v2060
      %v2240 = vunpack.c.l.b16 %v2061
      %v2241 = vunpack.c.l.b16 %v2062
      %v2242 = vunpack.c.h.b16 %v2062
      %v2243 = vunpack.c.l.b16 %v2063
      %v2244 = vunpack.c.l.b16 %v2064
      %v2245 = vunpack.c.h.b16 %v2064
      %v2246 = vunpack.c.l.b16 %v2065
      %v2247 = vunpack.c.l.b16 %v2066
      %v2248 = vunpack.c.h.b16 %v2066
      %v2249 = vunpack.c.l.b16 %v2067
      %v2250 = vunpack.c.l.b16 %v2068
      %v2251 = vunpack.c.h.b16 %v2068
      %v2252 = vunpack.c.l.b16 %v2069
      %v2253 = vunpack.c.l.b16 %v2070
      %v2254 = vunpack.c.h.b16 %v2070
      %v2255 = vunpack.c.l.b16 %v2071
      %v2256 = vunpack.c.l.b16 %v2072
      %v2257 = vunpack.c.h.b16 %v2072
      %v2258 = vunpack.c.l.b16 %v2073
      %v2259 = vunpack.c.l.b16 %v2074
      %v2260 = vunpack.c.h.b16 %v2074
      %v2261 = vunpack.c.l.b16 %v2075
      %v2262 = vunpack.c.l.b16 %v2076
      %v2263 = vunpack.c.h.b16 %v2076
      %v2264 = vunpack.c.l.b16 %v2077
      %v2265 = vunpack.c.l.b16 %v2078
      %v2266 = vunpack.c.h.b16 %v2078
      %v2267 = vunpack.c.l.b16 %v2079
      %v2268 = vunpack.c.l.b16 %v2080
      %v2269 = vunpack.c.h.b16 %v2080
      %v2270 = vunpack.c.l.b16 %v2081
      %v2271 = vunpack.c.l.b16 %v2082
      %v2272 = vunpack.c.h.b16 %v2082
      %v2273 = vunpack.c.l.b16 %v2083
      %v2274 = vunpack.c.l.b16 %v2084
      %v2275 = vunpack.c.h.b16 %v2084
      %v2276 = vunpack.c.l.b16 %v2085
      %v2277 = vunpack.c.l.b16 %v2086
      %v2278 = vunpack.c.h.b16 %v2086
      %v2279 = vunpack.c.l.b16 %v2087
      %v2280 = vunpack.c.l.b16 %v2088
      %v2281 = vunpack.c.h.b16 %v2088
      %v2282 = vunpack.c.l.b16 %v2089
      %v2283 = vunpack.c.l.b16 %v2090
      %v2284 = vunpack.c.h.b16 %v2090
      %v2285 = vunpack.c.l.b16 %v2091
      %v2286 = vunpack.c.l.b16 %v2092
      %v2287 = vunpack.c.h.b16 %v2092
      %v2288 = vunpack.c.l.b16 %v2093
      %v2289 = vunpack.c.l.b16 %v2094
      %v2290 = vunpack.c.h.b16 %v2094
      %v2291 = vunpack.c.l.b16 %v2095
      %v2292 = vunpack.c.l.b16 %v2096
      %v2293 = vunpack.c.h.b16 %v2096
      %v2294 = vunpack.c.l.b16 %v2097
      %v2295 = vunpack.c.l.b16 %v2098
      %v2296 = vunpack.c.h.b16 %v2098
      %v2297 = vunpack.c.l.b16 %v2099
      %v2298 = vunpack.c.l.b16 %v2100
      %v2299 = vunpack.c.h.b16 %v2100
      %v2300 = vunpack.c.l.b16 %v2101
      %v2301 = vunpack.c.l.b16 %v2102
      %v2302 = vunpack.c.h.b16 %v2102
      %v2303 = vunpack.c.l.b16 %v2103
      %v2304 = vunpack.c.l.b16 %v2104
      %v2305 = vunpack.c.h.b16 %v2104
      %v2306 = vunpack.c.l.b16 %v2105
      %v2307 = vunpack.c.l.b16 %v2106
      %v2308 = vunpack.c.h.b16 %v2106
      %v2309 = vunpack.c.l.b16 %v2107
      %v2310 = vunpack.c.l.b16 %v2108
      %v2311 = vunpack.c.h.b16 %v2108
      %v2312 = vunpack.c.l.b16 %v2109
      %v2313 = vunpack.c.l.b16 %v2110
      %v2314 = vunpack.c.h.b16 %v2110
      %v2315 = vunpack.c.l.b16 %v2111
      %v2316 = vunpack.c.l.b16 %v2112
      %v2317 = vunpack.c.h.b16 %v2112
      %v2318 = vunpack.c.l.b16 %v2113
      %v2319 = vunpack.c.l.b16 %v2114
      %v2320 = vunpack.c.h.b16 %v2114
      %v2321 = vunpack.c.l.b16 %v2115
      %v2322 = vunpack.c.l.b16 %v2116
      %v2323 = vunpack.c.h.b16 %v2116
      %v2324 = vunpack.c.l.b16 %v2117
      %v2325 = vunpack.c.l.b16 %v2118
      %v2326 = vunpack.c.h.b16 %v2118
      %v2327 = vunpack.c.l.b16 %v2119
      %v2328 = vunpack.c.l.b16 %v2120
      %v2329 = vunpack.c.h.b16 %v2120
      %v2330 = vunpack.c.l.b16 %v2121
      %v2331 = vpack.c.b16 %v2238, %v2235
      %v2332 = vpack.c.b16 %v2239, %v2236
      %v2333 = vpack.c.b16 %v2240, %v2237
      %v2334 = vpack.c.b16 %v2244, %v2241
      %v2335 = vpack.c.b16 %v2245, %v2242
      %v2336 = vpack.c.b16 %v2246, %v2243
      %v2337 = vpack.c.b16 %v2250, %v2247
      %v2338 = vpack.c.b16 %v2251, %v2248
      %v2339 = vpack.c.b16 %v2252, %v2249
      %v2340 = vpack.c.b16 %v2256, %v2253
      %v2341 = vpack.c.b16 %v2257, %v2254
      %v2342 = vpack.c.b16 %v2258, %v2255
      %v2343 = vpack.c.b16 %v2262, %v2259
      %v2344 = vpack.c.b16 %v2263, %v2260
      %v2345 = vpack.c.b16 %v2264, %v2261
      %v2346 = vpack.c.b16 %v2268, %v2265
      %v2347 = vpack.c.b16 %v2269, %v2266
      %v2348 = vpack.c.b16 %v2270, %v2267
      %v2349 = vpack.c.b16 %v2274, %v2271
      %v2350 = vpack.c.b16 %v2275, %v2272
      %v2351 = vpack.c.b16 %v2276, %v2273
      %v2352 = vpack.c.b16 %v2280, %v2277
      %v2353 = vpack.c.b16 %v2281, %v2278
      %v2354 = vpack.c.b16 %v2282, %v2279
      %v2355 = vpack.c.b16 %v2286, %v2283
      %v2356 = vpack.c.b16 %v2287, %v2284
      %v2357 = vpack.c.b16 %v2288, %v2285
      %v2358 = vpack.c.b16 %v2292, %v2289
      %v2359 = vpack.c.b16 %v2293, %v2290
      %v2360 = vpack.c.b16 %v2294, %v2291
      %v2361 = vpack.c.b16 %v2298, %v2295
      %v2362 = vpack.c.b16 %v2299, %v2296
      %v2363 = vpack.c.b16 %v2300, %v2297
      %v2364 = vpack.c.b16 %v2304, %v2301
      %v2365 = vpack.c.b16 %v2305, %v2302
      %v2366 = vpack.c.b16 %v2306, %v2303
      %v2367 = vpack.c.b16 %v2310, %v2307
      %v2368 = vpack.c.b16 %v2311, %v2308
      %v2369 = vpack.c.b16 %v2312, %v2309
      %v2370 = vpack.c.b16 %v2316, %v2313
      %v2371 = vpack.c.b16 %v2317, %v2314
      %v2372 = vpack.c.b16 %v2318, %v2315
      %v2373 = vpack.c.b16 %v2322, %v2319
      %v2374 = vpack.c.b16 %v2323, %v2320
      %v2375 = vpack.c.b16 %v2324, %v2321
      %v2376 = vpack.c.b16 %v2328, %v2325
      %v2377 = vpack.c.b16 %v2329, %v2326
      %v2378 = vpack.c.b16 %v2330, %v2327
      %v2475 = vunpack.c.l.b16 %v2123
      %v2476 = vunpack.c.l.b16 %v2124
      %v2477 = vunpack.c.l.b16 %v2125
      %v2478 = vunpack.c.l.b16 %v2126
      %v2479 = vunpack.c.l.b16 %v2127
      %v2480 = vunpack.c.l.b16 %v2128
      %v2481 = vunpack.c.l.b16 %v2129
      %v2482 = vunpack.c.l.b16 %v2130
      %v2483 = vunpack.c.l.b16 %v2131
      %v2484 = vunpack.c.l.b16 %v2132
      %v2485 = vunpack.c.l.b16 %v2133
      %v2486 = vunpack.c.l.b16 %v2134
      %v2487 = vunpack.c.l.b16 %v2135
      %v2488 = vunpack.c.l.b16 %v2136
      %v2489 = vunpack.c.l.b16 %v2137
      %v2490 = vunpack.c.l.b16 %v2138
      %v2491 = vunpack.c.l.b16 %v2139
      %v2492 = vunpack.c.l.b16 %v2140
      %v2493 = vunpack.c.l.b16 %v2141
      %v2494 = vunpack.c.l.b16 %v2142
      %v2495 = vunpack.c.l.b16 %v2143
      %v2496 = vunpack.c.l.b16 %v2144
      %v2497 = vunpack.c.l.b16 %v2145
      %v2498 = vunpack.c.l.b16 %v2146
      %v2499 = vunpack.c.l.b16 %v2147
      %v2500 = vunpack.c.l.b16 %v2148
      %v2501 = vunpack.c.l.b16 %v2149
      %v2502 = vunpack.c.l.b16 %v2150
      %v2503 = vunpack.c.l.b16 %v2151
      %v2504 = vunpack.c.l.b16 %v2152
      %v2505 = vunpack.c.l.b16 %v2153
      %v2506 = vunpack.c.l.b16 %v2154
      %v2507 = vunpack.c.l.b16 %v2155
      %v2508 = vunpack.c.l.b16 %v2156
      %v2509 = vunpack.c.l.b16 %v2157
      %v2510 = vunpack.c.l.b16 %v2158
      %v2511 = vunpack.c.l.b16 %v2159
      %v2512 = vunpack.c.l.b16 %v2160
      %v2513 = vunpack.c.l.b16 %v2161
      %v2514 = vunpack.c.l.b16 %v2162
      %v2515 = vunpack.c.l.b16 %v2163
      %v2516 = vunpack.c.l.b16 %v2164
      %v2517 = vunpack.c.l.b16 %v2165
      %v2518 = vunpack.c.l.b16 %v2166
      %v2519 = vunpack.c.l.b16 %v2167
      %v2520 = vunpack.c.l.b16 %v2168
      %v2521 = vunpack.c.l.b16 %v2169
      %v2522 = vunpack.c.l.b16 %v2170
      %v2523 = vpack.c.b16 %v2476, %v2475
      %v2524 = vpack.c.b16 %v2478, %v2477
      %v2525 = vpack.c.b16 %v2480, %v2479
      %v2526 = vpack.c.b16 %v2482, %v2481
      %v2527 = vpack.c.b16 %v2484, %v2483
      %v2528 = vpack.c.b16 %v2486, %v2485
      %v2529 = vpack.c.b16 %v2488, %v2487
      %v2530 = vpack.c.b16 %v2490, %v2489
      %v2531 = vpack.c.b16 %v2492, %v2491
      %v2532 = vpack.c.b16 %v2494, %v2493
      %v2533 = vpack.c.b16 %v2496, %v2495
      %v2534 = vpack.c.b16 %v2498, %v2497
      %v2535 = vpack.c.b16 %v2500, %v2499
      %v2536 = vpack.c.b16 %v2502, %v2501
      %v2537 = vpack.c.b16 %v2504, %v2503
      %v2538 = vpack.c.b16 %v2506, %v2505
      %v2539 = vpack.c.b16 %v2508, %v2507
      %v2540 = vpack.c.b16 %v2510, %v2509
      %v2541 = vpack.c.b16 %v2512, %v2511
      %v2542 = vpack.c.b16 %v2514, %v2513
      %v2543 = vpack.c.b16 %v2516, %v2515
      %v2544 = vpack.c.b16 %v2518, %v2517
      %v2545 = vpack.c.b16 %v2520, %v2519
      %v2546 = vpack.c.b16 %v2522, %v2521
      %2571 = vmatprep.subr.bf16.mxu0 0
      %2572 = vmatpush1.bf16.msra.mxu0 %v2530
      %2573 = vmatprep.subr.bf16.mxu0 0
      %2574 = vmatpush1.bf16.msra.mxu0 %v2529
      %2575 = vmatprep.subr.bf16.mxu0 0
      %2576 = vmatpush1.bf16.msra.mxu0 %v2528
      %2577 = vmatprep.subr.bf16.mxu0 0
      %2578 = vmatpush1.bf16.msra.mxu0 %v2527
      %2579 = vmatprep.subr.bf16.mxu0 0
      %2580 = vmatpush1.bf16.msra.mxu0 %v2526
      %2581 = vmatprep.subr.bf16.mxu0 0
      %2582 = vmatpush1.bf16.msra.mxu0 %v2525
      %2583 = vmatprep.subr.bf16.mxu0 0
      %2584 = vmatpush1.bf16.msra.mxu0 %v2524
      %2585 = vmatprep.subr.bf16.mxu0 0
      %2586 = vmatpush1.bf16.msra.mxu0 %v2523
      %2587 = vmatprep.subr.bf16.mxu0 0
      %2588 = vmatpush2.bf16.msra.mxu0 %v2538
      %2589 = vmatprep.subr.bf16.mxu0 0
      %2590 = vmatpush2.bf16.msra.mxu0 %v2537
      %2591 = vmatprep.subr.bf16.mxu0 0
      %2592 = vmatpush2.bf16.msra.mxu0 %v2536
      %2593 = vmatprep.subr.bf16.mxu0 0
      %2594 = vmatpush2.bf16.msra.mxu0 %v2535
      %2595 = vmatprep.subr.bf16.mxu0 0
      %2596 = vmatpush2.bf16.msra.mxu0 %v2534
      %2597 = vmatprep.subr.bf16.mxu0 0
      %2598 = vmatpush2.bf16.msra.mxu0 %v2533
      %2599 = vmatprep.subr.bf16.mxu0 0
      %2600 = vmatpush2.bf16.msra.mxu0 %v2532
      %2601 = vmatprep.subr.bf16.mxu0 0
      %2602 = vmatpush2.bf16.msra.mxu0 %v2531
      %2603 = vmatprep.mubr.bf16.mxu0 %v2332
      %2604 = vmatmul.mubr.bf16.gmra.mxu0 %v2331
      %v2605 = vpop.f32.mrf.mxu0
      %v2606 = vadd.f32 0.0, %v2605
      %v2607 = vpop.f32.mrf.mxu0
      %v2608 = vpop.f32.mrf.mxu0
      %v2609 = vadd.f32 0.0, %v2608
      %v2610 = vpop.f32.mrf.mxu0
      %2611 = vmatprep.mubr.bf16.mxu0 %v2335
      %2612 = vmatmul.mubr.bf16.gmra.mxu0 %v2334
      %v2613 = vpop.f32.mrf.mxu0
      %v2614 = vadd.f32 0.0, %v2613
      %v2615 = vpop.f32.mrf.mxu0
      %v2616 = vpop.f32.mrf.mxu0
      %v2617 = vadd.f32 0.0, %v2616
      %v2618 = vpop.f32.mrf.mxu0
      %2619 = vmatprep.mubr.bf16.mxu0 %v2338
      %2620 = vmatmul.mubr.bf16.gmra.mxu0 %v2337
      %v2621 = vpop.f32.mrf.mxu0
      %v2622 = vadd.f32 0.0, %v2621
      %v2623 = vpop.f32.mrf.mxu0
      %v2624 = vpop.f32.mrf.mxu0
      %v2625 = vadd.f32 0.0, %v2624
      %v2626 = vpop.f32.mrf.mxu0
      %2627 = vmatprep.mubr.bf16.mxu0 %v2341
      %2628 = vmatmul.mubr.bf16.gmra.mxu0 %v2340
      %v2629 = vpop.f32.mrf.mxu0
      %v2630 = vadd.f32 0.0, %v2629
      %v2631 = vpop.f32.mrf.mxu0
      %v2632 = vpop.f32.mrf.mxu0
      %v2633 = vadd.f32 0.0, %v2632
      %v2634 = vpop.f32.mrf.mxu0
      %2635 = vmatprep.mubr.bf16.mxu0 %v2344
      %2636 = vmatmul.mubr.bf16.gmra.mxu0 %v2343
      %v2637 = vpop.f32.mrf.mxu0
      %v2638 = vadd.f32 0.0, %v2637
      %v2639 = vpop.f32.mrf.mxu0
      %v2640 = vpop.f32.mrf.mxu0
      %v2641 = vadd.f32 0.0, %v2640
      %v2642 = vpop.f32.mrf.mxu0
      %2643 = vmatprep.mubr.bf16.mxu0 %v2347
      %2644 = vmatmul.mubr.bf16.gmra.mxu0 %v2346
      %v2645 = vpop.f32.mrf.mxu0
      %v2646 = vadd.f32 0.0, %v2645
      %v2647 = vpop.f32.mrf.mxu0
      %v2648 = vpop.f32.mrf.mxu0
      %v2649 = vadd.f32 0.0, %v2648
      %v2650 = vpop.f32.mrf.mxu0
      %2651 = vmatprep.mubr.bf16.mxu0 %v2350
      %2652 = vmatmul.mubr.bf16.gmra.mxu0 %v2349
      %v2653 = vpop.f32.mrf.mxu0
      %v2654 = vadd.f32 0.0, %v2653
      %v2655 = vpop.f32.mrf.mxu0
      %v2656 = vpop.f32.mrf.mxu0
      %v2657 = vadd.f32 0.0, %v2656
      %v2658 = vpop.f32.mrf.mxu0
      %2659 = vmatprep.mubr.bf16.mxu0 %v2353
      %2660 = vmatmul.mubr.bf16.gmra.mxu0 %v2352
      %v2661 = vpop.f32.mrf.mxu0
      %v2662 = vadd.f32 0.0, %v2661
      %v2663 = vpop.f32.mrf.mxu0
      %v2664 = vpop.f32.mrf.mxu0
      %v2665 = vadd.f32 0.0, %v2664
      %v2666 = vpop.f32.mrf.mxu0
      %2667 = vmatprep.mubr.bf16.mxu0 %v2356
      %2668 = vmatmul.mubr.bf16.gmra.mxu0 %v2355
      %v2669 = vpop.f32.mrf.mxu0
      %v2670 = vadd.f32 0.0, %v2669
      %v2671 = vpop.f32.mrf.mxu0
      %v2672 = vpop.f32.mrf.mxu0
      %v2673 = vadd.f32 0.0, %v2672
      %v2674 = vpop.f32.mrf.mxu0
      %2675 = vmatprep.mubr.bf16.mxu0 %v2359
      %2676 = vmatmul.mubr.bf16.gmra.mxu0 %v2358
      %v2677 = vpop.f32.mrf.mxu0
      %v2678 = vadd.f32 0.0, %v2677
      %v2679 = vpop.f32.mrf.mxu0
      %v2680 = vpop.f32.mrf.mxu0
      %v2681 = vadd.f32 0.0, %v2680
      %v2682 = vpop.f32.mrf.mxu0
      %2683 = vmatprep.mubr.bf16.mxu0 %v2362
      %2684 = vmatmul.mubr.bf16.gmra.mxu0 %v2361
      %v2685 = vpop.f32.mrf.mxu0
      %v2686 = vadd.f32 0.0, %v2685
      %v2687 = vpop.f32.mrf.mxu0
      %v2688 = vpop.f32.mrf.mxu0
      %v2689 = vadd.f32 0.0, %v2688
      %v2690 = vpop.f32.mrf.mxu0
      %2691 = vmatprep.mubr.bf16.mxu0 %v2365
      %2692 = vmatmul.mubr.bf16.gmra.mxu0 %v2364
      %v2693 = vpop.f32.mrf.mxu0
      %v2694 = vadd.f32 0.0, %v2693
      %v2695 = vpop.f32.mrf.mxu0
      %v2696 = vpop.f32.mrf.mxu0
      %v2697 = vadd.f32 0.0, %v2696
      %v2698 = vpop.f32.mrf.mxu0
      %2699 = vmatprep.mubr.bf16.mxu0 %v2368
      %2700 = vmatmul.mubr.bf16.gmra.mxu0 %v2367
      %v2701 = vpop.f32.mrf.mxu0
      %v2702 = vadd.f32 0.0, %v2701
      %v2703 = vpop.f32.mrf.mxu0
      %v2704 = vpop.f32.mrf.mxu0
      %v2705 = vadd.f32 0.0, %v2704
      %v2706 = vpop.f32.mrf.mxu0
      %2707 = vmatprep.mubr.bf16.mxu0 %v2371
      %2708 = vmatmul.mubr.bf16.gmra.mxu0 %v2370
      %v2709 = vpop.f32.mrf.mxu0
      %v2710 = vadd.f32 0.0, %v2709
      %v2711 = vpop.f32.mrf.mxu0
      %v2712 = vpop.f32.mrf.mxu0
      %v2713 = vadd.f32 0.0, %v2712
      %v2714 = vpop.f32.mrf.mxu0
      %2715 = vmatprep.mubr.bf16.mxu0 %v2374
      %2716 = vmatmul.mubr.bf16.gmra.mxu0 %v2373
      %v2717 = vpop.f32.mrf.mxu0
      %v2718 = vadd.f32 0.0, %v2717
      %v2719 = vpop.f32.mrf.mxu0
      %v2720 = vpop.f32.mrf.mxu0
      %v2721 = vadd.f32 0.0, %v2720
      %v2722 = vpop.f32.mrf.mxu0
      %2723 = vmatprep.mubr.bf16.mxu0 %v2377
      %2724 = vmatmul.mubr.bf16.gmra.mxu0 %v2376
      %v2725 = vpop.f32.mrf.mxu0
      %v2726 = vadd.f32 0.0, %v2725
      %v2727 = vpop.f32.mrf.mxu0
      %v2728 = vpop.f32.mrf.mxu0
      %v2729 = vadd.f32 0.0, %v2728
      %v2730 = vpop.f32.mrf.mxu0
      %2731 = vdwg.mxu0
      %2732 = vmatprep.subr.bf16.mxu0 0
      %2733 = vmatpush1.bf16.msra.mxu0 %v2546
      %2734 = vmatprep.subr.bf16.mxu0 0
      %2735 = vmatpush1.bf16.msra.mxu0 %v2545
      %2736 = vmatprep.subr.bf16.mxu0 0
      %2737 = vmatpush1.bf16.msra.mxu0 %v2544
      %2738 = vmatprep.subr.bf16.mxu0 0
      %2739 = vmatpush1.bf16.msra.mxu0 %v2543
      %2740 = vmatprep.subr.bf16.mxu0 0
      %2741 = vmatpush1.bf16.msra.mxu0 %v2542
      %2742 = vmatprep.subr.bf16.mxu0 0
      %2743 = vmatpush1.bf16.msra.mxu0 %v2541
      %2744 = vmatprep.subr.bf16.mxu0 0
      %2745 = vmatpush1.bf16.msra.mxu0 %v2540
      %2746 = vmatprep.subr.bf16.mxu0 0
      %2747 = vmatpush1.bf16.msra.mxu0 %v2539
      %2748 = vmatprep.subr.bf16.mxu0 0
      %2749 = vmatpush2.bf16.msra.mxu0 0
      %2750 = vmatprep.subr.bf16.mxu0 0
      %2751 = vmatpush2.bf16.msra.mxu0 0
      %2752 = vmatprep.subr.bf16.mxu0 0
      %2753 = vmatpush2.bf16.msra.mxu0 0
      %2754 = vmatprep.subr.bf16.mxu0 0
      %2755 = vmatpush2.bf16.msra.mxu0 0
      %2756 = vmatprep.subr.bf16.mxu0 0
      %2757 = vmatpush2.bf16.msra.mxu0 0
      %2758 = vmatprep.subr.bf16.mxu0 0
      %2759 = vmatpush2.bf16.msra.mxu0 0
      %2760 = vmatprep.subr.bf16.mxu0 0
      %2761 = vmatpush2.bf16.msra.mxu0 0
      %2762 = vmatprep.subr.bf16.mxu0 0
      %2763 = vmatpush2.bf16.msra.mxu0 0
      %2764 = vmatprep.mubr.bf16.mxu0 0
      %2765 = vmatmul.mubr.bf16.gmra.mxu0 %v2333
      %v2766 = vpop.f32.mrf.mxu0
      %v2767 = vadd.f32 %v2606, %v2766
      %v2768 = vpop.f32.mrf.mxu0
      %v2769 = vpop.f32.mrf.mxu0
      %v2770 = vadd.f32 %v2609, %v2769
      %v2771 = vpop.f32.mrf.mxu0
      %2772 = vmatprep.mubr.bf16.mxu0 0
      %2773 = vmatmul.mubr.bf16.gmra.mxu0 %v2336
      %v2774 = vpop.f32.mrf.mxu0
      %v2775 = vadd.f32 %v2614, %v2774
      %v2776 = vpop.f32.mrf.mxu0
      %v2777 = vpop.f32.mrf.mxu0
      %v2778 = vadd.f32 %v2617, %v2777
      %v2779 = vpop.f32.mrf.mxu0
      %2780 = vmatprep.mubr.bf16.mxu0 0
      %2781 = vmatmul.mubr.bf16.gmra.mxu0 %v2339
      %v2782 = vpop.f32.mrf.mxu0
      %v2783 = vadd.f32 %v2622, %v2782
      %v2784 = vpop.f32.mrf.mxu0
      %v2785 = vpop.f32.mrf.mxu0
      %v2786 = vadd.f32 %v2625, %v2785
      %v2787 = vpop.f32.mrf.mxu0
      %2788 = vmatprep.mubr.bf16.mxu0 0
      %2789 = vmatmul.mubr.bf16.gmra.mxu0 %v2342
      %v2790 = vpop.f32.mrf.mxu0
      %v2791 = vadd.f32 %v2630, %v2790
      %v2792 = vpop.f32.mrf.mxu0
      %v2793 = vpop.f32.mrf.mxu0
      %v2794 = vadd.f32 %v2633, %v2793
      %v2795 = vpop.f32.mrf.mxu0
      %2796 = vmatprep.mubr.bf16.mxu0 0
      %2797 = vmatmul.mubr.bf16.gmra.mxu0 %v2345
      %v2798 = vpop.f32.mrf.mxu0
      %v2799 = vadd.f32 %v2638, %v2798
      %v2800 = vpop.f32.mrf.mxu0
      %v2801 = vpop.f32.mrf.mxu0
      %v2802 = vadd.f32 %v2641, %v2801
      %v2803 = vpop.f32.mrf.mxu0
      %2804 = vmatprep.mubr.bf16.mxu0 0
      %2805 = vmatmul.mubr.bf16.gmra.mxu0 %v2348
      %v2806 = vpop.f32.mrf.mxu0
      %v2807 = vadd.f32 %v2646, %v2806
      %v2808 = vpop.f32.mrf.mxu0
      %v2809 = vpop.f32.mrf.mxu0
      %v2810 = vadd.f32 %v2649, %v2809
      %v2811 = vpop.f32.mrf.mxu0
      %2812 = vmatprep.mubr.bf16.mxu0 0
      %2813 = vmatmul.mubr.bf16.gmra.mxu0 %v2351
      %v2814 = vpop.f32.mrf.mxu0
      %v2815 = vadd.f32 %v2654, %v2814
      %v2816 = vpop.f32.mrf.mxu0
      %v2817 = vpop.f32.mrf.mxu0
      %v2818 = vadd.f32 %v2657, %v2817
      %v2819 = vpop.f32.mrf.mxu0
      %2820 = vmatprep.mubr.bf16.mxu0 0
      %2821 = vmatmul.mubr.bf16.gmra.mxu0 %v2354
      %v2822 = vpop.f32.mrf.mxu0
      %v2823 = vadd.f32 %v2662, %v2822
      %v2824 = vpop.f32.mrf.mxu0
      %v2825 = vpop.f32.mrf.mxu0
      %v2826 = vadd.f32 %v2665, %v2825
      %v2827 = vpop.f32.mrf.mxu0
      %2828 = vmatprep.mubr.bf16.mxu0 0
      %2829 = vmatmul.mubr.bf16.gmra.mxu0 %v2357
      %v2830 = vpop.f32.mrf.mxu0
      %v2831 = vadd.f32 %v2670, %v2830
      %v2832 = vpop.f32.mrf.mxu0
      %v2833 = vpop.f32.mrf.mxu0
      %v2834 = vadd.f32 %v2673, %v2833
      %v2835 = vpop.f32.mrf.mxu0
      %2836 = vmatprep.mubr.bf16.mxu0 0
      %2837 = vmatmul.mubr.bf16.gmra.mxu0 %v2360
      %v2838 = vpop.f32.mrf.mxu0
      %v2839 = vadd.f32 %v2678, %v2838
      %v2840 = vpop.f32.mrf.mxu0
      %v2841 = vpop.f32.mrf.mxu0
      %v2842 = vadd.f32 %v2681, %v2841
      %v2843 = vpop.f32.mrf.mxu0
      %2844 = vmatprep.mubr.bf16.mxu0 0
      %2845 = vmatmul.mubr.bf16.gmra.mxu0 %v2363
      %v2846 = vpop.f32.mrf.mxu0
      %v2847 = vadd.f32 %v2686, %v2846
      %v2848 = vpop.f32.mrf.mxu0
      %v2849 = vpop.f32.mrf.mxu0
      %v2850 = vadd.f32 %v2689, %v2849
      %v2851 = vpop.f32.mrf.mxu0
      %2852 = vmatprep.mubr.bf16.mxu0 0
      %2853 = vmatmul.mubr.bf16.gmra.mxu0 %v2366
      %v2854 = vpop.f32.mrf.mxu0
      %v2855 = vadd.f32 %v2694, %v2854
      %v2856 = vpop.f32.mrf.mxu0
      %v2857 = vpop.f32.mrf.mxu0
      %v2858 = vadd.f32 %v2697, %v2857
      %v2859 = vpop.f32.mrf.mxu0
      %2860 = vmatprep.mubr.bf16.mxu0 0
      %2861 = vmatmul.mubr.bf16.gmra.mxu0 %v2369
      %v2862 = vpop.f32.mrf.mxu0
      %v2863 = vadd.f32 %v2702, %v2862
      %v2864 = vpop.f32.mrf.mxu0
      %v2865 = vpop.f32.mrf.mxu0
      %v2866 = vadd.f32 %v2705, %v2865
      %v2867 = vpop.f32.mrf.mxu0
      %2868 = vmatprep.mubr.bf16.mxu0 0
      %2869 = vmatmul.mubr.bf16.gmra.mxu0 %v2372
      %v2870 = vpop.f32.mrf.mxu0
      %v2871 = vadd.f32 %v2710, %v2870
      %v2872 = vpop.f32.mrf.mxu0
      %v2873 = vpop.f32.mrf.mxu0
      %v2874 = vadd.f32 %v2713, %v2873
      %v2875 = vpop.f32.mrf.mxu0
      %2876 = vmatprep.mubr.bf16.mxu0 0
      %2877 = vmatmul.mubr.bf16.gmra.mxu0 %v2375
      %v2878 = vpop.f32.mrf.mxu0
      %v2879 = vadd.f32 %v2718, %v2878
      %v2880 = vpop.f32.mrf.mxu0
      %v2881 = vpop.f32.mrf.mxu0
      %v2882 = vadd.f32 %v2721, %v2881
      %v2883 = vpop.f32.mrf.mxu0
      %2884 = vmatprep.mubr.bf16.mxu0 0
      %2885 = vmatmul.mubr.bf16.gmra.mxu0 %v2378
      %v2886 = vpop.f32.mrf.mxu0
      %v2887 = vadd.f32 %v2726, %v2886
      %v2888 = vpop.f32.mrf.mxu0
      %v2889 = vpop.f32.mrf.mxu0
      %v2890 = vadd.f32 %v2729, %v2889
      %v2891 = vpop.f32.mrf.mxu0
      %2892 = vdwg.mxu0
      %v2893 = vadd.f32 %v2025, %v2767
      %v2894 = vadd.f32 %v2026, %v2770
      %v2895 = vadd.f32 %v2027, %v2775
      %v2896 = vadd.f32 %v2028, %v2778
      %v2897 = vadd.f32 %v2029, %v2783
      %v2898 = vadd.f32 %v2030, %v2786
      %v2899 = vadd.f32 %v2031, %v2791
      %v2900 = vadd.f32 %v2032, %v2794
      %v2901 = vadd.f32 %v2033, %v2799
      %v2902 = vadd.f32 %v2034, %v2802
      %v2903 = vadd.f32 %v2035, %v2807
      %v2904 = vadd.f32 %v2036, %v2810
      %v2905 = vadd.f32 %v2037, %v2815
      %v2906 = vadd.f32 %v2038, %v2818
      %v2907 = vadd.f32 %v2039, %v2823
      %v2908 = vadd.f32 %v2040, %v2826
      %v2909 = vadd.f32 %v2041, %v2831
      %v2910 = vadd.f32 %v2042, %v2834
      %v2911 = vadd.f32 %v2043, %v2839
      %v2912 = vadd.f32 %v2044, %v2842
      %v2913 = vadd.f32 %v2045, %v2847
      %v2914 = vadd.f32 %v2046, %v2850
      %v2915 = vadd.f32 %v2047, %v2855
      %v2916 = vadd.f32 %v2048, %v2858
      %v2917 = vadd.f32 %v2049, %v2863
      %v2918 = vadd.f32 %v2050, %v2866
      %v2919 = vadd.f32 %v2051, %v2871
      %v2920 = vadd.f32 %v2052, %v2874
      %v2921 = vadd.f32 %v2053, %v2879
      %v2922 = vadd.f32 %v2054, %v2882
      %v2923 = vadd.f32 %v2055, %v2887
      %v2924 = vadd.f32 %v2056, %v2890
      %2925 = vst [vmem:[#allocation3] sm:$0xff] %v2893
      %2926 = vst [vmem:[#allocation3 + $0x8] sm:$0xff] %v2894
      %2927 = vst [vmem:[#allocation3 + $0x10] sm:$0xff] %v2895
      %2928 = vst [vmem:[#allocation3 + $0x18] sm:$0xff] %v2896
      %2929 = vst [vmem:[#allocation3 + $0x20] sm:$0xff] %v2897
      %2930 = vst [vmem:[#allocation3 + $0x28] sm:$0xff] %v2898
      %2931 = vst [vmem:[#allocation3 + $0x30] sm:$0xff] %v2899
      %2932 = vst [vmem:[#allocation3 + $0x38] sm:$0xff] %v2900
      %2933 = vst [vmem:[#allocation3 + $0x40] sm:$0xff] %v2901
      %2934 = vst [vmem:[#allocation3 + $0x48] sm:$0xff] %v2902
      %2935 = vst [vmem:[#allocation3 + $0x50] sm:$0xff] %v2903
      %2936 = vst [vmem:[#allocation3 + $0x58] sm:$0xff] %v2904
      %2937 = vst [vmem:[#allocation3 + $0x60] sm:$0xff] %v2905
      %2938 = vst [vmem:[#allocation3 + $0x68] sm:$0xff] %v2906
      %2939 = vst [vmem:[#allocation3 + $0x70] sm:$0xff] %v2907
      %2940 = vst [vmem:[#allocation3 + $0x78] sm:$0xff] %v2908
      %2941 = vst [vmem:[#allocation3 + $0x80] sm:$0xff] %v2909
      %2942 = vst [vmem:[#allocation3 + $0x88] sm:$0xff] %v2910
      %2943 = vst [vmem:[#allocation3 + $0x90] sm:$0xff] %v2911
      %2944 = vst [vmem:[#allocation3 + $0x98] sm:$0xff] %v2912
      %2945 = vst [vmem:[#allocation3 + $0xa0] sm:$0xff] %v2913
      %2946 = vst [vmem:[#allocation3 + $0xa8] sm:$0xff] %v2914
      %2947 = vst [vmem:[#allocation3 + $0xb0] sm:$0xff] %v2915
      %2948 = vst [vmem:[#allocation3 + $0xb8] sm:$0xff] %v2916
      %2949 = vst [vmem:[#allocation3 + $0xc0] sm:$0xff] %v2917
      %2950 = vst [vmem:[#allocation3 + $0xc8] sm:$0xff] %v2918
      %2951 = vst [vmem:[#allocation3 + $0xd0] sm:$0xff] %v2919
      %2952 = vst [vmem:[#allocation3 + $0xd8] sm:$0xff] %v2920
      %2953 = vst [vmem:[#allocation3 + $0xe0] sm:$0xff] %v2921
      %2954 = vst [vmem:[#allocation3 + $0xe8] sm:$0xff] %v2922
      %2955 = vst [vmem:[#allocation3 + $0xf0] sm:$0xff] %v2923
      %2956 = vst [vmem:[#allocation3 + $0xf8] sm:$0xff] %v2924
      %v2957 = vld [vmem:[#allocation3] sm:$0xff]
      %v2958 = vld [vmem:[#allocation3 + $0x8] sm:$0xff]
      %v2959 = vld [vmem:[#allocation3 + $0x10] sm:$0xff]
      %v2960 = vld [vmem:[#allocation3 + $0x18] sm:$0xff]
      %v2961 = vld [vmem:[#allocation3 + $0x20] sm:$0xff]
      %v2962 = vld [vmem:[#allocation3 + $0x28] sm:$0xff]
      %v2963 = vld [vmem:[#allocation3 + $0x30] sm:$0xff]
      %v2964 = vld [vmem:[#allocation3 + $0x38] sm:$0xff]
      %v2965 = vld [vmem:[#allocation3 + $0x40] sm:$0xff]
      %v2966 = vld [vmem:[#allocation3 + $0x48] sm:$0xff]
      %v2967 = vld [vmem:[#allocation3 + $0x50] sm:$0xff]
      %v2968 = vld [vmem:[#allocation3 + $0x58] sm:$0xff]
      %v2969 = vld [vmem:[#allocation3 + $0x60] sm:$0xff]
      %v2970 = vld [vmem:[#allocation3 + $0x68] sm:$0xff]
      %v2971 = vld [vmem:[#allocation3 + $0x70] sm:$0xff]
      %v2972 = vld [vmem:[#allocation3 + $0x78] sm:$0xff]
      %v2973 = vld [vmem:[#allocation3 + $0x80] sm:$0xff]
      %v2974 = vld [vmem:[#allocation3 + $0x88] sm:$0xff]
      %v2975 = vld [vmem:[#allocation3 + $0x90] sm:$0xff]
      %v2976 = vld [vmem:[#allocation3 + $0x98] sm:$0xff]
      %v2977 = vld [vmem:[#allocation3 + $0xa0] sm:$0xff]
      %v2978 = vld [vmem:[#allocation3 + $0xa8] sm:$0xff]
      %v2979 = vld [vmem:[#allocation3 + $0xb0] sm:$0xff]
      %v2980 = vld [vmem:[#allocation3 + $0xb8] sm:$0xff]
      %v2981 = vld [vmem:[#allocation3 + $0xc0] sm:$0xff]
      %v2982 = vld [vmem:[#allocation3 + $0xc8] sm:$0xff]
      %v2983 = vld [vmem:[#allocation3 + $0xd0] sm:$0xff]
      %v2984 = vld [vmem:[#allocation3 + $0xd8] sm:$0xff]
      %v2985 = vld [vmem:[#allocation3 + $0xe0] sm:$0xff]
      %v2986 = vld [vmem:[#allocation3 + $0xe8] sm:$0xff]
      %v2987 = vld [vmem:[#allocation3 + $0xf0] sm:$0xff]
      %v2988 = vld [vmem:[#allocation3 + $0xf8] sm:$0xff]
      %s2989 = scalar_lea.vmem [#allocation2], 48
      %v2990 = vld [vmem:[%s2989] sm:$0xff]
      %v2991 = vld [vmem:[%s2989 + $0x8] sm:$0xf]
      %v2992 = vld [vmem:[%s2989 + $0xc] sm:$0xff]
      %v2993 = vld [vmem:[%s2989 + $0x14] sm:$0xf]
      %v2994 = vld [vmem:[%s2989 + $0x18] sm:$0xff]
      %v2995 = vld [vmem:[%s2989 + $0x20] sm:$0xf]
      %v2996 = vld [vmem:[%s2989 + $0x24] sm:$0xff]
      %v2997 = vld [vmem:[%s2989 + $0x2c] sm:$0xf]
      %v2998 = vld [vmem:[%s2989 + $0x30] sm:$0xff]
      %v2999 = vld [vmem:[%s2989 + $0x38] sm:$0xf]
      %v3000 = vld [vmem:[%s2989 + $0x3c] sm:$0xff]
      %v3001 = vld [vmem:[%s2989 + $0x44] sm:$0xf]
      %v3002 = vld [vmem:[%s2989 + $0x48] sm:$0xff]
      %v3003 = vld [vmem:[%s2989 + $0x50] sm:$0xf]
      %v3004 = vld [vmem:[%s2989 + $0x54] sm:$0xff]
      %v3005 = vld [vmem:[%s2989 + $0x5c] sm:$0xf]
      %v3006 = vld [vmem:[%s2989 + $0x60] sm:$0xff]
      %v3007 = vld [vmem:[%s2989 + $0x68] sm:$0xf]
      %v3008 = vld [vmem:[%s2989 + $0x6c] sm:$0xff]
      %v3009 = vld [vmem:[%s2989 + $0x74] sm:$0xf]
      %v3010 = vld [vmem:[%s2989 + $0x78] sm:$0xff]
      %v3011 = vld [vmem:[%s2989 + $0x80] sm:$0xf]
      %v3012 = vld [vmem:[%s2989 + $0x84] sm:$0xff]
      %v3013 = vld [vmem:[%s2989 + $0x8c] sm:$0xf]
      %v3014 = vld [vmem:[%s2989 + $0x90] sm:$0xff]
      %v3015 = vld [vmem:[%s2989 + $0x98] sm:$0xf]
      %v3016 = vld [vmem:[%s2989 + $0x9c] sm:$0xff]
      %v3017 = vld [vmem:[%s2989 + $0xa4] sm:$0xf]
      %v3018 = vld [vmem:[%s2989 + $0xa8] sm:$0xff]
      %v3019 = vld [vmem:[%s2989 + $0xb0] sm:$0xf]
      %v3020 = vld [vmem:[%s2989 + $0xb4] sm:$0xff]
      %v3021 = vld [vmem:[%s2989 + $0xbc] sm:$0xf]
      %v3022 = vld [vmem:[%s2989 + $0xc0] sm:$0xff]
      %v3023 = vld [vmem:[%s2989 + $0xc8] sm:$0xf]
      %v3024 = vld [vmem:[%s2989 + $0xcc] sm:$0xff]
      %v3025 = vld [vmem:[%s2989 + $0xd4] sm:$0xf]
      %v3026 = vld [vmem:[%s2989 + $0xd8] sm:$0xff]
      %v3027 = vld [vmem:[%s2989 + $0xe0] sm:$0xf]
      %v3028 = vld [vmem:[%s2989 + $0xe4] sm:$0xff]
      %v3029 = vld [vmem:[%s2989 + $0xec] sm:$0xf]
      %v3030 = vld [vmem:[%s2989 + $0xf0] sm:$0xff]
      %v3031 = vld [vmem:[%s2989 + $0xf8] sm:$0xf]
      %v3032 = vld [vmem:[%s2989 + $0xfc] sm:$0xff]
      %v3033 = vld [vmem:[%s2989 + $0x104] sm:$0xf]
      %v3034 = vld [vmem:[%s2989 + $0x108] sm:$0xff]
      %v3035 = vld [vmem:[%s2989 + $0x110] sm:$0xf]
      %v3036 = vld [vmem:[%s2989 + $0x114] sm:$0xff]
      %v3037 = vld [vmem:[%s2989 + $0x11c] sm:$0xf]
      %v3038 = vld [vmem:[%s2989 + $0x120] sm:$0xff]
      %v3039 = vld [vmem:[%s2989 + $0x128] sm:$0xf]
      %v3040 = vld [vmem:[%s2989 + $0x12c] sm:$0xff]
      %v3041 = vld [vmem:[%s2989 + $0x134] sm:$0xf]
      %v3042 = vld [vmem:[%s2989 + $0x138] sm:$0xff]
      %v3043 = vld [vmem:[%s2989 + $0x140] sm:$0xf]
      %v3044 = vld [vmem:[%s2989 + $0x144] sm:$0xff]
      %v3045 = vld [vmem:[%s2989 + $0x14c] sm:$0xf]
      %v3046 = vld [vmem:[%s2989 + $0x150] sm:$0xff]
      %v3047 = vld [vmem:[%s2989 + $0x158] sm:$0xf]
      %v3048 = vld [vmem:[%s2989 + $0x15c] sm:$0xff]
      %v3049 = vld [vmem:[%s2989 + $0x164] sm:$0xf]
      %v3050 = vld [vmem:[%s2989 + $0x168] sm:$0xff]
      %v3051 = vld [vmem:[%s2989 + $0x170] sm:$0xf]
      %v3052 = vld [vmem:[%s2989 + $0x174] sm:$0xff]
      %v3053 = vld [vmem:[%s2989 + $0x17c] sm:$0xf]
      %s3054 = scalar_lea.vmem %s1, 384
      %v3055 = vld [vmem:[%s3054] sm:$0xf]
      %v3056 = vld [vmem:[%s3054 + $0x4] sm:$0xf]
      %v3057 = vld [vmem:[%s3054 + $0x8] sm:$0xf]
      %v3058 = vld [vmem:[%s3054 + $0xc] sm:$0xf]
      %v3059 = vld [vmem:[%s3054 + $0x10] sm:$0xf]
      %v3060 = vld [vmem:[%s3054 + $0x14] sm:$0xf]
      %v3061 = vld [vmem:[%s3054 + $0x18] sm:$0xf]
      %v3062 = vld [vmem:[%s3054 + $0x1c] sm:$0xf]
      %v3063 = vld [vmem:[%s3054 + $0x20] sm:$0xf]
      %v3064 = vld [vmem:[%s3054 + $0x24] sm:$0xf]
      %v3065 = vld [vmem:[%s3054 + $0x28] sm:$0xf]
      %v3066 = vld [vmem:[%s3054 + $0x2c] sm:$0xf]
      %v3067 = vld [vmem:[%s3054 + $0x30] sm:$0xf]
      %v3068 = vld [vmem:[%s3054 + $0x34] sm:$0xf]
      %v3069 = vld [vmem:[%s3054 + $0x38] sm:$0xf]
      %v3070 = vld [vmem:[%s3054 + $0x3c] sm:$0xf]
      %v3071 = vld [vmem:[%s3054 + $0x40] sm:$0xf]
      %v3072 = vld [vmem:[%s3054 + $0x44] sm:$0xf]
      %v3073 = vld [vmem:[%s3054 + $0x48] sm:$0xf]
      %v3074 = vld [vmem:[%s3054 + $0x4c] sm:$0xf]
      %v3075 = vld [vmem:[%s3054 + $0x50] sm:$0xf]
      %v3076 = vld [vmem:[%s3054 + $0x54] sm:$0xf]
      %v3077 = vld [vmem:[%s3054 + $0x58] sm:$0xf]
      %v3078 = vld [vmem:[%s3054 + $0x5c] sm:$0xf]
      %v3079 = vld [vmem:[%s3054 + $0x60] sm:$0xf]
      %v3080 = vld [vmem:[%s3054 + $0x64] sm:$0xf]
      %v3081 = vld [vmem:[%s3054 + $0x68] sm:$0xf]
      %v3082 = vld [vmem:[%s3054 + $0x6c] sm:$0xf]
      %v3083 = vld [vmem:[%s3054 + $0x70] sm:$0xf]
      %v3084 = vld [vmem:[%s3054 + $0x74] sm:$0xf]
      %v3085 = vld [vmem:[%s3054 + $0x78] sm:$0xf]
      %v3086 = vld [vmem:[%s3054 + $0x7c] sm:$0xf]
      %v3087 = vld [vmem:[%s3054 + $0x80] sm:$0xf]
      %v3088 = vld [vmem:[%s3054 + $0x84] sm:$0xf]
      %v3089 = vld [vmem:[%s3054 + $0x88] sm:$0xf]
      %v3090 = vld [vmem:[%s3054 + $0x8c] sm:$0xf]
      %v3091 = vld [vmem:[%s3054 + $0x90] sm:$0xf]
      %v3092 = vld [vmem:[%s3054 + $0x94] sm:$0xf]
      %v3093 = vld [vmem:[%s3054 + $0x98] sm:$0xf]
      %v3094 = vld [vmem:[%s3054 + $0x9c] sm:$0xf]
      %v3095 = vld [vmem:[%s3054 + $0xa0] sm:$0xf]
      %v3096 = vld [vmem:[%s3054 + $0xa4] sm:$0xf]
      %v3097 = vld [vmem:[%s3054 + $0xa8] sm:$0xf]
      %v3098 = vld [vmem:[%s3054 + $0xac] sm:$0xf]
      %v3099 = vld [vmem:[%s3054 + $0xb0] sm:$0xf]
      %v3100 = vld [vmem:[%s3054 + $0xb4] sm:$0xf]
      %v3101 = vld [vmem:[%s3054 + $0xb8] sm:$0xf]
      %v3102 = vld [vmem:[%s3054 + $0xbc] sm:$0xf]
      %v3167 = vunpack.c.l.b16 %v2990
      %v3168 = vunpack.c.h.b16 %v2990
      %v3169 = vunpack.c.l.b16 %v2991
      %v3170 = vunpack.c.l.b16 %v2992
      %v3171 = vunpack.c.h.b16 %v2992
      %v3172 = vunpack.c.l.b16 %v2993
      %v3173 = vunpack.c.l.b16 %v2994
      %v3174 = vunpack.c.h.b16 %v2994
      %v3175 = vunpack.c.l.b16 %v2995
      %v3176 = vunpack.c.l.b16 %v2996
      %v3177 = vunpack.c.h.b16 %v2996
      %v3178 = vunpack.c.l.b16 %v2997
      %v3179 = vunpack.c.l.b16 %v2998
      %v3180 = vunpack.c.h.b16 %v2998
      %v3181 = vunpack.c.l.b16 %v2999
      %v3182 = vunpack.c.l.b16 %v3000
      %v3183 = vunpack.c.h.b16 %v3000
      %v3184 = vunpack.c.l.b16 %v3001
      %v3185 = vunpack.c.l.b16 %v3002
      %v3186 = vunpack.c.h.b16 %v3002
      %v3187 = vunpack.c.l.b16 %v3003
      %v3188 = vunpack.c.l.b16 %v3004
      %v3189 = vunpack.c.h.b16 %v3004
      %v3190 = vunpack.c.l.b16 %v3005
      %v3191 = vunpack.c.l.b16 %v3006
      %v3192 = vunpack.c.h.b16 %v3006
      %v3193 = vunpack.c.l.b16 %v3007
      %v3194 = vunpack.c.l.b16 %v3008
      %v3195 = vunpack.c.h.b16 %v3008
      %v3196 = vunpack.c.l.b16 %v3009
      %v3197 = vunpack.c.l.b16 %v3010
      %v3198 = vunpack.c.h.b16 %v3010
      %v3199 = vunpack.c.l.b16 %v3011
      %v3200 = vunpack.c.l.b16 %v3012
      %v3201 = vunpack.c.h.b16 %v3012
      %v3202 = vunpack.c.l.b16 %v3013
      %v3203 = vunpack.c.l.b16 %v3014
      %v3204 = vunpack.c.h.b16 %v3014
      %v3205 = vunpack.c.l.b16 %v3015
      %v3206 = vunpack.c.l.b16 %v3016
      %v3207 = vunpack.c.h.b16 %v3016
      %v3208 = vunpack.c.l.b16 %v3017
      %v3209 = vunpack.c.l.b16 %v3018
      %v3210 = vunpack.c.h.b16 %v3018
      %v3211 = vunpack.c.l.b16 %v3019
      %v3212 = vunpack.c.l.b16 %v3020
      %v3213 = vunpack.c.h.b16 %v3020
      %v3214 = vunpack.c.l.b16 %v3021
      %v3215 = vunpack.c.l.b16 %v3022
      %v3216 = vunpack.c.h.b16 %v3022
      %v3217 = vunpack.c.l.b16 %v3023
      %v3218 = vunpack.c.l.b16 %v3024
      %v3219 = vunpack.c.h.b16 %v3024
      %v3220 = vunpack.c.l.b16 %v3025
      %v3221 = vunpack.c.l.b16 %v3026
      %v3222 = vunpack.c.h.b16 %v3026
      %v3223 = vunpack.c.l.b16 %v3027
      %v3224 = vunpack.c.l.b16 %v3028
      %v3225 = vunpack.c.h.b16 %v3028
      %v3226 = vunpack.c.l.b16 %v3029
      %v3227 = vunpack.c.l.b16 %v3030
      %v3228 = vunpack.c.h.b16 %v3030
      %v3229 = vunpack.c.l.b16 %v3031
      %v3230 = vunpack.c.l.b16 %v3032
      %v3231 = vunpack.c.h.b16 %v3032
      %v3232 = vunpack.c.l.b16 %v3033
      %v3233 = vunpack.c.l.b16 %v3034
      %v3234 = vunpack.c.h.b16 %v3034
      %v3235 = vunpack.c.l.b16 %v3035
      %v3236 = vunpack.c.l.b16 %v3036
      %v3237 = vunpack.c.h.b16 %v3036
      %v3238 = vunpack.c.l.b16 %v3037
      %v3239 = vunpack.c.l.b16 %v3038
      %v3240 = vunpack.c.h.b16 %v3038
      %v3241 = vunpack.c.l.b16 %v3039
      %v3242 = vunpack.c.l.b16 %v3040
      %v3243 = vunpack.c.h.b16 %v3040
      %v3244 = vunpack.c.l.b16 %v3041
      %v3245 = vunpack.c.l.b16 %v3042
      %v3246 = vunpack.c.h.b16 %v3042
      %v3247 = vunpack.c.l.b16 %v3043
      %v3248 = vunpack.c.l.b16 %v3044
      %v3249 = vunpack.c.h.b16 %v3044
      %v3250 = vunpack.c.l.b16 %v3045
      %v3251 = vunpack.c.l.b16 %v3046
      %v3252 = vunpack.c.h.b16 %v3046
      %v3253 = vunpack.c.l.b16 %v3047
      %v3254 = vunpack.c.l.b16 %v3048
      %v3255 = vunpack.c.h.b16 %v3048
      %v3256 = vunpack.c.l.b16 %v3049
      %v3257 = vunpack.c.l.b16 %v3050
      %v3258 = vunpack.c.h.b16 %v3050
      %v3259 = vunpack.c.l.b16 %v3051
      %v3260 = vunpack.c.l.b16 %v3052
      %v3261 = vunpack.c.h.b16 %v3052
      %v3262 = vunpack.c.l.b16 %v3053
      %v3263 = vpack.c.b16 %v3170, %v3167
      %v3264 = vpack.c.b16 %v3171, %v3168
      %v3265 = vpack.c.b16 %v3172, %v3169
      %v3266 = vpack.c.b16 %v3176, %v3173
      %v3267 = vpack.c.b16 %v3177, %v3174
      %v3268 = vpack.c.b16 %v3178, %v3175
      %v3269 = vpack.c.b16 %v3182, %v3179
      %v3270 = vpack.c.b16 %v3183, %v3180
      %v3271 = vpack.c.b16 %v3184, %v3181
      %v3272 = vpack.c.b16 %v3188, %v3185
      %v3273 = vpack.c.b16 %v3189, %v3186
      %v3274 = vpack.c.b16 %v3190, %v3187
      %v3275 = vpack.c.b16 %v3194, %v3191
      %v3276 = vpack.c.b16 %v3195, %v3192
      %v3277 = vpack.c.b16 %v3196, %v3193
      %v3278 = vpack.c.b16 %v3200, %v3197
      %v3279 = vpack.c.b16 %v3201, %v3198
      %v3280 = vpack.c.b16 %v3202, %v3199
      %v3281 = vpack.c.b16 %v3206, %v3203
      %v3282 = vpack.c.b16 %v3207, %v3204
      %v3283 = vpack.c.b16 %v3208, %v3205
      %v3284 = vpack.c.b16 %v3212, %v3209
      %v3285 = vpack.c.b16 %v3213, %v3210
      %v3286 = vpack.c.b16 %v3214, %v3211
      %v3287 = vpack.c.b16 %v3218, %v3215
      %v3288 = vpack.c.b16 %v3219, %v3216
      %v3289 = vpack.c.b16 %v3220, %v3217
      %v3290 = vpack.c.b16 %v3224, %v3221
      %v3291 = vpack.c.b16 %v3225, %v3222
      %v3292 = vpack.c.b16 %v3226, %v3223
      %v3293 = vpack.c.b16 %v3230, %v3227
      %v3294 = vpack.c.b16 %v3231, %v3228
      %v3295 = vpack.c.b16 %v3232, %v3229
      %v3296 = vpack.c.b16 %v3236, %v3233
      %v3297 = vpack.c.b16 %v3237, %v3234
      %v3298 = vpack.c.b16 %v3238, %v3235
      %v3299 = vpack.c.b16 %v3242, %v3239
      %v3300 = vpack.c.b16 %v3243, %v3240
      %v3301 = vpack.c.b16 %v3244, %v3241
      %v3302 = vpack.c.b16 %v3248, %v3245
      %v3303 = vpack.c.b16 %v3249, %v3246
      %v3304 = vpack.c.b16 %v3250, %v3247
      %v3305 = vpack.c.b16 %v3254, %v3251
      %v3306 = vpack.c.b16 %v3255, %v3252
      %v3307 = vpack.c.b16 %v3256, %v3253
      %v3308 = vpack.c.b16 %v3260, %v3257
      %v3309 = vpack.c.b16 %v3261, %v3258
      %v3310 = vpack.c.b16 %v3262, %v3259
      %v3407 = vunpack.c.l.b16 %v3055
      %v3408 = vunpack.c.l.b16 %v3056
      %v3409 = vunpack.c.l.b16 %v3057
      %v3410 = vunpack.c.l.b16 %v3058
      %v3411 = vunpack.c.l.b16 %v3059
      %v3412 = vunpack.c.l.b16 %v3060
      %v3413 = vunpack.c.l.b16 %v3061
      %v3414 = vunpack.c.l.b16 %v3062
      %v3415 = vunpack.c.l.b16 %v3063
      %v3416 = vunpack.c.l.b16 %v3064
      %v3417 = vunpack.c.l.b16 %v3065
      %v3418 = vunpack.c.l.b16 %v3066
      %v3419 = vunpack.c.l.b16 %v3067
      %v3420 = vunpack.c.l.b16 %v3068
      %v3421 = vunpack.c.l.b16 %v3069
      %v3422 = vunpack.c.l.b16 %v3070
      %v3423 = vunpack.c.l.b16 %v3071
      %v3424 = vunpack.c.l.b16 %v3072
      %v3425 = vunpack.c.l.b16 %v3073
      %v3426 = vunpack.c.l.b16 %v3074
      %v3427 = vunpack.c.l.b16 %v3075
      %v3428 = vunpack.c.l.b16 %v3076
      %v3429 = vunpack.c.l.b16 %v3077
      %v3430 = vunpack.c.l.b16 %v3078
      %v3431 = vunpack.c.l.b16 %v3079
      %v3432 = vunpack.c.l.b16 %v3080
      %v3433 = vunpack.c.l.b16 %v3081
      %v3434 = vunpack.c.l.b16 %v3082
      %v3435 = vunpack.c.l.b16 %v3083
      %v3436 = vunpack.c.l.b16 %v3084
      %v3437 = vunpack.c.l.b16 %v3085
      %v3438 = vunpack.c.l.b16 %v3086
      %v3439 = vunpack.c.l.b16 %v3087
      %v3440 = vunpack.c.l.b16 %v3088
      %v3441 = vunpack.c.l.b16 %v3089
      %v3442 = vunpack.c.l.b16 %v3090
      %v3443 = vunpack.c.l.b16 %v3091
      %v3444 = vunpack.c.l.b16 %v3092
      %v3445 = vunpack.c.l.b16 %v3093
      %v3446 = vunpack.c.l.b16 %v3094
      %v3447 = vunpack.c.l.b16 %v3095
      %v3448 = vunpack.c.l.b16 %v3096
      %v3449 = vunpack.c.l.b16 %v3097
      %v3450 = vunpack.c.l.b16 %v3098
      %v3451 = vunpack.c.l.b16 %v3099
      %v3452 = vunpack.c.l.b16 %v3100
      %v3453 = vunpack.c.l.b16 %v3101
      %v3454 = vunpack.c.l.b16 %v3102
      %v3455 = vpack.c.b16 %v3408, %v3407
      %v3456 = vpack.c.b16 %v3410, %v3409
      %v3457 = vpack.c.b16 %v3412, %v3411
      %v3458 = vpack.c.b16 %v3414, %v3413
      %v3459 = vpack.c.b16 %v3416, %v3415
      %v3460 = vpack.c.b16 %v3418, %v3417
      %v3461 = vpack.c.b16 %v3420, %v3419
      %v3462 = vpack.c.b16 %v3422, %v3421
      %v3463 = vpack.c.b16 %v3424, %v3423
      %v3464 = vpack.c.b16 %v3426, %v3425
      %v3465 = vpack.c.b16 %v3428, %v3427
      %v3466 = vpack.c.b16 %v3430, %v3429
      %v3467 = vpack.c.b16 %v3432, %v3431
      %v3468 = vpack.c.b16 %v3434, %v3433
      %v3469 = vpack.c.b16 %v3436, %v3435
      %v3470 = vpack.c.b16 %v3438, %v3437
      %v3471 = vpack.c.b16 %v3440, %v3439
      %v3472 = vpack.c.b16 %v3442, %v3441
      %v3473 = vpack.c.b16 %v3444, %v3443
      %v3474 = vpack.c.b16 %v3446, %v3445
      %v3475 = vpack.c.b16 %v3448, %v3447
      %v3476 = vpack.c.b16 %v3450, %v3449
      %v3477 = vpack.c.b16 %v3452, %v3451
      %v3478 = vpack.c.b16 %v3454, %v3453
      %3503 = vmatprep.subr.bf16.mxu0 0
      %3504 = vmatpush1.bf16.msra.mxu0 %v3462
      %3505 = vmatprep.subr.bf16.mxu0 0
      %3506 = vmatpush1.bf16.msra.mxu0 %v3461
      %3507 = vmatprep.subr.bf16.mxu0 0
      %3508 = vmatpush1.bf16.msra.mxu0 %v3460
      %3509 = vmatprep.subr.bf16.mxu0 0
      %3510 = vmatpush1.bf16.msra.mxu0 %v3459
      %3511 = vmatprep.subr.bf16.mxu0 0
      %3512 = vmatpush1.bf16.msra.mxu0 %v3458
      %3513 = vmatprep.subr.bf16.mxu0 0
      %3514 = vmatpush1.bf16.msra.mxu0 %v3457
      %3515 = vmatprep.subr.bf16.mxu0 0
      %3516 = vmatpush1.bf16.msra.mxu0 %v3456
      %3517 = vmatprep.subr.bf16.mxu0 0
      %3518 = vmatpush1.bf16.msra.mxu0 %v3455
      %3519 = vmatprep.subr.bf16.mxu0 0
      %3520 = vmatpush2.bf16.msra.mxu0 %v3470
      %3521 = vmatprep.subr.bf16.mxu0 0
      %3522 = vmatpush2.bf16.msra.mxu0 %v3469
      %3523 = vmatprep.subr.bf16.mxu0 0
      %3524 = vmatpush2.bf16.msra.mxu0 %v3468
      %3525 = vmatprep.subr.bf16.mxu0 0
      %3526 = vmatpush2.bf16.msra.mxu0 %v3467
      %3527 = vmatprep.subr.bf16.mxu0 0
      %3528 = vmatpush2.bf16.msra.mxu0 %v3466
      %3529 = vmatprep.subr.bf16.mxu0 0
      %3530 = vmatpush2.bf16.msra.mxu0 %v3465
      %3531 = vmatprep.subr.bf16.mxu0 0
      %3532 = vmatpush2.bf16.msra.mxu0 %v3464
      %3533 = vmatprep.subr.bf16.mxu0 0
      %3534 = vmatpush2.bf16.msra.mxu0 %v3463
      %3535 = vmatprep.mubr.bf16.mxu0 %v3264
      %3536 = vmatmul.mubr.bf16.gmra.mxu0 %v3263
      %v3537 = vpop.f32.mrf.mxu0
      %v3538 = vadd.f32 0.0, %v3537
      %v3539 = vpop.f32.mrf.mxu0
      %v3540 = vpop.f32.mrf.mxu0
      %v3541 = vadd.f32 0.0, %v3540
      %v3542 = vpop.f32.mrf.mxu0
      %3543 = vmatprep.mubr.bf16.mxu0 %v3267
      %3544 = vmatmul.mubr.bf16.gmra.mxu0 %v3266
      %v3545 = vpop.f32.mrf.mxu0
      %v3546 = vadd.f32 0.0, %v3545
      %v3547 = vpop.f32.mrf.mxu0
      %v3548 = vpop.f32.mrf.mxu0
      %v3549 = vadd.f32 0.0, %v3548
      %v3550 = vpop.f32.mrf.mxu0
      %3551 = vmatprep.mubr.bf16.mxu0 %v3270
      %3552 = vmatmul.mubr.bf16.gmra.mxu0 %v3269
      %v3553 = vpop.f32.mrf.mxu0
      %v3554 = vadd.f32 0.0, %v3553
      %v3555 = vpop.f32.mrf.mxu0
      %v3556 = vpop.f32.mrf.mxu0
      %v3557 = vadd.f32 0.0, %v3556
      %v3558 = vpop.f32.mrf.mxu0
      %3559 = vmatprep.mubr.bf16.mxu0 %v3273
      %3560 = vmatmul.mubr.bf16.gmra.mxu0 %v3272
      %v3561 = vpop.f32.mrf.mxu0
      %v3562 = vadd.f32 0.0, %v3561
      %v3563 = vpop.f32.mrf.mxu0
      %v3564 = vpop.f32.mrf.mxu0
      %v3565 = vadd.f32 0.0, %v3564
      %v3566 = vpop.f32.mrf.mxu0
      %3567 = vmatprep.mubr.bf16.mxu0 %v3276
      %3568 = vmatmul.mubr.bf16.gmra.mxu0 %v3275
      %v3569 = vpop.f32.mrf.mxu0
      %v3570 = vadd.f32 0.0, %v3569
      %v3571 = vpop.f32.mrf.mxu0
      %v3572 = vpop.f32.mrf.mxu0
      %v3573 = vadd.f32 0.0, %v3572
      %v3574 = vpop.f32.mrf.mxu0
      %3575 = vmatprep.mubr.bf16.mxu0 %v3279
      %3576 = vmatmul.mubr.bf16.gmra.mxu0 %v3278
      %v3577 = vpop.f32.mrf.mxu0
      %v3578 = vadd.f32 0.0, %v3577
      %v3579 = vpop.f32.mrf.mxu0
      %v3580 = vpop.f32.mrf.mxu0
      %v3581 = vadd.f32 0.0, %v3580
      %v3582 = vpop.f32.mrf.mxu0
      %3583 = vmatprep.mubr.bf16.mxu0 %v3282
      %3584 = vmatmul.mubr.bf16.gmra.mxu0 %v3281
      %v3585 = vpop.f32.mrf.mxu0
      %v3586 = vadd.f32 0.0, %v3585
      %v3587 = vpop.f32.mrf.mxu0
      %v3588 = vpop.f32.mrf.mxu0
      %v3589 = vadd.f32 0.0, %v3588
      %v3590 = vpop.f32.mrf.mxu0
      %3591 = vmatprep.mubr.bf16.mxu0 %v3285
      %3592 = vmatmul.mubr.bf16.gmra.mxu0 %v3284
      %v3593 = vpop.f32.mrf.mxu0
      %v3594 = vadd.f32 0.0, %v3593
      %v3595 = vpop.f32.mrf.mxu0
      %v3596 = vpop.f32.mrf.mxu0
      %v3597 = vadd.f32 0.0, %v3596
      %v3598 = vpop.f32.mrf.mxu0
      %3599 = vmatprep.mubr.bf16.mxu0 %v3288
      %3600 = vmatmul.mubr.bf16.gmra.mxu0 %v3287
      %v3601 = vpop.f32.mrf.mxu0
      %v3602 = vadd.f32 0.0, %v3601
      %v3603 = vpop.f32.mrf.mxu0
      %v3604 = vpop.f32.mrf.mxu0
      %v3605 = vadd.f32 0.0, %v3604
      %v3606 = vpop.f32.mrf.mxu0
      %3607 = vmatprep.mubr.bf16.mxu0 %v3291
      %3608 = vmatmul.mubr.bf16.gmra.mxu0 %v3290
      %v3609 = vpop.f32.mrf.mxu0
      %v3610 = vadd.f32 0.0, %v3609
      %v3611 = vpop.f32.mrf.mxu0
      %v3612 = vpop.f32.mrf.mxu0
      %v3613 = vadd.f32 0.0, %v3612
      %v3614 = vpop.f32.mrf.mxu0
      %3615 = vmatprep.mubr.bf16.mxu0 %v3294
      %3616 = vmatmul.mubr.bf16.gmra.mxu0 %v3293
      %v3617 = vpop.f32.mrf.mxu0
      %v3618 = vadd.f32 0.0, %v3617
      %v3619 = vpop.f32.mrf.mxu0
      %v3620 = vpop.f32.mrf.mxu0
      %v3621 = vadd.f32 0.0, %v3620
      %v3622 = vpop.f32.mrf.mxu0
      %3623 = vmatprep.mubr.bf16.mxu0 %v3297
      %3624 = vmatmul.mubr.bf16.gmra.mxu0 %v3296
      %v3625 = vpop.f32.mrf.mxu0
      %v3626 = vadd.f32 0.0, %v3625
      %v3627 = vpop.f32.mrf.mxu0
      %v3628 = vpop.f32.mrf.mxu0
      %v3629 = vadd.f32 0.0, %v3628
      %v3630 = vpop.f32.mrf.mxu0
      %3631 = vmatprep.mubr.bf16.mxu0 %v3300
      %3632 = vmatmul.mubr.bf16.gmra.mxu0 %v3299
      %v3633 = vpop.f32.mrf.mxu0
      %v3634 = vadd.f32 0.0, %v3633
      %v3635 = vpop.f32.mrf.mxu0
      %v3636 = vpop.f32.mrf.mxu0
      %v3637 = vadd.f32 0.0, %v3636
      %v3638 = vpop.f32.mrf.mxu0
      %3639 = vmatprep.mubr.bf16.mxu0 %v3303
      %3640 = vmatmul.mubr.bf16.gmra.mxu0 %v3302
      %v3641 = vpop.f32.mrf.mxu0
      %v3642 = vadd.f32 0.0, %v3641
      %v3643 = vpop.f32.mrf.mxu0
      %v3644 = vpop.f32.mrf.mxu0
      %v3645 = vadd.f32 0.0, %v3644
      %v3646 = vpop.f32.mrf.mxu0
      %3647 = vmatprep.mubr.bf16.mxu0 %v3306
      %3648 = vmatmul.mubr.bf16.gmra.mxu0 %v3305
      %v3649 = vpop.f32.mrf.mxu0
      %v3650 = vadd.f32 0.0, %v3649
      %v3651 = vpop.f32.mrf.mxu0
      %v3652 = vpop.f32.mrf.mxu0
      %v3653 = vadd.f32 0.0, %v3652
      %v3654 = vpop.f32.mrf.mxu0
      %3655 = vmatprep.mubr.bf16.mxu0 %v3309
      %3656 = vmatmul.mubr.bf16.gmra.mxu0 %v3308
      %v3657 = vpop.f32.mrf.mxu0
      %v3658 = vadd.f32 0.0, %v3657
      %v3659 = vpop.f32.mrf.mxu0
      %v3660 = vpop.f32.mrf.mxu0
      %v3661 = vadd.f32 0.0, %v3660
      %v3662 = vpop.f32.mrf.mxu0
      %3663 = vdwg.mxu0
      %3664 = vmatprep.subr.bf16.mxu0 0
      %3665 = vmatpush1.bf16.msra.mxu0 %v3478
      %3666 = vmatprep.subr.bf16.mxu0 0
      %3667 = vmatpush1.bf16.msra.mxu0 %v3477
      %3668 = vmatprep.subr.bf16.mxu0 0
      %3669 = vmatpush1.bf16.msra.mxu0 %v3476
      %3670 = vmatprep.subr.bf16.mxu0 0
      %3671 = vmatpush1.bf16.msra.mxu0 %v3475
      %3672 = vmatprep.subr.bf16.mxu0 0
      %3673 = vmatpush1.bf16.msra.mxu0 %v3474
      %3674 = vmatprep.subr.bf16.mxu0 0
      %3675 = vmatpush1.bf16.msra.mxu0 %v3473
      %3676 = vmatprep.subr.bf16.mxu0 0
      %3677 = vmatpush1.bf16.msra.mxu0 %v3472
      %3678 = vmatprep.subr.bf16.mxu0 0
      %3679 = vmatpush1.bf16.msra.mxu0 %v3471
      %3680 = vmatprep.subr.bf16.mxu0 0
      %3681 = vmatpush2.bf16.msra.mxu0 0
      %3682 = vmatprep.subr.bf16.mxu0 0
      %3683 = vmatpush2.bf16.msra.mxu0 0
      %3684 = vmatprep.subr.bf16.mxu0 0
      %3685 = vmatpush2.bf16.msra.mxu0 0
      %3686 = vmatprep.subr.bf16.mxu0 0
      %3687 = vmatpush2.bf16.msra.mxu0 0
      %3688 = vmatprep.subr.bf16.mxu0 0
      %3689 = vmatpush2.bf16.msra.mxu0 0
      %3690 = vmatprep.subr.bf16.mxu0 0
      %3691 = vmatpush2.bf16.msra.mxu0 0
      %3692 = vmatprep.subr.bf16.mxu0 0
      %3693 = vmatpush2.bf16.msra.mxu0 0
      %3694 = vmatprep.subr.bf16.mxu0 0
      %3695 = vmatpush2.bf16.msra.mxu0 0
      %3696 = vmatprep.mubr.bf16.mxu0 0
      %3697 = vmatmul.mubr.bf16.gmra.mxu0 %v3265
      %v3698 = vpop.f32.mrf.mxu0
      %v3699 = vadd.f32 %v3538, %v3698
      %v3700 = vpop.f32.mrf.mxu0
      %v3701 = vpop.f32.mrf.mxu0
      %v3702 = vadd.f32 %v3541, %v3701
      %v3703 = vpop.f32.mrf.mxu0
      %3704 = vmatprep.mubr.bf16.mxu0 0
      %3705 = vmatmul.mubr.bf16.gmra.mxu0 %v3268
      %v3706 = vpop.f32.mrf.mxu0
      %v3707 = vadd.f32 %v3546, %v3706
      %v3708 = vpop.f32.mrf.mxu0
      %v3709 = vpop.f32.mrf.mxu0
      %v3710 = vadd.f32 %v3549, %v3709
      %v3711 = vpop.f32.mrf.mxu0
      %3712 = vmatprep.mubr.bf16.mxu0 0
      %3713 = vmatmul.mubr.bf16.gmra.mxu0 %v3271
      %v3714 = vpop.f32.mrf.mxu0
      %v3715 = vadd.f32 %v3554, %v3714
      %v3716 = vpop.f32.mrf.mxu0
      %v3717 = vpop.f32.mrf.mxu0
      %v3718 = vadd.f32 %v3557, %v3717
      %v3719 = vpop.f32.mrf.mxu0
      %3720 = vmatprep.mubr.bf16.mxu0 0
      %3721 = vmatmul.mubr.bf16.gmra.mxu0 %v3274
      %v3722 = vpop.f32.mrf.mxu0
      %v3723 = vadd.f32 %v3562, %v3722
      %v3724 = vpop.f32.mrf.mxu0
      %v3725 = vpop.f32.mrf.mxu0
      %v3726 = vadd.f32 %v3565, %v3725
      %v3727 = vpop.f32.mrf.mxu0
      %3728 = vmatprep.mubr.bf16.mxu0 0
      %3729 = vmatmul.mubr.bf16.gmra.mxu0 %v3277
      %v3730 = vpop.f32.mrf.mxu0
      %v3731 = vadd.f32 %v3570, %v3730
      %v3732 = vpop.f32.mrf.mxu0
      %v3733 = vpop.f32.mrf.mxu0
      %v3734 = vadd.f32 %v3573, %v3733
      %v3735 = vpop.f32.mrf.mxu0
      %3736 = vmatprep.mubr.bf16.mxu0 0
      %3737 = vmatmul.mubr.bf16.gmra.mxu0 %v3280
      %v3738 = vpop.f32.mrf.mxu0
      %v3739 = vadd.f32 %v3578, %v3738
      %v3740 = vpop.f32.mrf.mxu0
      %v3741 = vpop.f32.mrf.mxu0
      %v3742 = vadd.f32 %v3581, %v3741
      %v3743 = vpop.f32.mrf.mxu0
      %3744 = vmatprep.mubr.bf16.mxu0 0
      %3745 = vmatmul.mubr.bf16.gmra.mxu0 %v3283
      %v3746 = vpop.f32.mrf.mxu0
      %v3747 = vadd.f32 %v3586, %v3746
      %v3748 = vpop.f32.mrf.mxu0
      %v3749 = vpop.f32.mrf.mxu0
      %v3750 = vadd.f32 %v3589, %v3749
      %v3751 = vpop.f32.mrf.mxu0
      %3752 = vmatprep.mubr.bf16.mxu0 0
      %3753 = vmatmul.mubr.bf16.gmra.mxu0 %v3286
      %v3754 = vpop.f32.mrf.mxu0
      %v3755 = vadd.f32 %v3594, %v3754
      %v3756 = vpop.f32.mrf.mxu0
      %v3757 = vpop.f32.mrf.mxu0
      %v3758 = vadd.f32 %v3597, %v3757
      %v3759 = vpop.f32.mrf.mxu0
      %3760 = vmatprep.mubr.bf16.mxu0 0
      %3761 = vmatmul.mubr.bf16.gmra.mxu0 %v3289
      %v3762 = vpop.f32.mrf.mxu0
      %v3763 = vadd.f32 %v3602, %v3762
      %v3764 = vpop.f32.mrf.mxu0
      %v3765 = vpop.f32.mrf.mxu0
      %v3766 = vadd.f32 %v3605, %v3765
      %v3767 = vpop.f32.mrf.mxu0
      %3768 = vmatprep.mubr.bf16.mxu0 0
      %3769 = vmatmul.mubr.bf16.gmra.mxu0 %v3292
      %v3770 = vpop.f32.mrf.mxu0
      %v3771 = vadd.f32 %v3610, %v3770
      %v3772 = vpop.f32.mrf.mxu0
      %v3773 = vpop.f32.mrf.mxu0
      %v3774 = vadd.f32 %v3613, %v3773
      %v3775 = vpop.f32.mrf.mxu0
      %3776 = vmatprep.mubr.bf16.mxu0 0
      %3777 = vmatmul.mubr.bf16.gmra.mxu0 %v3295
      %v3778 = vpop.f32.mrf.mxu0
      %v3779 = vadd.f32 %v3618, %v3778
      %v3780 = vpop.f32.mrf.mxu0
      %v3781 = vpop.f32.mrf.mxu0
      %v3782 = vadd.f32 %v3621, %v3781
      %v3783 = vpop.f32.mrf.mxu0
      %3784 = vmatprep.mubr.bf16.mxu0 0
      %3785 = vmatmul.mubr.bf16.gmra.mxu0 %v3298
      %v3786 = vpop.f32.mrf.mxu0
      %v3787 = vadd.f32 %v3626, %v3786
      %v3788 = vpop.f32.mrf.mxu0
      %v3789 = vpop.f32.mrf.mxu0
      %v3790 = vadd.f32 %v3629, %v3789
      %v3791 = vpop.f32.mrf.mxu0
      %3792 = vmatprep.mubr.bf16.mxu0 0
      %3793 = vmatmul.mubr.bf16.gmra.mxu0 %v3301
      %v3794 = vpop.f32.mrf.mxu0
      %v3795 = vadd.f32 %v3634, %v3794
      %v3796 = vpop.f32.mrf.mxu0
      %v3797 = vpop.f32.mrf.mxu0
      %v3798 = vadd.f32 %v3637, %v3797
      %v3799 = vpop.f32.mrf.mxu0
      %3800 = vmatprep.mubr.bf16.mxu0 0
      %3801 = vmatmul.mubr.bf16.gmra.mxu0 %v3304
      %v3802 = vpop.f32.mrf.mxu0
      %v3803 = vadd.f32 %v3642, %v3802
      %v3804 = vpop.f32.mrf.mxu0
      %v3805 = vpop.f32.mrf.mxu0
      %v3806 = vadd.f32 %v3645, %v3805
      %v3807 = vpop.f32.mrf.mxu0
      %3808 = vmatprep.mubr.bf16.mxu0 0
      %3809 = vmatmul.mubr.bf16.gmra.mxu0 %v3307
      %v3810 = vpop.f32.mrf.mxu0
      %v3811 = vadd.f32 %v3650, %v3810
      %v3812 = vpop.f32.mrf.mxu0
      %v3813 = vpop.f32.mrf.mxu0
      %v3814 = vadd.f32 %v3653, %v3813
      %v3815 = vpop.f32.mrf.mxu0
      %3816 = vmatprep.mubr.bf16.mxu0 0
      %3817 = vmatmul.mubr.bf16.gmra.mxu0 %v3310
      %v3818 = vpop.f32.mrf.mxu0
      %v3819 = vadd.f32 %v3658, %v3818
      %v3820 = vpop.f32.mrf.mxu0
      %v3821 = vpop.f32.mrf.mxu0
      %v3822 = vadd.f32 %v3661, %v3821
      %v3823 = vpop.f32.mrf.mxu0
      %3824 = vdwg.mxu0
      %v3825 = vadd.f32 %v2957, %v3699
      %v3826 = vadd.f32 %v2958, %v3702
      %v3827 = vadd.f32 %v2959, %v3707
      %v3828 = vadd.f32 %v2960, %v3710
      %v3829 = vadd.f32 %v2961, %v3715
      %v3830 = vadd.f32 %v2962, %v3718
      %v3831 = vadd.f32 %v2963, %v3723
      %v3832 = vadd.f32 %v2964, %v3726
      %v3833 = vadd.f32 %v2965, %v3731
      %v3834 = vadd.f32 %v2966, %v3734
      %v3835 = vadd.f32 %v2967, %v3739
      %v3836 = vadd.f32 %v2968, %v3742
      %v3837 = vadd.f32 %v2969, %v3747
      %v3838 = vadd.f32 %v2970, %v3750
      %v3839 = vadd.f32 %v2971, %v3755
      %v3840 = vadd.f32 %v2972, %v3758
      %v3841 = vadd.f32 %v2973, %v3763
      %v3842 = vadd.f32 %v2974, %v3766
      %v3843 = vadd.f32 %v2975, %v3771
      %v3844 = vadd.f32 %v2976, %v3774
      %v3845 = vadd.f32 %v2977, %v3779
      %v3846 = vadd.f32 %v2978, %v3782
      %v3847 = vadd.f32 %v2979, %v3787
      %v3848 = vadd.f32 %v2980, %v3790
      %v3849 = vadd.f32 %v2981, %v3795
      %v3850 = vadd.f32 %v2982, %v3798
      %v3851 = vadd.f32 %v2983, %v3803
      %v3852 = vadd.f32 %v2984, %v3806
      %v3853 = vadd.f32 %v2985, %v3811
      %v3854 = vadd.f32 %v2986, %v3814
      %v3855 = vadd.f32 %v2987, %v3819
      %v3856 = vadd.f32 %v2988, %v3822
      %3857 = vst [vmem:[#allocation3] sm:$0xff] %v3825
      %3858 = vst [vmem:[#allocation3 + $0x8] sm:$0xff] %v3826
      %3859 = vst [vmem:[#allocation3 + $0x10] sm:$0xff] %v3827
      %3860 = vst [vmem:[#allocation3 + $0x18] sm:$0xff] %v3828
      %3861 = vst [vmem:[#allocation3 + $0x20] sm:$0xff] %v3829
      %3862 = vst [vmem:[#allocation3 + $0x28] sm:$0xff] %v3830
      %3863 = vst [vmem:[#allocation3 + $0x30] sm:$0xff] %v3831
      %3864 = vst [vmem:[#allocation3 + $0x38] sm:$0xff] %v3832
      %3865 = vst [vmem:[#allocation3 + $0x40] sm:$0xff] %v3833
      %3866 = vst [vmem:[#allocation3 + $0x48] sm:$0xff] %v3834
      %3867 = vst [vmem:[#allocation3 + $0x50] sm:$0xff] %v3835
      %3868 = vst [vmem:[#allocation3 + $0x58] sm:$0xff] %v3836
      %3869 = vst [vmem:[#allocation3 + $0x60] sm:$0xff] %v3837
      %3870 = vst [vmem:[#allocation3 + $0x68] sm:$0xff] %v3838
      %3871 = vst [vmem:[#allocation3 + $0x70] sm:$0xff] %v3839
      %3872 = vst [vmem:[#allocation3 + $0x78] sm:$0xff] %v3840
      %3873 = vst [vmem:[#allocation3 + $0x80] sm:$0xff] %v3841
      %3874 = vst [vmem:[#allocation3 + $0x88] sm:$0xff] %v3842
      %3875 = vst [vmem:[#allocation3 + $0x90] sm:$0xff] %v3843
      %3876 = vst [vmem:[#allocation3 + $0x98] sm:$0xff] %v3844
      %3877 = vst [vmem:[#allocation3 + $0xa0] sm:$0xff] %v3845
      %3878 = vst [vmem:[#allocation3 + $0xa8] sm:$0xff] %v3846
      %3879 = vst [vmem:[#allocation3 + $0xb0] sm:$0xff] %v3847
      %3880 = vst [vmem:[#allocation3 + $0xb8] sm:$0xff] %v3848
      %3881 = vst [vmem:[#allocation3 + $0xc0] sm:$0xff] %v3849
      %3882 = vst [vmem:[#allocation3 + $0xc8] sm:$0xff] %v3850
      %3883 = vst [vmem:[#allocation3 + $0xd0] sm:$0xff] %v3851
      %3884 = vst [vmem:[#allocation3 + $0xd8] sm:$0xff] %v3852
      %3885 = vst [vmem:[#allocation3 + $0xe0] sm:$0xff] %v3853
      %3886 = vst [vmem:[#allocation3 + $0xe8] sm:$0xff] %v3854
      %3887 = vst [vmem:[#allocation3 + $0xf0] sm:$0xff] %v3855
      %3888 = vst [vmem:[#allocation3 + $0xf8] sm:$0xff] %v3856
      %p3889 = scmp.eq.s32.totalorder %s19, 0
      // Predicated region
      $region37: #{hourglass2d_pallas.7} parent=35 // pred_check
        %p3890 = pneg %p3889
      $region38: #{hourglass2d_pallas.7} parent=35 // pred_check_branch
        %3892 = sbr.rel (%p3890) target = $region40
      $region39: #{hourglass2d_pallas.7} parent=35 // pred_region
        %v3893 = vld [vmem:[#allocation3] sm:$0xff]
        %v3894 = vld [vmem:[#allocation3 + $0x8] sm:$0xff]
        %v3895 = vld [vmem:[#allocation3 + $0x10] sm:$0xff]
        %v3896 = vld [vmem:[#allocation3 + $0x18] sm:$0xff]
        %v3897 = vld [vmem:[#allocation3 + $0x20] sm:$0xff]
        %v3898 = vld [vmem:[#allocation3 + $0x28] sm:$0xff]
        %v3899 = vld [vmem:[#allocation3 + $0x30] sm:$0xff]
        %v3900 = vld [vmem:[#allocation3 + $0x38] sm:$0xff]
        %v3901 = vld [vmem:[#allocation3 + $0x40] sm:$0xff]
        %v3902 = vld [vmem:[#allocation3 + $0x48] sm:$0xff]
        %v3903 = vld [vmem:[#allocation3 + $0x50] sm:$0xff]
        %v3904 = vld [vmem:[#allocation3 + $0x58] sm:$0xff]
        %v3905 = vld [vmem:[#allocation3 + $0x60] sm:$0xff]
        %v3906 = vld [vmem:[#allocation3 + $0x68] sm:$0xff]
        %v3907 = vld [vmem:[#allocation3 + $0x70] sm:$0xff]
        %v3908 = vld [vmem:[#allocation3 + $0x78] sm:$0xff]
        %v3909 = vld [vmem:[#allocation3 + $0x80] sm:$0xff]
        %v3910 = vld [vmem:[#allocation3 + $0x88] sm:$0xff]
        %v3911 = vld [vmem:[#allocation3 + $0x90] sm:$0xff]
        %v3912 = vld [vmem:[#allocation3 + $0x98] sm:$0xff]
        %v3913 = vld [vmem:[#allocation3 + $0xa0] sm:$0xff]
        %v3914 = vld [vmem:[#allocation3 + $0xa8] sm:$0xff]
        %v3915 = vld [vmem:[#allocation3 + $0xb0] sm:$0xff]
        %v3916 = vld [vmem:[#allocation3 + $0xb8] sm:$0xff]
        %v3917 = vld [vmem:[#allocation3 + $0xc0] sm:$0xff]
        %v3918 = vld [vmem:[#allocation3 + $0xc8] sm:$0xff]
        %v3919 = vld [vmem:[#allocation3 + $0xd0] sm:$0xff]
        %v3920 = vld [vmem:[#allocation3 + $0xd8] sm:$0xff]
        %v3921 = vld [vmem:[#allocation3 + $0xe0] sm:$0xff]
        %v3922 = vld [vmem:[#allocation3 + $0xe8] sm:$0xff]
        %v3923 = vld [vmem:[#allocation3 + $0xf0] sm:$0xff]
        %v3924 = vld [vmem:[#allocation3 + $0xf8] sm:$0xff]
        %v3925 = vadd.f32 %v3893, %v3894
        %v3926 = vadd.f32 %v3925, %v3895
        %v3927 = vadd.f32 %v3926, %v3896
        %v3928 = vadd.f32 %v3927, %v3897
        %v3929 = vadd.f32 %v3928, %v3898
        %v3930 = vadd.f32 %v3929, %v3899
        %v3931 = vadd.f32 %v3930, %v3900
        %v3932 = vadd.f32 %v3931, %v3901
        %v3933 = vadd.f32 %v3932, %v3902
        %v3934 = vadd.f32 %v3933, %v3903
        %v3935 = vadd.f32 %v3934, %v3904
        %v3936 = vadd.f32 %v3935, %v3905
        %v3937 = vadd.f32 %v3936, %v3906
        %v3938 = vadd.f32 %v3937, %v3907
        %v3939 = vadd.f32 %v3938, %v3908
        %v3940 = vadd.f32 %v3939, %v3909
        %v3941 = vadd.f32 %v3940, %v3910
        %v3942 = vadd.f32 %v3941, %v3911
        %v3943 = vadd.f32 %v3942, %v3912
        %v3944 = vadd.f32 %v3943, %v3913
        %v3945 = vadd.f32 %v3944, %v3914
        %v3946 = vadd.f32 %v3945, %v3915
        %v3947 = vadd.f32 %v3946, %v3916
        %v3948 = vadd.f32 %v3947, %v3917
        %v3949 = vadd.f32 %v3948, %v3918
        %v3950 = vadd.f32 %v3949, %v3919
        %v3951 = vadd.f32 %v3950, %v3920
        %v3952 = vadd.f32 %v3951, %v3921
        %v3953 = vadd.f32 %v3952, %v3922
        %v3954 = vadd.f32 %v3953, %v3923
        %v3955 = vadd.f32 %v3954, %v3924
        %v3956 = vrot.slane %v3955, 4
        %v3957 = vadd.f32 %v3955, %v3956
        %v3958 = vrot.slane %v3957, 2
        %v3959 = vadd.f32 %v3957, %v3958
        %v3960 = vrot.slane %v3959, 1
        %v3961 = vadd.f32 %v3959, %v3960
        %v3962 = vmul.f32 %v3961, 0.00390625
        %v3963 = vsub.f32 %v3893, %v3962
        %v3964 = vsub.f32 %v3894, %v3962
        %v3965 = vsub.f32 %v3895, %v3962
        %v3966 = vsub.f32 %v3896, %v3962
        %v3967 = vsub.f32 %v3897, %v3962
        %v3968 = vsub.f32 %v3898, %v3962
        %v3969 = vsub.f32 %v3899, %v3962
        %v3970 = vsub.f32 %v3900, %v3962
        %v3971 = vsub.f32 %v3901, %v3962
        %v3972 = vsub.f32 %v3902, %v3962
        %v3973 = vsub.f32 %v3903, %v3962
        %v3974 = vsub.f32 %v3904, %v3962
        %v3975 = vsub.f32 %v3905, %v3962
        %v3976 = vsub.f32 %v3906, %v3962
        %v3977 = vsub.f32 %v3907, %v3962
        %v3978 = vsub.f32 %v3908, %v3962
        %v3979 = vsub.f32 %v3909, %v3962
        %v3980 = vsub.f32 %v3910, %v3962
        %v3981 = vsub.f32 %v3911, %v3962
        %v3982 = vsub.f32 %v3912, %v3962
        %v3983 = vsub.f32 %v3913, %v3962
        %v3984 = vsub.f32 %v3914, %v3962
        %v3985 = vsub.f32 %v3915, %v3962
        %v3986 = vsub.f32 %v3916, %v3962
        %v3987 = vsub.f32 %v3917, %v3962
        %v3988 = vsub.f32 %v3918, %v3962
        %v3989 = vsub.f32 %v3919, %v3962
        %v3990 = vsub.f32 %v3920, %v3962
        %v3991 = vsub.f32 %v3921, %v3962
        %v3992 = vsub.f32 %v3922, %v3962
        %v3993 = vsub.f32 %v3923, %v3962
        %v3994 = vsub.f32 %v3924, %v3962
        %v3995 = vmul.f32 %v3963, %v3963
        %v3996 = vmul.f32 %v3964, %v3964
        %v3997 = vmul.f32 %v3965, %v3965
        %v3998 = vmul.f32 %v3966, %v3966
        %v3999 = vmul.f32 %v3967, %v3967
        %v4000 = vmul.f32 %v3968, %v3968
        %v4001 = vmul.f32 %v3969, %v3969
        %v4002 = vmul.f32 %v3970, %v3970
        %v4003 = vmul.f32 %v3971, %v3971
        %v4004 = vmul.f32 %v3972, %v3972
        %v4005 = vmul.f32 %v3973, %v3973
        %v4006 = vmul.f32 %v3974, %v3974
        %v4007 = vmul.f32 %v3975, %v3975
        %v4008 = vmul.f32 %v3976, %v3976
        %v4009 = vmul.f32 %v3977, %v3977
        %v4010 = vmul.f32 %v3978, %v3978
        %v4011 = vmul.f32 %v3979, %v3979
        %v4012 = vmul.f32 %v3980, %v3980
        %v4013 = vmul.f32 %v3981, %v3981
        %v4014 = vmul.f32 %v3982, %v3982
        %v4015 = vmul.f32 %v3983, %v3983
        %v4016 = vmul.f32 %v3984, %v3984
        %v4017 = vmul.f32 %v3985, %v3985
        %v4018 = vmul.f32 %v3986, %v3986
        %v4019 = vmul.f32 %v3987, %v3987
        %v4020 = vmul.f32 %v3988, %v3988
        %v4021 = vmul.f32 %v3989, %v3989
        %v4022 = vmul.f32 %v3990, %v3990
        %v4023 = vmul.f32 %v3991, %v3991
        %v4024 = vmul.f32 %v3992, %v3992
        %v4025 = vmul.f32 %v3993, %v3993
        %v4026 = vmul.f32 %v3994, %v3994
        %v4027 = vadd.f32 %v3995, %v3996
        %v4028 = vadd.f32 %v4027, %v3997
        %v4029 = vadd.f32 %v4028, %v3998
        %v4030 = vadd.f32 %v4029, %v3999
        %v4031 = vadd.f32 %v4030, %v4000
        %v4032 = vadd.f32 %v4031, %v4001
        %v4033 = vadd.f32 %v4032, %v4002
        %v4034 = vadd.f32 %v4033, %v4003
        %v4035 = vadd.f32 %v4034, %v4004
        %v4036 = vadd.f32 %v4035, %v4005
        %v4037 = vadd.f32 %v4036, %v4006
        %v4038 = vadd.f32 %v4037, %v4007
        %v4039 = vadd.f32 %v4038, %v4008
        %v4040 = vadd.f32 %v4039, %v4009
        %v4041 = vadd.f32 %v4040, %v4010
        %v4042 = vadd.f32 %v4041, %v4011
        %v4043 = vadd.f32 %v4042, %v4012
        %v4044 = vadd.f32 %v4043, %v4013
        %v4045 = vadd.f32 %v4044, %v4014
        %v4046 = vadd.f32 %v4045, %v4015
        %v4047 = vadd.f32 %v4046, %v4016
        %v4048 = vadd.f32 %v4047, %v4017
        %v4049 = vadd.f32 %v4048, %v4018
        %v4050 = vadd.f32 %v4049, %v4019
        %v4051 = vadd.f32 %v4050, %v4020
        %v4052 = vadd.f32 %v4051, %v4021
        %v4053 = vadd.f32 %v4052, %v4022
        %v4054 = vadd.f32 %v4053, %v4023
        %v4055 = vadd.f32 %v4054, %v4024
        %v4056 = vadd.f32 %v4055, %v4025
        %v4057 = vadd.f32 %v4056, %v4026
        %v4058 = vrot.slane %v4057, 4
        %v4059 = vadd.f32 %v4057, %v4058
        %v4060 = vrot.slane %v4059, 2
        %v4061 = vadd.f32 %v4059, %v4060
        %v4062 = vrot.slane %v4061, 1
        %v4063 = vadd.f32 %v4061, %v4062
        %p4064 = scmp.eq.s32.totalorder %s20, 0
        // Predicated region
        $region41: #{hourglass2d_pallas.7} parent=39 // pred_check
          %p4065 = pneg %p4064
        $region42: #{hourglass2d_pallas.7} parent=39 // pred_check_branch
          %4067 = sbr.rel (%p4065) target = $region44
        $region43: #{hourglass2d_pallas.7} parent=39 // pred_region
          %4068 = vst [vmem:[#allocation4] sm:$0x1] %v3962
          %4069 = vst [vmem:[#allocation5] sm:$0x1] %v4063
        $region44: #{hourglass2d_pallas.7} parent=39 // pred_fallthru
          _
        %p4070 = scmp.gt.s32.totalorder %s20, 0
        // Predicated region
        $region45: #{hourglass2d_pallas.7} parent=39 // pred_check
          %p4071 = pneg %p4070
        $region46: #{hourglass2d_pallas.7} parent=39 // pred_check_branch
          %4073 = sbr.rel (%p4071) target = $region48
        $region47: #{hourglass2d_pallas.7} parent=39 // pred_region
          %s4074 = smul.u32 %s20, 256
          %s4075 = scvt.s32.f32 %s4074
          %s4076 = sadd.f32 %s4075, 256.0
          %v4077 = vld [vmem:[#allocation4] sm:$0x1]
          %v4078 = vsub.f32 %v3962, %v4077
          %v4079 = vstv %s4076
          %v4080 = vrcp.pop %v4079
          %s4081 = vtos %v4080
          %s4082 = smul.f32 256.0, %s4081
          %v4083 = vstv %s4082
          %v4084 = vmul.f32 %v4078, %v4083
          %v4085 = vadd.f32 %v4077, %v4084
          %4086 = vst [vmem:[#allocation4] sm:$0x1] %v4085
          %v4087 = vld [vmem:[#allocation5] sm:$0x1]
          %v4088 = vadd.f32 %v4087, %v4063
          %v4089 = vmul.f32 %v4078, %v4078
          %s4090 = smul.f32 %s4075, 256.0
          %v4091 = vstv %s4076
          %v4092 = vrcp.pop %v4091
          %s4093 = vtos %v4092
          %s4094 = smul.f32 %s4090, %s4093
          %v4095 = vstv %s4094
          %v4096 = vmul.f32 %v4089, %v4095
          %v4097 = vadd.f32 %v4088, %v4096
          %4098 = vst [vmem:[#allocation5] sm:$0x1] %v4097
        $region48: #{hourglass2d_pallas.7} parent=39 // pred_fallthru
          _
      $region40: #{hourglass2d_pallas.7} parent=35 // pred_fallthru
        _
      %p4099 = scmp.eq.s32.totalorder %s19, 1
      // Predicated region
      $region49: #{hourglass2d_pallas.7} parent=35 // pred_check
        %p4100 = pneg %p4099
      $region50: #{hourglass2d_pallas.7} parent=35 // pred_check_branch
        %4102 = sbr.rel (%p4100) target = $region52
      $region51: #{hourglass2d_pallas.7} parent=35 // pred_region
        %v4103 = vld [vmem:[#allocation5] sm:$0x1]
        %v4104 = vmul.f32 %v4103, 0.001953125
        %v4105 = vadd.f32 %v4104, 1e-05
        %v4106 = vrsqrt.pop %v4105
        %v4107 = vld [vmem:[%s2] sm:$0x1]
        %v4108 = vmul.f32 %v4106, %v4107
        %v4109 = vld [vmem:[%s3] sm:$0x1]
        %v4110 = vld [vmem:[#allocation4] sm:$0x1]
        %v4111 = vmul.f32 %v4110, %v4108
        %v4112 = vsub.f32 %v4109, %v4111
        %v4113 = vld [vmem:[#allocation3] sm:$0xff]
        %v4114 = vld [vmem:[#allocation3 + $0x8] sm:$0xff]
        %v4115 = vld [vmem:[#allocation3 + $0x10] sm:$0xff]
        %v4116 = vld [vmem:[#allocation3 + $0x18] sm:$0xff]
        %v4117 = vld [vmem:[#allocation3 + $0x20] sm:$0xff]
        %v4118 = vld [vmem:[#allocation3 + $0x28] sm:$0xff]
        %v4119 = vld [vmem:[#allocation3 + $0x30] sm:$0xff]
        %v4120 = vld [vmem:[#allocation3 + $0x38] sm:$0xff]
        %v4121 = vld [vmem:[#allocation3 + $0x40] sm:$0xff]
        %v4122 = vld [vmem:[#allocation3 + $0x48] sm:$0xff]
        %v4123 = vld [vmem:[#allocation3 + $0x50] sm:$0xff]
        %v4124 = vld [vmem:[#allocation3 + $0x58] sm:$0xff]
        %v4125 = vld [vmem:[#allocation3 + $0x60] sm:$0xff]
        %v4126 = vld [vmem:[#allocation3 + $0x68] sm:$0xff]
        %v4127 = vld [vmem:[#allocation3 + $0x70] sm:$0xff]
        %v4128 = vld [vmem:[#allocation3 + $0x78] sm:$0xff]
        %v4129 = vld [vmem:[#allocation3 + $0x80] sm:$0xff]
        %v4130 = vld [vmem:[#allocation3 + $0x88] sm:$0xff]
        %v4131 = vld [vmem:[#allocation3 + $0x90] sm:$0xff]
        %v4132 = vld [vmem:[#allocation3 + $0x98] sm:$0xff]
        %v4133 = vld [vmem:[#allocation3 + $0xa0] sm:$0xff]
        %v4134 = vld [vmem:[#allocation3 + $0xa8] sm:$0xff]
        %v4135 = vld [vmem:[#allocation3 + $0xb0] sm:$0xff]
        %v4136 = vld [vmem:[#allocation3 + $0xb8] sm:$0xff]
        %v4137 = vld [vmem:[#allocation3 + $0xc0] sm:$0xff]
        %v4138 = vld [vmem:[#allocation3 + $0xc8] sm:$0xff]
        %v4139 = vld [vmem:[#allocation3 + $0xd0] sm:$0xff]
        %v4140 = vld [vmem:[#allocation3 + $0xd8] sm:$0xff]
        %v4141 = vld [vmem:[#allocation3 + $0xe0] sm:$0xff]
        %v4142 = vld [vmem:[#allocation3 + $0xe8] sm:$0xff]
        %v4143 = vld [vmem:[#allocation3 + $0xf0] sm:$0xff]
        %v4144 = vld [vmem:[#allocation3 + $0xf8] sm:$0xff]
        %v4146 = vlaneseq
        %v4147 = vshrl.u32 %v4146, 7
        %v4148 = vsub.s32 0, %v4147
        %v4149 = vrot.slane %v4108, %v4148
        %v4151 = vmul.f32 %v4113, %v4149
        %v4152 = vmul.f32 %v4114, %v4149
        %v4153 = vmul.f32 %v4115, %v4149
        %v4154 = vmul.f32 %v4116, %v4149
        %v4155 = vmul.f32 %v4117, %v4149
        %v4156 = vmul.f32 %v4118, %v4149
        %v4157 = vmul.f32 %v4119, %v4149
        %v4158 = vmul.f32 %v4120, %v4149
        %v4159 = vmul.f32 %v4121, %v4149
        %v4160 = vmul.f32 %v4122, %v4149
        %v4161 = vmul.f32 %v4123, %v4149
        %v4162 = vmul.f32 %v4124, %v4149
        %v4163 = vmul.f32 %v4125, %v4149
        %v4164 = vmul.f32 %v4126, %v4149
        %v4165 = vmul.f32 %v4127, %v4149
        %v4166 = vmul.f32 %v4128, %v4149
        %v4167 = vmul.f32 %v4129, %v4149
        %v4168 = vmul.f32 %v4130, %v4149
        %v4169 = vmul.f32 %v4131, %v4149
        %v4170 = vmul.f32 %v4132, %v4149
        %v4171 = vmul.f32 %v4133, %v4149
        %v4172 = vmul.f32 %v4134, %v4149
        %v4173 = vmul.f32 %v4135, %v4149
        %v4174 = vmul.f32 %v4136, %v4149
        %v4175 = vmul.f32 %v4137, %v4149
        %v4176 = vmul.f32 %v4138, %v4149
        %v4177 = vmul.f32 %v4139, %v4149
        %v4178 = vmul.f32 %v4140, %v4149
        %v4179 = vmul.f32 %v4141, %v4149
        %v4180 = vmul.f32 %v4142, %v4149
        %v4181 = vmul.f32 %v4143, %v4149
        %v4182 = vmul.f32 %v4144, %v4149
        %v4184 = vlaneseq
        %v4185 = vshrl.u32 %v4184, 7
        %v4186 = vsub.s32 0, %v4185
        %v4187 = vrot.slane %v4112, %v4186
        %v4189 = vadd.f32 %v4151, %v4187
        %v4190 = vadd.f32 %v4152, %v4187
        %v4191 = vadd.f32 %v4153, %v4187
        %v4192 = vadd.f32 %v4154, %v4187
        %v4193 = vadd.f32 %v4155, %v4187
        %v4194 = vadd.f32 %v4156, %v4187
        %v4195 = vadd.f32 %v4157, %v4187
        %v4196 = vadd.f32 %v4158, %v4187
        %v4197 = vadd.f32 %v4159, %v4187
        %v4198 = vadd.f32 %v4160, %v4187
        %v4199 = vadd.f32 %v4161, %v4187
        %v4200 = vadd.f32 %v4162, %v4187
        %v4201 = vadd.f32 %v4163, %v4187
        %v4202 = vadd.f32 %v4164, %v4187
        %v4203 = vadd.f32 %v4165, %v4187
        %v4204 = vadd.f32 %v4166, %v4187
        %v4205 = vadd.f32 %v4167, %v4187
        %v4206 = vadd.f32 %v4168, %v4187
        %v4207 = vadd.f32 %v4169, %v4187
        %v4208 = vadd.f32 %v4170, %v4187
        %v4209 = vadd.f32 %v4171, %v4187
        %v4210 = vadd.f32 %v4172, %v4187
        %v4211 = vadd.f32 %v4173, %v4187
        %v4212 = vadd.f32 %v4174, %v4187
        %v4213 = vadd.f32 %v4175, %v4187
        %v4214 = vadd.f32 %v4176, %v4187
        %v4215 = vadd.f32 %v4177, %v4187
        %v4216 = vadd.f32 %v4178, %v4187
        %v4217 = vadd.f32 %v4179, %v4187
        %v4218 = vadd.f32 %v4180, %v4187
        %v4219 = vadd.f32 %v4181, %v4187
        %v4220 = vadd.f32 %v4182, %v4187
        %v4221 = vmax.f32 %v4189, 0.0
        %v4222 = vmax.f32 %v4190, 0.0
        %v4223 = vmax.f32 %v4191, 0.0
        %v4224 = vmax.f32 %v4192, 0.0
        %v4225 = vmax.f32 %v4193, 0.0
        %v4226 = vmax.f32 %v4194, 0.0
        %v4227 = vmax.f32 %v4195, 0.0
        %v4228 = vmax.f32 %v4196, 0.0
        %v4229 = vmax.f32 %v4197, 0.0
        %v4230 = vmax.f32 %v4198, 0.0
        %v4231 = vmax.f32 %v4199, 0.0
        %v4232 = vmax.f32 %v4200, 0.0
        %v4233 = vmax.f32 %v4201, 0.0
        %v4234 = vmax.f32 %v4202, 0.0
        %v4235 = vmax.f32 %v4203, 0.0
        %v4236 = vmax.f32 %v4204, 0.0
        %v4237 = vmax.f32 %v4205, 0.0
        %v4238 = vmax.f32 %v4206, 0.0
        %v4239 = vmax.f32 %v4207, 0.0
        %v4240 = vmax.f32 %v4208, 0.0
        %v4241 = vmax.f32 %v4209, 0.0
        %v4242 = vmax.f32 %v4210, 0.0
        %v4243 = vmax.f32 %v4211, 0.0
        %v4244 = vmax.f32 %v4212, 0.0
        %v4245 = vmax.f32 %v4213, 0.0
        %v4246 = vmax.f32 %v4214, 0.0
        %v4247 = vmax.f32 %v4215, 0.0
        %v4248 = vmax.f32 %v4216, 0.0
        %v4249 = vmax.f32 %v4217, 0.0
        %v4250 = vmax.f32 %v4218, 0.0
        %v4251 = vmax.f32 %v4219, 0.0
        %v4252 = vmax.f32 %v4220, 0.0
        %v4253 = vpack.c.bf16 %v4222, %v4221
        %v4254 = vpack.c.bf16 %v4224, %v4223
        %v4255 = vpack.c.bf16 %v4226, %v4225
        %v4256 = vpack.c.bf16 %v4228, %v4227
        %v4257 = vpack.c.bf16 %v4230, %v4229
        %v4258 = vpack.c.bf16 %v4232, %v4231
        %v4259 = vpack.c.bf16 %v4234, %v4233
        %v4260 = vpack.c.bf16 %v4236, %v4235
        %v4261 = vpack.c.bf16 %v4238, %v4237
        %v4262 = vpack.c.bf16 %v4240, %v4239
        %v4263 = vpack.c.bf16 %v4242, %v4241
        %v4264 = vpack.c.bf16 %v4244, %v4243
        %v4265 = vpack.c.bf16 %v4246, %v4245
        %v4266 = vpack.c.bf16 %v4248, %v4247
        %v4267 = vpack.c.bf16 %v4250, %v4249
        %v4268 = vpack.c.bf16 %v4252, %v4251
        %v4285 = vunpack.c.l.b16 %v4253
        %v4286 = vunpack.c.h.b16 %v4253
        %v4287 = vunpack.c.l.b16 %v4254
        %v4288 = vunpack.c.h.b16 %v4254
        %v4289 = vunpack.c.l.b16 %v4255
        %v4290 = vunpack.c.h.b16 %v4255
        %v4291 = vunpack.c.l.b16 %v4256
        %v4292 = vunpack.c.h.b16 %v4256
        %v4293 = vunpack.c.l.b16 %v4257
        %v4294 = vunpack.c.h.b16 %v4257
        %v4295 = vunpack.c.l.b16 %v4258
        %v4296 = vunpack.c.h.b16 %v4258
        %v4297 = vunpack.c.l.b16 %v4259
        %v4298 = vunpack.c.h.b16 %v4259
        %v4299 = vunpack.c.l.b16 %v4260
        %v4300 = vunpack.c.h.b16 %v4260
        %v4301 = vunpack.c.l.b16 %v4261
        %v4302 = vunpack.c.h.b16 %v4261
        %v4303 = vunpack.c.l.b16 %v4262
        %v4304 = vunpack.c.h.b16 %v4262
        %v4305 = vunpack.c.l.b16 %v4263
        %v4306 = vunpack.c.h.b16 %v4263
        %v4307 = vunpack.c.l.b16 %v4264
        %v4308 = vunpack.c.h.b16 %v4264
        %v4309 = vunpack.c.l.b16 %v4265
        %v4310 = vunpack.c.h.b16 %v4265
        %v4311 = vunpack.c.l.b16 %v4266
        %v4312 = vunpack.c.h.b16 %v4266
        %v4313 = vunpack.c.l.b16 %v4267
        %v4314 = vunpack.c.h.b16 %v4267
        %v4315 = vunpack.c.l.b16 %v4268
        %v4316 = vunpack.c.h.b16 %v4268
        %v4317 = vpack.c.b16 %v4285, %v4285
        %v4318 = vpack.c.b16 %v4286, %v4286
        %v4319 = vpack.c.b16 %v4287, %v4287
        %v4320 = vpack.c.b16 %v4288, %v4288
        %v4321 = vpack.c.b16 %v4289, %v4289
        %v4322 = vpack.c.b16 %v4290, %v4290
        %v4323 = vpack.c.b16 %v4291, %v4291
        %v4324 = vpack.c.b16 %v4292, %v4292
        %v4325 = vpack.c.b16 %v4293, %v4293
        %v4326 = vpack.c.b16 %v4294, %v4294
        %v4327 = vpack.c.b16 %v4295, %v4295
        %v4328 = vpack.c.b16 %v4296, %v4296
        %v4329 = vpack.c.b16 %v4297, %v4297
        %v4330 = vpack.c.b16 %v4298, %v4298
        %v4331 = vpack.c.b16 %v4299, %v4299
        %v4332 = vpack.c.b16 %v4300, %v4300
        %v4333 = vpack.c.b16 %v4301, %v4301
        %v4334 = vpack.c.b16 %v4302, %v4302
        %v4335 = vpack.c.b16 %v4303, %v4303
        %v4336 = vpack.c.b16 %v4304, %v4304
        %v4337 = vpack.c.b16 %v4305, %v4305
        %v4338 = vpack.c.b16 %v4306, %v4306
        %v4339 = vpack.c.b16 %v4307, %v4307
        %v4340 = vpack.c.b16 %v4308, %v4308
        %v4341 = vpack.c.b16 %v4309, %v4309
        %v4342 = vpack.c.b16 %v4310, %v4310
        %v4343 = vpack.c.b16 %v4311, %v4311
        %v4344 = vpack.c.b16 %v4312, %v4312
        %v4345 = vpack.c.b16 %v4313, %v4313
        %v4346 = vpack.c.b16 %v4314, %v4314
        %v4347 = vpack.c.b16 %v4315, %v4315
        %v4348 = vpack.c.b16 %v4316, %v4316
        %4381 = vst [vmem:[%s213] sm:$0xf] %v4317
        %4382 = vst [vmem:[%s213 + $0x4] sm:$0xf] %v4318
        %4383 = vst [vmem:[%s213 + $0x8] sm:$0xf] %v4319
        %4384 = vst [vmem:[%s213 + $0xc] sm:$0xf] %v4320
        %4385 = vst [vmem:[%s213 + $0x10] sm:$0xf] %v4321
        %4386 = vst [vmem:[%s213 + $0x14] sm:$0xf] %v4322
        %4387 = vst [vmem:[%s213 + $0x18] sm:$0xf] %v4323
        %4388 = vst [vmem:[%s213 + $0x1c] sm:$0xf] %v4324
        %4389 = vst [vmem:[%s213 + $0x20] sm:$0xf] %v4325
        %4390 = vst [vmem:[%s213 + $0x24] sm:$0xf] %v4326
        %4391 = vst [vmem:[%s213 + $0x28] sm:$0xf] %v4327
        %4392 = vst [vmem:[%s213 + $0x2c] sm:$0xf] %v4328
        %4393 = vst [vmem:[%s213 + $0x30] sm:$0xf] %v4329
        %4394 = vst [vmem:[%s213 + $0x34] sm:$0xf] %v4330
        %4395 = vst [vmem:[%s213 + $0x38] sm:$0xf] %v4331
        %4396 = vst [vmem:[%s213 + $0x3c] sm:$0xf] %v4332
        %4397 = vst [vmem:[%s213 + $0x40] sm:$0xf] %v4333
        %4398 = vst [vmem:[%s213 + $0x44] sm:$0xf] %v4334
        %4399 = vst [vmem:[%s213 + $0x48] sm:$0xf] %v4335
        %4400 = vst [vmem:[%s213 + $0x4c] sm:$0xf] %v4336
        %4401 = vst [vmem:[%s213 + $0x50] sm:$0xf] %v4337
        %4402 = vst [vmem:[%s213 + $0x54] sm:$0xf] %v4338
        %4403 = vst [vmem:[%s213 + $0x58] sm:$0xf] %v4339
        %4404 = vst [vmem:[%s213 + $0x5c] sm:$0xf] %v4340
        %4405 = vst [vmem:[%s213 + $0x60] sm:$0xf] %v4341
        %4406 = vst [vmem:[%s213 + $0x64] sm:$0xf] %v4342
        %4407 = vst [vmem:[%s213 + $0x68] sm:$0xf] %v4343
        %4408 = vst [vmem:[%s213 + $0x6c] sm:$0xf] %v4344
        %4409 = vst [vmem:[%s213 + $0x70] sm:$0xf] %v4345
        %4410 = vst [vmem:[%s213 + $0x74] sm:$0xf] %v4346
        %4411 = vst [vmem:[%s213 + $0x78] sm:$0xf] %v4347
        %4412 = vst [vmem:[%s213 + $0x7c] sm:$0xf] %v4348
      $region52: #{hourglass2d_pallas.7} parent=35 // pred_fallthru
        _
      %s4413 = smul.u32 %s20, %s19
      %s4414 = smul.u32 32, %s4413
      %p4415 = scmp.lt.s32.totalorder %s4414, 63
      %s4416 = scalar_select %p4415, %s4414, 63
      %s4417 = smul.addr %s4416, 4
      %s4418 = scalar_lea.vmem %s4, %s4417
      // Predicated region
      $region53: #{hourglass2d_pallas.7} parent=35 // pred_check
        %p4419 = pneg %p136
      $region54: #{hourglass2d_pallas.7} parent=35 // pred_check_branch
        %4421 = sbr.rel (%p4419) target = $region56
      $region55: #{hourglass2d_pallas.7} parent=35 // pred_region
        %s4422 = smul.u32 %s20, %s19
        %s4423 = smul.u32 32, %s4422
      $region56: #{hourglass2d_pallas.7} parent=35 // pred_fallthru
        _
    $region36: #{hourglass2d_pallas.7} parent=5 // pred_fallthru
      _
    %p4424 = scmp.le.s32.totalorder 2, %s10
    // Predicated region
    $region57: #{hourglass2d_pallas.7} parent=5 // pred_check
      %p4425 = pneg %p4424
    $region58: #{hourglass2d_pallas.7} parent=5 // pred_check_branch
      %4427 = sbr.rel (%p4425) target = $region60
    $region59: #{hourglass2d_pallas.7} parent=5 // pred_region
      %s4428 = ssub.s32 %s10, 2
      // Predicated region
      $region61: #{hourglass2d_pallas.7} parent=59 // pred_check
        %p4429 = pneg %p142
      $region62: #{hourglass2d_pallas.7} parent=59 // pred_check_branch
        %4431 = sbr.rel (%p4429) target = $region64
      $region63: #{hourglass2d_pallas.7} parent=59 // pred_region
        %s4432 = smul.u32 %s22, %s21
        %s4433 = smul.u32 32, %s4432
        %p4434 = scmp.lt.s32.totalorder %s4433, 63
        %s4435 = scalar_select %p4434, %s4433, 63
        %s4436 = smul.addr %s4435, 4
        %s4437 = scalar_lea.vmem %s4, %s4436
      $region64: #{hourglass2d_pallas.7} parent=59 // pred_fallthru
        _
    $region60: #{hourglass2d_pallas.7} parent=5 // pred_fallthru
      _
  $region6: #{hourglass2d_pallas.7} parent=0 // loop_footer
    %s14 = sadd.s32 1, %s10
  $region7: #{hourglass2d_pallas.7} parent=0 // loop_footer_branch
    %9 = sbr.rel target = $region3
  $region8: #{hourglass2d_pallas.7} parent=0 // loop_exit
    _

</llo_original>
